<compile_context>
chip_gen: v7x
topology: tpu7x:2x2x1
jax: 0.10.0
libtpu: 0.0.40
codegen_flags: <defaults>
</compile_context>

<pallas_src>
import jax
import jax.numpy as jnp
from jax import lax
from jax.experimental import pallas as pl
from jax.experimental.pallas import tpu as pltpu
import numpy as np

# ---------------------------------------------------------------------------
# synthetic feature config (deterministic, stands in for `config`/`embed_features`)
# ---------------------------------------------------------------------------
SPARSE_FEATS = [("user_id", 7), ("item_id", 11), ("cate", 5)]          # (name, vocab)
VARLEN_FEATS = [("seq_a", 9, 4), ("seq_b", 6, 4)]                      # (name, vocab, maxlen)
INIT_STD = 0.01
VOCAB_PAD = 128   # per-column vocab slab = one full lane width
FEAT_PAD = 128    # padded output feature lanes (lane-dense stores, full MXU N tile)


# ---------------------------------------------------------------------------
# Pallas kernel: fused one-hot gather + pooling + concat as a single MXU matmul
# ---------------------------------------------------------------------------
def linear_kernel(idx_ref, w_ref, out_ref):
    """out[b, f] = sum_t W[t*Vp + idx[b, t], f]   (gather+mask+pool+concat fused)."""
    idx = idx_ref[...]                       # (BM, Tp) int32 per-column indices
    w = w_ref[...]                           # (Tp*Vp, Fp) f32 fused gather/pool matrix
    BM, Tp = idx.shape
    K, Fp = w.shape
    Vp = K // Tp

    iota_v = lax.broadcasted_iota(jnp.int32, (BM, Vp), 1)
    # Per-column one-hot slabs (each exactly one 128-lane tile), concatenated
    # along the lane dim -> (BM, Tp*Vp).  Lane-aligned concat, no reshape of
    # tiled dims, so the whole reduction lands on the MXU.
    onehot = jnp.concatenate(
        [(idx[:, t:t + 1] == iota_v).astype(jnp.float32) for t in range(Tp)],
        axis=-1)
    out_ref[...] = jnp.dot(onehot, w,
                           precision=jax.lax.Precision.HIGHEST,
                           preferred_element_type=jnp.float32)


def linear_forward(idx, w, n_features, *, block_b=None):
    """idx: (B, Tp) int32 padded index columns; w: (Tp*Vp, Fp) fused weights."""
    B, Tp = idx.shape
    K, Fp = w.shape
    if block_b is None:
        # v7x-safe default (32 MiB scoped VMEM); raise toward 1024+ on v5e/v6e.
        block_b = min(B, 256)
    grid = (pl.cdiv(B, block_b),)
    cost = pl.CostEstimate(
        flops=2 * B * K * Fp,
        transcendentals=0,
        bytes_accessed=idx.size * 4 + B * Fp * 4 + K * Fp * 4,
    )
    out = pl.pallas_call(
        linear_kernel,
        out_shape=jax.ShapeDtypeStruct((B, Fp), jnp.float32),
        grid=grid,
        in_specs=[
            pl.BlockSpec((block_b, Tp), lambda i: (i, 0)),   # batch-tiled indices
            pl.BlockSpec((K, Fp), lambda i: (0, 0)),         # VMEM-resident fused W
        ],
        out_specs=pl.BlockSpec((block_b, Fp), lambda i: (i, 0)),  # lane-dense output
        compiler_params=pltpu.CompilerParams(
            dimension_semantics=("parallel",)),
        cost_estimate=cost,
    )(idx, w)
    return out[:, :n_features]


# ---------------------------------------------------------------------------
# parameter / metadata construction (plain JAX / numpy glue)
# ---------------------------------------------------------------------------
def build_params(key):
    """Dim-1 linear embedding tables (create_embedding_matrix(..., 1, init_std))."""
    tables = {}
    keys = jax.random.split(key, len(SPARSE_FEATS) + len(VARLEN_FEATS))
    i = 0
    for name, vocab in SPARSE_FEATS:
        tables[name] = INIT_STD * jax.random.normal(keys[i], (vocab,), jnp.float32)
        i += 1
    for name, vocab, _ in VARLEN_FEATS:
        tables[name] = INIT_STD * jax.random.normal(keys[i], (vocab,), jnp.float32)
        i += 1
    return tables


def build_fused_weight(tables):
    """Fused W[t*Vp + v, f] = seg[t, f] * table_col_t[v]; mask & padding baked in."""
    # column layout matching X: [sparse cols ..., varlen cols (maxlen each) ...]
    col_names, col_feat, col_is_varlen = [], [], []
    f = 0
    for name, _ in SPARSE_FEATS:
        col_names.append(name); col_feat.append(f); col_is_varlen.append(False); f += 1
    for name, _, maxlen in VARLEN_FEATS:
        for _ in range(maxlen):
            col_names.append(name); col_feat.append(f); col_is_varlen.append(True)
        f += 1
    T, F_ = len(col_names), f
    Tp = int(np.ceil(T / 8) * 8)                         # pad columns to sublane multiple
    Fp = max(FEAT_PAD, int(np.ceil(F_ / 128) * 128))     # pad features to lane multiple

    W = np.zeros((Tp * VOCAB_PAD, Fp), np.float32)
    for t in range(T):
        tab = np.asarray(tables[col_names[t]], np.float32).copy()
        vocab = tab.shape[0]
        assert vocab <= VOCAB_PAD, (
            f"vocab of feature {col_names[t]} ({vocab}) exceeds VOCAB_PAD={VOCAB_PAD}")
        if col_is_varlen[t]:
            tab[0] = 0.0          # padding index 0 never contributes (mask baked in)
        W[t * VOCAB_PAD:t * VOCAB_PAD + vocab, col_feat[t]] = tab
    # padded columns (t >= T) and padded feature lanes (f >= F_) stay all-zero.
    # TODO(synk): combiner fixed to 'sum'; a 'mean' combiner would additionally
    #             divide each varlen slot by the per-row count of valid indices.
    return jnp.asarray(W), T, Tp, F_


def prepare_indices(x, Tp):
    """Mimic X[...].long() and pad the column axis to Tp (kept in plain XLA)."""
    idx = x.astype(jnp.int32)
    B, T = idx.shape
    return jnp.pad(idx, ((0, 0), (0, Tp - T)))


def reference_forward(x, tables):
    """Pure-JAX reference mirroring the PyTorch forward (sum combiner, pad-0 mask)."""
    outs = []
    col = 0
    for name, _ in SPARSE_FEATS:
        idx = x[:, col].astype(jnp.int32)
        outs.append(tables[name][idx])                     # (B,), embedding dim 1
        col += 1
    for name, _, maxlen in VARLEN_FEATS:
        idx = x[:, col:col + maxlen].astype(jnp.int32)     # (B, maxlen)
        emb = tables[name][idx]                            # (B, maxlen)
        mask = (idx != 0).astype(jnp.float32)
        outs.append(jnp.sum(emb * mask, axis=1))           # (B,)
        col += maxlen
    return jnp.stack(outs, axis=1)                         # (B, F)


# ---------------------------------------------------------------------------
if __name__ == "__main__":
    key = jax.random.PRNGKey(0)
    k_param, k_data = jax.random.split(key)

    tables = build_params(k_param)
    W, T, Tp, F_ = build_fused_weight(tables)

    # deterministic float-index input X (B, T), like the PyTorch model's X
    B = 32
    cols = []
    dkeys = jax.random.split(k_data, len(SPARSE_FEATS) + len(VARLEN_FEATS))
    i = 0
    for _, vocab in SPARSE_FEATS:
        cols.append(jax.random.randint(dkeys[i], (B, 1), 0, vocab)); i += 1
    for _, vocab, maxlen in VARLEN_FEATS:
        cols.append(jax.random.randint(dkeys[i], (B, maxlen), 0, vocab)); i += 1
    X = jnp.concatenate(cols, axis=1).astype(jnp.float32)   # (32, 11)

    idx = prepare_indices(X, Tp)                             # (32, 16) int32
    out = linear_forward(idx, W, F_, block_b=16)             # grid=(2,), (32, 5)
    out = jax.block_until_ready(out)

    ref = reference_forward(X, tables)
    np.testing.assert_allclose(np.asarray(out), np.asarray(ref),
                               rtol=1e-4, atol=1e-6)

    print("KERNEL_OK")
</pallas_src>

<mosaic_0001>
module attributes {stable_mosaic.version = 11 : i64} {
  func.func @linear_kernel(%arg0: i32, %arg1: memref<16x16xi32, #tpu.memory_space<vmem>>, %arg2: memref<2048x128xf32, #tpu.memory_space<vmem>>, %arg3: memref<16x128xf32, #tpu.memory_space<vmem>>) attributes {dimension_semantics = [#tpu.dimension_semantics<parallel>], iteration_bounds = array<i64: 2>, scalar_prefetch = 0 : i64, scratch_operands = 0 : i64, tpu.core_type = #tpu.core_type<tc>, window_params = [{transform_indices = @transform_0, window_bounds = array<i64: 16, 16>}, {pipeline_mode = #tpu.pipeline_mode<synchronous>, transform_indices = @transform_1, window_bounds = array<i64: 2048, 128>}, {transform_indices = @transform_2, window_bounds = array<i64: 16, 128>}]} {
    %c0 = arith.constant 0 : index
    %c0_0 = arith.constant 0 : index
    %0 = vector.load %arg1[%c0, %c0_0] : memref<16x16xi32, #tpu.memory_space<vmem>>, vector<16x16xi32>
    %c0_1 = arith.constant 0 : index
    %c0_2 = arith.constant 0 : index
    %1 = vector.load %arg2[%c0_1, %c0_2] : memref<2048x128xf32, #tpu.memory_space<vmem>>, vector<2048x128xf32>
    %2 = tpu.iota {dimensions = array<i32: 1>} : vector<16x128xi32>
    %3 = vector.extract_strided_slice %0 {offsets = [0, 0], sizes = [16, 1], strides = [1, 1]} : vector<16x16xi32> to vector<16x1xi32>
    %4 = vector.broadcast %3 : vector<16x1xi32> to vector<16x128xi32>
    %5 = arith.cmpi eq, %4, %2 : vector<16x128xi32>
    %6 = arith.extui %5 : vector<16x128xi1> to vector<16x128xi32>
    %7 = arith.sitofp %6 : vector<16x128xi32> to vector<16x128xf32>
    %8 = vector.extract_strided_slice %0 {offsets = [0, 1], sizes = [16, 1], strides = [1, 1]} : vector<16x16xi32> to vector<16x1xi32>
    %9 = vector.broadcast %8 : vector<16x1xi32> to vector<16x128xi32>
    %10 = arith.cmpi eq, %9, %2 : vector<16x128xi32>
    %11 = arith.extui %10 : vector<16x128xi1> to vector<16x128xi32>
    %12 = arith.sitofp %11 : vector<16x128xi32> to vector<16x128xf32>
    %13 = vector.extract_strided_slice %0 {offsets = [0, 2], sizes = [16, 1], strides = [1, 1]} : vector<16x16xi32> to vector<16x1xi32>
    %14 = vector.broadcast %13 : vector<16x1xi32> to vector<16x128xi32>
    %15 = arith.cmpi eq, %14, %2 : vector<16x128xi32>
    %16 = arith.extui %15 : vector<16x128xi1> to vector<16x128xi32>
    %17 = arith.sitofp %16 : vector<16x128xi32> to vector<16x128xf32>
    %18 = vector.extract_strided_slice %0 {offsets = [0, 3], sizes = [16, 1], strides = [1, 1]} : vector<16x16xi32> to vector<16x1xi32>
    %19 = vector.broadcast %18 : vector<16x1xi32> to vector<16x128xi32>
    %20 = arith.cmpi eq, %19, %2 : vector<16x128xi32>
    %21 = arith.extui %20 : vector<16x128xi1> to vector<16x128xi32>
    %22 = arith.sitofp %21 : vector<16x128xi32> to vector<16x128xf32>
    %23 = vector.extract_strided_slice %0 {offsets = [0, 4], sizes = [16, 1], strides = [1, 1]} : vector<16x16xi32> to vector<16x1xi32>
    %24 = vector.broadcast %23 : vector<16x1xi32> to vector<16x128xi32>
    %25 = arith.cmpi eq, %24, %2 : vector<16x128xi32>
    %26 = arith.extui %25 : vector<16x128xi1> to vector<16x128xi32>
    %27 = arith.sitofp %26 : vector<16x128xi32> to vector<16x128xf32>
    %28 = vector.extract_strided_slice %0 {offsets = [0, 5], sizes = [16, 1], strides = [1, 1]} : vector<16x16xi32> to vector<16x1xi32>
    %29 = vector.broadcast %28 : vector<16x1xi32> to vector<16x128xi32>
    %30 = arith.cmpi eq, %29, %2 : vector<16x128xi32>
    %31 = arith.extui %30 : vector<16x128xi1> to vector<16x128xi32>
    %32 = arith.sitofp %31 : vector<16x128xi32> to vector<16x128xf32>
    %33 = vector.extract_strided_slice %0 {offsets = [0, 6], sizes = [16, 1], strides = [1, 1]} : vector<16x16xi32> to vector<16x1xi32>
    %34 = vector.broadcast %33 : vector<16x1xi32> to vector<16x128xi32>
    %35 = arith.cmpi eq, %34, %2 : vector<16x128xi32>
    %36 = arith.extui %35 : vector<16x128xi1> to vector<16x128xi32>
    %37 = arith.sitofp %36 : vector<16x128xi32> to vector<16x128xf32>
    %38 = vector.extract_strided_slice %0 {offsets = [0, 7], sizes = [16, 1], strides = [1, 1]} : vector<16x16xi32> to vector<16x1xi32>
    %39 = vector.broadcast %38 : vector<16x1xi32> to vector<16x128xi32>
    %40 = arith.cmpi eq, %39, %2 : vector<16x128xi32>
    %41 = arith.extui %40 : vector<16x128xi1> to vector<16x128xi32>
    %42 = arith.sitofp %41 : vector<16x128xi32> to vector<16x128xf32>
    %43 = vector.extract_strided_slice %0 {offsets = [0, 8], sizes = [16, 1], strides = [1, 1]} : vector<16x16xi32> to vector<16x1xi32>
    %44 = vector.broadcast %43 : vector<16x1xi32> to vector<16x128xi32>
    %45 = arith.cmpi eq, %44, %2 : vector<16x128xi32>
    %46 = arith.extui %45 : vector<16x128xi1> to vector<16x128xi32>
    %47 = arith.sitofp %46 : vector<16x128xi32> to vector<16x128xf32>
    %48 = vector.extract_strided_slice %0 {offsets = [0, 9], sizes = [16, 1], strides = [1, 1]} : vector<16x16xi32> to vector<16x1xi32>
    %49 = vector.broadcast %48 : vector<16x1xi32> to vector<16x128xi32>
    %50 = arith.cmpi eq, %49, %2 : vector<16x128xi32>
    %51 = arith.extui %50 : vector<16x128xi1> to vector<16x128xi32>
    %52 = arith.sitofp %51 : vector<16x128xi32> to vector<16x128xf32>
    %53 = vector.extract_strided_slice %0 {offsets = [0, 10], sizes = [16, 1], strides = [1, 1]} : vector<16x16xi32> to vector<16x1xi32>
    %54 = vector.broadcast %53 : vector<16x1xi32> to vector<16x128xi32>
    %55 = arith.cmpi eq, %54, %2 : vector<16x128xi32>
    %56 = arith.extui %55 : vector<16x128xi1> to vector<16x128xi32>
    %57 = arith.sitofp %56 : vector<16x128xi32> to vector<16x128xf32>
    %58 = vector.extract_strided_slice %0 {offsets = [0, 11], sizes = [16, 1], strides = [1, 1]} : vector<16x16xi32> to vector<16x1xi32>
    %59 = vector.broadcast %58 : vector<16x1xi32> to vector<16x128xi32>
    %60 = arith.cmpi eq, %59, %2 : vector<16x128xi32>
    %61 = arith.extui %60 : vector<16x128xi1> to vector<16x128xi32>
    %62 = arith.sitofp %61 : vector<16x128xi32> to vector<16x128xf32>
    %63 = vector.extract_strided_slice %0 {offsets = [0, 12], sizes = [16, 1], strides = [1, 1]} : vector<16x16xi32> to vector<16x1xi32>
    %64 = vector.broadcast %63 : vector<16x1xi32> to vector<16x128xi32>
    %65 = arith.cmpi eq, %64, %2 : vector<16x128xi32>
    %66 = arith.extui %65 : vector<16x128xi1> to vector<16x128xi32>
    %67 = arith.sitofp %66 : vector<16x128xi32> to vector<16x128xf32>
    %68 = vector.extract_strided_slice %0 {offsets = [0, 13], sizes = [16, 1], strides = [1, 1]} : vector<16x16xi32> to vector<16x1xi32>
    %69 = vector.broadcast %68 : vector<16x1xi32> to vector<16x128xi32>
    %70 = arith.cmpi eq, %69, %2 : vector<16x128xi32>
    %71 = arith.extui %70 : vector<16x128xi1> to vector<16x128xi32>
    %72 = arith.sitofp %71 : vector<16x128xi32> to vector<16x128xf32>
    %73 = vector.extract_strided_slice %0 {offsets = [0, 14], sizes = [16, 1], strides = [1, 1]} : vector<16x16xi32> to vector<16x1xi32>
    %74 = vector.broadcast %73 : vector<16x1xi32> to vector<16x128xi32>
    %75 = arith.cmpi eq, %74, %2 : vector<16x128xi32>
    %76 = arith.extui %75 : vector<16x128xi1> to vector<16x128xi32>
    %77 = arith.sitofp %76 : vector<16x128xi32> to vector<16x128xf32>
    %78 = vector.extract_strided_slice %0 {offsets = [0, 15], sizes = [16, 1], strides = [1, 1]} : vector<16x16xi32> to vector<16x1xi32>
    %79 = vector.broadcast %78 : vector<16x1xi32> to vector<16x128xi32>
    %80 = arith.cmpi eq, %79, %2 : vector<16x128xi32>
    %81 = arith.extui %80 : vector<16x128xi1> to vector<16x128xi32>
    %82 = arith.sitofp %81 : vector<16x128xi32> to vector<16x128xf32>
    %83 = tpu.concatenate %7, %12, %17, %22, %27, %32, %37, %42, %47, %52, %57, %62, %67, %72, %77, %82 in 1 : vector<16x128xf32>, vector<16x128xf32>, vector<16x128xf32>, vector<16x128xf32>, vector<16x128xf32>, vector<16x128xf32>, vector<16x128xf32>, vector<16x128xf32>, vector<16x128xf32>, vector<16x128xf32>, vector<16x128xf32>, vector<16x128xf32>, vector<16x128xf32>, vector<16x128xf32>, vector<16x128xf32>, vector<16x128xf32> -> vector<16x2048xf32>
    %cst = arith.constant dense<0.000000e+00> : vector<16x128xf32>
    %84 = tpu.matmul %83, %1, %cst {dimension_numbers = #tpu.dot_dimension_numbers<[1], [0], [0], [1], [0, 0, 1, 1], [], []>, precision = #tpu.contract_precision<fp32>} : vector<16x2048xf32>, vector<2048x128xf32>, vector<16x128xf32> -> vector<16x128xf32>
    %c0_3 = arith.constant 0 : index
    %c0_4 = arith.constant 0 : index
    %85 = vector.load %arg3[%c0_3, %c0_4] : memref<16x128xf32, #tpu.memory_space<vmem>>, vector<16x128xf32>
    tpu.vector_store %arg3[%c0_3, %c0_4], %84 {strides = array<i32>} : memref<16x128xf32, #tpu.memory_space<vmem>>, vector<16x128xf32>,
    return
  }
  func.func @transform_0(%arg0: i32) -> (i32, i32) {
    %c0_i32 = arith.constant 0 : i32
    %c0_i32_0 = arith.constant 0 : i32
    return %arg0, %c0_i32 : i32, i32
  }
  func.func @transform_1(%arg0: i32) -> (i32, i32) {
    %c0_i32 = arith.constant 0 : i32
    %c0_i32_0 = arith.constant 0 : i32
    %c0_i32_1 = arith.constant 0 : i32
    return %c0_i32, %c0_i32_0 : i32, i32
  }
  func.func @transform_2(%arg0: i32) -> (i32, i32) {
    %c0_i32 = arith.constant 0 : i32
    %c0_i32_0 = arith.constant 0 : i32
    return %arg0, %c0_i32 : i32, i32
  }
}

</mosaic_0001>

<llo_original>
// kernel: tpu_custom_call.1
$region0: #{tpu_custom_call.1}
  #allocation0 [shape = 'u32[]', space=smem, size = 0x4, offset = 0x4, fixed_abs, tag = 'smem constant byte address 0x4 - core index']
  #allocation1 [shape = 'u32[144,128]{1,0:T(1,128)}', space=vmem, size = 0x12000, scoped, tag = 'internal scratch']
  %s0 = inlined_call_operand.vmem [shape: s32[32,16], index: 0, kind: input, shape index: {}]
  %s1 = inlined_call_operand.hbm [shape: f32[2048,128], index: 1, kind: input, shape index: {}]
  %s2 = inlined_call_operand.hbm [shape: f32[32,128], index: 2, kind: output, shape index: {}]
  %s3 = sld [smem:[#allocation0]]
  $region45: #{tpu_custom_call.1} parent=0
    _
  %s5 = ssub.s32 1, %s3
  %s6 = scalar_select 0, %s5, %s3
  $region1: #{tpu_custom_call.1} parent=0
    #allocation2 [shape = 'u8[1048576]{0}', space=vmem, size = 0x100000, scoped, tag = 'input window, operand 1, single buffered']
    #allocation3 [shape = 's32[2]{0}', space=sflag, size = 0x8, scoped, tag = 'scoped memory for tpu_custom_call.1']
    #allocation4 [shape = 's32[2]{0}', space=sflag, size = 0x8, scoped, tag = 'scoped memory for tpu_custom_call.1']
    #allocation5 [shape = 'u8[16384]{0}', space=vmem, size = 0x4000, scoped, tag = 'output window, operand 0']
    %7 = vsyncpa [#allocation3], 0
    %8 = vsyncpa [#allocation4], 0
    %s9 = scalar_lea.sflag [#allocation4], 1
    %10 = vsyncpa %s9, 0
    loop: start=0, step=1, limit=4
    $region2: #{tpu_custom_call.1} parent=1 // loop_pre_header
      _
    $region3: #{tpu_custom_call.1} parent=1 // loop_header
      %s12 = sphi 0, %s16
      %p13 = scmp.ge.s32.totalorder %s12, 4
      %s22 = sphi 0, %s24
      %s25 = sphi 0, %s22
      %s26 = sphi 0, %s25
      %s42 = sphi 0, %s26
      %s46 = sphi 0, %s46
      %s48 = sphi 0, %s46
      %s49 = sphi 0, %s48
      %s63 = sphi 0, %s49
      %s69 = sphi 0, %s71
      %s72 = sphi 0, %s69
      %s73 = sphi 0, %s72
      %s89 = sphi 0, %s73
    $region4: #{tpu_custom_call.1} parent=1 // loop_header_branch
      %15 = sbr.rel (%p13) target = $region8
    $region5: #{tpu_custom_call.1} parent=1 // loop_body
      %s17 = ssub.s32 %s12, 1
      %s18 = ssub.s32 %s12, 2
      %s19 = sadd.s32 %s12, 1
      %s20 = ssub.s32 %s12, %s19
      %p21 = scmp.eq.s32.totalorder %s20, 0
      %s23 = sadd.s32 %s22, 1
      %s24 = scalar_select %p21, %s22, %s23
      %p27 = pneg %p21
      %p28 = scmp.eq.s32.totalorder %s12, 1
      %p29 = por %p27, %p28
      %p30 = scmp.ne.s32.totalorder %s22, %s25
      %p31 = scmp.eq.s32.totalorder %s12, 0
      %p32 = por %p30, %p31
      %p33 = scmp.ne.s32.totalorder %s22, %s25
      %p34 = scmp.eq.s32.totalorder %s17, 1
      %p35 = por %p33, %p34
      %p36 = scmp.ne.s32.totalorder %s25, %s26
      %p37 = scmp.eq.s32.totalorder %s17, 0
      %p38 = por %p36, %p37
      %p39 = scmp.ne.s32.totalorder %s25, %s26
      %p40 = scmp.eq.s32.totalorder %s18, 1
      %p41 = por %p39, %p40
      %p43 = scmp.ne.s32.totalorder %s26, %s42
      %p44 = scmp.eq.s32.totalorder %s18, 0
      %p45 = por %p43, %p44
      %s47 = sadd.s32 %s46, 1
      %p50 = scmp.eq.s32.totalorder %s12, 1
      %p51 = scmp.ne.s32.totalorder %s46, %s48
      %p52 = scmp.eq.s32.totalorder %s12, 0
      %p53 = por %p51, %p52
      %p54 = scmp.ne.s32.totalorder %s46, %s48
      %p55 = scmp.eq.s32.totalorder %s17, 1
      %p56 = por %p54, %p55
      %p57 = scmp.ne.s32.totalorder %s48, %s49
      %p58 = scmp.eq.s32.totalorder %s17, 0
      %p59 = por %p57, %p58
      %p60 = scmp.ne.s32.totalorder %s48, %s49
      %p61 = scmp.eq.s32.totalorder %s18, 1
      %p62 = por %p60, %p61
      %p64 = scmp.ne.s32.totalorder %s49, %s63
      %p65 = scmp.eq.s32.totalorder %s18, 0
      %p66 = por %p64, %p65
      %s67 = ssub.s32 %s12, %s19
      %p68 = scmp.eq.s32.totalorder %s67, 0
      %s70 = sadd.s32 %s69, 1
      %s71 = scalar_select %p68, %s69, %s70
      %p74 = pneg %p68
      %p75 = scmp.eq.s32.totalorder %s12, 1
      %p76 = por %p74, %p75
      %p77 = scmp.ne.s32.totalorder %s69, %s72
      %p78 = scmp.eq.s32.totalorder %s12, 0
      %p79 = por %p77, %p78
      %p80 = scmp.ne.s32.totalorder %s69, %s72
      %p81 = scmp.eq.s32.totalorder %s17, 1
      %p82 = por %p80, %p81
      %p83 = scmp.ne.s32.totalorder %s72, %s73
      %p84 = scmp.eq.s32.totalorder %s17, 0
      %p85 = por %p83, %p84
      %p86 = scmp.ne.s32.totalorder %s72, %s73
      %p87 = scmp.eq.s32.totalorder %s18, 1
      %p88 = por %p86, %p87
      %p90 = scmp.ne.s32.totalorder %s73, %s89
      %p91 = scmp.eq.s32.totalorder %s18, 0
      %p92 = por %p90, %p91
      %p93 = scmp.le.s32.totalorder 1, %s12
      %p94 = scmp.lt.s32.totalorder %s12, 3
      %p95 = pnand %p93, %p94
      %p96 = pneg %p95
      // Predicated region
      $region9: #{tpu_custom_call.1} parent=5 // pred_check
        _
      $region10: #{tpu_custom_call.1} parent=5 // pred_check_branch
        %98 = sbr.rel (%p95) target = $region12
      $region11: #{tpu_custom_call.1} parent=5 // pred_region
        %s99 = ssub.s32 %s12, 1
        // Predicated region
        $region13: #{tpu_custom_call.1} parent=11 // pred_check
          %p100 = pneg %p59
        $region14: #{tpu_custom_call.1} parent=11 // pred_check_branch
          %102 = sbr.rel (%p100) target = $region16
        $region15: #{tpu_custom_call.1} parent=11 // pred_region
          %s104 = ssub.s32 32768, 32768
          %105 = vsyncadd [#allocation3], %s104
          %s106 = sshll.u32 [#allocation2], 4
          %s107 = int_to_ptr.vmem [resolvable:$true] %s106
          %112 = dma.hbm_to_vmem [thread:$0]  %s1, 32768, %s107, [#allocation3], 128, 128, 8
        $region16: #{tpu_custom_call.1} parent=11 // pred_fallthru
          _
      $region12: #{tpu_custom_call.1} parent=5 // pred_fallthru
        _
      %p113 = scmp.lt.s32.totalorder %s12, 2
      // Predicated region
      $region17: #{tpu_custom_call.1} parent=5 // pred_check
        %p114 = pneg %p113
      $region18: #{tpu_custom_call.1} parent=5 // pred_check_branch
        %116 = sbr.rel (%p114) target = $region20
      $region19: #{tpu_custom_call.1} parent=5 // pred_region
        // Predicated region
        $region21: #{tpu_custom_call.1} parent=19 // pred_check
          %p117 = pneg %p32
        $region22: #{tpu_custom_call.1} parent=19 // pred_check_branch
          %119 = sbr.rel (%p117) target = $region24
        $region23: #{tpu_custom_call.1} parent=19 // pred_region
          %s120 = smul.u32 2, %s12
          %p121 = scmp.lt.s32.totalorder %s120, 3
          %s122 = scalar_select %p121, %s120, 3
          %s123 = smul.addr %s122, 8
          %s124 = scalar_lea.vmem %s0, %s123
          %s125 = smul.u32 2, %s12
        $region24: #{tpu_custom_call.1} parent=19 // pred_fallthru
          _
      $region20: #{tpu_custom_call.1} parent=5 // pred_fallthru
        _
      %p126 = scmp.le.s32.totalorder 1, %s12
      %p127 = scmp.lt.s32.totalorder %s12, 3
      %p128 = pnand %p126, %p127
      %p129 = pneg %p128
      // Predicated region
      $region25: #{tpu_custom_call.1} parent=5 // pred_check
        _
      $region26: #{tpu_custom_call.1} parent=5 // pred_check_branch
        %131 = sbr.rel (%p128) target = $region28
      $region27: #{tpu_custom_call.1} parent=5 // pred_region
        %s132 = ssub.s32 %s12, 1
        // Predicated region
        $region29: #{tpu_custom_call.1} parent=27 // pred_check
          %p133 = pneg %p59
        $region30: #{tpu_custom_call.1} parent=27 // pred_check_branch
          %135 = sbr.rel (%p133) target = $region32
        $region31: #{tpu_custom_call.1} parent=27 // pred_region
          %136 = dma.done [#allocation3], 32768
        $region32: #{tpu_custom_call.1} parent=27 // pred_fallthru
          _
        %s137 = smul.u32 2, %s17
        %p138 = scmp.lt.s32.totalorder %s137, 3
        %s139 = scalar_select %p138, %s137, 3
        %s140 = smul.addr %s139, 8
        %s141 = scalar_lea.vmem %s0, %s140
        %p142 = pneg %p38
        %p143 = pneg %p35
        %p144 = pneg %p59
        %p145 = pneg %p56
        %p146 = pneg %p85
        %p147 = pneg %p82
        %s148 = sand.u32 %s72, 1
        %s149 = scalar_lea.sflag [#allocation4], %s148
        %s150 = sand.u32 %s72, 1
        %s151 = smul.addr %s150, 16
        %s152 = scalar_lea.vmem [#allocation5], %s151
        %s153 = smul.u32 2, %s17
        %p154 = scmp.lt.s32.totalorder %s153, 3
        %s155 = scalar_select %p154, %s153, 3
        %s156 = smul.addr %s155, 8
        %s157 = scalar_lea.vmem %s0, %s156
        %s158 = smul.u32 2, %s17
        %s159 = smul.u32 2, %s17
        %v160 = vld [vmem:[%s157] sm:$0xff]
        %v161 = vld [vmem:[%s157 + $0x8] sm:$0xff]
        %v162 = vld [vmem:[#allocation2] sm:$0xff]
        %v163 = vld [vmem:[#allocation2 + $0x8] sm:$0xff]
        %v164 = vld [vmem:[#allocation2 + $0x10] sm:$0xff]
        %v165 = vld [vmem:[#allocation2 + $0x18] sm:$0xff]
        %v166 = vld [vmem:[#allocation2 + $0x20] sm:$0xff]
        %v167 = vld [vmem:[#allocation2 + $0x28] sm:$0xff]
        %v168 = vld [vmem:[#allocation2 + $0x30] sm:$0xff]
        %v169 = vld [vmem:[#allocation2 + $0x38] sm:$0xff]
        %v170 = vld [vmem:[#allocation2 + $0x40] sm:$0xff]
        %v171 = vld [vmem:[#allocation2 + $0x48] sm:$0xff]
        %v172 = vld [vmem:[#allocation2 + $0x50] sm:$0xff]
        %v173 = vld [vmem:[#allocation2 + $0x58] sm:$0xff]
        %v174 = vld [vmem:[#allocation2 + $0x60] sm:$0xff]
        %v175 = vld [vmem:[#allocation2 + $0x68] sm:$0xff]
        %v176 = vld [vmem:[#allocation2 + $0x70] sm:$0xff]
        %v177 = vld [vmem:[#allocation2 + $0x78] sm:$0xff]
        %v178 = vld [vmem:[#allocation2 + $0x80] sm:$0xff]
        %v179 = vld [vmem:[#allocation2 + $0x88] sm:$0xff]
        %v180 = vld [vmem:[#allocation2 + $0x90] sm:$0xff]
        %v181 = vld [vmem:[#allocation2 + $0x98] sm:$0xff]
        %v182 = vld [vmem:[#allocation2 + $0xa0] sm:$0xff]
        %v183 = vld [vmem:[#allocation2 + $0xa8] sm:$0xff]
        %v184 = vld [vmem:[#allocation2 + $0xb0] sm:$0xff]
        %v185 = vld [vmem:[#allocation2 + $0xb8] sm:$0xff]
        %v186 = vld [vmem:[#allocation2 + $0xc0] sm:$0xff]
        %v187 = vld [vmem:[#allocation2 + $0xc8] sm:$0xff]
        %v188 = vld [vmem:[#allocation2 + $0xd0] sm:$0xff]
        %v189 = vld [vmem:[#allocation2 + $0xd8] sm:$0xff]
        %v190 = vld [vmem:[#allocation2 + $0xe0] sm:$0xff]
        %v191 = vld [vmem:[#allocation2 + $0xe8] sm:$0xff]
        %v192 = vld [vmem:[#allocation2 + $0xf0] sm:$0xff]
        %v193 = vld [vmem:[#allocation2 + $0xf8] sm:$0xff]
        %v194 = vld [vmem:[#allocation2 + $0x100] sm:$0xff]
        %v195 = vld [vmem:[#allocation2 + $0x108] sm:$0xff]
        %v196 = vld [vmem:[#allocation2 + $0x110] sm:$0xff]
        %v197 = vld [vmem:[#allocation2 + $0x118] sm:$0xff]
        %v198 = vld [vmem:[#allocation2 + $0x120] sm:$0xff]
        %v199 = vld [vmem:[#allocation2 + $0x128] sm:$0xff]
        %v200 = vld [vmem:[#allocation2 + $0x130] sm:$0xff]
        %v201 = vld [vmem:[#allocation2 + $0x138] sm:$0xff]
        %v202 = vld [vmem:[#allocation2 + $0x140] sm:$0xff]
        %v203 = vld [vmem:[#allocation2 + $0x148] sm:$0xff]
        %v204 = vld [vmem:[#allocation2 + $0x150] sm:$0xff]
        %v205 = vld [vmem:[#allocation2 + $0x158] sm:$0xff]
        %v206 = vld [vmem:[#allocation2 + $0x160] sm:$0xff]
        %v207 = vld [vmem:[#allocation2 + $0x168] sm:$0xff]
        %v208 = vld [vmem:[#allocation2 + $0x170] sm:$0xff]
        %v209 = vld [vmem:[#allocation2 + $0x178] sm:$0xff]
        %v210 = vld [vmem:[#allocation2 + $0x180] sm:$0xff]
        %v211 = vld [vmem:[#allocation2 + $0x188] sm:$0xff]
        %v212 = vld [vmem:[#allocation2 + $0x190] sm:$0xff]
        %v213 = vld [vmem:[#allocation2 + $0x198] sm:$0xff]
        %v214 = vld [vmem:[#allocation2 + $0x1a0] sm:$0xff]
        %v215 = vld [vmem:[#allocation2 + $0x1a8] sm:$0xff]
        %v216 = vld [vmem:[#allocation2 + $0x1b0] sm:$0xff]
        %v217 = vld [vmem:[#allocation2 + $0x1b8] sm:$0xff]
        %v218 = vld [vmem:[#allocation2 + $0x1c0] sm:$0xff]
        %v219 = vld [vmem:[#allocation2 + $0x1c8] sm:$0xff]
        %v220 = vld [vmem:[#allocation2 + $0x1d0] sm:$0xff]
        %v221 = vld [vmem:[#allocation2 + $0x1d8] sm:$0xff]
        %v222 = vld [vmem:[#allocation2 + $0x1e0] sm:$0xff]
        %v223 = vld [vmem:[#allocation2 + $0x1e8] sm:$0xff]
        %v224 = vld [vmem:[#allocation2 + $0x1f0] sm:$0xff]
        %v225 = vld [vmem:[#allocation2 + $0x1f8] sm:$0xff]
        %v226 = vld [vmem:[#allocation2 + $0x200] sm:$0xff]
        %v227 = vld [vmem:[#allocation2 + $0x208] sm:$0xff]
        %v228 = vld [vmem:[#allocation2 + $0x210] sm:$0xff]
        %v229 = vld [vmem:[#allocation2 + $0x218] sm:$0xff]
        %v230 = vld [vmem:[#allocation2 + $0x220] sm:$0xff]
        %v231 = vld [vmem:[#allocation2 + $0x228] sm:$0xff]
        %v232 = vld [vmem:[#allocation2 + $0x230] sm:$0xff]
        %v233 = vld [vmem:[#allocation2 + $0x238] sm:$0xff]
        %v234 = vld [vmem:[#allocation2 + $0x240] sm:$0xff]
        %v235 = vld [vmem:[#allocation2 + $0x248] sm:$0xff]
        %v236 = vld [vmem:[#allocation2 + $0x250] sm:$0xff]
        %v237 = vld [vmem:[#allocation2 + $0x258] sm:$0xff]
        %v238 = vld [vmem:[#allocation2 + $0x260] sm:$0xff]
        %v239 = vld [vmem:[#allocation2 + $0x268] sm:$0xff]
        %v240 = vld [vmem:[#allocation2 + $0x270] sm:$0xff]
        %v241 = vld [vmem:[#allocation2 + $0x278] sm:$0xff]
        %v242 = vld [vmem:[#allocation2 + $0x280] sm:$0xff]
        %v243 = vld [vmem:[#allocation2 + $0x288] sm:$0xff]
        %v244 = vld [vmem:[#allocation2 + $0x290] sm:$0xff]
        %v245 = vld [vmem:[#allocation2 + $0x298] sm:$0xff]
        %v246 = vld [vmem:[#allocation2 + $0x2a0] sm:$0xff]
        %v247 = vld [vmem:[#allocation2 + $0x2a8] sm:$0xff]
        %v248 = vld [vmem:[#allocation2 + $0x2b0] sm:$0xff]
        %v249 = vld [vmem:[#allocation2 + $0x2b8] sm:$0xff]
        %v250 = vld [vmem:[#allocation2 + $0x2c0] sm:$0xff]
        %v251 = vld [vmem:[#allocation2 + $0x2c8] sm:$0xff]
        %v252 = vld [vmem:[#allocation2 + $0x2d0] sm:$0xff]
        %v253 = vld [vmem:[#allocation2 + $0x2d8] sm:$0xff]
        %v254 = vld [vmem:[#allocation2 + $0x2e0] sm:$0xff]
        %v255 = vld [vmem:[#allocation2 + $0x2e8] sm:$0xff]
        %v256 = vld [vmem:[#allocation2 + $0x2f0] sm:$0xff]
        %v257 = vld [vmem:[#allocation2 + $0x2f8] sm:$0xff]
        %v258 = vld [vmem:[#allocation2 + $0x300] sm:$0xff]
        %v259 = vld [vmem:[#allocation2 + $0x308] sm:$0xff]
        %v260 = vld [vmem:[#allocation2 + $0x310] sm:$0xff]
        %v261 = vld [vmem:[#allocation2 + $0x318] sm:$0xff]
        %v262 = vld [vmem:[#allocation2 + $0x320] sm:$0xff]
        %v263 = vld [vmem:[#allocation2 + $0x328] sm:$0xff]
        %v264 = vld [vmem:[#allocation2 + $0x330] sm:$0xff]
        %v265 = vld [vmem:[#allocation2 + $0x338] sm:$0xff]
        %v266 = vld [vmem:[#allocation2 + $0x340] sm:$0xff]
        %v267 = vld [vmem:[#allocation2 + $0x348] sm:$0xff]
        %v268 = vld [vmem:[#allocation2 + $0x350] sm:$0xff]
        %v269 = vld [vmem:[#allocation2 + $0x358] sm:$0xff]
        %v270 = vld [vmem:[#allocation2 + $0x360] sm:$0xff]
        %v271 = vld [vmem:[#allocation2 + $0x368] sm:$0xff]
        %v272 = vld [vmem:[#allocation2 + $0x370] sm:$0xff]
        %v273 = vld [vmem:[#allocation2 + $0x378] sm:$0xff]
        %v274 = vld [vmem:[#allocation2 + $0x380] sm:$0xff]
        %v275 = vld [vmem:[#allocation2 + $0x388] sm:$0xff]
        %v276 = vld [vmem:[#allocation2 + $0x390] sm:$0xff]
        %v277 = vld [vmem:[#allocation2 + $0x398] sm:$0xff]
        %v278 = vld [vmem:[#allocation2 + $0x3a0] sm:$0xff]
        %v279 = vld [vmem:[#allocation2 + $0x3a8] sm:$0xff]
        %v280 = vld [vmem:[#allocation2 + $0x3b0] sm:$0xff]
        %v281 = vld [vmem:[#allocation2 + $0x3b8] sm:$0xff]
        %v282 = vld [vmem:[#allocation2 + $0x3c0] sm:$0xff]
        %v283 = vld [vmem:[#allocation2 + $0x3c8] sm:$0xff]
        %v284 = vld [vmem:[#allocation2 + $0x3d0] sm:$0xff]
        %v285 = vld [vmem:[#allocation2 + $0x3d8] sm:$0xff]
        %v286 = vld [vmem:[#allocation2 + $0x3e0] sm:$0xff]
        %v287 = vld [vmem:[#allocation2 + $0x3e8] sm:$0xff]
        %v288 = vld [vmem:[#allocation2 + $0x3f0] sm:$0xff]
        %v289 = vld [vmem:[#allocation2 + $0x3f8] sm:$0xff]
        %v290 = vld [vmem:[#allocation2 + $0x400] sm:$0xff]
        %v291 = vld [vmem:[#allocation2 + $0x408] sm:$0xff]
        %v292 = vld [vmem:[#allocation2 + $0x410] sm:$0xff]
        %v293 = vld [vmem:[#allocation2 + $0x418] sm:$0xff]
        %v294 = vld [vmem:[#allocation2 + $0x420] sm:$0xff]
        %v295 = vld [vmem:[#allocation2 + $0x428] sm:$0xff]
        %v296 = vld [vmem:[#allocation2 + $0x430] sm:$0xff]
        %v297 = vld [vmem:[#allocation2 + $0x438] sm:$0xff]
        %v298 = vld [vmem:[#allocation2 + $0x440] sm:$0xff]
        %v299 = vld [vmem:[#allocation2 + $0x448] sm:$0xff]
        %v300 = vld [vmem:[#allocation2 + $0x450] sm:$0xff]
        %v301 = vld [vmem:[#allocation2 + $0x458] sm:$0xff]
        %v302 = vld [vmem:[#allocation2 + $0x460] sm:$0xff]
        %v303 = vld [vmem:[#allocation2 + $0x468] sm:$0xff]
        %v304 = vld [vmem:[#allocation2 + $0x470] sm:$0xff]
        %v305 = vld [vmem:[#allocation2 + $0x478] sm:$0xff]
        %v306 = vld [vmem:[#allocation2 + $0x480] sm:$0xff]
        %v307 = vld [vmem:[#allocation2 + $0x488] sm:$0xff]
        %v308 = vld [vmem:[#allocation2 + $0x490] sm:$0xff]
        %v309 = vld [vmem:[#allocation2 + $0x498] sm:$0xff]
        %v310 = vld [vmem:[#allocation2 + $0x4a0] sm:$0xff]
        %v311 = vld [vmem:[#allocation2 + $0x4a8] sm:$0xff]
        %v312 = vld [vmem:[#allocation2 + $0x4b0] sm:$0xff]
        %v313 = vld [vmem:[#allocation2 + $0x4b8] sm:$0xff]
        %v314 = vld [vmem:[#allocation2 + $0x4c0] sm:$0xff]
        %v315 = vld [vmem:[#allocation2 + $0x4c8] sm:$0xff]
        %v316 = vld [vmem:[#allocation2 + $0x4d0] sm:$0xff]
        %v317 = vld [vmem:[#allocation2 + $0x4d8] sm:$0xff]
        %v318 = vld [vmem:[#allocation2 + $0x4e0] sm:$0xff]
        %v319 = vld [vmem:[#allocation2 + $0x4e8] sm:$0xff]
        %v320 = vld [vmem:[#allocation2 + $0x4f0] sm:$0xff]
        %v321 = vld [vmem:[#allocation2 + $0x4f8] sm:$0xff]
        %v322 = vld [vmem:[#allocation2 + $0x500] sm:$0xff]
        %v323 = vld [vmem:[#allocation2 + $0x508] sm:$0xff]
        %v324 = vld [vmem:[#allocation2 + $0x510] sm:$0xff]
        %v325 = vld [vmem:[#allocation2 + $0x518] sm:$0xff]
        %v326 = vld [vmem:[#allocation2 + $0x520] sm:$0xff]
        %v327 = vld [vmem:[#allocation2 + $0x528] sm:$0xff]
        %v328 = vld [vmem:[#allocation2 + $0x530] sm:$0xff]
        %v329 = vld [vmem:[#allocation2 + $0x538] sm:$0xff]
        %v330 = vld [vmem:[#allocation2 + $0x540] sm:$0xff]
        %v331 = vld [vmem:[#allocation2 + $0x548] sm:$0xff]
        %v332 = vld [vmem:[#allocation2 + $0x550] sm:$0xff]
        %v333 = vld [vmem:[#allocation2 + $0x558] sm:$0xff]
        %v334 = vld [vmem:[#allocation2 + $0x560] sm:$0xff]
        %v335 = vld [vmem:[#allocation2 + $0x568] sm:$0xff]
        %v336 = vld [vmem:[#allocation2 + $0x570] sm:$0xff]
        %v337 = vld [vmem:[#allocation2 + $0x578] sm:$0xff]
        %v338 = vld [vmem:[#allocation2 + $0x580] sm:$0xff]
        %v339 = vld [vmem:[#allocation2 + $0x588] sm:$0xff]
        %v340 = vld [vmem:[#allocation2 + $0x590] sm:$0xff]
        %v341 = vld [vmem:[#allocation2 + $0x598] sm:$0xff]
        %v342 = vld [vmem:[#allocation2 + $0x5a0] sm:$0xff]
        %v343 = vld [vmem:[#allocation2 + $0x5a8] sm:$0xff]
        %v344 = vld [vmem:[#allocation2 + $0x5b0] sm:$0xff]
        %v345 = vld [vmem:[#allocation2 + $0x5b8] sm:$0xff]
        %v346 = vld [vmem:[#allocation2 + $0x5c0] sm:$0xff]
        %v347 = vld [vmem:[#allocation2 + $0x5c8] sm:$0xff]
        %v348 = vld [vmem:[#allocation2 + $0x5d0] sm:$0xff]
        %v349 = vld [vmem:[#allocation2 + $0x5d8] sm:$0xff]
        %v350 = vld [vmem:[#allocation2 + $0x5e0] sm:$0xff]
        %v351 = vld [vmem:[#allocation2 + $0x5e8] sm:$0xff]
        %v352 = vld [vmem:[#allocation2 + $0x5f0] sm:$0xff]
        %v353 = vld [vmem:[#allocation2 + $0x5f8] sm:$0xff]
        %v354 = vld [vmem:[#allocation2 + $0x600] sm:$0xff]
        %v355 = vld [vmem:[#allocation2 + $0x608] sm:$0xff]
        %v356 = vld [vmem:[#allocation2 + $0x610] sm:$0xff]
        %v357 = vld [vmem:[#allocation2 + $0x618] sm:$0xff]
        %v358 = vld [vmem:[#allocation2 + $0x620] sm:$0xff]
        %v359 = vld [vmem:[#allocation2 + $0x628] sm:$0xff]
        %v360 = vld [vmem:[#allocation2 + $0x630] sm:$0xff]
        %v361 = vld [vmem:[#allocation2 + $0x638] sm:$0xff]
        %v362 = vld [vmem:[#allocation2 + $0x640] sm:$0xff]
        %v363 = vld [vmem:[#allocation2 + $0x648] sm:$0xff]
        %v364 = vld [vmem:[#allocation2 + $0x650] sm:$0xff]
        %v365 = vld [vmem:[#allocation2 + $0x658] sm:$0xff]
        %v366 = vld [vmem:[#allocation2 + $0x660] sm:$0xff]
        %v367 = vld [vmem:[#allocation2 + $0x668] sm:$0xff]
        %v368 = vld [vmem:[#allocation2 + $0x670] sm:$0xff]
        %v369 = vld [vmem:[#allocation2 + $0x678] sm:$0xff]
        %v370 = vld [vmem:[#allocation2 + $0x680] sm:$0xff]
        %v371 = vld [vmem:[#allocation2 + $0x688] sm:$0xff]
        %v372 = vld [vmem:[#allocation2 + $0x690] sm:$0xff]
        %v373 = vld [vmem:[#allocation2 + $0x698] sm:$0xff]
        %v374 = vld [vmem:[#allocation2 + $0x6a0] sm:$0xff]
        %v375 = vld [vmem:[#allocation2 + $0x6a8] sm:$0xff]
        %v376 = vld [vmem:[#allocation2 + $0x6b0] sm:$0xff]
        %v377 = vld [vmem:[#allocation2 + $0x6b8] sm:$0xff]
        %v378 = vld [vmem:[#allocation2 + $0x6c0] sm:$0xff]
        %v379 = vld [vmem:[#allocation2 + $0x6c8] sm:$0xff]
        %v380 = vld [vmem:[#allocation2 + $0x6d0] sm:$0xff]
        %v381 = vld [vmem:[#allocation2 + $0x6d8] sm:$0xff]
        %v382 = vld [vmem:[#allocation2 + $0x6e0] sm:$0xff]
        %v383 = vld [vmem:[#allocation2 + $0x6e8] sm:$0xff]
        %v384 = vld [vmem:[#allocation2 + $0x6f0] sm:$0xff]
        %v385 = vld [vmem:[#allocation2 + $0x6f8] sm:$0xff]
        %v386 = vld [vmem:[#allocation2 + $0x700] sm:$0xff]
        %v387 = vld [vmem:[#allocation2 + $0x708] sm:$0xff]
        %v388 = vld [vmem:[#allocation2 + $0x710] sm:$0xff]
        %v389 = vld [vmem:[#allocation2 + $0x718] sm:$0xff]
        %v390 = vld [vmem:[#allocation2 + $0x720] sm:$0xff]
        %v391 = vld [vmem:[#allocation2 + $0x728] sm:$0xff]
        %v392 = vld [vmem:[#allocation2 + $0x730] sm:$0xff]
        %v393 = vld [vmem:[#allocation2 + $0x738] sm:$0xff]
        %v394 = vld [vmem:[#allocation2 + $0x740] sm:$0xff]
        %v395 = vld [vmem:[#allocation2 + $0x748] sm:$0xff]
        %v396 = vld [vmem:[#allocation2 + $0x750] sm:$0xff]
        %v397 = vld [vmem:[#allocation2 + $0x758] sm:$0xff]
        %v398 = vld [vmem:[#allocation2 + $0x760] sm:$0xff]
        %v399 = vld [vmem:[#allocation2 + $0x768] sm:$0xff]
        %v400 = vld [vmem:[#allocation2 + $0x770] sm:$0xff]
        %v401 = vld [vmem:[#allocation2 + $0x778] sm:$0xff]
        %v402 = vld [vmem:[#allocation2 + $0x780] sm:$0xff]
        %v403 = vld [vmem:[#allocation2 + $0x788] sm:$0xff]
        %v404 = vld [vmem:[#allocation2 + $0x790] sm:$0xff]
        %v405 = vld [vmem:[#allocation2 + $0x798] sm:$0xff]
        %v406 = vld [vmem:[#allocation2 + $0x7a0] sm:$0xff]
        %v407 = vld [vmem:[#allocation2 + $0x7a8] sm:$0xff]
        %v408 = vld [vmem:[#allocation2 + $0x7b0] sm:$0xff]
        %v409 = vld [vmem:[#allocation2 + $0x7b8] sm:$0xff]
        %v410 = vld [vmem:[#allocation2 + $0x7c0] sm:$0xff]
        %v411 = vld [vmem:[#allocation2 + $0x7c8] sm:$0xff]
        %v412 = vld [vmem:[#allocation2 + $0x7d0] sm:$0xff]
        %v413 = vld [vmem:[#allocation2 + $0x7d8] sm:$0xff]
        %v414 = vld [vmem:[#allocation2 + $0x7e0] sm:$0xff]
        %v415 = vld [vmem:[#allocation2 + $0x7e8] sm:$0xff]
        %v416 = vld [vmem:[#allocation2 + $0x7f0] sm:$0xff]
        %v417 = vld [vmem:[#allocation2 + $0x7f8] sm:$0xff]
        %v418 = vlaneseq
        %v419 = vand.u32 %v418, 127
        %420 = vset.pattern.permute.xlu0 0
        %421 = vperm.xlu0 %420, %v160
        %v422 = vpop.permute.xlu0 %421
        %423 = vset.pattern.permute.xlu0 0
        %424 = vperm.xlu0 %423, %v161
        %v425 = vpop.permute.xlu0 %424
        %vm426 = vcmp.eq.s32.totalorder %v422, %v419
        %vm427 = vcmp.eq.s32.totalorder %v425, %v419
        %v428 = vsel %vm426, 1, 0
        %v429 = vsel %vm427, 1, 0
        %v430 = vcvt.s32.f32 %v428
        %v431 = vcvt.s32.f32 %v429
        %432 = vset.pattern.permute.xlu0 1
        %433 = vperm.xlu0 %432, %v160
        %v434 = vpop.permute.xlu0 %433
        %435 = vset.pattern.permute.xlu0 1
        %436 = vperm.xlu0 %435, %v161
        %v437 = vpop.permute.xlu0 %436
        %vm438 = vcmp.eq.s32.totalorder %v434, %v419
        %vm439 = vcmp.eq.s32.totalorder %v437, %v419
        %v440 = vsel %vm438, 1, 0
        %v441 = vsel %vm439, 1, 0
        %v442 = vcvt.s32.f32 %v440
        %v443 = vcvt.s32.f32 %v441
        %444 = vset.pattern.permute.xlu0 2
        %445 = vperm.xlu0 %444, %v160
        %v446 = vpop.permute.xlu0 %445
        %447 = vset.pattern.permute.xlu0 2
        %448 = vperm.xlu0 %447, %v161
        %v449 = vpop.permute.xlu0 %448
        %vm450 = vcmp.eq.s32.totalorder %v446, %v419
        %vm451 = vcmp.eq.s32.totalorder %v449, %v419
        %v452 = vsel %vm450, 1, 0
        %v453 = vsel %vm451, 1, 0
        %v454 = vcvt.s32.f32 %v452
        %v455 = vcvt.s32.f32 %v453
        %456 = vset.pattern.permute.xlu0 3
        %457 = vperm.xlu0 %456, %v160
        %v458 = vpop.permute.xlu0 %457
        %459 = vset.pattern.permute.xlu0 3
        %460 = vperm.xlu0 %459, %v161
        %v461 = vpop.permute.xlu0 %460
        %vm462 = vcmp.eq.s32.totalorder %v458, %v419
        %vm463 = vcmp.eq.s32.totalorder %v461, %v419
        %v464 = vsel %vm462, 1, 0
        %v465 = vsel %vm463, 1, 0
        %v466 = vcvt.s32.f32 %v464
        %v467 = vcvt.s32.f32 %v465
        %468 = vset.pattern.permute.xlu0 4
        %469 = vperm.xlu0 %468, %v160
        %v470 = vpop.permute.xlu0 %469
        %471 = vset.pattern.permute.xlu0 4
        %472 = vperm.xlu0 %471, %v161
        %v473 = vpop.permute.xlu0 %472
        %vm474 = vcmp.eq.s32.totalorder %v470, %v419
        %vm475 = vcmp.eq.s32.totalorder %v473, %v419
        %v476 = vsel %vm474, 1, 0
        %v477 = vsel %vm475, 1, 0
        %v478 = vcvt.s32.f32 %v476
        %v479 = vcvt.s32.f32 %v477
        %480 = vset.pattern.permute.xlu0 5
        %481 = vperm.xlu0 %480, %v160
        %v482 = vpop.permute.xlu0 %481
        %483 = vset.pattern.permute.xlu0 5
        %484 = vperm.xlu0 %483, %v161
        %v485 = vpop.permute.xlu0 %484
        %vm486 = vcmp.eq.s32.totalorder %v482, %v419
        %vm487 = vcmp.eq.s32.totalorder %v485, %v419
        %v488 = vsel %vm486, 1, 0
        %v489 = vsel %vm487, 1, 0
        %v490 = vcvt.s32.f32 %v488
        %v491 = vcvt.s32.f32 %v489
        %492 = vset.pattern.permute.xlu0 6
        %493 = vperm.xlu0 %492, %v160
        %v494 = vpop.permute.xlu0 %493
        %495 = vset.pattern.permute.xlu0 6
        %496 = vperm.xlu0 %495, %v161
        %v497 = vpop.permute.xlu0 %496
        %vm498 = vcmp.eq.s32.totalorder %v494, %v419
        %vm499 = vcmp.eq.s32.totalorder %v497, %v419
        %v500 = vsel %vm498, 1, 0
        %v501 = vsel %vm499, 1, 0
        %v502 = vcvt.s32.f32 %v500
        %v503 = vcvt.s32.f32 %v501
        %504 = vset.pattern.permute.xlu0 7
        %505 = vperm.xlu0 %504, %v160
        %v506 = vpop.permute.xlu0 %505
        %507 = vset.pattern.permute.xlu0 7
        %508 = vperm.xlu0 %507, %v161
        %v509 = vpop.permute.xlu0 %508
        %vm510 = vcmp.eq.s32.totalorder %v506, %v419
        %vm511 = vcmp.eq.s32.totalorder %v509, %v419
        %v512 = vsel %vm510, 1, 0
        %v513 = vsel %vm511, 1, 0
        %v514 = vcvt.s32.f32 %v512
        %v515 = vcvt.s32.f32 %v513
        %516 = vset.pattern.permute.xlu0 8
        %517 = vperm.xlu0 %516, %v160
        %v518 = vpop.permute.xlu0 %517
        %519 = vset.pattern.permute.xlu0 8
        %520 = vperm.xlu0 %519, %v161
        %v521 = vpop.permute.xlu0 %520
        %vm522 = vcmp.eq.s32.totalorder %v518, %v419
        %vm523 = vcmp.eq.s32.totalorder %v521, %v419
        %v524 = vsel %vm522, 1, 0
        %v525 = vsel %vm523, 1, 0
        %v526 = vcvt.s32.f32 %v524
        %v527 = vcvt.s32.f32 %v525
        %528 = vset.pattern.permute.xlu0 9
        %529 = vperm.xlu0 %528, %v160
        %v530 = vpop.permute.xlu0 %529
        %531 = vset.pattern.permute.xlu0 9
        %532 = vperm.xlu0 %531, %v161
        %v533 = vpop.permute.xlu0 %532
        %vm534 = vcmp.eq.s32.totalorder %v530, %v419
        %vm535 = vcmp.eq.s32.totalorder %v533, %v419
        %v536 = vsel %vm534, 1, 0
        %v537 = vsel %vm535, 1, 0
        %v538 = vcvt.s32.f32 %v536
        %v539 = vcvt.s32.f32 %v537
        %540 = vset.pattern.permute.xlu0 10
        %541 = vperm.xlu0 %540, %v160
        %v542 = vpop.permute.xlu0 %541
        %543 = vset.pattern.permute.xlu0 10
        %544 = vperm.xlu0 %543, %v161
        %v545 = vpop.permute.xlu0 %544
        %vm546 = vcmp.eq.s32.totalorder %v542, %v419
        %vm547 = vcmp.eq.s32.totalorder %v545, %v419
        %v548 = vsel %vm546, 1, 0
        %v549 = vsel %vm547, 1, 0
        %v550 = vcvt.s32.f32 %v548
        %v551 = vcvt.s32.f32 %v549
        %552 = vset.pattern.permute.xlu0 11
        %553 = vperm.xlu0 %552, %v160
        %v554 = vpop.permute.xlu0 %553
        %555 = vset.pattern.permute.xlu0 11
        %556 = vperm.xlu0 %555, %v161
        %v557 = vpop.permute.xlu0 %556
        %vm558 = vcmp.eq.s32.totalorder %v554, %v419
        %vm559 = vcmp.eq.s32.totalorder %v557, %v419
        %v560 = vsel %vm558, 1, 0
        %v561 = vsel %vm559, 1, 0
        %v562 = vcvt.s32.f32 %v560
        %v563 = vcvt.s32.f32 %v561
        %564 = vset.pattern.permute.xlu0 12
        %565 = vperm.xlu0 %564, %v160
        %v566 = vpop.permute.xlu0 %565
        %567 = vset.pattern.permute.xlu0 12
        %568 = vperm.xlu0 %567, %v161
        %v569 = vpop.permute.xlu0 %568
        %vm570 = vcmp.eq.s32.totalorder %v566, %v419
        %vm571 = vcmp.eq.s32.totalorder %v569, %v419
        %v572 = vsel %vm570, 1, 0
        %v573 = vsel %vm571, 1, 0
        %v574 = vcvt.s32.f32 %v572
        %v575 = vcvt.s32.f32 %v573
        %576 = vset.pattern.permute.xlu0 13
        %577 = vperm.xlu0 %576, %v160
        %v578 = vpop.permute.xlu0 %577
        %579 = vset.pattern.permute.xlu0 13
        %580 = vperm.xlu0 %579, %v161
        %v581 = vpop.permute.xlu0 %580
        %vm582 = vcmp.eq.s32.totalorder %v578, %v419
        %vm583 = vcmp.eq.s32.totalorder %v581, %v419
        %v584 = vsel %vm582, 1, 0
        %v585 = vsel %vm583, 1, 0
        %v586 = vcvt.s32.f32 %v584
        %v587 = vcvt.s32.f32 %v585
        %588 = vset.pattern.permute.xlu0 14
        %589 = vperm.xlu0 %588, %v160
        %v590 = vpop.permute.xlu0 %589
        %591 = vset.pattern.permute.xlu0 14
        %592 = vperm.xlu0 %591, %v161
        %v593 = vpop.permute.xlu0 %592
        %vm594 = vcmp.eq.s32.totalorder %v590, %v419
        %vm595 = vcmp.eq.s32.totalorder %v593, %v419
        %v596 = vsel %vm594, 1, 0
        %v597 = vsel %vm595, 1, 0
        %v598 = vcvt.s32.f32 %v596
        %v599 = vcvt.s32.f32 %v597
        %600 = vset.pattern.permute.xlu0 15
        %601 = vperm.xlu0 %600, %v160
        %v602 = vpop.permute.xlu0 %601
        %603 = vset.pattern.permute.xlu0 15
        %604 = vperm.xlu0 %603, %v161
        %v605 = vpop.permute.xlu0 %604
        %vm606 = vcmp.eq.s32.totalorder %v602, %v419
        %vm607 = vcmp.eq.s32.totalorder %v605, %v419
        %v608 = vsel %vm606, 1, 0
        %v609 = vsel %vm607, 1, 0
        %v610 = vcvt.s32.f32 %v608
        %v611 = vcvt.s32.f32 %v609
        %612 = vmatprep.subr.mxu0 0.0
        %v613 = vand.u32 %v162, 4294901760
        %614 = vmatpush1.msra.mxu0 %v613
        %615 = vmatprep.subr.mxu0 0.0
        %v616 = vand.u32 %v163, 4294901760
        %617 = vmatpush1.msra.mxu0 %v616
        %618 = vmatprep.subr.mxu0 0.0
        %v619 = vand.u32 %v164, 4294901760
        %620 = vmatpush1.msra.mxu0 %v619
        %621 = vmatprep.subr.mxu0 0.0
        %v622 = vand.u32 %v165, 4294901760
        %623 = vmatpush1.msra.mxu0 %v622
        %624 = vmatprep.subr.mxu0 0.0
        %v625 = vand.u32 %v166, 4294901760
        %626 = vmatpush1.msra.mxu0 %v625
        %627 = vmatprep.subr.mxu0 0.0
        %v628 = vand.u32 %v167, 4294901760
        %629 = vmatpush1.msra.mxu0 %v628
        %630 = vmatprep.subr.mxu0 0.0
        %v631 = vand.u32 %v168, 4294901760
        %632 = vmatpush1.msra.mxu0 %v631
        %633 = vmatprep.subr.mxu0 0.0
        %v634 = vand.u32 %v169, 4294901760
        %635 = vmatpush1.msra.mxu0 %v634
        %636 = vmatprep.subr.mxu0 0.0
        %v637 = vand.u32 %v170, 4294901760
        %638 = vmatpush1.msra.mxu0 %v637
        %639 = vmatprep.subr.mxu0 0.0
        %v640 = vand.u32 %v171, 4294901760
        %641 = vmatpush1.msra.mxu0 %v640
        %642 = vmatprep.subr.mxu0 0.0
        %v643 = vand.u32 %v172, 4294901760
        %644 = vmatpush1.msra.mxu0 %v643
        %645 = vmatprep.subr.mxu0 0.0
        %v646 = vand.u32 %v173, 4294901760
        %647 = vmatpush1.msra.mxu0 %v646
        %648 = vmatprep.subr.mxu0 0.0
        %v649 = vand.u32 %v174, 4294901760
        %650 = vmatpush1.msra.mxu0 %v649
        %651 = vmatprep.subr.mxu0 0.0
        %v652 = vand.u32 %v175, 4294901760
        %653 = vmatpush1.msra.mxu0 %v652
        %654 = vmatprep.subr.mxu0 0.0
        %v655 = vand.u32 %v176, 4294901760
        %656 = vmatpush1.msra.mxu0 %v655
        %657 = vmatprep.subr.mxu0 0.0
        %v658 = vand.u32 %v177, 4294901760
        %659 = vmatpush1.msra.mxu0 %v658
        %660 = vmatprep.subr.mxu0 0.0
        %v661 = vand.u32 %v178, 4294901760
        %662 = vmatpush1.msra.mxu0 %v661
        %663 = vmatprep.subr.mxu0 0.0
        %v664 = vand.u32 %v179, 4294901760
        %665 = vmatpush1.msra.mxu0 %v664
        %666 = vmatprep.subr.mxu0 0.0
        %v667 = vand.u32 %v180, 4294901760
        %668 = vmatpush1.msra.mxu0 %v667
        %669 = vmatprep.subr.mxu0 0.0
        %v670 = vand.u32 %v181, 4294901760
        %671 = vmatpush1.msra.mxu0 %v670
        %672 = vmatprep.subr.mxu0 0.0
        %v673 = vand.u32 %v182, 4294901760
        %674 = vmatpush1.msra.mxu0 %v673
        %675 = vmatprep.subr.mxu0 0.0
        %v676 = vand.u32 %v183, 4294901760
        %677 = vmatpush1.msra.mxu0 %v676
        %678 = vmatprep.subr.mxu0 0.0
        %v679 = vand.u32 %v184, 4294901760
        %680 = vmatpush1.msra.mxu0 %v679
        %681 = vmatprep.subr.mxu0 0.0
        %v682 = vand.u32 %v185, 4294901760
        %683 = vmatpush1.msra.mxu0 %v682
        %684 = vmatprep.subr.mxu0 0.0
        %v685 = vand.u32 %v186, 4294901760
        %686 = vmatpush1.msra.mxu0 %v685
        %687 = vmatprep.subr.mxu0 0.0
        %v688 = vand.u32 %v187, 4294901760
        %689 = vmatpush1.msra.mxu0 %v688
        %690 = vmatprep.subr.mxu0 0.0
        %v691 = vand.u32 %v188, 4294901760
        %692 = vmatpush1.msra.mxu0 %v691
        %693 = vmatprep.subr.mxu0 0.0
        %v694 = vand.u32 %v189, 4294901760
        %695 = vmatpush1.msra.mxu0 %v694
        %696 = vmatprep.subr.mxu0 0.0
        %v697 = vand.u32 %v190, 4294901760
        %698 = vmatpush1.msra.mxu0 %v697
        %699 = vmatprep.subr.mxu0 0.0
        %v700 = vand.u32 %v191, 4294901760
        %701 = vmatpush1.msra.mxu0 %v700
        %702 = vmatprep.subr.mxu0 0.0
        %v703 = vand.u32 %v192, 4294901760
        %704 = vmatpush1.msra.mxu0 %v703
        %705 = vmatprep.subr.mxu0 0.0
        %v706 = vand.u32 %v193, 4294901760
        %707 = vmatpush1.msra.mxu0 %v706
        %v708 = vand.u32 %v442, 4294901760
        %v709 = vsub.f32 %v442, %v708
        %v710 = vand.u32 %v709, 4294901760
        %v711 = vsub.f32 %v709, %v710
        %v712 = vand.u32 %v711, 4294901760
        %713 = vmatprep.mubr.f32.mxu0 %v712
        %v714 = vand.u32 %v430, 4294901760
        %v715 = vsub.f32 %v430, %v714
        %v716 = vand.u32 %v715, 4294901760
        %v717 = vsub.f32 %v715, %v716
        %v718 = vand.u32 %v717, 4294901760
        %719 = vmatmul.mubr.f32.gmra.mrb[0].mxu0 %v718
        %v720 = vpop.f32.mrb[0].mxu0
        %v721 = vadd.f32 0.0, %v720
        %v722 = vpop.f32.mrb[0].mxu0
        %v723 = vand.u32 %v443, 4294901760
        %v724 = vsub.f32 %v443, %v723
        %v725 = vand.u32 %v724, 4294901760
        %v726 = vsub.f32 %v724, %v725
        %v727 = vand.u32 %v726, 4294901760
        %728 = vmatprep.mubr.f32.mxu0 %v727
        %v729 = vand.u32 %v431, 4294901760
        %v730 = vsub.f32 %v431, %v729
        %v731 = vand.u32 %v730, 4294901760
        %v732 = vsub.f32 %v730, %v731
        %v733 = vand.u32 %v732, 4294901760
        %734 = vmatmul.mubr.f32.gmra.mrb[0].mxu0 %v733
        %v735 = vpop.f32.mrb[0].mxu0
        %v736 = vadd.f32 0.0, %v735
        %v737 = vpop.f32.mrb[0].mxu0
        %738 = vdwg.mxu0
        %739 = vmatprep.subr.mxu0 0.0
        %v740 = vand.u32 %v162, 4294901760
        %v741 = vsub.f32 %v162, %v740
        %v742 = vand.u32 %v741, 4294901760
        %v743 = vsub.f32 %v741, %v742
        %v744 = vand.u32 %v743, 4294901760
        %745 = vmatpush1.msra.mxu0 %v744
        %746 = vmatprep.subr.mxu0 0.0
        %v747 = vand.u32 %v163, 4294901760
        %v748 = vsub.f32 %v163, %v747
        %v749 = vand.u32 %v748, 4294901760
        %v750 = vsub.f32 %v748, %v749
        %v751 = vand.u32 %v750, 4294901760
        %752 = vmatpush1.msra.mxu0 %v751
        %753 = vmatprep.subr.mxu0 0.0
        %v754 = vand.u32 %v164, 4294901760
        %v755 = vsub.f32 %v164, %v754
        %v756 = vand.u32 %v755, 4294901760
        %v757 = vsub.f32 %v755, %v756
        %v758 = vand.u32 %v757, 4294901760
        %759 = vmatpush1.msra.mxu0 %v758
        %760 = vmatprep.subr.mxu0 0.0
        %v761 = vand.u32 %v165, 4294901760
        %v762 = vsub.f32 %v165, %v761
        %v763 = vand.u32 %v762, 4294901760
        %v764 = vsub.f32 %v762, %v763
        %v765 = vand.u32 %v764, 4294901760
        %766 = vmatpush1.msra.mxu0 %v765
        %767 = vmatprep.subr.mxu0 0.0
        %v768 = vand.u32 %v166, 4294901760
        %v769 = vsub.f32 %v166, %v768
        %v770 = vand.u32 %v769, 4294901760
        %v771 = vsub.f32 %v769, %v770
        %v772 = vand.u32 %v771, 4294901760
        %773 = vmatpush1.msra.mxu0 %v772
        %774 = vmatprep.subr.mxu0 0.0
        %v775 = vand.u32 %v167, 4294901760
        %v776 = vsub.f32 %v167, %v775
        %v777 = vand.u32 %v776, 4294901760
        %v778 = vsub.f32 %v776, %v777
        %v779 = vand.u32 %v778, 4294901760
        %780 = vmatpush1.msra.mxu0 %v779
        %781 = vmatprep.subr.mxu0 0.0
        %v782 = vand.u32 %v168, 4294901760
        %v783 = vsub.f32 %v168, %v782
        %v784 = vand.u32 %v783, 4294901760
        %v785 = vsub.f32 %v783, %v784
        %v786 = vand.u32 %v785, 4294901760
        %787 = vmatpush1.msra.mxu0 %v786
        %788 = vmatprep.subr.mxu0 0.0
        %v789 = vand.u32 %v169, 4294901760
        %v790 = vsub.f32 %v169, %v789
        %v791 = vand.u32 %v790, 4294901760
        %v792 = vsub.f32 %v790, %v791
        %v793 = vand.u32 %v792, 4294901760
        %794 = vmatpush1.msra.mxu0 %v793
        %795 = vmatprep.subr.mxu0 0.0
        %v796 = vand.u32 %v170, 4294901760
        %v797 = vsub.f32 %v170, %v796
        %v798 = vand.u32 %v797, 4294901760
        %v799 = vsub.f32 %v797, %v798
        %v800 = vand.u32 %v799, 4294901760
        %801 = vmatpush1.msra.mxu0 %v800
        %802 = vmatprep.subr.mxu0 0.0
        %v803 = vand.u32 %v171, 4294901760
        %v804 = vsub.f32 %v171, %v803
        %v805 = vand.u32 %v804, 4294901760
        %v806 = vsub.f32 %v804, %v805
        %v807 = vand.u32 %v806, 4294901760
        %808 = vmatpush1.msra.mxu0 %v807
        %809 = vmatprep.subr.mxu0 0.0
        %v810 = vand.u32 %v172, 4294901760
        %v811 = vsub.f32 %v172, %v810
        %v812 = vand.u32 %v811, 4294901760
        %v813 = vsub.f32 %v811, %v812
        %v814 = vand.u32 %v813, 4294901760
        %815 = vmatpush1.msra.mxu0 %v814
        %816 = vmatprep.subr.mxu0 0.0
        %v817 = vand.u32 %v173, 4294901760
        %v818 = vsub.f32 %v173, %v817
        %v819 = vand.u32 %v818, 4294901760
        %v820 = vsub.f32 %v818, %v819
        %v821 = vand.u32 %v820, 4294901760
        %822 = vmatpush1.msra.mxu0 %v821
        %823 = vmatprep.subr.mxu0 0.0
        %v824 = vand.u32 %v174, 4294901760
        %v825 = vsub.f32 %v174, %v824
        %v826 = vand.u32 %v825, 4294901760
        %v827 = vsub.f32 %v825, %v826
        %v828 = vand.u32 %v827, 4294901760
        %829 = vmatpush1.msra.mxu0 %v828
        %830 = vmatprep.subr.mxu0 0.0
        %v831 = vand.u32 %v175, 4294901760
        %v832 = vsub.f32 %v175, %v831
        %v833 = vand.u32 %v832, 4294901760
        %v834 = vsub.f32 %v832, %v833
        %v835 = vand.u32 %v834, 4294901760
        %836 = vmatpush1.msra.mxu0 %v835
        %837 = vmatprep.subr.mxu0 0.0
        %v838 = vand.u32 %v176, 4294901760
        %v839 = vsub.f32 %v176, %v838
        %v840 = vand.u32 %v839, 4294901760
        %v841 = vsub.f32 %v839, %v840
        %v842 = vand.u32 %v841, 4294901760
        %843 = vmatpush1.msra.mxu0 %v842
        %844 = vmatprep.subr.mxu0 0.0
        %v845 = vand.u32 %v177, 4294901760
        %v846 = vsub.f32 %v177, %v845
        %v847 = vand.u32 %v846, 4294901760
        %v848 = vsub.f32 %v846, %v847
        %v849 = vand.u32 %v848, 4294901760
        %850 = vmatpush1.msra.mxu0 %v849
        %851 = vmatprep.subr.mxu0 0.0
        %v852 = vand.u32 %v178, 4294901760
        %v853 = vsub.f32 %v178, %v852
        %v854 = vand.u32 %v853, 4294901760
        %v855 = vsub.f32 %v853, %v854
        %v856 = vand.u32 %v855, 4294901760
        %857 = vmatpush1.msra.mxu0 %v856
        %858 = vmatprep.subr.mxu0 0.0
        %v859 = vand.u32 %v179, 4294901760
        %v860 = vsub.f32 %v179, %v859
        %v861 = vand.u32 %v860, 4294901760
        %v862 = vsub.f32 %v860, %v861
        %v863 = vand.u32 %v862, 4294901760
        %864 = vmatpush1.msra.mxu0 %v863
        %865 = vmatprep.subr.mxu0 0.0
        %v866 = vand.u32 %v180, 4294901760
        %v867 = vsub.f32 %v180, %v866
        %v868 = vand.u32 %v867, 4294901760
        %v869 = vsub.f32 %v867, %v868
        %v870 = vand.u32 %v869, 4294901760
        %871 = vmatpush1.msra.mxu0 %v870
        %872 = vmatprep.subr.mxu0 0.0
        %v873 = vand.u32 %v181, 4294901760
        %v874 = vsub.f32 %v181, %v873
        %v875 = vand.u32 %v874, 4294901760
        %v876 = vsub.f32 %v874, %v875
        %v877 = vand.u32 %v876, 4294901760
        %878 = vmatpush1.msra.mxu0 %v877
        %879 = vmatprep.subr.mxu0 0.0
        %v880 = vand.u32 %v182, 4294901760
        %v881 = vsub.f32 %v182, %v880
        %v882 = vand.u32 %v881, 4294901760
        %v883 = vsub.f32 %v881, %v882
        %v884 = vand.u32 %v883, 4294901760
        %885 = vmatpush1.msra.mxu0 %v884
        %886 = vmatprep.subr.mxu0 0.0
        %v887 = vand.u32 %v183, 4294901760
        %v888 = vsub.f32 %v183, %v887
        %v889 = vand.u32 %v888, 4294901760
        %v890 = vsub.f32 %v888, %v889
        %v891 = vand.u32 %v890, 4294901760
        %892 = vmatpush1.msra.mxu0 %v891
        %893 = vmatprep.subr.mxu0 0.0
        %v894 = vand.u32 %v184, 4294901760
        %v895 = vsub.f32 %v184, %v894
        %v896 = vand.u32 %v895, 4294901760
        %v897 = vsub.f32 %v895, %v896
        %v898 = vand.u32 %v897, 4294901760
        %899 = vmatpush1.msra.mxu0 %v898
        %900 = vmatprep.subr.mxu0 0.0
        %v901 = vand.u32 %v185, 4294901760
        %v902 = vsub.f32 %v185, %v901
        %v903 = vand.u32 %v902, 4294901760
        %v904 = vsub.f32 %v902, %v903
        %v905 = vand.u32 %v904, 4294901760
        %906 = vmatpush1.msra.mxu0 %v905
        %907 = vmatprep.subr.mxu0 0.0
        %v908 = vand.u32 %v186, 4294901760
        %v909 = vsub.f32 %v186, %v908
        %v910 = vand.u32 %v909, 4294901760
        %v911 = vsub.f32 %v909, %v910
        %v912 = vand.u32 %v911, 4294901760
        %913 = vmatpush1.msra.mxu0 %v912
        %914 = vmatprep.subr.mxu0 0.0
        %v915 = vand.u32 %v187, 4294901760
        %v916 = vsub.f32 %v187, %v915
        %v917 = vand.u32 %v916, 4294901760
        %v918 = vsub.f32 %v916, %v917
        %v919 = vand.u32 %v918, 4294901760
        %920 = vmatpush1.msra.mxu0 %v919
        %921 = vmatprep.subr.mxu0 0.0
        %v922 = vand.u32 %v188, 4294901760
        %v923 = vsub.f32 %v188, %v922
        %v924 = vand.u32 %v923, 4294901760
        %v925 = vsub.f32 %v923, %v924
        %v926 = vand.u32 %v925, 4294901760
        %927 = vmatpush1.msra.mxu0 %v926
        %928 = vmatprep.subr.mxu0 0.0
        %v929 = vand.u32 %v189, 4294901760
        %v930 = vsub.f32 %v189, %v929
        %v931 = vand.u32 %v930, 4294901760
        %v932 = vsub.f32 %v930, %v931
        %v933 = vand.u32 %v932, 4294901760
        %934 = vmatpush1.msra.mxu0 %v933
        %935 = vmatprep.subr.mxu0 0.0
        %v936 = vand.u32 %v190, 4294901760
        %v937 = vsub.f32 %v190, %v936
        %v938 = vand.u32 %v937, 4294901760
        %v939 = vsub.f32 %v937, %v938
        %v940 = vand.u32 %v939, 4294901760
        %941 = vmatpush1.msra.mxu0 %v940
        %942 = vmatprep.subr.mxu0 0.0
        %v943 = vand.u32 %v191, 4294901760
        %v944 = vsub.f32 %v191, %v943
        %v945 = vand.u32 %v944, 4294901760
        %v946 = vsub.f32 %v944, %v945
        %v947 = vand.u32 %v946, 4294901760
        %948 = vmatpush1.msra.mxu0 %v947
        %949 = vmatprep.subr.mxu0 0.0
        %v950 = vand.u32 %v192, 4294901760
        %v951 = vsub.f32 %v192, %v950
        %v952 = vand.u32 %v951, 4294901760
        %v953 = vsub.f32 %v951, %v952
        %v954 = vand.u32 %v953, 4294901760
        %955 = vmatpush1.msra.mxu0 %v954
        %956 = vmatprep.subr.mxu0 0.0
        %v957 = vand.u32 %v193, 4294901760
        %v958 = vsub.f32 %v193, %v957
        %v959 = vand.u32 %v958, 4294901760
        %v960 = vsub.f32 %v958, %v959
        %v961 = vand.u32 %v960, 4294901760
        %962 = vmatpush1.msra.mxu0 %v961
        %v963 = vand.u32 %v442, 4294901760
        %964 = vmatprep.mubr.f32.mxu0 %v963
        %v965 = vand.u32 %v430, 4294901760
        %966 = vmatmul.mubr.f32.gmra.mrb[0].mxu0 %v965
        %v967 = vpop.f32.mrb[0].mxu0
        %v968 = vadd.f32 %v721, %v967
        %v969 = vpop.f32.mrb[0].mxu0
        %v970 = vand.u32 %v443, 4294901760
        %971 = vmatprep.mubr.f32.mxu0 %v970
        %v972 = vand.u32 %v431, 4294901760
        %973 = vmatmul.mubr.f32.gmra.mrb[0].mxu0 %v972
        %v974 = vpop.f32.mrb[0].mxu0
        %v975 = vadd.f32 %v736, %v974
        %v976 = vpop.f32.mrb[0].mxu0
        %977 = vdwg.mxu0
        %978 = vmatprep.subr.mxu0 0.0
        %v979 = vand.u32 %v162, 4294901760
        %v980 = vsub.f32 %v162, %v979
        %981 = vmatpush1.msra.mxu0 %v980
        %982 = vmatprep.subr.mxu0 0.0
        %v983 = vand.u32 %v163, 4294901760
        %v984 = vsub.f32 %v163, %v983
        %985 = vmatpush1.msra.mxu0 %v984
        %986 = vmatprep.subr.mxu0 0.0
        %v987 = vand.u32 %v164, 4294901760
        %v988 = vsub.f32 %v164, %v987
        %989 = vmatpush1.msra.mxu0 %v988
        %990 = vmatprep.subr.mxu0 0.0
        %v991 = vand.u32 %v165, 4294901760
        %v992 = vsub.f32 %v165, %v991
        %993 = vmatpush1.msra.mxu0 %v992
        %994 = vmatprep.subr.mxu0 0.0
        %v995 = vand.u32 %v166, 4294901760
        %v996 = vsub.f32 %v166, %v995
        %997 = vmatpush1.msra.mxu0 %v996
        %998 = vmatprep.subr.mxu0 0.0
        %v999 = vand.u32 %v167, 4294901760
        %v1000 = vsub.f32 %v167, %v999
        %1001 = vmatpush1.msra.mxu0 %v1000
        %1002 = vmatprep.subr.mxu0 0.0
        %v1003 = vand.u32 %v168, 4294901760
        %v1004 = vsub.f32 %v168, %v1003
        %1005 = vmatpush1.msra.mxu0 %v1004
        %1006 = vmatprep.subr.mxu0 0.0
        %v1007 = vand.u32 %v169, 4294901760
        %v1008 = vsub.f32 %v169, %v1007
        %1009 = vmatpush1.msra.mxu0 %v1008
        %1010 = vmatprep.subr.mxu0 0.0
        %v1011 = vand.u32 %v170, 4294901760
        %v1012 = vsub.f32 %v170, %v1011
        %1013 = vmatpush1.msra.mxu0 %v1012
        %1014 = vmatprep.subr.mxu0 0.0
        %v1015 = vand.u32 %v171, 4294901760
        %v1016 = vsub.f32 %v171, %v1015
        %1017 = vmatpush1.msra.mxu0 %v1016
        %1018 = vmatprep.subr.mxu0 0.0
        %v1019 = vand.u32 %v172, 4294901760
        %v1020 = vsub.f32 %v172, %v1019
        %1021 = vmatpush1.msra.mxu0 %v1020
        %1022 = vmatprep.subr.mxu0 0.0
        %v1023 = vand.u32 %v173, 4294901760
        %v1024 = vsub.f32 %v173, %v1023
        %1025 = vmatpush1.msra.mxu0 %v1024
        %1026 = vmatprep.subr.mxu0 0.0
        %v1027 = vand.u32 %v174, 4294901760
        %v1028 = vsub.f32 %v174, %v1027
        %1029 = vmatpush1.msra.mxu0 %v1028
        %1030 = vmatprep.subr.mxu0 0.0
        %v1031 = vand.u32 %v175, 4294901760
        %v1032 = vsub.f32 %v175, %v1031
        %1033 = vmatpush1.msra.mxu0 %v1032
        %1034 = vmatprep.subr.mxu0 0.0
        %v1035 = vand.u32 %v176, 4294901760
        %v1036 = vsub.f32 %v176, %v1035
        %1037 = vmatpush1.msra.mxu0 %v1036
        %1038 = vmatprep.subr.mxu0 0.0
        %v1039 = vand.u32 %v177, 4294901760
        %v1040 = vsub.f32 %v177, %v1039
        %1041 = vmatpush1.msra.mxu0 %v1040
        %1042 = vmatprep.subr.mxu0 0.0
        %v1043 = vand.u32 %v178, 4294901760
        %v1044 = vsub.f32 %v178, %v1043
        %1045 = vmatpush1.msra.mxu0 %v1044
        %1046 = vmatprep.subr.mxu0 0.0
        %v1047 = vand.u32 %v179, 4294901760
        %v1048 = vsub.f32 %v179, %v1047
        %1049 = vmatpush1.msra.mxu0 %v1048
        %1050 = vmatprep.subr.mxu0 0.0
        %v1051 = vand.u32 %v180, 4294901760
        %v1052 = vsub.f32 %v180, %v1051
        %1053 = vmatpush1.msra.mxu0 %v1052
        %1054 = vmatprep.subr.mxu0 0.0
        %v1055 = vand.u32 %v181, 4294901760
        %v1056 = vsub.f32 %v181, %v1055
        %1057 = vmatpush1.msra.mxu0 %v1056
        %1058 = vmatprep.subr.mxu0 0.0
        %v1059 = vand.u32 %v182, 4294901760
        %v1060 = vsub.f32 %v182, %v1059
        %1061 = vmatpush1.msra.mxu0 %v1060
        %1062 = vmatprep.subr.mxu0 0.0
        %v1063 = vand.u32 %v183, 4294901760
        %v1064 = vsub.f32 %v183, %v1063
        %1065 = vmatpush1.msra.mxu0 %v1064
        %1066 = vmatprep.subr.mxu0 0.0
        %v1067 = vand.u32 %v184, 4294901760
        %v1068 = vsub.f32 %v184, %v1067
        %1069 = vmatpush1.msra.mxu0 %v1068
        %1070 = vmatprep.subr.mxu0 0.0
        %v1071 = vand.u32 %v185, 4294901760
        %v1072 = vsub.f32 %v185, %v1071
        %1073 = vmatpush1.msra.mxu0 %v1072
        %1074 = vmatprep.subr.mxu0 0.0
        %v1075 = vand.u32 %v186, 4294901760
        %v1076 = vsub.f32 %v186, %v1075
        %1077 = vmatpush1.msra.mxu0 %v1076
        %1078 = vmatprep.subr.mxu0 0.0
        %v1079 = vand.u32 %v187, 4294901760
        %v1080 = vsub.f32 %v187, %v1079
        %1081 = vmatpush1.msra.mxu0 %v1080
        %1082 = vmatprep.subr.mxu0 0.0
        %v1083 = vand.u32 %v188, 4294901760
        %v1084 = vsub.f32 %v188, %v1083
        %1085 = vmatpush1.msra.mxu0 %v1084
        %1086 = vmatprep.subr.mxu0 0.0
        %v1087 = vand.u32 %v189, 4294901760
        %v1088 = vsub.f32 %v189, %v1087
        %1089 = vmatpush1.msra.mxu0 %v1088
        %1090 = vmatprep.subr.mxu0 0.0
        %v1091 = vand.u32 %v190, 4294901760
        %v1092 = vsub.f32 %v190, %v1091
        %1093 = vmatpush1.msra.mxu0 %v1092
        %1094 = vmatprep.subr.mxu0 0.0
        %v1095 = vand.u32 %v191, 4294901760
        %v1096 = vsub.f32 %v191, %v1095
        %1097 = vmatpush1.msra.mxu0 %v1096
        %1098 = vmatprep.subr.mxu0 0.0
        %v1099 = vand.u32 %v192, 4294901760
        %v1100 = vsub.f32 %v192, %v1099
        %1101 = vmatpush1.msra.mxu0 %v1100
        %1102 = vmatprep.subr.mxu0 0.0
        %v1103 = vand.u32 %v193, 4294901760
        %v1104 = vsub.f32 %v193, %v1103
        %1105 = vmatpush1.msra.mxu0 %v1104
        %v1106 = vand.u32 %v442, 4294901760
        %v1107 = vsub.f32 %v442, %v1106
        %1108 = vmatprep.mubr.f32.mxu0 %v1107
        %v1109 = vand.u32 %v430, 4294901760
        %v1110 = vsub.f32 %v430, %v1109
        %1111 = vmatmul.mubr.f32.gmra.mrb[0].mxu0 %v1110
        %v1112 = vpop.f32.mrb[0].mxu0
        %v1113 = vadd.f32 %v968, %v1112
        %v1114 = vpop.f32.mrb[0].mxu0
        %v1115 = vand.u32 %v443, 4294901760
        %v1116 = vsub.f32 %v443, %v1115
        %1117 = vmatprep.mubr.f32.mxu0 %v1116
        %v1118 = vand.u32 %v431, 4294901760
        %v1119 = vsub.f32 %v431, %v1118
        %1120 = vmatmul.mubr.f32.gmra.mrb[0].mxu0 %v1119
        %v1121 = vpop.f32.mrb[0].mxu0
        %v1122 = vadd.f32 %v975, %v1121
        %v1123 = vpop.f32.mrb[0].mxu0
        %1124 = vdwg.mxu0
        %1125 = vmatprep.subr.mxu0 0.0
        %v1126 = vand.u32 %v162, 4294901760
        %1127 = vmatpush1.msra.mxu0 %v1126
        %1128 = vmatprep.subr.mxu0 0.0
        %v1129 = vand.u32 %v163, 4294901760
        %1130 = vmatpush1.msra.mxu0 %v1129
        %1131 = vmatprep.subr.mxu0 0.0
        %v1132 = vand.u32 %v164, 4294901760
        %1133 = vmatpush1.msra.mxu0 %v1132
        %1134 = vmatprep.subr.mxu0 0.0
        %v1135 = vand.u32 %v165, 4294901760
        %1136 = vmatpush1.msra.mxu0 %v1135
        %1137 = vmatprep.subr.mxu0 0.0
        %v1138 = vand.u32 %v166, 4294901760
        %1139 = vmatpush1.msra.mxu0 %v1138
        %1140 = vmatprep.subr.mxu0 0.0
        %v1141 = vand.u32 %v167, 4294901760
        %1142 = vmatpush1.msra.mxu0 %v1141
        %1143 = vmatprep.subr.mxu0 0.0
        %v1144 = vand.u32 %v168, 4294901760
        %1145 = vmatpush1.msra.mxu0 %v1144
        %1146 = vmatprep.subr.mxu0 0.0
        %v1147 = vand.u32 %v169, 4294901760
        %1148 = vmatpush1.msra.mxu0 %v1147
        %1149 = vmatprep.subr.mxu0 0.0
        %v1150 = vand.u32 %v170, 4294901760
        %1151 = vmatpush1.msra.mxu0 %v1150
        %1152 = vmatprep.subr.mxu0 0.0
        %v1153 = vand.u32 %v171, 4294901760
        %1154 = vmatpush1.msra.mxu0 %v1153
        %1155 = vmatprep.subr.mxu0 0.0
        %v1156 = vand.u32 %v172, 4294901760
        %1157 = vmatpush1.msra.mxu0 %v1156
        %1158 = vmatprep.subr.mxu0 0.0
        %v1159 = vand.u32 %v173, 4294901760
        %1160 = vmatpush1.msra.mxu0 %v1159
        %1161 = vmatprep.subr.mxu0 0.0
        %v1162 = vand.u32 %v174, 4294901760
        %1163 = vmatpush1.msra.mxu0 %v1162
        %1164 = vmatprep.subr.mxu0 0.0
        %v1165 = vand.u32 %v175, 4294901760
        %1166 = vmatpush1.msra.mxu0 %v1165
        %1167 = vmatprep.subr.mxu0 0.0
        %v1168 = vand.u32 %v176, 4294901760
        %1169 = vmatpush1.msra.mxu0 %v1168
        %1170 = vmatprep.subr.mxu0 0.0
        %v1171 = vand.u32 %v177, 4294901760
        %1172 = vmatpush1.msra.mxu0 %v1171
        %1173 = vmatprep.subr.mxu0 0.0
        %v1174 = vand.u32 %v178, 4294901760
        %1175 = vmatpush1.msra.mxu0 %v1174
        %1176 = vmatprep.subr.mxu0 0.0
        %v1177 = vand.u32 %v179, 4294901760
        %1178 = vmatpush1.msra.mxu0 %v1177
        %1179 = vmatprep.subr.mxu0 0.0
        %v1180 = vand.u32 %v180, 4294901760
        %1181 = vmatpush1.msra.mxu0 %v1180
        %1182 = vmatprep.subr.mxu0 0.0
        %v1183 = vand.u32 %v181, 4294901760
        %1184 = vmatpush1.msra.mxu0 %v1183
        %1185 = vmatprep.subr.mxu0 0.0
        %v1186 = vand.u32 %v182, 4294901760
        %1187 = vmatpush1.msra.mxu0 %v1186
        %1188 = vmatprep.subr.mxu0 0.0
        %v1189 = vand.u32 %v183, 4294901760
        %1190 = vmatpush1.msra.mxu0 %v1189
        %1191 = vmatprep.subr.mxu0 0.0
        %v1192 = vand.u32 %v184, 4294901760
        %1193 = vmatpush1.msra.mxu0 %v1192
        %1194 = vmatprep.subr.mxu0 0.0
        %v1195 = vand.u32 %v185, 4294901760
        %1196 = vmatpush1.msra.mxu0 %v1195
        %1197 = vmatprep.subr.mxu0 0.0
        %v1198 = vand.u32 %v186, 4294901760
        %1199 = vmatpush1.msra.mxu0 %v1198
        %1200 = vmatprep.subr.mxu0 0.0
        %v1201 = vand.u32 %v187, 4294901760
        %1202 = vmatpush1.msra.mxu0 %v1201
        %1203 = vmatprep.subr.mxu0 0.0
        %v1204 = vand.u32 %v188, 4294901760
        %1205 = vmatpush1.msra.mxu0 %v1204
        %1206 = vmatprep.subr.mxu0 0.0
        %v1207 = vand.u32 %v189, 4294901760
        %1208 = vmatpush1.msra.mxu0 %v1207
        %1209 = vmatprep.subr.mxu0 0.0
        %v1210 = vand.u32 %v190, 4294901760
        %1211 = vmatpush1.msra.mxu0 %v1210
        %1212 = vmatprep.subr.mxu0 0.0
        %v1213 = vand.u32 %v191, 4294901760
        %1214 = vmatpush1.msra.mxu0 %v1213
        %1215 = vmatprep.subr.mxu0 0.0
        %v1216 = vand.u32 %v192, 4294901760
        %1217 = vmatpush1.msra.mxu0 %v1216
        %1218 = vmatprep.subr.mxu0 0.0
        %v1219 = vand.u32 %v193, 4294901760
        %1220 = vmatpush1.msra.mxu0 %v1219
        %v1221 = vand.u32 %v442, 4294901760
        %v1222 = vsub.f32 %v442, %v1221
        %v1223 = vand.u32 %v1222, 4294901760
        %1224 = vmatprep.mubr.f32.mxu0 %v1223
        %v1225 = vand.u32 %v430, 4294901760
        %v1226 = vsub.f32 %v430, %v1225
        %v1227 = vand.u32 %v1226, 4294901760
        %1228 = vmatmul.mubr.f32.gmra.mrb[0].mxu0 %v1227
        %v1229 = vpop.f32.mrb[0].mxu0
        %v1230 = vadd.f32 %v1113, %v1229
        %v1231 = vpop.f32.mrb[0].mxu0
        %v1232 = vand.u32 %v443, 4294901760
        %v1233 = vsub.f32 %v443, %v1232
        %v1234 = vand.u32 %v1233, 4294901760
        %1235 = vmatprep.mubr.f32.mxu0 %v1234
        %v1236 = vand.u32 %v431, 4294901760
        %v1237 = vsub.f32 %v431, %v1236
        %v1238 = vand.u32 %v1237, 4294901760
        %1239 = vmatmul.mubr.f32.gmra.mrb[0].mxu0 %v1238
        %v1240 = vpop.f32.mrb[0].mxu0
        %v1241 = vadd.f32 %v1122, %v1240
        %v1242 = vpop.f32.mrb[0].mxu0
        %1243 = vdwg.mxu0
        %1244 = vmatprep.subr.mxu0 0.0
        %v1245 = vand.u32 %v162, 4294901760
        %v1246 = vsub.f32 %v162, %v1245
        %v1247 = vand.u32 %v1246, 4294901760
        %1248 = vmatpush1.msra.mxu0 %v1247
        %1249 = vmatprep.subr.mxu0 0.0
        %v1250 = vand.u32 %v163, 4294901760
        %v1251 = vsub.f32 %v163, %v1250
        %v1252 = vand.u32 %v1251, 4294901760
        %1253 = vmatpush1.msra.mxu0 %v1252
        %1254 = vmatprep.subr.mxu0 0.0
        %v1255 = vand.u32 %v164, 4294901760
        %v1256 = vsub.f32 %v164, %v1255
        %v1257 = vand.u32 %v1256, 4294901760
        %1258 = vmatpush1.msra.mxu0 %v1257
        %1259 = vmatprep.subr.mxu0 0.0
        %v1260 = vand.u32 %v165, 4294901760
        %v1261 = vsub.f32 %v165, %v1260
        %v1262 = vand.u32 %v1261, 4294901760
        %1263 = vmatpush1.msra.mxu0 %v1262
        %1264 = vmatprep.subr.mxu0 0.0
        %v1265 = vand.u32 %v166, 4294901760
        %v1266 = vsub.f32 %v166, %v1265
        %v1267 = vand.u32 %v1266, 4294901760
        %1268 = vmatpush1.msra.mxu0 %v1267
        %1269 = vmatprep.subr.mxu0 0.0
        %v1270 = vand.u32 %v167, 4294901760
        %v1271 = vsub.f32 %v167, %v1270
        %v1272 = vand.u32 %v1271, 4294901760
        %1273 = vmatpush1.msra.mxu0 %v1272
        %1274 = vmatprep.subr.mxu0 0.0
        %v1275 = vand.u32 %v168, 4294901760
        %v1276 = vsub.f32 %v168, %v1275
        %v1277 = vand.u32 %v1276, 4294901760
        %1278 = vmatpush1.msra.mxu0 %v1277
        %1279 = vmatprep.subr.mxu0 0.0
        %v1280 = vand.u32 %v169, 4294901760
        %v1281 = vsub.f32 %v169, %v1280
        %v1282 = vand.u32 %v1281, 4294901760
        %1283 = vmatpush1.msra.mxu0 %v1282
        %1284 = vmatprep.subr.mxu0 0.0
        %v1285 = vand.u32 %v170, 4294901760
        %v1286 = vsub.f32 %v170, %v1285
        %v1287 = vand.u32 %v1286, 4294901760
        %1288 = vmatpush1.msra.mxu0 %v1287
        %1289 = vmatprep.subr.mxu0 0.0
        %v1290 = vand.u32 %v171, 4294901760
        %v1291 = vsub.f32 %v171, %v1290
        %v1292 = vand.u32 %v1291, 4294901760
        %1293 = vmatpush1.msra.mxu0 %v1292
        %1294 = vmatprep.subr.mxu0 0.0
        %v1295 = vand.u32 %v172, 4294901760
        %v1296 = vsub.f32 %v172, %v1295
        %v1297 = vand.u32 %v1296, 4294901760
        %1298 = vmatpush1.msra.mxu0 %v1297
        %1299 = vmatprep.subr.mxu0 0.0
        %v1300 = vand.u32 %v173, 4294901760
        %v1301 = vsub.f32 %v173, %v1300
        %v1302 = vand.u32 %v1301, 4294901760
        %1303 = vmatpush1.msra.mxu0 %v1302
        %1304 = vmatprep.subr.mxu0 0.0
        %v1305 = vand.u32 %v174, 4294901760
        %v1306 = vsub.f32 %v174, %v1305
        %v1307 = vand.u32 %v1306, 4294901760
        %1308 = vmatpush1.msra.mxu0 %v1307
        %1309 = vmatprep.subr.mxu0 0.0
        %v1310 = vand.u32 %v175, 4294901760
        %v1311 = vsub.f32 %v175, %v1310
        %v1312 = vand.u32 %v1311, 4294901760
        %1313 = vmatpush1.msra.mxu0 %v1312
        %1314 = vmatprep.subr.mxu0 0.0
        %v1315 = vand.u32 %v176, 4294901760
        %v1316 = vsub.f32 %v176, %v1315
        %v1317 = vand.u32 %v1316, 4294901760
        %1318 = vmatpush1.msra.mxu0 %v1317
        %1319 = vmatprep.subr.mxu0 0.0
        %v1320 = vand.u32 %v177, 4294901760
        %v1321 = vsub.f32 %v177, %v1320
        %v1322 = vand.u32 %v1321, 4294901760
        %1323 = vmatpush1.msra.mxu0 %v1322
        %1324 = vmatprep.subr.mxu0 0.0
        %v1325 = vand.u32 %v178, 4294901760
        %v1326 = vsub.f32 %v178, %v1325
        %v1327 = vand.u32 %v1326, 4294901760
        %1328 = vmatpush1.msra.mxu0 %v1327
        %1329 = vmatprep.subr.mxu0 0.0
        %v1330 = vand.u32 %v179, 4294901760
        %v1331 = vsub.f32 %v179, %v1330
        %v1332 = vand.u32 %v1331, 4294901760
        %1333 = vmatpush1.msra.mxu0 %v1332
        %1334 = vmatprep.subr.mxu0 0.0
        %v1335 = vand.u32 %v180, 4294901760
        %v1336 = vsub.f32 %v180, %v1335
        %v1337 = vand.u32 %v1336, 4294901760
        %1338 = vmatpush1.msra.mxu0 %v1337
        %1339 = vmatprep.subr.mxu0 0.0
        %v1340 = vand.u32 %v181, 4294901760
        %v1341 = vsub.f32 %v181, %v1340
        %v1342 = vand.u32 %v1341, 4294901760
        %1343 = vmatpush1.msra.mxu0 %v1342
        %1344 = vmatprep.subr.mxu0 0.0
        %v1345 = vand.u32 %v182, 4294901760
        %v1346 = vsub.f32 %v182, %v1345
        %v1347 = vand.u32 %v1346, 4294901760
        %1348 = vmatpush1.msra.mxu0 %v1347
        %1349 = vmatprep.subr.mxu0 0.0
        %v1350 = vand.u32 %v183, 4294901760
        %v1351 = vsub.f32 %v183, %v1350
        %v1352 = vand.u32 %v1351, 4294901760
        %1353 = vmatpush1.msra.mxu0 %v1352
        %1354 = vmatprep.subr.mxu0 0.0
        %v1355 = vand.u32 %v184, 4294901760
        %v1356 = vsub.f32 %v184, %v1355
        %v1357 = vand.u32 %v1356, 4294901760
        %1358 = vmatpush1.msra.mxu0 %v1357
        %1359 = vmatprep.subr.mxu0 0.0
        %v1360 = vand.u32 %v185, 4294901760
        %v1361 = vsub.f32 %v185, %v1360
        %v1362 = vand.u32 %v1361, 4294901760
        %1363 = vmatpush1.msra.mxu0 %v1362
        %1364 = vmatprep.subr.mxu0 0.0
        %v1365 = vand.u32 %v186, 4294901760
        %v1366 = vsub.f32 %v186, %v1365
        %v1367 = vand.u32 %v1366, 4294901760
        %1368 = vmatpush1.msra.mxu0 %v1367
        %1369 = vmatprep.subr.mxu0 0.0
        %v1370 = vand.u32 %v187, 4294901760
        %v1371 = vsub.f32 %v187, %v1370
        %v1372 = vand.u32 %v1371, 4294901760
        %1373 = vmatpush1.msra.mxu0 %v1372
        %1374 = vmatprep.subr.mxu0 0.0
        %v1375 = vand.u32 %v188, 4294901760
        %v1376 = vsub.f32 %v188, %v1375
        %v1377 = vand.u32 %v1376, 4294901760
        %1378 = vmatpush1.msra.mxu0 %v1377
        %1379 = vmatprep.subr.mxu0 0.0
        %v1380 = vand.u32 %v189, 4294901760
        %v1381 = vsub.f32 %v189, %v1380
        %v1382 = vand.u32 %v1381, 4294901760
        %1383 = vmatpush1.msra.mxu0 %v1382
        %1384 = vmatprep.subr.mxu0 0.0
        %v1385 = vand.u32 %v190, 4294901760
        %v1386 = vsub.f32 %v190, %v1385
        %v1387 = vand.u32 %v1386, 4294901760
        %1388 = vmatpush1.msra.mxu0 %v1387
        %1389 = vmatprep.subr.mxu0 0.0
        %v1390 = vand.u32 %v191, 4294901760
        %v1391 = vsub.f32 %v191, %v1390
        %v1392 = vand.u32 %v1391, 4294901760
        %1393 = vmatpush1.msra.mxu0 %v1392
        %1394 = vmatprep.subr.mxu0 0.0
        %v1395 = vand.u32 %v192, 4294901760
        %v1396 = vsub.f32 %v192, %v1395
        %v1397 = vand.u32 %v1396, 4294901760
        %1398 = vmatpush1.msra.mxu0 %v1397
        %1399 = vmatprep.subr.mxu0 0.0
        %v1400 = vand.u32 %v193, 4294901760
        %v1401 = vsub.f32 %v193, %v1400
        %v1402 = vand.u32 %v1401, 4294901760
        %1403 = vmatpush1.msra.mxu0 %v1402
        %v1404 = vand.u32 %v442, 4294901760
        %1405 = vmatprep.mubr.f32.mxu0 %v1404
        %v1406 = vand.u32 %v430, 4294901760
        %1407 = vmatmul.mubr.f32.gmra.mrb[0].mxu0 %v1406
        %v1408 = vpop.f32.mrb[0].mxu0
        %v1409 = vadd.f32 %v1230, %v1408
        %v1410 = vpop.f32.mrb[0].mxu0
        %v1411 = vand.u32 %v443, 4294901760
        %1412 = vmatprep.mubr.f32.mxu0 %v1411
        %v1413 = vand.u32 %v431, 4294901760
        %1414 = vmatmul.mubr.f32.gmra.mrb[0].mxu0 %v1413
        %v1415 = vpop.f32.mrb[0].mxu0
        %v1416 = vadd.f32 %v1241, %v1415
        %v1417 = vpop.f32.mrb[0].mxu0
        %1418 = vdwg.mxu0
        %1419 = vmatprep.subr.mxu0 0.0
        %v1420 = vand.u32 %v162, 4294901760
        %1421 = vmatpush1.msra.mxu0 %v1420
        %1422 = vmatprep.subr.mxu0 0.0
        %v1423 = vand.u32 %v163, 4294901760
        %1424 = vmatpush1.msra.mxu0 %v1423
        %1425 = vmatprep.subr.mxu0 0.0
        %v1426 = vand.u32 %v164, 4294901760
        %1427 = vmatpush1.msra.mxu0 %v1426
        %1428 = vmatprep.subr.mxu0 0.0
        %v1429 = vand.u32 %v165, 4294901760
        %1430 = vmatpush1.msra.mxu0 %v1429
        %1431 = vmatprep.subr.mxu0 0.0
        %v1432 = vand.u32 %v166, 4294901760
        %1433 = vmatpush1.msra.mxu0 %v1432
        %1434 = vmatprep.subr.mxu0 0.0
        %v1435 = vand.u32 %v167, 4294901760
        %1436 = vmatpush1.msra.mxu0 %v1435
        %1437 = vmatprep.subr.mxu0 0.0
        %v1438 = vand.u32 %v168, 4294901760
        %1439 = vmatpush1.msra.mxu0 %v1438
        %1440 = vmatprep.subr.mxu0 0.0
        %v1441 = vand.u32 %v169, 4294901760
        %1442 = vmatpush1.msra.mxu0 %v1441
        %1443 = vmatprep.subr.mxu0 0.0
        %v1444 = vand.u32 %v170, 4294901760
        %1445 = vmatpush1.msra.mxu0 %v1444
        %1446 = vmatprep.subr.mxu0 0.0
        %v1447 = vand.u32 %v171, 4294901760
        %1448 = vmatpush1.msra.mxu0 %v1447
        %1449 = vmatprep.subr.mxu0 0.0
        %v1450 = vand.u32 %v172, 4294901760
        %1451 = vmatpush1.msra.mxu0 %v1450
        %1452 = vmatprep.subr.mxu0 0.0
        %v1453 = vand.u32 %v173, 4294901760
        %1454 = vmatpush1.msra.mxu0 %v1453
        %1455 = vmatprep.subr.mxu0 0.0
        %v1456 = vand.u32 %v174, 4294901760
        %1457 = vmatpush1.msra.mxu0 %v1456
        %1458 = vmatprep.subr.mxu0 0.0
        %v1459 = vand.u32 %v175, 4294901760
        %1460 = vmatpush1.msra.mxu0 %v1459
        %1461 = vmatprep.subr.mxu0 0.0
        %v1462 = vand.u32 %v176, 4294901760
        %1463 = vmatpush1.msra.mxu0 %v1462
        %1464 = vmatprep.subr.mxu0 0.0
        %v1465 = vand.u32 %v177, 4294901760
        %1466 = vmatpush1.msra.mxu0 %v1465
        %1467 = vmatprep.subr.mxu0 0.0
        %v1468 = vand.u32 %v178, 4294901760
        %1469 = vmatpush1.msra.mxu0 %v1468
        %1470 = vmatprep.subr.mxu0 0.0
        %v1471 = vand.u32 %v179, 4294901760
        %1472 = vmatpush1.msra.mxu0 %v1471
        %1473 = vmatprep.subr.mxu0 0.0
        %v1474 = vand.u32 %v180, 4294901760
        %1475 = vmatpush1.msra.mxu0 %v1474
        %1476 = vmatprep.subr.mxu0 0.0
        %v1477 = vand.u32 %v181, 4294901760
        %1478 = vmatpush1.msra.mxu0 %v1477
        %1479 = vmatprep.subr.mxu0 0.0
        %v1480 = vand.u32 %v182, 4294901760
        %1481 = vmatpush1.msra.mxu0 %v1480
        %1482 = vmatprep.subr.mxu0 0.0
        %v1483 = vand.u32 %v183, 4294901760
        %1484 = vmatpush1.msra.mxu0 %v1483
        %1485 = vmatprep.subr.mxu0 0.0
        %v1486 = vand.u32 %v184, 4294901760
        %1487 = vmatpush1.msra.mxu0 %v1486
        %1488 = vmatprep.subr.mxu0 0.0
        %v1489 = vand.u32 %v185, 4294901760
        %1490 = vmatpush1.msra.mxu0 %v1489
        %1491 = vmatprep.subr.mxu0 0.0
        %v1492 = vand.u32 %v186, 4294901760
        %1493 = vmatpush1.msra.mxu0 %v1492
        %1494 = vmatprep.subr.mxu0 0.0
        %v1495 = vand.u32 %v187, 4294901760
        %1496 = vmatpush1.msra.mxu0 %v1495
        %1497 = vmatprep.subr.mxu0 0.0
        %v1498 = vand.u32 %v188, 4294901760
        %1499 = vmatpush1.msra.mxu0 %v1498
        %1500 = vmatprep.subr.mxu0 0.0
        %v1501 = vand.u32 %v189, 4294901760
        %1502 = vmatpush1.msra.mxu0 %v1501
        %1503 = vmatprep.subr.mxu0 0.0
        %v1504 = vand.u32 %v190, 4294901760
        %1505 = vmatpush1.msra.mxu0 %v1504
        %1506 = vmatprep.subr.mxu0 0.0
        %v1507 = vand.u32 %v191, 4294901760
        %1508 = vmatpush1.msra.mxu0 %v1507
        %1509 = vmatprep.subr.mxu0 0.0
        %v1510 = vand.u32 %v192, 4294901760
        %1511 = vmatpush1.msra.mxu0 %v1510
        %1512 = vmatprep.subr.mxu0 0.0
        %v1513 = vand.u32 %v193, 4294901760
        %1514 = vmatpush1.msra.mxu0 %v1513
        %v1515 = vand.u32 %v442, 4294901760
        %1516 = vmatprep.mubr.f32.mxu0 %v1515
        %v1517 = vand.u32 %v430, 4294901760
        %1518 = vmatmul.mubr.f32.gmra.mrb[0].mxu0 %v1517
        %v1519 = vpop.f32.mrb[0].mxu0
        %v1520 = vadd.f32 %v1409, %v1519
        %v1521 = vpop.f32.mrb[0].mxu0
        %v1522 = vand.u32 %v443, 4294901760
        %1523 = vmatprep.mubr.f32.mxu0 %v1522
        %v1524 = vand.u32 %v431, 4294901760
        %1525 = vmatmul.mubr.f32.gmra.mrb[0].mxu0 %v1524
        %v1526 = vpop.f32.mrb[0].mxu0
        %v1527 = vadd.f32 %v1416, %v1526
        %v1528 = vpop.f32.mrb[0].mxu0
        %1529 = vdwg.mxu0
        %1530 = vmatprep.subr.mxu0 0.0
        %v1531 = vand.u32 %v194, 4294901760
        %1532 = vmatpush1.msra.mxu0 %v1531
        %1533 = vmatprep.subr.mxu0 0.0
        %v1534 = vand.u32 %v195, 4294901760
        %1535 = vmatpush1.msra.mxu0 %v1534
        %1536 = vmatprep.subr.mxu0 0.0
        %v1537 = vand.u32 %v196, 4294901760
        %1538 = vmatpush1.msra.mxu0 %v1537
        %1539 = vmatprep.subr.mxu0 0.0
        %v1540 = vand.u32 %v197, 4294901760
        %1541 = vmatpush1.msra.mxu0 %v1540
        %1542 = vmatprep.subr.mxu0 0.0
        %v1543 = vand.u32 %v198, 4294901760
        %1544 = vmatpush1.msra.mxu0 %v1543
        %1545 = vmatprep.subr.mxu0 0.0
        %v1546 = vand.u32 %v199, 4294901760
        %1547 = vmatpush1.msra.mxu0 %v1546
        %1548 = vmatprep.subr.mxu0 0.0
        %v1549 = vand.u32 %v200, 4294901760
        %1550 = vmatpush1.msra.mxu0 %v1549
        %1551 = vmatprep.subr.mxu0 0.0
        %v1552 = vand.u32 %v201, 4294901760
        %1553 = vmatpush1.msra.mxu0 %v1552
        %1554 = vmatprep.subr.mxu0 0.0
        %v1555 = vand.u32 %v202, 4294901760
        %1556 = vmatpush1.msra.mxu0 %v1555
        %1557 = vmatprep.subr.mxu0 0.0
        %v1558 = vand.u32 %v203, 4294901760
        %1559 = vmatpush1.msra.mxu0 %v1558
        %1560 = vmatprep.subr.mxu0 0.0
        %v1561 = vand.u32 %v204, 4294901760
        %1562 = vmatpush1.msra.mxu0 %v1561
        %1563 = vmatprep.subr.mxu0 0.0
        %v1564 = vand.u32 %v205, 4294901760
        %1565 = vmatpush1.msra.mxu0 %v1564
        %1566 = vmatprep.subr.mxu0 0.0
        %v1567 = vand.u32 %v206, 4294901760
        %1568 = vmatpush1.msra.mxu0 %v1567
        %1569 = vmatprep.subr.mxu0 0.0
        %v1570 = vand.u32 %v207, 4294901760
        %1571 = vmatpush1.msra.mxu0 %v1570
        %1572 = vmatprep.subr.mxu0 0.0
        %v1573 = vand.u32 %v208, 4294901760
        %1574 = vmatpush1.msra.mxu0 %v1573
        %1575 = vmatprep.subr.mxu0 0.0
        %v1576 = vand.u32 %v209, 4294901760
        %1577 = vmatpush1.msra.mxu0 %v1576
        %1578 = vmatprep.subr.mxu0 0.0
        %v1579 = vand.u32 %v210, 4294901760
        %1580 = vmatpush1.msra.mxu0 %v1579
        %1581 = vmatprep.subr.mxu0 0.0
        %v1582 = vand.u32 %v211, 4294901760
        %1583 = vmatpush1.msra.mxu0 %v1582
        %1584 = vmatprep.subr.mxu0 0.0
        %v1585 = vand.u32 %v212, 4294901760
        %1586 = vmatpush1.msra.mxu0 %v1585
        %1587 = vmatprep.subr.mxu0 0.0
        %v1588 = vand.u32 %v213, 4294901760
        %1589 = vmatpush1.msra.mxu0 %v1588
        %1590 = vmatprep.subr.mxu0 0.0
        %v1591 = vand.u32 %v214, 4294901760
        %1592 = vmatpush1.msra.mxu0 %v1591
        %1593 = vmatprep.subr.mxu0 0.0
        %v1594 = vand.u32 %v215, 4294901760
        %1595 = vmatpush1.msra.mxu0 %v1594
        %1596 = vmatprep.subr.mxu0 0.0
        %v1597 = vand.u32 %v216, 4294901760
        %1598 = vmatpush1.msra.mxu0 %v1597
        %1599 = vmatprep.subr.mxu0 0.0
        %v1600 = vand.u32 %v217, 4294901760
        %1601 = vmatpush1.msra.mxu0 %v1600
        %1602 = vmatprep.subr.mxu0 0.0
        %v1603 = vand.u32 %v218, 4294901760
        %1604 = vmatpush1.msra.mxu0 %v1603
        %1605 = vmatprep.subr.mxu0 0.0
        %v1606 = vand.u32 %v219, 4294901760
        %1607 = vmatpush1.msra.mxu0 %v1606
        %1608 = vmatprep.subr.mxu0 0.0
        %v1609 = vand.u32 %v220, 4294901760
        %1610 = vmatpush1.msra.mxu0 %v1609
        %1611 = vmatprep.subr.mxu0 0.0
        %v1612 = vand.u32 %v221, 4294901760
        %1613 = vmatpush1.msra.mxu0 %v1612
        %1614 = vmatprep.subr.mxu0 0.0
        %v1615 = vand.u32 %v222, 4294901760
        %1616 = vmatpush1.msra.mxu0 %v1615
        %1617 = vmatprep.subr.mxu0 0.0
        %v1618 = vand.u32 %v223, 4294901760
        %1619 = vmatpush1.msra.mxu0 %v1618
        %1620 = vmatprep.subr.mxu0 0.0
        %v1621 = vand.u32 %v224, 4294901760
        %1622 = vmatpush1.msra.mxu0 %v1621
        %1623 = vmatprep.subr.mxu0 0.0
        %v1624 = vand.u32 %v225, 4294901760
        %1625 = vmatpush1.msra.mxu0 %v1624
        %v1626 = vand.u32 %v466, 4294901760
        %v1627 = vsub.f32 %v466, %v1626
        %v1628 = vand.u32 %v1627, 4294901760
        %v1629 = vsub.f32 %v1627, %v1628
        %v1630 = vand.u32 %v1629, 4294901760
        %1631 = vmatprep.mubr.f32.mxu0 %v1630
        %v1632 = vand.u32 %v454, 4294901760
        %v1633 = vsub.f32 %v454, %v1632
        %v1634 = vand.u32 %v1633, 4294901760
        %v1635 = vsub.f32 %v1633, %v1634
        %v1636 = vand.u32 %v1635, 4294901760
        %1637 = vmatmul.mubr.f32.gmra.mrb[0].mxu0 %v1636
        %v1638 = vpop.f32.mrb[0].mxu0
        %v1639 = vadd.f32 %v1520, %v1638
        %v1640 = vpop.f32.mrb[0].mxu0
        %v1641 = vand.u32 %v467, 4294901760
        %v1642 = vsub.f32 %v467, %v1641
        %v1643 = vand.u32 %v1642, 4294901760
        %v1644 = vsub.f32 %v1642, %v1643
        %v1645 = vand.u32 %v1644, 4294901760
        %1646 = vmatprep.mubr.f32.mxu0 %v1645
        %v1647 = vand.u32 %v455, 4294901760
        %v1648 = vsub.f32 %v455, %v1647
        %v1649 = vand.u32 %v1648, 4294901760
        %v1650 = vsub.f32 %v1648, %v1649
        %v1651 = vand.u32 %v1650, 4294901760
        %1652 = vmatmul.mubr.f32.gmra.mrb[0].mxu0 %v1651
        %v1653 = vpop.f32.mrb[0].mxu0
        %v1654 = vadd.f32 %v1527, %v1653
        %v1655 = vpop.f32.mrb[0].mxu0
        %1656 = vdwg.mxu0
        %1657 = vmatprep.subr.mxu0 0.0
        %v1658 = vand.u32 %v194, 4294901760
        %v1659 = vsub.f32 %v194, %v1658
        %v1660 = vand.u32 %v1659, 4294901760
        %v1661 = vsub.f32 %v1659, %v1660
        %v1662 = vand.u32 %v1661, 4294901760
        %1663 = vmatpush1.msra.mxu0 %v1662
        %1664 = vmatprep.subr.mxu0 0.0
        %v1665 = vand.u32 %v195, 4294901760
        %v1666 = vsub.f32 %v195, %v1665
        %v1667 = vand.u32 %v1666, 4294901760
        %v1668 = vsub.f32 %v1666, %v1667
        %v1669 = vand.u32 %v1668, 4294901760
        %1670 = vmatpush1.msra.mxu0 %v1669
        %1671 = vmatprep.subr.mxu0 0.0
        %v1672 = vand.u32 %v196, 4294901760
        %v1673 = vsub.f32 %v196, %v1672
        %v1674 = vand.u32 %v1673, 4294901760
        %v1675 = vsub.f32 %v1673, %v1674
        %v1676 = vand.u32 %v1675, 4294901760
        %1677 = vmatpush1.msra.mxu0 %v1676
        %1678 = vmatprep.subr.mxu0 0.0
        %v1679 = vand.u32 %v197, 4294901760
        %v1680 = vsub.f32 %v197, %v1679
        %v1681 = vand.u32 %v1680, 4294901760
        %v1682 = vsub.f32 %v1680, %v1681
        %v1683 = vand.u32 %v1682, 4294901760
        %1684 = vmatpush1.msra.mxu0 %v1683
        %1685 = vmatprep.subr.mxu0 0.0
        %v1686 = vand.u32 %v198, 4294901760
        %v1687 = vsub.f32 %v198, %v1686
        %v1688 = vand.u32 %v1687, 4294901760
        %v1689 = vsub.f32 %v1687, %v1688
        %v1690 = vand.u32 %v1689, 4294901760
        %1691 = vmatpush1.msra.mxu0 %v1690
        %1692 = vmatprep.subr.mxu0 0.0
        %v1693 = vand.u32 %v199, 4294901760
        %v1694 = vsub.f32 %v199, %v1693
        %v1695 = vand.u32 %v1694, 4294901760
        %v1696 = vsub.f32 %v1694, %v1695
        %v1697 = vand.u32 %v1696, 4294901760
        %1698 = vmatpush1.msra.mxu0 %v1697
        %1699 = vmatprep.subr.mxu0 0.0
        %v1700 = vand.u32 %v200, 4294901760
        %v1701 = vsub.f32 %v200, %v1700
        %v1702 = vand.u32 %v1701, 4294901760
        %v1703 = vsub.f32 %v1701, %v1702
        %v1704 = vand.u32 %v1703, 4294901760
        %1705 = vmatpush1.msra.mxu0 %v1704
        %1706 = vmatprep.subr.mxu0 0.0
        %v1707 = vand.u32 %v201, 4294901760
        %v1708 = vsub.f32 %v201, %v1707
        %v1709 = vand.u32 %v1708, 4294901760
        %v1710 = vsub.f32 %v1708, %v1709
        %v1711 = vand.u32 %v1710, 4294901760
        %1712 = vmatpush1.msra.mxu0 %v1711
        %1713 = vmatprep.subr.mxu0 0.0
        %v1714 = vand.u32 %v202, 4294901760
        %v1715 = vsub.f32 %v202, %v1714
        %v1716 = vand.u32 %v1715, 4294901760
        %v1717 = vsub.f32 %v1715, %v1716
        %v1718 = vand.u32 %v1717, 4294901760
        %1719 = vmatpush1.msra.mxu0 %v1718
        %1720 = vmatprep.subr.mxu0 0.0
        %v1721 = vand.u32 %v203, 4294901760
        %v1722 = vsub.f32 %v203, %v1721
        %v1723 = vand.u32 %v1722, 4294901760
        %v1724 = vsub.f32 %v1722, %v1723
        %v1725 = vand.u32 %v1724, 4294901760
        %1726 = vmatpush1.msra.mxu0 %v1725
        %1727 = vmatprep.subr.mxu0 0.0
        %v1728 = vand.u32 %v204, 4294901760
        %v1729 = vsub.f32 %v204, %v1728
        %v1730 = vand.u32 %v1729, 4294901760
        %v1731 = vsub.f32 %v1729, %v1730
        %v1732 = vand.u32 %v1731, 4294901760
        %1733 = vmatpush1.msra.mxu0 %v1732
        %1734 = vmatprep.subr.mxu0 0.0
        %v1735 = vand.u32 %v205, 4294901760
        %v1736 = vsub.f32 %v205, %v1735
        %v1737 = vand.u32 %v1736, 4294901760
        %v1738 = vsub.f32 %v1736, %v1737
        %v1739 = vand.u32 %v1738, 4294901760
        %1740 = vmatpush1.msra.mxu0 %v1739
        %1741 = vmatprep.subr.mxu0 0.0
        %v1742 = vand.u32 %v206, 4294901760
        %v1743 = vsub.f32 %v206, %v1742
        %v1744 = vand.u32 %v1743, 4294901760
        %v1745 = vsub.f32 %v1743, %v1744
        %v1746 = vand.u32 %v1745, 4294901760
        %1747 = vmatpush1.msra.mxu0 %v1746
        %1748 = vmatprep.subr.mxu0 0.0
        %v1749 = vand.u32 %v207, 4294901760
        %v1750 = vsub.f32 %v207, %v1749
        %v1751 = vand.u32 %v1750, 4294901760
        %v1752 = vsub.f32 %v1750, %v1751
        %v1753 = vand.u32 %v1752, 4294901760
        %1754 = vmatpush1.msra.mxu0 %v1753
        %1755 = vmatprep.subr.mxu0 0.0
        %v1756 = vand.u32 %v208, 4294901760
        %v1757 = vsub.f32 %v208, %v1756
        %v1758 = vand.u32 %v1757, 4294901760
        %v1759 = vsub.f32 %v1757, %v1758
        %v1760 = vand.u32 %v1759, 4294901760
        %1761 = vmatpush1.msra.mxu0 %v1760
        %1762 = vmatprep.subr.mxu0 0.0
        %v1763 = vand.u32 %v209, 4294901760
        %v1764 = vsub.f32 %v209, %v1763
        %v1765 = vand.u32 %v1764, 4294901760
        %v1766 = vsub.f32 %v1764, %v1765
        %v1767 = vand.u32 %v1766, 4294901760
        %1768 = vmatpush1.msra.mxu0 %v1767
        %1769 = vmatprep.subr.mxu0 0.0
        %v1770 = vand.u32 %v210, 4294901760
        %v1771 = vsub.f32 %v210, %v1770
        %v1772 = vand.u32 %v1771, 4294901760
        %v1773 = vsub.f32 %v1771, %v1772
        %v1774 = vand.u32 %v1773, 4294901760
        %1775 = vmatpush1.msra.mxu0 %v1774
        %1776 = vmatprep.subr.mxu0 0.0
        %v1777 = vand.u32 %v211, 4294901760
        %v1778 = vsub.f32 %v211, %v1777
        %v1779 = vand.u32 %v1778, 4294901760
        %v1780 = vsub.f32 %v1778, %v1779
        %v1781 = vand.u32 %v1780, 4294901760
        %1782 = vmatpush1.msra.mxu0 %v1781
        %1783 = vmatprep.subr.mxu0 0.0
        %v1784 = vand.u32 %v212, 4294901760
        %v1785 = vsub.f32 %v212, %v1784
        %v1786 = vand.u32 %v1785, 4294901760
        %v1787 = vsub.f32 %v1785, %v1786
        %v1788 = vand.u32 %v1787, 4294901760
        %1789 = vmatpush1.msra.mxu0 %v1788
        %1790 = vmatprep.subr.mxu0 0.0
        %v1791 = vand.u32 %v213, 4294901760
        %v1792 = vsub.f32 %v213, %v1791
        %v1793 = vand.u32 %v1792, 4294901760
        %v1794 = vsub.f32 %v1792, %v1793
        %v1795 = vand.u32 %v1794, 4294901760
        %1796 = vmatpush1.msra.mxu0 %v1795
        %1797 = vmatprep.subr.mxu0 0.0
        %v1798 = vand.u32 %v214, 4294901760
        %v1799 = vsub.f32 %v214, %v1798
        %v1800 = vand.u32 %v1799, 4294901760
        %v1801 = vsub.f32 %v1799, %v1800
        %v1802 = vand.u32 %v1801, 4294901760
        %1803 = vmatpush1.msra.mxu0 %v1802
        %1804 = vmatprep.subr.mxu0 0.0
        %v1805 = vand.u32 %v215, 4294901760
        %v1806 = vsub.f32 %v215, %v1805
        %v1807 = vand.u32 %v1806, 4294901760
        %v1808 = vsub.f32 %v1806, %v1807
        %v1809 = vand.u32 %v1808, 4294901760
        %1810 = vmatpush1.msra.mxu0 %v1809
        %1811 = vmatprep.subr.mxu0 0.0
        %v1812 = vand.u32 %v216, 4294901760
        %v1813 = vsub.f32 %v216, %v1812
        %v1814 = vand.u32 %v1813, 4294901760
        %v1815 = vsub.f32 %v1813, %v1814
        %v1816 = vand.u32 %v1815, 4294901760
        %1817 = vmatpush1.msra.mxu0 %v1816
        %1818 = vmatprep.subr.mxu0 0.0
        %v1819 = vand.u32 %v217, 4294901760
        %v1820 = vsub.f32 %v217, %v1819
        %v1821 = vand.u32 %v1820, 4294901760
        %v1822 = vsub.f32 %v1820, %v1821
        %v1823 = vand.u32 %v1822, 4294901760
        %1824 = vmatpush1.msra.mxu0 %v1823
        %1825 = vmatprep.subr.mxu0 0.0
        %v1826 = vand.u32 %v218, 4294901760
        %v1827 = vsub.f32 %v218, %v1826
        %v1828 = vand.u32 %v1827, 4294901760
        %v1829 = vsub.f32 %v1827, %v1828
        %v1830 = vand.u32 %v1829, 4294901760
        %1831 = vmatpush1.msra.mxu0 %v1830
        %1832 = vmatprep.subr.mxu0 0.0
        %v1833 = vand.u32 %v219, 4294901760
        %v1834 = vsub.f32 %v219, %v1833
        %v1835 = vand.u32 %v1834, 4294901760
        %v1836 = vsub.f32 %v1834, %v1835
        %v1837 = vand.u32 %v1836, 4294901760
        %1838 = vmatpush1.msra.mxu0 %v1837
        %1839 = vmatprep.subr.mxu0 0.0
        %v1840 = vand.u32 %v220, 4294901760
        %v1841 = vsub.f32 %v220, %v1840
        %v1842 = vand.u32 %v1841, 4294901760
        %v1843 = vsub.f32 %v1841, %v1842
        %v1844 = vand.u32 %v1843, 4294901760
        %1845 = vmatpush1.msra.mxu0 %v1844
        %1846 = vmatprep.subr.mxu0 0.0
        %v1847 = vand.u32 %v221, 4294901760
        %v1848 = vsub.f32 %v221, %v1847
        %v1849 = vand.u32 %v1848, 4294901760
        %v1850 = vsub.f32 %v1848, %v1849
        %v1851 = vand.u32 %v1850, 4294901760
        %1852 = vmatpush1.msra.mxu0 %v1851
        %1853 = vmatprep.subr.mxu0 0.0
        %v1854 = vand.u32 %v222, 4294901760
        %v1855 = vsub.f32 %v222, %v1854
        %v1856 = vand.u32 %v1855, 4294901760
        %v1857 = vsub.f32 %v1855, %v1856
        %v1858 = vand.u32 %v1857, 4294901760
        %1859 = vmatpush1.msra.mxu0 %v1858
        %1860 = vmatprep.subr.mxu0 0.0
        %v1861 = vand.u32 %v223, 4294901760
        %v1862 = vsub.f32 %v223, %v1861
        %v1863 = vand.u32 %v1862, 4294901760
        %v1864 = vsub.f32 %v1862, %v1863
        %v1865 = vand.u32 %v1864, 4294901760
        %1866 = vmatpush1.msra.mxu0 %v1865
        %1867 = vmatprep.subr.mxu0 0.0
        %v1868 = vand.u32 %v224, 4294901760
        %v1869 = vsub.f32 %v224, %v1868
        %v1870 = vand.u32 %v1869, 4294901760
        %v1871 = vsub.f32 %v1869, %v1870
        %v1872 = vand.u32 %v1871, 4294901760
        %1873 = vmatpush1.msra.mxu0 %v1872
        %1874 = vmatprep.subr.mxu0 0.0
        %v1875 = vand.u32 %v225, 4294901760
        %v1876 = vsub.f32 %v225, %v1875
        %v1877 = vand.u32 %v1876, 4294901760
        %v1878 = vsub.f32 %v1876, %v1877
        %v1879 = vand.u32 %v1878, 4294901760
        %1880 = vmatpush1.msra.mxu0 %v1879
        %v1881 = vand.u32 %v466, 4294901760
        %1882 = vmatprep.mubr.f32.mxu0 %v1881
        %v1883 = vand.u32 %v454, 4294901760
        %1884 = vmatmul.mubr.f32.gmra.mrb[0].mxu0 %v1883
        %v1885 = vpop.f32.mrb[0].mxu0
        %v1886 = vadd.f32 %v1639, %v1885
        %v1887 = vpop.f32.mrb[0].mxu0
        %v1888 = vand.u32 %v467, 4294901760
        %1889 = vmatprep.mubr.f32.mxu0 %v1888
        %v1890 = vand.u32 %v455, 4294901760
        %1891 = vmatmul.mubr.f32.gmra.mrb[0].mxu0 %v1890
        %v1892 = vpop.f32.mrb[0].mxu0
        %v1893 = vadd.f32 %v1654, %v1892
        %v1894 = vpop.f32.mrb[0].mxu0
        %1895 = vdwg.mxu0
        %1896 = vmatprep.subr.mxu0 0.0
        %v1897 = vand.u32 %v194, 4294901760
        %v1898 = vsub.f32 %v194, %v1897
        %1899 = vmatpush1.msra.mxu0 %v1898
        %1900 = vmatprep.subr.mxu0 0.0
        %v1901 = vand.u32 %v195, 4294901760
        %v1902 = vsub.f32 %v195, %v1901
        %1903 = vmatpush1.msra.mxu0 %v1902
        %1904 = vmatprep.subr.mxu0 0.0
        %v1905 = vand.u32 %v196, 4294901760
        %v1906 = vsub.f32 %v196, %v1905
        %1907 = vmatpush1.msra.mxu0 %v1906
        %1908 = vmatprep.subr.mxu0 0.0
        %v1909 = vand.u32 %v197, 4294901760
        %v1910 = vsub.f32 %v197, %v1909
        %1911 = vmatpush1.msra.mxu0 %v1910
        %1912 = vmatprep.subr.mxu0 0.0
        %v1913 = vand.u32 %v198, 4294901760
        %v1914 = vsub.f32 %v198, %v1913
        %1915 = vmatpush1.msra.mxu0 %v1914
        %1916 = vmatprep.subr.mxu0 0.0
        %v1917 = vand.u32 %v199, 4294901760
        %v1918 = vsub.f32 %v199, %v1917
        %1919 = vmatpush1.msra.mxu0 %v1918
        %1920 = vmatprep.subr.mxu0 0.0
        %v1921 = vand.u32 %v200, 4294901760
        %v1922 = vsub.f32 %v200, %v1921
        %1923 = vmatpush1.msra.mxu0 %v1922
        %1924 = vmatprep.subr.mxu0 0.0
        %v1925 = vand.u32 %v201, 4294901760
        %v1926 = vsub.f32 %v201, %v1925
        %1927 = vmatpush1.msra.mxu0 %v1926
        %1928 = vmatprep.subr.mxu0 0.0
        %v1929 = vand.u32 %v202, 4294901760
        %v1930 = vsub.f32 %v202, %v1929
        %1931 = vmatpush1.msra.mxu0 %v1930
        %1932 = vmatprep.subr.mxu0 0.0
        %v1933 = vand.u32 %v203, 4294901760
        %v1934 = vsub.f32 %v203, %v1933
        %1935 = vmatpush1.msra.mxu0 %v1934
        %1936 = vmatprep.subr.mxu0 0.0
        %v1937 = vand.u32 %v204, 4294901760
        %v1938 = vsub.f32 %v204, %v1937
        %1939 = vmatpush1.msra.mxu0 %v1938
        %1940 = vmatprep.subr.mxu0 0.0
        %v1941 = vand.u32 %v205, 4294901760
        %v1942 = vsub.f32 %v205, %v1941
        %1943 = vmatpush1.msra.mxu0 %v1942
        %1944 = vmatprep.subr.mxu0 0.0
        %v1945 = vand.u32 %v206, 4294901760
        %v1946 = vsub.f32 %v206, %v1945
        %1947 = vmatpush1.msra.mxu0 %v1946
        %1948 = vmatprep.subr.mxu0 0.0
        %v1949 = vand.u32 %v207, 4294901760
        %v1950 = vsub.f32 %v207, %v1949
        %1951 = vmatpush1.msra.mxu0 %v1950
        %1952 = vmatprep.subr.mxu0 0.0
        %v1953 = vand.u32 %v208, 4294901760
        %v1954 = vsub.f32 %v208, %v1953
        %1955 = vmatpush1.msra.mxu0 %v1954
        %1956 = vmatprep.subr.mxu0 0.0
        %v1957 = vand.u32 %v209, 4294901760
        %v1958 = vsub.f32 %v209, %v1957
        %1959 = vmatpush1.msra.mxu0 %v1958
        %1960 = vmatprep.subr.mxu0 0.0
        %v1961 = vand.u32 %v210, 4294901760
        %v1962 = vsub.f32 %v210, %v1961
        %1963 = vmatpush1.msra.mxu0 %v1962
        %1964 = vmatprep.subr.mxu0 0.0
        %v1965 = vand.u32 %v211, 4294901760
        %v1966 = vsub.f32 %v211, %v1965
        %1967 = vmatpush1.msra.mxu0 %v1966
        %1968 = vmatprep.subr.mxu0 0.0
        %v1969 = vand.u32 %v212, 4294901760
        %v1970 = vsub.f32 %v212, %v1969
        %1971 = vmatpush1.msra.mxu0 %v1970
        %1972 = vmatprep.subr.mxu0 0.0
        %v1973 = vand.u32 %v213, 4294901760
        %v1974 = vsub.f32 %v213, %v1973
        %1975 = vmatpush1.msra.mxu0 %v1974
        %1976 = vmatprep.subr.mxu0 0.0
        %v1977 = vand.u32 %v214, 4294901760
        %v1978 = vsub.f32 %v214, %v1977
        %1979 = vmatpush1.msra.mxu0 %v1978
        %1980 = vmatprep.subr.mxu0 0.0
        %v1981 = vand.u32 %v215, 4294901760
        %v1982 = vsub.f32 %v215, %v1981
        %1983 = vmatpush1.msra.mxu0 %v1982
        %1984 = vmatprep.subr.mxu0 0.0
        %v1985 = vand.u32 %v216, 4294901760
        %v1986 = vsub.f32 %v216, %v1985
        %1987 = vmatpush1.msra.mxu0 %v1986
        %1988 = vmatprep.subr.mxu0 0.0
        %v1989 = vand.u32 %v217, 4294901760
        %v1990 = vsub.f32 %v217, %v1989
        %1991 = vmatpush1.msra.mxu0 %v1990
        %1992 = vmatprep.subr.mxu0 0.0
        %v1993 = vand.u32 %v218, 4294901760
        %v1994 = vsub.f32 %v218, %v1993
        %1995 = vmatpush1.msra.mxu0 %v1994
        %1996 = vmatprep.subr.mxu0 0.0
        %v1997 = vand.u32 %v219, 4294901760
        %v1998 = vsub.f32 %v219, %v1997
        %1999 = vmatpush1.msra.mxu0 %v1998
        %2000 = vmatprep.subr.mxu0 0.0
        %v2001 = vand.u32 %v220, 4294901760
        %v2002 = vsub.f32 %v220, %v2001
        %2003 = vmatpush1.msra.mxu0 %v2002
        %2004 = vmatprep.subr.mxu0 0.0
        %v2005 = vand.u32 %v221, 4294901760
        %v2006 = vsub.f32 %v221, %v2005
        %2007 = vmatpush1.msra.mxu0 %v2006
        %2008 = vmatprep.subr.mxu0 0.0
        %v2009 = vand.u32 %v222, 4294901760
        %v2010 = vsub.f32 %v222, %v2009
        %2011 = vmatpush1.msra.mxu0 %v2010
        %2012 = vmatprep.subr.mxu0 0.0
        %v2013 = vand.u32 %v223, 4294901760
        %v2014 = vsub.f32 %v223, %v2013
        %2015 = vmatpush1.msra.mxu0 %v2014
        %2016 = vmatprep.subr.mxu0 0.0
        %v2017 = vand.u32 %v224, 4294901760
        %v2018 = vsub.f32 %v224, %v2017
        %2019 = vmatpush1.msra.mxu0 %v2018
        %2020 = vmatprep.subr.mxu0 0.0
        %v2021 = vand.u32 %v225, 4294901760
        %v2022 = vsub.f32 %v225, %v2021
        %2023 = vmatpush1.msra.mxu0 %v2022
        %v2024 = vand.u32 %v466, 4294901760
        %v2025 = vsub.f32 %v466, %v2024
        %2026 = vmatprep.mubr.f32.mxu0 %v2025
        %v2027 = vand.u32 %v454, 4294901760
        %v2028 = vsub.f32 %v454, %v2027
        %2029 = vmatmul.mubr.f32.gmra.mrb[0].mxu0 %v2028
        %v2030 = vpop.f32.mrb[0].mxu0
        %v2031 = vadd.f32 %v1886, %v2030
        %v2032 = vpop.f32.mrb[0].mxu0
        %v2033 = vand.u32 %v467, 4294901760
        %v2034 = vsub.f32 %v467, %v2033
        %2035 = vmatprep.mubr.f32.mxu0 %v2034
        %v2036 = vand.u32 %v455, 4294901760
        %v2037 = vsub.f32 %v455, %v2036
        %2038 = vmatmul.mubr.f32.gmra.mrb[0].mxu0 %v2037
        %v2039 = vpop.f32.mrb[0].mxu0
        %v2040 = vadd.f32 %v1893, %v2039
        %v2041 = vpop.f32.mrb[0].mxu0
        %2042 = vdwg.mxu0
        %2043 = vmatprep.subr.mxu0 0.0
        %v2044 = vand.u32 %v194, 4294901760
        %2045 = vmatpush1.msra.mxu0 %v2044
        %2046 = vmatprep.subr.mxu0 0.0
        %v2047 = vand.u32 %v195, 4294901760
        %2048 = vmatpush1.msra.mxu0 %v2047
        %2049 = vmatprep.subr.mxu0 0.0
        %v2050 = vand.u32 %v196, 4294901760
        %2051 = vmatpush1.msra.mxu0 %v2050
        %2052 = vmatprep.subr.mxu0 0.0
        %v2053 = vand.u32 %v197, 4294901760
        %2054 = vmatpush1.msra.mxu0 %v2053
        %2055 = vmatprep.subr.mxu0 0.0
        %v2056 = vand.u32 %v198, 4294901760
        %2057 = vmatpush1.msra.mxu0 %v2056
        %2058 = vmatprep.subr.mxu0 0.0
        %v2059 = vand.u32 %v199, 4294901760
        %2060 = vmatpush1.msra.mxu0 %v2059
        %2061 = vmatprep.subr.mxu0 0.0
        %v2062 = vand.u32 %v200, 4294901760
        %2063 = vmatpush1.msra.mxu0 %v2062
        %2064 = vmatprep.subr.mxu0 0.0
        %v2065 = vand.u32 %v201, 4294901760
        %2066 = vmatpush1.msra.mxu0 %v2065
        %2067 = vmatprep.subr.mxu0 0.0
        %v2068 = vand.u32 %v202, 4294901760
        %2069 = vmatpush1.msra.mxu0 %v2068
        %2070 = vmatprep.subr.mxu0 0.0
        %v2071 = vand.u32 %v203, 4294901760
        %2072 = vmatpush1.msra.mxu0 %v2071
        %2073 = vmatprep.subr.mxu0 0.0
        %v2074 = vand.u32 %v204, 4294901760
        %2075 = vmatpush1.msra.mxu0 %v2074
        %2076 = vmatprep.subr.mxu0 0.0
        %v2077 = vand.u32 %v205, 4294901760
        %2078 = vmatpush1.msra.mxu0 %v2077
        %2079 = vmatprep.subr.mxu0 0.0
        %v2080 = vand.u32 %v206, 4294901760
        %2081 = vmatpush1.msra.mxu0 %v2080
        %2082 = vmatprep.subr.mxu0 0.0
        %v2083 = vand.u32 %v207, 4294901760
        %2084 = vmatpush1.msra.mxu0 %v2083
        %2085 = vmatprep.subr.mxu0 0.0
        %v2086 = vand.u32 %v208, 4294901760
        %2087 = vmatpush1.msra.mxu0 %v2086
        %2088 = vmatprep.subr.mxu0 0.0
        %v2089 = vand.u32 %v209, 4294901760
        %2090 = vmatpush1.msra.mxu0 %v2089
        %2091 = vmatprep.subr.mxu0 0.0
        %v2092 = vand.u32 %v210, 4294901760
        %2093 = vmatpush1.msra.mxu0 %v2092
        %2094 = vmatprep.subr.mxu0 0.0
        %v2095 = vand.u32 %v211, 4294901760
        %2096 = vmatpush1.msra.mxu0 %v2095
        %2097 = vmatprep.subr.mxu0 0.0
        %v2098 = vand.u32 %v212, 4294901760
        %2099 = vmatpush1.msra.mxu0 %v2098
        %2100 = vmatprep.subr.mxu0 0.0
        %v2101 = vand.u32 %v213, 4294901760
        %2102 = vmatpush1.msra.mxu0 %v2101
        %2103 = vmatprep.subr.mxu0 0.0
        %v2104 = vand.u32 %v214, 4294901760
        %2105 = vmatpush1.msra.mxu0 %v2104
        %2106 = vmatprep.subr.mxu0 0.0
        %v2107 = vand.u32 %v215, 4294901760
        %2108 = vmatpush1.msra.mxu0 %v2107
        %2109 = vmatprep.subr.mxu0 0.0
        %v2110 = vand.u32 %v216, 4294901760
        %2111 = vmatpush1.msra.mxu0 %v2110
        %2112 = vmatprep.subr.mxu0 0.0
        %v2113 = vand.u32 %v217, 4294901760
        %2114 = vmatpush1.msra.mxu0 %v2113
        %2115 = vmatprep.subr.mxu0 0.0
        %v2116 = vand.u32 %v218, 4294901760
        %2117 = vmatpush1.msra.mxu0 %v2116
        %2118 = vmatprep.subr.mxu0 0.0
        %v2119 = vand.u32 %v219, 4294901760
        %2120 = vmatpush1.msra.mxu0 %v2119
        %2121 = vmatprep.subr.mxu0 0.0
        %v2122 = vand.u32 %v220, 4294901760
        %2123 = vmatpush1.msra.mxu0 %v2122
        %2124 = vmatprep.subr.mxu0 0.0
        %v2125 = vand.u32 %v221, 4294901760
        %2126 = vmatpush1.msra.mxu0 %v2125
        %2127 = vmatprep.subr.mxu0 0.0
        %v2128 = vand.u32 %v222, 4294901760
        %2129 = vmatpush1.msra.mxu0 %v2128
        %2130 = vmatprep.subr.mxu0 0.0
        %v2131 = vand.u32 %v223, 4294901760
        %2132 = vmatpush1.msra.mxu0 %v2131
        %2133 = vmatprep.subr.mxu0 0.0
        %v2134 = vand.u32 %v224, 4294901760
        %2135 = vmatpush1.msra.mxu0 %v2134
        %2136 = vmatprep.subr.mxu0 0.0
        %v2137 = vand.u32 %v225, 4294901760
        %2138 = vmatpush1.msra.mxu0 %v2137
        %v2139 = vand.u32 %v466, 4294901760
        %v2140 = vsub.f32 %v466, %v2139
        %v2141 = vand.u32 %v2140, 4294901760
        %2142 = vmatprep.mubr.f32.mxu0 %v2141
        %v2143 = vand.u32 %v454, 4294901760
        %v2144 = vsub.f32 %v454, %v2143
        %v2145 = vand.u32 %v2144, 4294901760
        %2146 = vmatmul.mubr.f32.gmra.mrb[0].mxu0 %v2145
        %v2147 = vpop.f32.mrb[0].mxu0
        %v2148 = vadd.f32 %v2031, %v2147
        %v2149 = vpop.f32.mrb[0].mxu0
        %v2150 = vand.u32 %v467, 4294901760
        %v2151 = vsub.f32 %v467, %v2150
        %v2152 = vand.u32 %v2151, 4294901760
        %2153 = vmatprep.mubr.f32.mxu0 %v2152
        %v2154 = vand.u32 %v455, 4294901760
        %v2155 = vsub.f32 %v455, %v2154
        %v2156 = vand.u32 %v2155, 4294901760
        %2157 = vmatmul.mubr.f32.gmra.mrb[0].mxu0 %v2156
        %v2158 = vpop.f32.mrb[0].mxu0
        %v2159 = vadd.f32 %v2040, %v2158
        %v2160 = vpop.f32.mrb[0].mxu0
        %2161 = vdwg.mxu0
        %2162 = vmatprep.subr.mxu0 0.0
        %v2163 = vand.u32 %v194, 4294901760
        %v2164 = vsub.f32 %v194, %v2163
        %v2165 = vand.u32 %v2164, 4294901760
        %2166 = vmatpush1.msra.mxu0 %v2165
        %2167 = vmatprep.subr.mxu0 0.0
        %v2168 = vand.u32 %v195, 4294901760
        %v2169 = vsub.f32 %v195, %v2168
        %v2170 = vand.u32 %v2169, 4294901760
        %2171 = vmatpush1.msra.mxu0 %v2170
        %2172 = vmatprep.subr.mxu0 0.0
        %v2173 = vand.u32 %v196, 4294901760
        %v2174 = vsub.f32 %v196, %v2173
        %v2175 = vand.u32 %v2174, 4294901760
        %2176 = vmatpush1.msra.mxu0 %v2175
        %2177 = vmatprep.subr.mxu0 0.0
        %v2178 = vand.u32 %v197, 4294901760
        %v2179 = vsub.f32 %v197, %v2178
        %v2180 = vand.u32 %v2179, 4294901760
        %2181 = vmatpush1.msra.mxu0 %v2180
        %2182 = vmatprep.subr.mxu0 0.0
        %v2183 = vand.u32 %v198, 4294901760
        %v2184 = vsub.f32 %v198, %v2183
        %v2185 = vand.u32 %v2184, 4294901760
        %2186 = vmatpush1.msra.mxu0 %v2185
        %2187 = vmatprep.subr.mxu0 0.0
        %v2188 = vand.u32 %v199, 4294901760
        %v2189 = vsub.f32 %v199, %v2188
        %v2190 = vand.u32 %v2189, 4294901760
        %2191 = vmatpush1.msra.mxu0 %v2190
        %2192 = vmatprep.subr.mxu0 0.0
        %v2193 = vand.u32 %v200, 4294901760
        %v2194 = vsub.f32 %v200, %v2193
        %v2195 = vand.u32 %v2194, 4294901760
        %2196 = vmatpush1.msra.mxu0 %v2195
        %2197 = vmatprep.subr.mxu0 0.0
        %v2198 = vand.u32 %v201, 4294901760
        %v2199 = vsub.f32 %v201, %v2198
        %v2200 = vand.u32 %v2199, 4294901760
        %2201 = vmatpush1.msra.mxu0 %v2200
        %2202 = vmatprep.subr.mxu0 0.0
        %v2203 = vand.u32 %v202, 4294901760
        %v2204 = vsub.f32 %v202, %v2203
        %v2205 = vand.u32 %v2204, 4294901760
        %2206 = vmatpush1.msra.mxu0 %v2205
        %2207 = vmatprep.subr.mxu0 0.0
        %v2208 = vand.u32 %v203, 4294901760
        %v2209 = vsub.f32 %v203, %v2208
        %v2210 = vand.u32 %v2209, 4294901760
        %2211 = vmatpush1.msra.mxu0 %v2210
        %2212 = vmatprep.subr.mxu0 0.0
        %v2213 = vand.u32 %v204, 4294901760
        %v2214 = vsub.f32 %v204, %v2213
        %v2215 = vand.u32 %v2214, 4294901760
        %2216 = vmatpush1.msra.mxu0 %v2215
        %2217 = vmatprep.subr.mxu0 0.0
        %v2218 = vand.u32 %v205, 4294901760
        %v2219 = vsub.f32 %v205, %v2218
        %v2220 = vand.u32 %v2219, 4294901760
        %2221 = vmatpush1.msra.mxu0 %v2220
        %2222 = vmatprep.subr.mxu0 0.0
        %v2223 = vand.u32 %v206, 4294901760
        %v2224 = vsub.f32 %v206, %v2223
        %v2225 = vand.u32 %v2224, 4294901760
        %2226 = vmatpush1.msra.mxu0 %v2225
        %2227 = vmatprep.subr.mxu0 0.0
        %v2228 = vand.u32 %v207, 4294901760
        %v2229 = vsub.f32 %v207, %v2228
        %v2230 = vand.u32 %v2229, 4294901760
        %2231 = vmatpush1.msra.mxu0 %v2230
        %2232 = vmatprep.subr.mxu0 0.0
        %v2233 = vand.u32 %v208, 4294901760
        %v2234 = vsub.f32 %v208, %v2233
        %v2235 = vand.u32 %v2234, 4294901760
        %2236 = vmatpush1.msra.mxu0 %v2235
        %2237 = vmatprep.subr.mxu0 0.0
        %v2238 = vand.u32 %v209, 4294901760
        %v2239 = vsub.f32 %v209, %v2238
        %v2240 = vand.u32 %v2239, 4294901760
        %2241 = vmatpush1.msra.mxu0 %v2240
        %2242 = vmatprep.subr.mxu0 0.0
        %v2243 = vand.u32 %v210, 4294901760
        %v2244 = vsub.f32 %v210, %v2243
        %v2245 = vand.u32 %v2244, 4294901760
        %2246 = vmatpush1.msra.mxu0 %v2245
        %2247 = vmatprep.subr.mxu0 0.0
        %v2248 = vand.u32 %v211, 4294901760
        %v2249 = vsub.f32 %v211, %v2248
        %v2250 = vand.u32 %v2249, 4294901760
        %2251 = vmatpush1.msra.mxu0 %v2250
        %2252 = vmatprep.subr.mxu0 0.0
        %v2253 = vand.u32 %v212, 4294901760
        %v2254 = vsub.f32 %v212, %v2253
        %v2255 = vand.u32 %v2254, 4294901760
        %2256 = vmatpush1.msra.mxu0 %v2255
        %2257 = vmatprep.subr.mxu0 0.0
        %v2258 = vand.u32 %v213, 4294901760
        %v2259 = vsub.f32 %v213, %v2258
        %v2260 = vand.u32 %v2259, 4294901760
        %2261 = vmatpush1.msra.mxu0 %v2260
        %2262 = vmatprep.subr.mxu0 0.0
        %v2263 = vand.u32 %v214, 4294901760
        %v2264 = vsub.f32 %v214, %v2263
        %v2265 = vand.u32 %v2264, 4294901760
        %2266 = vmatpush1.msra.mxu0 %v2265
        %2267 = vmatprep.subr.mxu0 0.0
        %v2268 = vand.u32 %v215, 4294901760
        %v2269 = vsub.f32 %v215, %v2268
        %v2270 = vand.u32 %v2269, 4294901760
        %2271 = vmatpush1.msra.mxu0 %v2270
        %2272 = vmatprep.subr.mxu0 0.0
        %v2273 = vand.u32 %v216, 4294901760
        %v2274 = vsub.f32 %v216, %v2273
        %v2275 = vand.u32 %v2274, 4294901760
        %2276 = vmatpush1.msra.mxu0 %v2275
        %2277 = vmatprep.subr.mxu0 0.0
        %v2278 = vand.u32 %v217, 4294901760
        %v2279 = vsub.f32 %v217, %v2278
        %v2280 = vand.u32 %v2279, 4294901760
        %2281 = vmatpush1.msra.mxu0 %v2280
        %2282 = vmatprep.subr.mxu0 0.0
        %v2283 = vand.u32 %v218, 4294901760
        %v2284 = vsub.f32 %v218, %v2283
        %v2285 = vand.u32 %v2284, 4294901760
        %2286 = vmatpush1.msra.mxu0 %v2285
        %2287 = vmatprep.subr.mxu0 0.0
        %v2288 = vand.u32 %v219, 4294901760
        %v2289 = vsub.f32 %v219, %v2288
        %v2290 = vand.u32 %v2289, 4294901760
        %2291 = vmatpush1.msra.mxu0 %v2290
        %2292 = vmatprep.subr.mxu0 0.0
        %v2293 = vand.u32 %v220, 4294901760
        %v2294 = vsub.f32 %v220, %v2293
        %v2295 = vand.u32 %v2294, 4294901760
        %2296 = vmatpush1.msra.mxu0 %v2295
        %2297 = vmatprep.subr.mxu0 0.0
        %v2298 = vand.u32 %v221, 4294901760
        %v2299 = vsub.f32 %v221, %v2298
        %v2300 = vand.u32 %v2299, 4294901760
        %2301 = vmatpush1.msra.mxu0 %v2300
        %2302 = vmatprep.subr.mxu0 0.0
        %v2303 = vand.u32 %v222, 4294901760
        %v2304 = vsub.f32 %v222, %v2303
        %v2305 = vand.u32 %v2304, 4294901760
        %2306 = vmatpush1.msra.mxu0 %v2305
        %2307 = vmatprep.subr.mxu0 0.0
        %v2308 = vand.u32 %v223, 4294901760
        %v2309 = vsub.f32 %v223, %v2308
        %v2310 = vand.u32 %v2309, 4294901760
        %2311 = vmatpush1.msra.mxu0 %v2310
        %2312 = vmatprep.subr.mxu0 0.0
        %v2313 = vand.u32 %v224, 4294901760
        %v2314 = vsub.f32 %v224, %v2313
        %v2315 = vand.u32 %v2314, 4294901760
        %2316 = vmatpush1.msra.mxu0 %v2315
        %2317 = vmatprep.subr.mxu0 0.0
        %v2318 = vand.u32 %v225, 4294901760
        %v2319 = vsub.f32 %v225, %v2318
        %v2320 = vand.u32 %v2319, 4294901760
        %2321 = vmatpush1.msra.mxu0 %v2320
        %v2322 = vand.u32 %v466, 4294901760
        %2323 = vmatprep.mubr.f32.mxu0 %v2322
        %v2324 = vand.u32 %v454, 4294901760
        %2325 = vmatmul.mubr.f32.gmra.mrb[0].mxu0 %v2324
        %v2326 = vpop.f32.mrb[0].mxu0
        %v2327 = vadd.f32 %v2148, %v2326
        %v2328 = vpop.f32.mrb[0].mxu0
        %v2329 = vand.u32 %v467, 4294901760
        %2330 = vmatprep.mubr.f32.mxu0 %v2329
        %v2331 = vand.u32 %v455, 4294901760
        %2332 = vmatmul.mubr.f32.gmra.mrb[0].mxu0 %v2331
        %v2333 = vpop.f32.mrb[0].mxu0
        %v2334 = vadd.f32 %v2159, %v2333
        %v2335 = vpop.f32.mrb[0].mxu0
        %2336 = vdwg.mxu0
        %2337 = vmatprep.subr.mxu0 0.0
        %v2338 = vand.u32 %v194, 4294901760
        %2339 = vmatpush1.msra.mxu0 %v2338
        %2340 = vmatprep.subr.mxu0 0.0
        %v2341 = vand.u32 %v195, 4294901760
        %2342 = vmatpush1.msra.mxu0 %v2341
        %2343 = vmatprep.subr.mxu0 0.0
        %v2344 = vand.u32 %v196, 4294901760
        %2345 = vmatpush1.msra.mxu0 %v2344
        %2346 = vmatprep.subr.mxu0 0.0
        %v2347 = vand.u32 %v197, 4294901760
        %2348 = vmatpush1.msra.mxu0 %v2347
        %2349 = vmatprep.subr.mxu0 0.0
        %v2350 = vand.u32 %v198, 4294901760
        %2351 = vmatpush1.msra.mxu0 %v2350
        %2352 = vmatprep.subr.mxu0 0.0
        %v2353 = vand.u32 %v199, 4294901760
        %2354 = vmatpush1.msra.mxu0 %v2353
        %2355 = vmatprep.subr.mxu0 0.0
        %v2356 = vand.u32 %v200, 4294901760
        %2357 = vmatpush1.msra.mxu0 %v2356
        %2358 = vmatprep.subr.mxu0 0.0
        %v2359 = vand.u32 %v201, 4294901760
        %2360 = vmatpush1.msra.mxu0 %v2359
        %2361 = vmatprep.subr.mxu0 0.0
        %v2362 = vand.u32 %v202, 4294901760
        %2363 = vmatpush1.msra.mxu0 %v2362
        %2364 = vmatprep.subr.mxu0 0.0
        %v2365 = vand.u32 %v203, 4294901760
        %2366 = vmatpush1.msra.mxu0 %v2365
        %2367 = vmatprep.subr.mxu0 0.0
        %v2368 = vand.u32 %v204, 4294901760
        %2369 = vmatpush1.msra.mxu0 %v2368
        %2370 = vmatprep.subr.mxu0 0.0
        %v2371 = vand.u32 %v205, 4294901760
        %2372 = vmatpush1.msra.mxu0 %v2371
        %2373 = vmatprep.subr.mxu0 0.0
        %v2374 = vand.u32 %v206, 4294901760
        %2375 = vmatpush1.msra.mxu0 %v2374
        %2376 = vmatprep.subr.mxu0 0.0
        %v2377 = vand.u32 %v207, 4294901760
        %2378 = vmatpush1.msra.mxu0 %v2377
        %2379 = vmatprep.subr.mxu0 0.0
        %v2380 = vand.u32 %v208, 4294901760
        %2381 = vmatpush1.msra.mxu0 %v2380
        %2382 = vmatprep.subr.mxu0 0.0
        %v2383 = vand.u32 %v209, 4294901760
        %2384 = vmatpush1.msra.mxu0 %v2383
        %2385 = vmatprep.subr.mxu0 0.0
        %v2386 = vand.u32 %v210, 4294901760
        %2387 = vmatpush1.msra.mxu0 %v2386
        %2388 = vmatprep.subr.mxu0 0.0
        %v2389 = vand.u32 %v211, 4294901760
        %2390 = vmatpush1.msra.mxu0 %v2389
        %2391 = vmatprep.subr.mxu0 0.0
        %v2392 = vand.u32 %v212, 4294901760
        %2393 = vmatpush1.msra.mxu0 %v2392
        %2394 = vmatprep.subr.mxu0 0.0
        %v2395 = vand.u32 %v213, 4294901760
        %2396 = vmatpush1.msra.mxu0 %v2395
        %2397 = vmatprep.subr.mxu0 0.0
        %v2398 = vand.u32 %v214, 4294901760
        %2399 = vmatpush1.msra.mxu0 %v2398
        %2400 = vmatprep.subr.mxu0 0.0
        %v2401 = vand.u32 %v215, 4294901760
        %2402 = vmatpush1.msra.mxu0 %v2401
        %2403 = vmatprep.subr.mxu0 0.0
        %v2404 = vand.u32 %v216, 4294901760
        %2405 = vmatpush1.msra.mxu0 %v2404
        %2406 = vmatprep.subr.mxu0 0.0
        %v2407 = vand.u32 %v217, 4294901760
        %2408 = vmatpush1.msra.mxu0 %v2407
        %2409 = vmatprep.subr.mxu0 0.0
        %v2410 = vand.u32 %v218, 4294901760
        %2411 = vmatpush1.msra.mxu0 %v2410
        %2412 = vmatprep.subr.mxu0 0.0
        %v2413 = vand.u32 %v219, 4294901760
        %2414 = vmatpush1.msra.mxu0 %v2413
        %2415 = vmatprep.subr.mxu0 0.0
        %v2416 = vand.u32 %v220, 4294901760
        %2417 = vmatpush1.msra.mxu0 %v2416
        %2418 = vmatprep.subr.mxu0 0.0
        %v2419 = vand.u32 %v221, 4294901760
        %2420 = vmatpush1.msra.mxu0 %v2419
        %2421 = vmatprep.subr.mxu0 0.0
        %v2422 = vand.u32 %v222, 4294901760
        %2423 = vmatpush1.msra.mxu0 %v2422
        %2424 = vmatprep.subr.mxu0 0.0
        %v2425 = vand.u32 %v223, 4294901760
        %2426 = vmatpush1.msra.mxu0 %v2425
        %2427 = vmatprep.subr.mxu0 0.0
        %v2428 = vand.u32 %v224, 4294901760
        %2429 = vmatpush1.msra.mxu0 %v2428
        %2430 = vmatprep.subr.mxu0 0.0
        %v2431 = vand.u32 %v225, 4294901760
        %2432 = vmatpush1.msra.mxu0 %v2431
        %v2433 = vand.u32 %v466, 4294901760
        %2434 = vmatprep.mubr.f32.mxu0 %v2433
        %v2435 = vand.u32 %v454, 4294901760
        %2436 = vmatmul.mubr.f32.gmra.mrb[0].mxu0 %v2435
        %v2437 = vpop.f32.mrb[0].mxu0
        %v2438 = vadd.f32 %v2327, %v2437
        %v2439 = vpop.f32.mrb[0].mxu0
        %v2440 = vand.u32 %v467, 4294901760
        %2441 = vmatprep.mubr.f32.mxu0 %v2440
        %v2442 = vand.u32 %v455, 4294901760
        %2443 = vmatmul.mubr.f32.gmra.mrb[0].mxu0 %v2442
        %v2444 = vpop.f32.mrb[0].mxu0
        %v2445 = vadd.f32 %v2334, %v2444
        %v2446 = vpop.f32.mrb[0].mxu0
        %2447 = vdwg.mxu0
        %2448 = vmatprep.subr.mxu0 0.0
        %v2449 = vand.u32 %v226, 4294901760
        %2450 = vmatpush1.msra.mxu0 %v2449
        %2451 = vmatprep.subr.mxu0 0.0
        %v2452 = vand.u32 %v227, 4294901760
        %2453 = vmatpush1.msra.mxu0 %v2452
        %2454 = vmatprep.subr.mxu0 0.0
        %v2455 = vand.u32 %v228, 4294901760
        %2456 = vmatpush1.msra.mxu0 %v2455
        %2457 = vmatprep.subr.mxu0 0.0
        %v2458 = vand.u32 %v229, 4294901760
        %2459 = vmatpush1.msra.mxu0 %v2458
        %2460 = vmatprep.subr.mxu0 0.0
        %v2461 = vand.u32 %v230, 4294901760
        %2462 = vmatpush1.msra.mxu0 %v2461
        %2463 = vmatprep.subr.mxu0 0.0
        %v2464 = vand.u32 %v231, 4294901760
        %2465 = vmatpush1.msra.mxu0 %v2464
        %2466 = vmatprep.subr.mxu0 0.0
        %v2467 = vand.u32 %v232, 4294901760
        %2468 = vmatpush1.msra.mxu0 %v2467
        %2469 = vmatprep.subr.mxu0 0.0
        %v2470 = vand.u32 %v233, 4294901760
        %2471 = vmatpush1.msra.mxu0 %v2470
        %2472 = vmatprep.subr.mxu0 0.0
        %v2473 = vand.u32 %v234, 4294901760
        %2474 = vmatpush1.msra.mxu0 %v2473
        %2475 = vmatprep.subr.mxu0 0.0
        %v2476 = vand.u32 %v235, 4294901760
        %2477 = vmatpush1.msra.mxu0 %v2476
        %2478 = vmatprep.subr.mxu0 0.0
        %v2479 = vand.u32 %v236, 4294901760
        %2480 = vmatpush1.msra.mxu0 %v2479
        %2481 = vmatprep.subr.mxu0 0.0
        %v2482 = vand.u32 %v237, 4294901760
        %2483 = vmatpush1.msra.mxu0 %v2482
        %2484 = vmatprep.subr.mxu0 0.0
        %v2485 = vand.u32 %v238, 4294901760
        %2486 = vmatpush1.msra.mxu0 %v2485
        %2487 = vmatprep.subr.mxu0 0.0
        %v2488 = vand.u32 %v239, 4294901760
        %2489 = vmatpush1.msra.mxu0 %v2488
        %2490 = vmatprep.subr.mxu0 0.0
        %v2491 = vand.u32 %v240, 4294901760
        %2492 = vmatpush1.msra.mxu0 %v2491
        %2493 = vmatprep.subr.mxu0 0.0
        %v2494 = vand.u32 %v241, 4294901760
        %2495 = vmatpush1.msra.mxu0 %v2494
        %2496 = vmatprep.subr.mxu0 0.0
        %v2497 = vand.u32 %v242, 4294901760
        %2498 = vmatpush1.msra.mxu0 %v2497
        %2499 = vmatprep.subr.mxu0 0.0
        %v2500 = vand.u32 %v243, 4294901760
        %2501 = vmatpush1.msra.mxu0 %v2500
        %2502 = vmatprep.subr.mxu0 0.0
        %v2503 = vand.u32 %v244, 4294901760
        %2504 = vmatpush1.msra.mxu0 %v2503
        %2505 = vmatprep.subr.mxu0 0.0
        %v2506 = vand.u32 %v245, 4294901760
        %2507 = vmatpush1.msra.mxu0 %v2506
        %2508 = vmatprep.subr.mxu0 0.0
        %v2509 = vand.u32 %v246, 4294901760
        %2510 = vmatpush1.msra.mxu0 %v2509
        %2511 = vmatprep.subr.mxu0 0.0
        %v2512 = vand.u32 %v247, 4294901760
        %2513 = vmatpush1.msra.mxu0 %v2512
        %2514 = vmatprep.subr.mxu0 0.0
        %v2515 = vand.u32 %v248, 4294901760
        %2516 = vmatpush1.msra.mxu0 %v2515
        %2517 = vmatprep.subr.mxu0 0.0
        %v2518 = vand.u32 %v249, 4294901760
        %2519 = vmatpush1.msra.mxu0 %v2518
        %2520 = vmatprep.subr.mxu0 0.0
        %v2521 = vand.u32 %v250, 4294901760
        %2522 = vmatpush1.msra.mxu0 %v2521
        %2523 = vmatprep.subr.mxu0 0.0
        %v2524 = vand.u32 %v251, 4294901760
        %2525 = vmatpush1.msra.mxu0 %v2524
        %2526 = vmatprep.subr.mxu0 0.0
        %v2527 = vand.u32 %v252, 4294901760
        %2528 = vmatpush1.msra.mxu0 %v2527
        %2529 = vmatprep.subr.mxu0 0.0
        %v2530 = vand.u32 %v253, 4294901760
        %2531 = vmatpush1.msra.mxu0 %v2530
        %2532 = vmatprep.subr.mxu0 0.0
        %v2533 = vand.u32 %v254, 4294901760
        %2534 = vmatpush1.msra.mxu0 %v2533
        %2535 = vmatprep.subr.mxu0 0.0
        %v2536 = vand.u32 %v255, 4294901760
        %2537 = vmatpush1.msra.mxu0 %v2536
        %2538 = vmatprep.subr.mxu0 0.0
        %v2539 = vand.u32 %v256, 4294901760
        %2540 = vmatpush1.msra.mxu0 %v2539
        %2541 = vmatprep.subr.mxu0 0.0
        %v2542 = vand.u32 %v257, 4294901760
        %2543 = vmatpush1.msra.mxu0 %v2542
        %v2544 = vand.u32 %v490, 4294901760
        %v2545 = vsub.f32 %v490, %v2544
        %v2546 = vand.u32 %v2545, 4294901760
        %v2547 = vsub.f32 %v2545, %v2546
        %v2548 = vand.u32 %v2547, 4294901760
        %2549 = vmatprep.mubr.f32.mxu0 %v2548
        %v2550 = vand.u32 %v478, 4294901760
        %v2551 = vsub.f32 %v478, %v2550
        %v2552 = vand.u32 %v2551, 4294901760
        %v2553 = vsub.f32 %v2551, %v2552
        %v2554 = vand.u32 %v2553, 4294901760
        %2555 = vmatmul.mubr.f32.gmra.mrb[0].mxu0 %v2554
        %v2556 = vpop.f32.mrb[0].mxu0
        %v2557 = vadd.f32 %v2438, %v2556
        %v2558 = vpop.f32.mrb[0].mxu0
        %v2559 = vand.u32 %v491, 4294901760
        %v2560 = vsub.f32 %v491, %v2559
        %v2561 = vand.u32 %v2560, 4294901760
        %v2562 = vsub.f32 %v2560, %v2561
        %v2563 = vand.u32 %v2562, 4294901760
        %2564 = vmatprep.mubr.f32.mxu0 %v2563
        %v2565 = vand.u32 %v479, 4294901760
        %v2566 = vsub.f32 %v479, %v2565
        %v2567 = vand.u32 %v2566, 4294901760
        %v2568 = vsub.f32 %v2566, %v2567
        %v2569 = vand.u32 %v2568, 4294901760
        %2570 = vmatmul.mubr.f32.gmra.mrb[0].mxu0 %v2569
        %v2571 = vpop.f32.mrb[0].mxu0
        %v2572 = vadd.f32 %v2445, %v2571
        %v2573 = vpop.f32.mrb[0].mxu0
        %2574 = vdwg.mxu0
        %2575 = vmatprep.subr.mxu0 0.0
        %v2576 = vand.u32 %v226, 4294901760
        %v2577 = vsub.f32 %v226, %v2576
        %v2578 = vand.u32 %v2577, 4294901760
        %v2579 = vsub.f32 %v2577, %v2578
        %v2580 = vand.u32 %v2579, 4294901760
        %2581 = vmatpush1.msra.mxu0 %v2580
        %2582 = vmatprep.subr.mxu0 0.0
        %v2583 = vand.u32 %v227, 4294901760
        %v2584 = vsub.f32 %v227, %v2583
        %v2585 = vand.u32 %v2584, 4294901760
        %v2586 = vsub.f32 %v2584, %v2585
        %v2587 = vand.u32 %v2586, 4294901760
        %2588 = vmatpush1.msra.mxu0 %v2587
        %2589 = vmatprep.subr.mxu0 0.0
        %v2590 = vand.u32 %v228, 4294901760
        %v2591 = vsub.f32 %v228, %v2590
        %v2592 = vand.u32 %v2591, 4294901760
        %v2593 = vsub.f32 %v2591, %v2592
        %v2594 = vand.u32 %v2593, 4294901760
        %2595 = vmatpush1.msra.mxu0 %v2594
        %2596 = vmatprep.subr.mxu0 0.0
        %v2597 = vand.u32 %v229, 4294901760
        %v2598 = vsub.f32 %v229, %v2597
        %v2599 = vand.u32 %v2598, 4294901760
        %v2600 = vsub.f32 %v2598, %v2599
        %v2601 = vand.u32 %v2600, 4294901760
        %2602 = vmatpush1.msra.mxu0 %v2601
        %2603 = vmatprep.subr.mxu0 0.0
        %v2604 = vand.u32 %v230, 4294901760
        %v2605 = vsub.f32 %v230, %v2604
        %v2606 = vand.u32 %v2605, 4294901760
        %v2607 = vsub.f32 %v2605, %v2606
        %v2608 = vand.u32 %v2607, 4294901760
        %2609 = vmatpush1.msra.mxu0 %v2608
        %2610 = vmatprep.subr.mxu0 0.0
        %v2611 = vand.u32 %v231, 4294901760
        %v2612 = vsub.f32 %v231, %v2611
        %v2613 = vand.u32 %v2612, 4294901760
        %v2614 = vsub.f32 %v2612, %v2613
        %v2615 = vand.u32 %v2614, 4294901760
        %2616 = vmatpush1.msra.mxu0 %v2615
        %2617 = vmatprep.subr.mxu0 0.0
        %v2618 = vand.u32 %v232, 4294901760
        %v2619 = vsub.f32 %v232, %v2618
        %v2620 = vand.u32 %v2619, 4294901760
        %v2621 = vsub.f32 %v2619, %v2620
        %v2622 = vand.u32 %v2621, 4294901760
        %2623 = vmatpush1.msra.mxu0 %v2622
        %2624 = vmatprep.subr.mxu0 0.0
        %v2625 = vand.u32 %v233, 4294901760
        %v2626 = vsub.f32 %v233, %v2625
        %v2627 = vand.u32 %v2626, 4294901760
        %v2628 = vsub.f32 %v2626, %v2627
        %v2629 = vand.u32 %v2628, 4294901760
        %2630 = vmatpush1.msra.mxu0 %v2629
        %2631 = vmatprep.subr.mxu0 0.0
        %v2632 = vand.u32 %v234, 4294901760
        %v2633 = vsub.f32 %v234, %v2632
        %v2634 = vand.u32 %v2633, 4294901760
        %v2635 = vsub.f32 %v2633, %v2634
        %v2636 = vand.u32 %v2635, 4294901760
        %2637 = vmatpush1.msra.mxu0 %v2636
        %2638 = vmatprep.subr.mxu0 0.0
        %v2639 = vand.u32 %v235, 4294901760
        %v2640 = vsub.f32 %v235, %v2639
        %v2641 = vand.u32 %v2640, 4294901760
        %v2642 = vsub.f32 %v2640, %v2641
        %v2643 = vand.u32 %v2642, 4294901760
        %2644 = vmatpush1.msra.mxu0 %v2643
        %2645 = vmatprep.subr.mxu0 0.0
        %v2646 = vand.u32 %v236, 4294901760
        %v2647 = vsub.f32 %v236, %v2646
        %v2648 = vand.u32 %v2647, 4294901760
        %v2649 = vsub.f32 %v2647, %v2648
        %v2650 = vand.u32 %v2649, 4294901760
        %2651 = vmatpush1.msra.mxu0 %v2650
        %2652 = vmatprep.subr.mxu0 0.0
        %v2653 = vand.u32 %v237, 4294901760
        %v2654 = vsub.f32 %v237, %v2653
        %v2655 = vand.u32 %v2654, 4294901760
        %v2656 = vsub.f32 %v2654, %v2655
        %v2657 = vand.u32 %v2656, 4294901760
        %2658 = vmatpush1.msra.mxu0 %v2657
        %2659 = vmatprep.subr.mxu0 0.0
        %v2660 = vand.u32 %v238, 4294901760
        %v2661 = vsub.f32 %v238, %v2660
        %v2662 = vand.u32 %v2661, 4294901760
        %v2663 = vsub.f32 %v2661, %v2662
        %v2664 = vand.u32 %v2663, 4294901760
        %2665 = vmatpush1.msra.mxu0 %v2664
        %2666 = vmatprep.subr.mxu0 0.0
        %v2667 = vand.u32 %v239, 4294901760
        %v2668 = vsub.f32 %v239, %v2667
        %v2669 = vand.u32 %v2668, 4294901760
        %v2670 = vsub.f32 %v2668, %v2669
        %v2671 = vand.u32 %v2670, 4294901760
        %2672 = vmatpush1.msra.mxu0 %v2671
        %2673 = vmatprep.subr.mxu0 0.0
        %v2674 = vand.u32 %v240, 4294901760
        %v2675 = vsub.f32 %v240, %v2674
        %v2676 = vand.u32 %v2675, 4294901760
        %v2677 = vsub.f32 %v2675, %v2676
        %v2678 = vand.u32 %v2677, 4294901760
        %2679 = vmatpush1.msra.mxu0 %v2678
        %2680 = vmatprep.subr.mxu0 0.0
        %v2681 = vand.u32 %v241, 4294901760
        %v2682 = vsub.f32 %v241, %v2681
        %v2683 = vand.u32 %v2682, 4294901760
        %v2684 = vsub.f32 %v2682, %v2683
        %v2685 = vand.u32 %v2684, 4294901760
        %2686 = vmatpush1.msra.mxu0 %v2685
        %2687 = vmatprep.subr.mxu0 0.0
        %v2688 = vand.u32 %v242, 4294901760
        %v2689 = vsub.f32 %v242, %v2688
        %v2690 = vand.u32 %v2689, 4294901760
        %v2691 = vsub.f32 %v2689, %v2690
        %v2692 = vand.u32 %v2691, 4294901760
        %2693 = vmatpush1.msra.mxu0 %v2692
        %2694 = vmatprep.subr.mxu0 0.0
        %v2695 = vand.u32 %v243, 4294901760
        %v2696 = vsub.f32 %v243, %v2695
        %v2697 = vand.u32 %v2696, 4294901760
        %v2698 = vsub.f32 %v2696, %v2697
        %v2699 = vand.u32 %v2698, 4294901760
        %2700 = vmatpush1.msra.mxu0 %v2699
        %2701 = vmatprep.subr.mxu0 0.0
        %v2702 = vand.u32 %v244, 4294901760
        %v2703 = vsub.f32 %v244, %v2702
        %v2704 = vand.u32 %v2703, 4294901760
        %v2705 = vsub.f32 %v2703, %v2704
        %v2706 = vand.u32 %v2705, 4294901760
        %2707 = vmatpush1.msra.mxu0 %v2706
        %2708 = vmatprep.subr.mxu0 0.0
        %v2709 = vand.u32 %v245, 4294901760
        %v2710 = vsub.f32 %v245, %v2709
        %v2711 = vand.u32 %v2710, 4294901760
        %v2712 = vsub.f32 %v2710, %v2711
        %v2713 = vand.u32 %v2712, 4294901760
        %2714 = vmatpush1.msra.mxu0 %v2713
        %2715 = vmatprep.subr.mxu0 0.0
        %v2716 = vand.u32 %v246, 4294901760
        %v2717 = vsub.f32 %v246, %v2716
        %v2718 = vand.u32 %v2717, 4294901760
        %v2719 = vsub.f32 %v2717, %v2718
        %v2720 = vand.u32 %v2719, 4294901760
        %2721 = vmatpush1.msra.mxu0 %v2720
        %2722 = vmatprep.subr.mxu0 0.0
        %v2723 = vand.u32 %v247, 4294901760
        %v2724 = vsub.f32 %v247, %v2723
        %v2725 = vand.u32 %v2724, 4294901760
        %v2726 = vsub.f32 %v2724, %v2725
        %v2727 = vand.u32 %v2726, 4294901760
        %2728 = vmatpush1.msra.mxu0 %v2727
        %2729 = vmatprep.subr.mxu0 0.0
        %v2730 = vand.u32 %v248, 4294901760
        %v2731 = vsub.f32 %v248, %v2730
        %v2732 = vand.u32 %v2731, 4294901760
        %v2733 = vsub.f32 %v2731, %v2732
        %v2734 = vand.u32 %v2733, 4294901760
        %2735 = vmatpush1.msra.mxu0 %v2734
        %2736 = vmatprep.subr.mxu0 0.0
        %v2737 = vand.u32 %v249, 4294901760
        %v2738 = vsub.f32 %v249, %v2737
        %v2739 = vand.u32 %v2738, 4294901760
        %v2740 = vsub.f32 %v2738, %v2739
        %v2741 = vand.u32 %v2740, 4294901760
        %2742 = vmatpush1.msra.mxu0 %v2741
        %2743 = vmatprep.subr.mxu0 0.0
        %v2744 = vand.u32 %v250, 4294901760
        %v2745 = vsub.f32 %v250, %v2744
        %v2746 = vand.u32 %v2745, 4294901760
        %v2747 = vsub.f32 %v2745, %v2746
        %v2748 = vand.u32 %v2747, 4294901760
        %2749 = vmatpush1.msra.mxu0 %v2748
        %2750 = vmatprep.subr.mxu0 0.0
        %v2751 = vand.u32 %v251, 4294901760
        %v2752 = vsub.f32 %v251, %v2751
        %v2753 = vand.u32 %v2752, 4294901760
        %v2754 = vsub.f32 %v2752, %v2753
        %v2755 = vand.u32 %v2754, 4294901760
        %2756 = vmatpush1.msra.mxu0 %v2755
        %2757 = vmatprep.subr.mxu0 0.0
        %v2758 = vand.u32 %v252, 4294901760
        %v2759 = vsub.f32 %v252, %v2758
        %v2760 = vand.u32 %v2759, 4294901760
        %v2761 = vsub.f32 %v2759, %v2760
        %v2762 = vand.u32 %v2761, 4294901760
        %2763 = vmatpush1.msra.mxu0 %v2762
        %2764 = vmatprep.subr.mxu0 0.0
        %v2765 = vand.u32 %v253, 4294901760
        %v2766 = vsub.f32 %v253, %v2765
        %v2767 = vand.u32 %v2766, 4294901760
        %v2768 = vsub.f32 %v2766, %v2767
        %v2769 = vand.u32 %v2768, 4294901760
        %2770 = vmatpush1.msra.mxu0 %v2769
        %2771 = vmatprep.subr.mxu0 0.0
        %v2772 = vand.u32 %v254, 4294901760
        %v2773 = vsub.f32 %v254, %v2772
        %v2774 = vand.u32 %v2773, 4294901760
        %v2775 = vsub.f32 %v2773, %v2774
        %v2776 = vand.u32 %v2775, 4294901760
        %2777 = vmatpush1.msra.mxu0 %v2776
        %2778 = vmatprep.subr.mxu0 0.0
        %v2779 = vand.u32 %v255, 4294901760
        %v2780 = vsub.f32 %v255, %v2779
        %v2781 = vand.u32 %v2780, 4294901760
        %v2782 = vsub.f32 %v2780, %v2781
        %v2783 = vand.u32 %v2782, 4294901760
        %2784 = vmatpush1.msra.mxu0 %v2783
        %2785 = vmatprep.subr.mxu0 0.0
        %v2786 = vand.u32 %v256, 4294901760
        %v2787 = vsub.f32 %v256, %v2786
        %v2788 = vand.u32 %v2787, 4294901760
        %v2789 = vsub.f32 %v2787, %v2788
        %v2790 = vand.u32 %v2789, 4294901760
        %2791 = vmatpush1.msra.mxu0 %v2790
        %2792 = vmatprep.subr.mxu0 0.0
        %v2793 = vand.u32 %v257, 4294901760
        %v2794 = vsub.f32 %v257, %v2793
        %v2795 = vand.u32 %v2794, 4294901760
        %v2796 = vsub.f32 %v2794, %v2795
        %v2797 = vand.u32 %v2796, 4294901760
        %2798 = vmatpush1.msra.mxu0 %v2797
        %v2799 = vand.u32 %v490, 4294901760
        %2800 = vmatprep.mubr.f32.mxu0 %v2799
        %v2801 = vand.u32 %v478, 4294901760
        %2802 = vmatmul.mubr.f32.gmra.mrb[0].mxu0 %v2801
        %v2803 = vpop.f32.mrb[0].mxu0
        %v2804 = vadd.f32 %v2557, %v2803
        %v2805 = vpop.f32.mrb[0].mxu0
        %v2806 = vand.u32 %v491, 4294901760
        %2807 = vmatprep.mubr.f32.mxu0 %v2806
        %v2808 = vand.u32 %v479, 4294901760
        %2809 = vmatmul.mubr.f32.gmra.mrb[0].mxu0 %v2808
        %v2810 = vpop.f32.mrb[0].mxu0
        %v2811 = vadd.f32 %v2572, %v2810
        %v2812 = vpop.f32.mrb[0].mxu0
        %2813 = vdwg.mxu0
        %2814 = vmatprep.subr.mxu0 0.0
        %v2815 = vand.u32 %v226, 4294901760
        %v2816 = vsub.f32 %v226, %v2815
        %2817 = vmatpush1.msra.mxu0 %v2816
        %2818 = vmatprep.subr.mxu0 0.0
        %v2819 = vand.u32 %v227, 4294901760
        %v2820 = vsub.f32 %v227, %v2819
        %2821 = vmatpush1.msra.mxu0 %v2820
        %2822 = vmatprep.subr.mxu0 0.0
        %v2823 = vand.u32 %v228, 4294901760
        %v2824 = vsub.f32 %v228, %v2823
        %2825 = vmatpush1.msra.mxu0 %v2824
        %2826 = vmatprep.subr.mxu0 0.0
        %v2827 = vand.u32 %v229, 4294901760
        %v2828 = vsub.f32 %v229, %v2827
        %2829 = vmatpush1.msra.mxu0 %v2828
        %2830 = vmatprep.subr.mxu0 0.0
        %v2831 = vand.u32 %v230, 4294901760
        %v2832 = vsub.f32 %v230, %v2831
        %2833 = vmatpush1.msra.mxu0 %v2832
        %2834 = vmatprep.subr.mxu0 0.0
        %v2835 = vand.u32 %v231, 4294901760
        %v2836 = vsub.f32 %v231, %v2835
        %2837 = vmatpush1.msra.mxu0 %v2836
        %2838 = vmatprep.subr.mxu0 0.0
        %v2839 = vand.u32 %v232, 4294901760
        %v2840 = vsub.f32 %v232, %v2839
        %2841 = vmatpush1.msra.mxu0 %v2840
        %2842 = vmatprep.subr.mxu0 0.0
        %v2843 = vand.u32 %v233, 4294901760
        %v2844 = vsub.f32 %v233, %v2843
        %2845 = vmatpush1.msra.mxu0 %v2844
        %2846 = vmatprep.subr.mxu0 0.0
        %v2847 = vand.u32 %v234, 4294901760
        %v2848 = vsub.f32 %v234, %v2847
        %2849 = vmatpush1.msra.mxu0 %v2848
        %2850 = vmatprep.subr.mxu0 0.0
        %v2851 = vand.u32 %v235, 4294901760
        %v2852 = vsub.f32 %v235, %v2851
        %2853 = vmatpush1.msra.mxu0 %v2852
        %2854 = vmatprep.subr.mxu0 0.0
        %v2855 = vand.u32 %v236, 4294901760
        %v2856 = vsub.f32 %v236, %v2855
        %2857 = vmatpush1.msra.mxu0 %v2856
        %2858 = vmatprep.subr.mxu0 0.0
        %v2859 = vand.u32 %v237, 4294901760
        %v2860 = vsub.f32 %v237, %v2859
        %2861 = vmatpush1.msra.mxu0 %v2860
        %2862 = vmatprep.subr.mxu0 0.0
        %v2863 = vand.u32 %v238, 4294901760
        %v2864 = vsub.f32 %v238, %v2863
        %2865 = vmatpush1.msra.mxu0 %v2864
        %2866 = vmatprep.subr.mxu0 0.0
        %v2867 = vand.u32 %v239, 4294901760
        %v2868 = vsub.f32 %v239, %v2867
        %2869 = vmatpush1.msra.mxu0 %v2868
        %2870 = vmatprep.subr.mxu0 0.0
        %v2871 = vand.u32 %v240, 4294901760
        %v2872 = vsub.f32 %v240, %v2871
        %2873 = vmatpush1.msra.mxu0 %v2872
        %2874 = vmatprep.subr.mxu0 0.0
        %v2875 = vand.u32 %v241, 4294901760
        %v2876 = vsub.f32 %v241, %v2875
        %2877 = vmatpush1.msra.mxu0 %v2876
        %2878 = vmatprep.subr.mxu0 0.0
        %v2879 = vand.u32 %v242, 4294901760
        %v2880 = vsub.f32 %v242, %v2879
        %2881 = vmatpush1.msra.mxu0 %v2880
        %2882 = vmatprep.subr.mxu0 0.0
        %v2883 = vand.u32 %v243, 4294901760
        %v2884 = vsub.f32 %v243, %v2883
        %2885 = vmatpush1.msra.mxu0 %v2884
        %2886 = vmatprep.subr.mxu0 0.0
        %v2887 = vand.u32 %v244, 4294901760
        %v2888 = vsub.f32 %v244, %v2887
        %2889 = vmatpush1.msra.mxu0 %v2888
        %2890 = vmatprep.subr.mxu0 0.0
        %v2891 = vand.u32 %v245, 4294901760
        %v2892 = vsub.f32 %v245, %v2891
        %2893 = vmatpush1.msra.mxu0 %v2892
        %2894 = vmatprep.subr.mxu0 0.0
        %v2895 = vand.u32 %v246, 4294901760
        %v2896 = vsub.f32 %v246, %v2895
        %2897 = vmatpush1.msra.mxu0 %v2896
        %2898 = vmatprep.subr.mxu0 0.0
        %v2899 = vand.u32 %v247, 4294901760
        %v2900 = vsub.f32 %v247, %v2899
        %2901 = vmatpush1.msra.mxu0 %v2900
        %2902 = vmatprep.subr.mxu0 0.0
        %v2903 = vand.u32 %v248, 4294901760
        %v2904 = vsub.f32 %v248, %v2903
        %2905 = vmatpush1.msra.mxu0 %v2904
        %2906 = vmatprep.subr.mxu0 0.0
        %v2907 = vand.u32 %v249, 4294901760
        %v2908 = vsub.f32 %v249, %v2907
        %2909 = vmatpush1.msra.mxu0 %v2908
        %2910 = vmatprep.subr.mxu0 0.0
        %v2911 = vand.u32 %v250, 4294901760
        %v2912 = vsub.f32 %v250, %v2911
        %2913 = vmatpush1.msra.mxu0 %v2912
        %2914 = vmatprep.subr.mxu0 0.0
        %v2915 = vand.u32 %v251, 4294901760
        %v2916 = vsub.f32 %v251, %v2915
        %2917 = vmatpush1.msra.mxu0 %v2916
        %2918 = vmatprep.subr.mxu0 0.0
        %v2919 = vand.u32 %v252, 4294901760
        %v2920 = vsub.f32 %v252, %v2919
        %2921 = vmatpush1.msra.mxu0 %v2920
        %2922 = vmatprep.subr.mxu0 0.0
        %v2923 = vand.u32 %v253, 4294901760
        %v2924 = vsub.f32 %v253, %v2923
        %2925 = vmatpush1.msra.mxu0 %v2924
        %2926 = vmatprep.subr.mxu0 0.0
        %v2927 = vand.u32 %v254, 4294901760
        %v2928 = vsub.f32 %v254, %v2927
        %2929 = vmatpush1.msra.mxu0 %v2928
        %2930 = vmatprep.subr.mxu0 0.0
        %v2931 = vand.u32 %v255, 4294901760
        %v2932 = vsub.f32 %v255, %v2931
        %2933 = vmatpush1.msra.mxu0 %v2932
        %2934 = vmatprep.subr.mxu0 0.0
        %v2935 = vand.u32 %v256, 4294901760
        %v2936 = vsub.f32 %v256, %v2935
        %2937 = vmatpush1.msra.mxu0 %v2936
        %2938 = vmatprep.subr.mxu0 0.0
        %v2939 = vand.u32 %v257, 4294901760
        %v2940 = vsub.f32 %v257, %v2939
        %2941 = vmatpush1.msra.mxu0 %v2940
        %v2942 = vand.u32 %v490, 4294901760
        %v2943 = vsub.f32 %v490, %v2942
        %2944 = vmatprep.mubr.f32.mxu0 %v2943
        %v2945 = vand.u32 %v478, 4294901760
        %v2946 = vsub.f32 %v478, %v2945
        %2947 = vmatmul.mubr.f32.gmra.mrb[0].mxu0 %v2946
        %v2948 = vpop.f32.mrb[0].mxu0
        %v2949 = vadd.f32 %v2804, %v2948
        %v2950 = vpop.f32.mrb[0].mxu0
        %v2951 = vand.u32 %v491, 4294901760
        %v2952 = vsub.f32 %v491, %v2951
        %2953 = vmatprep.mubr.f32.mxu0 %v2952
        %v2954 = vand.u32 %v479, 4294901760
        %v2955 = vsub.f32 %v479, %v2954
        %2956 = vmatmul.mubr.f32.gmra.mrb[0].mxu0 %v2955
        %v2957 = vpop.f32.mrb[0].mxu0
        %v2958 = vadd.f32 %v2811, %v2957
        %v2959 = vpop.f32.mrb[0].mxu0
        %2960 = vdwg.mxu0
        %2961 = vmatprep.subr.mxu0 0.0
        %v2962 = vand.u32 %v226, 4294901760
        %2963 = vmatpush1.msra.mxu0 %v2962
        %2964 = vmatprep.subr.mxu0 0.0
        %v2965 = vand.u32 %v227, 4294901760
        %2966 = vmatpush1.msra.mxu0 %v2965
        %2967 = vmatprep.subr.mxu0 0.0
        %v2968 = vand.u32 %v228, 4294901760
        %2969 = vmatpush1.msra.mxu0 %v2968
        %2970 = vmatprep.subr.mxu0 0.0
        %v2971 = vand.u32 %v229, 4294901760
        %2972 = vmatpush1.msra.mxu0 %v2971
        %2973 = vmatprep.subr.mxu0 0.0
        %v2974 = vand.u32 %v230, 4294901760
        %2975 = vmatpush1.msra.mxu0 %v2974
        %2976 = vmatprep.subr.mxu0 0.0
        %v2977 = vand.u32 %v231, 4294901760
        %2978 = vmatpush1.msra.mxu0 %v2977
        %2979 = vmatprep.subr.mxu0 0.0
        %v2980 = vand.u32 %v232, 4294901760
        %2981 = vmatpush1.msra.mxu0 %v2980
        %2982 = vmatprep.subr.mxu0 0.0
        %v2983 = vand.u32 %v233, 4294901760
        %2984 = vmatpush1.msra.mxu0 %v2983
        %2985 = vmatprep.subr.mxu0 0.0
        %v2986 = vand.u32 %v234, 4294901760
        %2987 = vmatpush1.msra.mxu0 %v2986
        %2988 = vmatprep.subr.mxu0 0.0
        %v2989 = vand.u32 %v235, 4294901760
        %2990 = vmatpush1.msra.mxu0 %v2989
        %2991 = vmatprep.subr.mxu0 0.0
        %v2992 = vand.u32 %v236, 4294901760
        %2993 = vmatpush1.msra.mxu0 %v2992
        %2994 = vmatprep.subr.mxu0 0.0
        %v2995 = vand.u32 %v237, 4294901760
        %2996 = vmatpush1.msra.mxu0 %v2995
        %2997 = vmatprep.subr.mxu0 0.0
        %v2998 = vand.u32 %v238, 4294901760
        %2999 = vmatpush1.msra.mxu0 %v2998
        %3000 = vmatprep.subr.mxu0 0.0
        %v3001 = vand.u32 %v239, 4294901760
        %3002 = vmatpush1.msra.mxu0 %v3001
        %3003 = vmatprep.subr.mxu0 0.0
        %v3004 = vand.u32 %v240, 4294901760
        %3005 = vmatpush1.msra.mxu0 %v3004
        %3006 = vmatprep.subr.mxu0 0.0
        %v3007 = vand.u32 %v241, 4294901760
        %3008 = vmatpush1.msra.mxu0 %v3007
        %3009 = vmatprep.subr.mxu0 0.0
        %v3010 = vand.u32 %v242, 4294901760
        %3011 = vmatpush1.msra.mxu0 %v3010
        %3012 = vmatprep.subr.mxu0 0.0
        %v3013 = vand.u32 %v243, 4294901760
        %3014 = vmatpush1.msra.mxu0 %v3013
        %3015 = vmatprep.subr.mxu0 0.0
        %v3016 = vand.u32 %v244, 4294901760
        %3017 = vmatpush1.msra.mxu0 %v3016
        %3018 = vmatprep.subr.mxu0 0.0
        %v3019 = vand.u32 %v245, 4294901760
        %3020 = vmatpush1.msra.mxu0 %v3019
        %3021 = vmatprep.subr.mxu0 0.0
        %v3022 = vand.u32 %v246, 4294901760
        %3023 = vmatpush1.msra.mxu0 %v3022
        %3024 = vmatprep.subr.mxu0 0.0
        %v3025 = vand.u32 %v247, 4294901760
        %3026 = vmatpush1.msra.mxu0 %v3025
        %3027 = vmatprep.subr.mxu0 0.0
        %v3028 = vand.u32 %v248, 4294901760
        %3029 = vmatpush1.msra.mxu0 %v3028
        %3030 = vmatprep.subr.mxu0 0.0
        %v3031 = vand.u32 %v249, 4294901760
        %3032 = vmatpush1.msra.mxu0 %v3031
        %3033 = vmatprep.subr.mxu0 0.0
        %v3034 = vand.u32 %v250, 4294901760
        %3035 = vmatpush1.msra.mxu0 %v3034
        %3036 = vmatprep.subr.mxu0 0.0
        %v3037 = vand.u32 %v251, 4294901760
        %3038 = vmatpush1.msra.mxu0 %v3037
        %3039 = vmatprep.subr.mxu0 0.0
        %v3040 = vand.u32 %v252, 4294901760
        %3041 = vmatpush1.msra.mxu0 %v3040
        %3042 = vmatprep.subr.mxu0 0.0
        %v3043 = vand.u32 %v253, 4294901760
        %3044 = vmatpush1.msra.mxu0 %v3043
        %3045 = vmatprep.subr.mxu0 0.0
        %v3046 = vand.u32 %v254, 4294901760
        %3047 = vmatpush1.msra.mxu0 %v3046
        %3048 = vmatprep.subr.mxu0 0.0
        %v3049 = vand.u32 %v255, 4294901760
        %3050 = vmatpush1.msra.mxu0 %v3049
        %3051 = vmatprep.subr.mxu0 0.0
        %v3052 = vand.u32 %v256, 4294901760
        %3053 = vmatpush1.msra.mxu0 %v3052
        %3054 = vmatprep.subr.mxu0 0.0
        %v3055 = vand.u32 %v257, 4294901760
        %3056 = vmatpush1.msra.mxu0 %v3055
        %v3057 = vand.u32 %v490, 4294901760
        %v3058 = vsub.f32 %v490, %v3057
        %v3059 = vand.u32 %v3058, 4294901760
        %3060 = vmatprep.mubr.f32.mxu0 %v3059
        %v3061 = vand.u32 %v478, 4294901760
        %v3062 = vsub.f32 %v478, %v3061
        %v3063 = vand.u32 %v3062, 4294901760
        %3064 = vmatmul.mubr.f32.gmra.mrb[0].mxu0 %v3063
        %v3065 = vpop.f32.mrb[0].mxu0
        %v3066 = vadd.f32 %v2949, %v3065
        %v3067 = vpop.f32.mrb[0].mxu0
        %v3068 = vand.u32 %v491, 4294901760
        %v3069 = vsub.f32 %v491, %v3068
        %v3070 = vand.u32 %v3069, 4294901760
        %3071 = vmatprep.mubr.f32.mxu0 %v3070
        %v3072 = vand.u32 %v479, 4294901760
        %v3073 = vsub.f32 %v479, %v3072
        %v3074 = vand.u32 %v3073, 4294901760
        %3075 = vmatmul.mubr.f32.gmra.mrb[0].mxu0 %v3074
        %v3076 = vpop.f32.mrb[0].mxu0
        %v3077 = vadd.f32 %v2958, %v3076
        %v3078 = vpop.f32.mrb[0].mxu0
        %3079 = vdwg.mxu0
        %3080 = vmatprep.subr.mxu0 0.0
        %v3081 = vand.u32 %v226, 4294901760
        %v3082 = vsub.f32 %v226, %v3081
        %v3083 = vand.u32 %v3082, 4294901760
        %3084 = vmatpush1.msra.mxu0 %v3083
        %3085 = vmatprep.subr.mxu0 0.0
        %v3086 = vand.u32 %v227, 4294901760
        %v3087 = vsub.f32 %v227, %v3086
        %v3088 = vand.u32 %v3087, 4294901760
        %3089 = vmatpush1.msra.mxu0 %v3088
        %3090 = vmatprep.subr.mxu0 0.0
        %v3091 = vand.u32 %v228, 4294901760
        %v3092 = vsub.f32 %v228, %v3091
        %v3093 = vand.u32 %v3092, 4294901760
        %3094 = vmatpush1.msra.mxu0 %v3093
        %3095 = vmatprep.subr.mxu0 0.0
        %v3096 = vand.u32 %v229, 4294901760
        %v3097 = vsub.f32 %v229, %v3096
        %v3098 = vand.u32 %v3097, 4294901760
        %3099 = vmatpush1.msra.mxu0 %v3098
        %3100 = vmatprep.subr.mxu0 0.0
        %v3101 = vand.u32 %v230, 4294901760
        %v3102 = vsub.f32 %v230, %v3101
        %v3103 = vand.u32 %v3102, 4294901760
        %3104 = vmatpush1.msra.mxu0 %v3103
        %3105 = vmatprep.subr.mxu0 0.0
        %v3106 = vand.u32 %v231, 4294901760
        %v3107 = vsub.f32 %v231, %v3106
        %v3108 = vand.u32 %v3107, 4294901760
        %3109 = vmatpush1.msra.mxu0 %v3108
        %3110 = vmatprep.subr.mxu0 0.0
        %v3111 = vand.u32 %v232, 4294901760
        %v3112 = vsub.f32 %v232, %v3111
        %v3113 = vand.u32 %v3112, 4294901760
        %3114 = vmatpush1.msra.mxu0 %v3113
        %3115 = vmatprep.subr.mxu0 0.0
        %v3116 = vand.u32 %v233, 4294901760
        %v3117 = vsub.f32 %v233, %v3116
        %v3118 = vand.u32 %v3117, 4294901760
        %3119 = vmatpush1.msra.mxu0 %v3118
        %3120 = vmatprep.subr.mxu0 0.0
        %v3121 = vand.u32 %v234, 4294901760
        %v3122 = vsub.f32 %v234, %v3121
        %v3123 = vand.u32 %v3122, 4294901760
        %3124 = vmatpush1.msra.mxu0 %v3123
        %3125 = vmatprep.subr.mxu0 0.0
        %v3126 = vand.u32 %v235, 4294901760
        %v3127 = vsub.f32 %v235, %v3126
        %v3128 = vand.u32 %v3127, 4294901760
        %3129 = vmatpush1.msra.mxu0 %v3128
        %3130 = vmatprep.subr.mxu0 0.0
        %v3131 = vand.u32 %v236, 4294901760
        %v3132 = vsub.f32 %v236, %v3131
        %v3133 = vand.u32 %v3132, 4294901760
        %3134 = vmatpush1.msra.mxu0 %v3133
        %3135 = vmatprep.subr.mxu0 0.0
        %v3136 = vand.u32 %v237, 4294901760
        %v3137 = vsub.f32 %v237, %v3136
        %v3138 = vand.u32 %v3137, 4294901760
        %3139 = vmatpush1.msra.mxu0 %v3138
        %3140 = vmatprep.subr.mxu0 0.0
        %v3141 = vand.u32 %v238, 4294901760
        %v3142 = vsub.f32 %v238, %v3141
        %v3143 = vand.u32 %v3142, 4294901760
        %3144 = vmatpush1.msra.mxu0 %v3143
        %3145 = vmatprep.subr.mxu0 0.0
        %v3146 = vand.u32 %v239, 4294901760
        %v3147 = vsub.f32 %v239, %v3146
        %v3148 = vand.u32 %v3147, 4294901760
        %3149 = vmatpush1.msra.mxu0 %v3148
        %3150 = vmatprep.subr.mxu0 0.0
        %v3151 = vand.u32 %v240, 4294901760
        %v3152 = vsub.f32 %v240, %v3151
        %v3153 = vand.u32 %v3152, 4294901760
        %3154 = vmatpush1.msra.mxu0 %v3153
        %3155 = vmatprep.subr.mxu0 0.0
        %v3156 = vand.u32 %v241, 4294901760
        %v3157 = vsub.f32 %v241, %v3156
        %v3158 = vand.u32 %v3157, 4294901760
        %3159 = vmatpush1.msra.mxu0 %v3158
        %3160 = vmatprep.subr.mxu0 0.0
        %v3161 = vand.u32 %v242, 4294901760
        %v3162 = vsub.f32 %v242, %v3161
        %v3163 = vand.u32 %v3162, 4294901760
        %3164 = vmatpush1.msra.mxu0 %v3163
        %3165 = vmatprep.subr.mxu0 0.0
        %v3166 = vand.u32 %v243, 4294901760
        %v3167 = vsub.f32 %v243, %v3166
        %v3168 = vand.u32 %v3167, 4294901760
        %3169 = vmatpush1.msra.mxu0 %v3168
        %3170 = vmatprep.subr.mxu0 0.0
        %v3171 = vand.u32 %v244, 4294901760
        %v3172 = vsub.f32 %v244, %v3171
        %v3173 = vand.u32 %v3172, 4294901760
        %3174 = vmatpush1.msra.mxu0 %v3173
        %3175 = vmatprep.subr.mxu0 0.0
        %v3176 = vand.u32 %v245, 4294901760
        %v3177 = vsub.f32 %v245, %v3176
        %v3178 = vand.u32 %v3177, 4294901760
        %3179 = vmatpush1.msra.mxu0 %v3178
        %3180 = vmatprep.subr.mxu0 0.0
        %v3181 = vand.u32 %v246, 4294901760
        %v3182 = vsub.f32 %v246, %v3181
        %v3183 = vand.u32 %v3182, 4294901760
        %3184 = vmatpush1.msra.mxu0 %v3183
        %3185 = vmatprep.subr.mxu0 0.0
        %v3186 = vand.u32 %v247, 4294901760
        %v3187 = vsub.f32 %v247, %v3186
        %v3188 = vand.u32 %v3187, 4294901760
        %3189 = vmatpush1.msra.mxu0 %v3188
        %3190 = vmatprep.subr.mxu0 0.0
        %v3191 = vand.u32 %v248, 4294901760
        %v3192 = vsub.f32 %v248, %v3191
        %v3193 = vand.u32 %v3192, 4294901760
        %3194 = vmatpush1.msra.mxu0 %v3193
        %3195 = vmatprep.subr.mxu0 0.0
        %v3196 = vand.u32 %v249, 4294901760
        %v3197 = vsub.f32 %v249, %v3196
        %v3198 = vand.u32 %v3197, 4294901760
        %3199 = vmatpush1.msra.mxu0 %v3198
        %3200 = vmatprep.subr.mxu0 0.0
        %v3201 = vand.u32 %v250, 4294901760
        %v3202 = vsub.f32 %v250, %v3201
        %v3203 = vand.u32 %v3202, 4294901760
        %3204 = vmatpush1.msra.mxu0 %v3203
        %3205 = vmatprep.subr.mxu0 0.0
        %v3206 = vand.u32 %v251, 4294901760
        %v3207 = vsub.f32 %v251, %v3206
        %v3208 = vand.u32 %v3207, 4294901760
        %3209 = vmatpush1.msra.mxu0 %v3208
        %3210 = vmatprep.subr.mxu0 0.0
        %v3211 = vand.u32 %v252, 4294901760
        %v3212 = vsub.f32 %v252, %v3211
        %v3213 = vand.u32 %v3212, 4294901760
        %3214 = vmatpush1.msra.mxu0 %v3213
        %3215 = vmatprep.subr.mxu0 0.0
        %v3216 = vand.u32 %v253, 4294901760
        %v3217 = vsub.f32 %v253, %v3216
        %v3218 = vand.u32 %v3217, 4294901760
        %3219 = vmatpush1.msra.mxu0 %v3218
        %3220 = vmatprep.subr.mxu0 0.0
        %v3221 = vand.u32 %v254, 4294901760
        %v3222 = vsub.f32 %v254, %v3221
        %v3223 = vand.u32 %v3222, 4294901760
        %3224 = vmatpush1.msra.mxu0 %v3223
        %3225 = vmatprep.subr.mxu0 0.0
        %v3226 = vand.u32 %v255, 4294901760
        %v3227 = vsub.f32 %v255, %v3226
        %v3228 = vand.u32 %v3227, 4294901760
        %3229 = vmatpush1.msra.mxu0 %v3228
        %3230 = vmatprep.subr.mxu0 0.0
        %v3231 = vand.u32 %v256, 4294901760
        %v3232 = vsub.f32 %v256, %v3231
        %v3233 = vand.u32 %v3232, 4294901760
        %3234 = vmatpush1.msra.mxu0 %v3233
        %3235 = vmatprep.subr.mxu0 0.0
        %v3236 = vand.u32 %v257, 4294901760
        %v3237 = vsub.f32 %v257, %v3236
        %v3238 = vand.u32 %v3237, 4294901760
        %3239 = vmatpush1.msra.mxu0 %v3238
        %v3240 = vand.u32 %v490, 4294901760
        %3241 = vmatprep.mubr.f32.mxu0 %v3240
        %v3242 = vand.u32 %v478, 4294901760
        %3243 = vmatmul.mubr.f32.gmra.mrb[0].mxu0 %v3242
        %v3244 = vpop.f32.mrb[0].mxu0
        %v3245 = vadd.f32 %v3066, %v3244
        %v3246 = vpop.f32.mrb[0].mxu0
        %v3247 = vand.u32 %v491, 4294901760
        %3248 = vmatprep.mubr.f32.mxu0 %v3247
        %v3249 = vand.u32 %v479, 4294901760
        %3250 = vmatmul.mubr.f32.gmra.mrb[0].mxu0 %v3249
        %v3251 = vpop.f32.mrb[0].mxu0
        %v3252 = vadd.f32 %v3077, %v3251
        %v3253 = vpop.f32.mrb[0].mxu0
        %3254 = vdwg.mxu0
        %3255 = vmatprep.subr.mxu0 0.0
        %v3256 = vand.u32 %v226, 4294901760
        %3257 = vmatpush1.msra.mxu0 %v3256
        %3258 = vmatprep.subr.mxu0 0.0
        %v3259 = vand.u32 %v227, 4294901760
        %3260 = vmatpush1.msra.mxu0 %v3259
        %3261 = vmatprep.subr.mxu0 0.0
        %v3262 = vand.u32 %v228, 4294901760
        %3263 = vmatpush1.msra.mxu0 %v3262
        %3264 = vmatprep.subr.mxu0 0.0
        %v3265 = vand.u32 %v229, 4294901760
        %3266 = vmatpush1.msra.mxu0 %v3265
        %3267 = vmatprep.subr.mxu0 0.0
        %v3268 = vand.u32 %v230, 4294901760
        %3269 = vmatpush1.msra.mxu0 %v3268
        %3270 = vmatprep.subr.mxu0 0.0
        %v3271 = vand.u32 %v231, 4294901760
        %3272 = vmatpush1.msra.mxu0 %v3271
        %3273 = vmatprep.subr.mxu0 0.0
        %v3274 = vand.u32 %v232, 4294901760
        %3275 = vmatpush1.msra.mxu0 %v3274
        %3276 = vmatprep.subr.mxu0 0.0
        %v3277 = vand.u32 %v233, 4294901760
        %3278 = vmatpush1.msra.mxu0 %v3277
        %3279 = vmatprep.subr.mxu0 0.0
        %v3280 = vand.u32 %v234, 4294901760
        %3281 = vmatpush1.msra.mxu0 %v3280
        %3282 = vmatprep.subr.mxu0 0.0
        %v3283 = vand.u32 %v235, 4294901760
        %3284 = vmatpush1.msra.mxu0 %v3283
        %3285 = vmatprep.subr.mxu0 0.0
        %v3286 = vand.u32 %v236, 4294901760
        %3287 = vmatpush1.msra.mxu0 %v3286
        %3288 = vmatprep.subr.mxu0 0.0
        %v3289 = vand.u32 %v237, 4294901760
        %3290 = vmatpush1.msra.mxu0 %v3289
        %3291 = vmatprep.subr.mxu0 0.0
        %v3292 = vand.u32 %v238, 4294901760
        %3293 = vmatpush1.msra.mxu0 %v3292
        %3294 = vmatprep.subr.mxu0 0.0
        %v3295 = vand.u32 %v239, 4294901760
        %3296 = vmatpush1.msra.mxu0 %v3295
        %3297 = vmatprep.subr.mxu0 0.0
        %v3298 = vand.u32 %v240, 4294901760
        %3299 = vmatpush1.msra.mxu0 %v3298
        %3300 = vmatprep.subr.mxu0 0.0
        %v3301 = vand.u32 %v241, 4294901760
        %3302 = vmatpush1.msra.mxu0 %v3301
        %3303 = vmatprep.subr.mxu0 0.0
        %v3304 = vand.u32 %v242, 4294901760
        %3305 = vmatpush1.msra.mxu0 %v3304
        %3306 = vmatprep.subr.mxu0 0.0
        %v3307 = vand.u32 %v243, 4294901760
        %3308 = vmatpush1.msra.mxu0 %v3307
        %3309 = vmatprep.subr.mxu0 0.0
        %v3310 = vand.u32 %v244, 4294901760
        %3311 = vmatpush1.msra.mxu0 %v3310
        %3312 = vmatprep.subr.mxu0 0.0
        %v3313 = vand.u32 %v245, 4294901760
        %3314 = vmatpush1.msra.mxu0 %v3313
        %3315 = vmatprep.subr.mxu0 0.0
        %v3316 = vand.u32 %v246, 4294901760
        %3317 = vmatpush1.msra.mxu0 %v3316
        %3318 = vmatprep.subr.mxu0 0.0
        %v3319 = vand.u32 %v247, 4294901760
        %3320 = vmatpush1.msra.mxu0 %v3319
        %3321 = vmatprep.subr.mxu0 0.0
        %v3322 = vand.u32 %v248, 4294901760
        %3323 = vmatpush1.msra.mxu0 %v3322
        %3324 = vmatprep.subr.mxu0 0.0
        %v3325 = vand.u32 %v249, 4294901760
        %3326 = vmatpush1.msra.mxu0 %v3325
        %3327 = vmatprep.subr.mxu0 0.0
        %v3328 = vand.u32 %v250, 4294901760
        %3329 = vmatpush1.msra.mxu0 %v3328
        %3330 = vmatprep.subr.mxu0 0.0
        %v3331 = vand.u32 %v251, 4294901760
        %3332 = vmatpush1.msra.mxu0 %v3331
        %3333 = vmatprep.subr.mxu0 0.0
        %v3334 = vand.u32 %v252, 4294901760
        %3335 = vmatpush1.msra.mxu0 %v3334
        %3336 = vmatprep.subr.mxu0 0.0
        %v3337 = vand.u32 %v253, 4294901760
        %3338 = vmatpush1.msra.mxu0 %v3337
        %3339 = vmatprep.subr.mxu0 0.0
        %v3340 = vand.u32 %v254, 4294901760
        %3341 = vmatpush1.msra.mxu0 %v3340
        %3342 = vmatprep.subr.mxu0 0.0
        %v3343 = vand.u32 %v255, 4294901760
        %3344 = vmatpush1.msra.mxu0 %v3343
        %3345 = vmatprep.subr.mxu0 0.0
        %v3346 = vand.u32 %v256, 4294901760
        %3347 = vmatpush1.msra.mxu0 %v3346
        %3348 = vmatprep.subr.mxu0 0.0
        %v3349 = vand.u32 %v257, 4294901760
        %3350 = vmatpush1.msra.mxu0 %v3349
        %v3351 = vand.u32 %v490, 4294901760
        %3352 = vmatprep.mubr.f32.mxu0 %v3351
        %v3353 = vand.u32 %v478, 4294901760
        %3354 = vmatmul.mubr.f32.gmra.mrb[0].mxu0 %v3353
        %v3355 = vpop.f32.mrb[0].mxu0
        %v3356 = vadd.f32 %v3245, %v3355
        %v3357 = vpop.f32.mrb[0].mxu0
        %v3358 = vand.u32 %v491, 4294901760
        %3359 = vmatprep.mubr.f32.mxu0 %v3358
        %v3360 = vand.u32 %v479, 4294901760
        %3361 = vmatmul.mubr.f32.gmra.mrb[0].mxu0 %v3360
        %v3362 = vpop.f32.mrb[0].mxu0
        %v3363 = vadd.f32 %v3252, %v3362
        %v3364 = vpop.f32.mrb[0].mxu0
        %3365 = vdwg.mxu0
        %3366 = vmatprep.subr.mxu0 0.0
        %v3367 = vand.u32 %v258, 4294901760
        %3368 = vmatpush1.msra.mxu0 %v3367
        %3369 = vmatprep.subr.mxu0 0.0
        %v3370 = vand.u32 %v259, 4294901760
        %3371 = vmatpush1.msra.mxu0 %v3370
        %3372 = vmatprep.subr.mxu0 0.0
        %v3373 = vand.u32 %v260, 4294901760
        %3374 = vmatpush1.msra.mxu0 %v3373
        %3375 = vmatprep.subr.mxu0 0.0
        %v3376 = vand.u32 %v261, 4294901760
        %3377 = vmatpush1.msra.mxu0 %v3376
        %3378 = vmatprep.subr.mxu0 0.0
        %v3379 = vand.u32 %v262, 4294901760
        %3380 = vmatpush1.msra.mxu0 %v3379
        %3381 = vmatprep.subr.mxu0 0.0
        %v3382 = vand.u32 %v263, 4294901760
        %3383 = vmatpush1.msra.mxu0 %v3382
        %3384 = vmatprep.subr.mxu0 0.0
        %v3385 = vand.u32 %v264, 4294901760
        %3386 = vmatpush1.msra.mxu0 %v3385
        %3387 = vmatprep.subr.mxu0 0.0
        %v3388 = vand.u32 %v265, 4294901760
        %3389 = vmatpush1.msra.mxu0 %v3388
        %3390 = vmatprep.subr.mxu0 0.0
        %v3391 = vand.u32 %v266, 4294901760
        %3392 = vmatpush1.msra.mxu0 %v3391
        %3393 = vmatprep.subr.mxu0 0.0
        %v3394 = vand.u32 %v267, 4294901760
        %3395 = vmatpush1.msra.mxu0 %v3394
        %3396 = vmatprep.subr.mxu0 0.0
        %v3397 = vand.u32 %v268, 4294901760
        %3398 = vmatpush1.msra.mxu0 %v3397
        %3399 = vmatprep.subr.mxu0 0.0
        %v3400 = vand.u32 %v269, 4294901760
        %3401 = vmatpush1.msra.mxu0 %v3400
        %3402 = vmatprep.subr.mxu0 0.0
        %v3403 = vand.u32 %v270, 4294901760
        %3404 = vmatpush1.msra.mxu0 %v3403
        %3405 = vmatprep.subr.mxu0 0.0
        %v3406 = vand.u32 %v271, 4294901760
        %3407 = vmatpush1.msra.mxu0 %v3406
        %3408 = vmatprep.subr.mxu0 0.0
        %v3409 = vand.u32 %v272, 4294901760
        %3410 = vmatpush1.msra.mxu0 %v3409
        %3411 = vmatprep.subr.mxu0 0.0
        %v3412 = vand.u32 %v273, 4294901760
        %3413 = vmatpush1.msra.mxu0 %v3412
        %3414 = vmatprep.subr.mxu0 0.0
        %v3415 = vand.u32 %v274, 4294901760
        %3416 = vmatpush1.msra.mxu0 %v3415
        %3417 = vmatprep.subr.mxu0 0.0
        %v3418 = vand.u32 %v275, 4294901760
        %3419 = vmatpush1.msra.mxu0 %v3418
        %3420 = vmatprep.subr.mxu0 0.0
        %v3421 = vand.u32 %v276, 4294901760
        %3422 = vmatpush1.msra.mxu0 %v3421
        %3423 = vmatprep.subr.mxu0 0.0
        %v3424 = vand.u32 %v277, 4294901760
        %3425 = vmatpush1.msra.mxu0 %v3424
        %3426 = vmatprep.subr.mxu0 0.0
        %v3427 = vand.u32 %v278, 4294901760
        %3428 = vmatpush1.msra.mxu0 %v3427
        %3429 = vmatprep.subr.mxu0 0.0
        %v3430 = vand.u32 %v279, 4294901760
        %3431 = vmatpush1.msra.mxu0 %v3430
        %3432 = vmatprep.subr.mxu0 0.0
        %v3433 = vand.u32 %v280, 4294901760
        %3434 = vmatpush1.msra.mxu0 %v3433
        %3435 = vmatprep.subr.mxu0 0.0
        %v3436 = vand.u32 %v281, 4294901760
        %3437 = vmatpush1.msra.mxu0 %v3436
        %3438 = vmatprep.subr.mxu0 0.0
        %v3439 = vand.u32 %v282, 4294901760
        %3440 = vmatpush1.msra.mxu0 %v3439
        %3441 = vmatprep.subr.mxu0 0.0
        %v3442 = vand.u32 %v283, 4294901760
        %3443 = vmatpush1.msra.mxu0 %v3442
        %3444 = vmatprep.subr.mxu0 0.0
        %v3445 = vand.u32 %v284, 4294901760
        %3446 = vmatpush1.msra.mxu0 %v3445
        %3447 = vmatprep.subr.mxu0 0.0
        %v3448 = vand.u32 %v285, 4294901760
        %3449 = vmatpush1.msra.mxu0 %v3448
        %3450 = vmatprep.subr.mxu0 0.0
        %v3451 = vand.u32 %v286, 4294901760
        %3452 = vmatpush1.msra.mxu0 %v3451
        %3453 = vmatprep.subr.mxu0 0.0
        %v3454 = vand.u32 %v287, 4294901760
        %3455 = vmatpush1.msra.mxu0 %v3454
        %3456 = vmatprep.subr.mxu0 0.0
        %v3457 = vand.u32 %v288, 4294901760
        %3458 = vmatpush1.msra.mxu0 %v3457
        %3459 = vmatprep.subr.mxu0 0.0
        %v3460 = vand.u32 %v289, 4294901760
        %3461 = vmatpush1.msra.mxu0 %v3460
        %v3462 = vand.u32 %v514, 4294901760
        %v3463 = vsub.f32 %v514, %v3462
        %v3464 = vand.u32 %v3463, 4294901760
        %v3465 = vsub.f32 %v3463, %v3464
        %v3466 = vand.u32 %v3465, 4294901760
        %3467 = vmatprep.mubr.f32.mxu0 %v3466
        %v3468 = vand.u32 %v502, 4294901760
        %v3469 = vsub.f32 %v502, %v3468
        %v3470 = vand.u32 %v3469, 4294901760
        %v3471 = vsub.f32 %v3469, %v3470
        %v3472 = vand.u32 %v3471, 4294901760
        %3473 = vmatmul.mubr.f32.gmra.mrb[0].mxu0 %v3472
        %v3474 = vpop.f32.mrb[0].mxu0
        %v3475 = vadd.f32 %v3356, %v3474
        %v3476 = vpop.f32.mrb[0].mxu0
        %v3477 = vand.u32 %v515, 4294901760
        %v3478 = vsub.f32 %v515, %v3477
        %v3479 = vand.u32 %v3478, 4294901760
        %v3480 = vsub.f32 %v3478, %v3479
        %v3481 = vand.u32 %v3480, 4294901760
        %3482 = vmatprep.mubr.f32.mxu0 %v3481
        %v3483 = vand.u32 %v503, 4294901760
        %v3484 = vsub.f32 %v503, %v3483
        %v3485 = vand.u32 %v3484, 4294901760
        %v3486 = vsub.f32 %v3484, %v3485
        %v3487 = vand.u32 %v3486, 4294901760
        %3488 = vmatmul.mubr.f32.gmra.mrb[0].mxu0 %v3487
        %v3489 = vpop.f32.mrb[0].mxu0
        %v3490 = vadd.f32 %v3363, %v3489
        %v3491 = vpop.f32.mrb[0].mxu0
        %3492 = vdwg.mxu0
        %3493 = vmatprep.subr.mxu0 0.0
        %v3494 = vand.u32 %v258, 4294901760
        %v3495 = vsub.f32 %v258, %v3494
        %v3496 = vand.u32 %v3495, 4294901760
        %v3497 = vsub.f32 %v3495, %v3496
        %v3498 = vand.u32 %v3497, 4294901760
        %3499 = vmatpush1.msra.mxu0 %v3498
        %3500 = vmatprep.subr.mxu0 0.0
        %v3501 = vand.u32 %v259, 4294901760
        %v3502 = vsub.f32 %v259, %v3501
        %v3503 = vand.u32 %v3502, 4294901760
        %v3504 = vsub.f32 %v3502, %v3503
        %v3505 = vand.u32 %v3504, 4294901760
        %3506 = vmatpush1.msra.mxu0 %v3505
        %3507 = vmatprep.subr.mxu0 0.0
        %v3508 = vand.u32 %v260, 4294901760
        %v3509 = vsub.f32 %v260, %v3508
        %v3510 = vand.u32 %v3509, 4294901760
        %v3511 = vsub.f32 %v3509, %v3510
        %v3512 = vand.u32 %v3511, 4294901760
        %3513 = vmatpush1.msra.mxu0 %v3512
        %3514 = vmatprep.subr.mxu0 0.0
        %v3515 = vand.u32 %v261, 4294901760
        %v3516 = vsub.f32 %v261, %v3515
        %v3517 = vand.u32 %v3516, 4294901760
        %v3518 = vsub.f32 %v3516, %v3517
        %v3519 = vand.u32 %v3518, 4294901760
        %3520 = vmatpush1.msra.mxu0 %v3519
        %3521 = vmatprep.subr.mxu0 0.0
        %v3522 = vand.u32 %v262, 4294901760
        %v3523 = vsub.f32 %v262, %v3522
        %v3524 = vand.u32 %v3523, 4294901760
        %v3525 = vsub.f32 %v3523, %v3524
        %v3526 = vand.u32 %v3525, 4294901760
        %3527 = vmatpush1.msra.mxu0 %v3526
        %3528 = vmatprep.subr.mxu0 0.0
        %v3529 = vand.u32 %v263, 4294901760
        %v3530 = vsub.f32 %v263, %v3529
        %v3531 = vand.u32 %v3530, 4294901760
        %v3532 = vsub.f32 %v3530, %v3531
        %v3533 = vand.u32 %v3532, 4294901760
        %3534 = vmatpush1.msra.mxu0 %v3533
        %3535 = vmatprep.subr.mxu0 0.0
        %v3536 = vand.u32 %v264, 4294901760
        %v3537 = vsub.f32 %v264, %v3536
        %v3538 = vand.u32 %v3537, 4294901760
        %v3539 = vsub.f32 %v3537, %v3538
        %v3540 = vand.u32 %v3539, 4294901760
        %3541 = vmatpush1.msra.mxu0 %v3540
        %3542 = vmatprep.subr.mxu0 0.0
        %v3543 = vand.u32 %v265, 4294901760
        %v3544 = vsub.f32 %v265, %v3543
        %v3545 = vand.u32 %v3544, 4294901760
        %v3546 = vsub.f32 %v3544, %v3545
        %v3547 = vand.u32 %v3546, 4294901760
        %3548 = vmatpush1.msra.mxu0 %v3547
        %3549 = vmatprep.subr.mxu0 0.0
        %v3550 = vand.u32 %v266, 4294901760
        %v3551 = vsub.f32 %v266, %v3550
        %v3552 = vand.u32 %v3551, 4294901760
        %v3553 = vsub.f32 %v3551, %v3552
        %v3554 = vand.u32 %v3553, 4294901760
        %3555 = vmatpush1.msra.mxu0 %v3554
        %3556 = vmatprep.subr.mxu0 0.0
        %v3557 = vand.u32 %v267, 4294901760
        %v3558 = vsub.f32 %v267, %v3557
        %v3559 = vand.u32 %v3558, 4294901760
        %v3560 = vsub.f32 %v3558, %v3559
        %v3561 = vand.u32 %v3560, 4294901760
        %3562 = vmatpush1.msra.mxu0 %v3561
        %3563 = vmatprep.subr.mxu0 0.0
        %v3564 = vand.u32 %v268, 4294901760
        %v3565 = vsub.f32 %v268, %v3564
        %v3566 = vand.u32 %v3565, 4294901760
        %v3567 = vsub.f32 %v3565, %v3566
        %v3568 = vand.u32 %v3567, 4294901760
        %3569 = vmatpush1.msra.mxu0 %v3568
        %3570 = vmatprep.subr.mxu0 0.0
        %v3571 = vand.u32 %v269, 4294901760
        %v3572 = vsub.f32 %v269, %v3571
        %v3573 = vand.u32 %v3572, 4294901760
        %v3574 = vsub.f32 %v3572, %v3573
        %v3575 = vand.u32 %v3574, 4294901760
        %3576 = vmatpush1.msra.mxu0 %v3575
        %3577 = vmatprep.subr.mxu0 0.0
        %v3578 = vand.u32 %v270, 4294901760
        %v3579 = vsub.f32 %v270, %v3578
        %v3580 = vand.u32 %v3579, 4294901760
        %v3581 = vsub.f32 %v3579, %v3580
        %v3582 = vand.u32 %v3581, 4294901760
        %3583 = vmatpush1.msra.mxu0 %v3582
        %3584 = vmatprep.subr.mxu0 0.0
        %v3585 = vand.u32 %v271, 4294901760
        %v3586 = vsub.f32 %v271, %v3585
        %v3587 = vand.u32 %v3586, 4294901760
        %v3588 = vsub.f32 %v3586, %v3587
        %v3589 = vand.u32 %v3588, 4294901760
        %3590 = vmatpush1.msra.mxu0 %v3589
        %3591 = vmatprep.subr.mxu0 0.0
        %v3592 = vand.u32 %v272, 4294901760
        %v3593 = vsub.f32 %v272, %v3592
        %v3594 = vand.u32 %v3593, 4294901760
        %v3595 = vsub.f32 %v3593, %v3594
        %v3596 = vand.u32 %v3595, 4294901760
        %3597 = vmatpush1.msra.mxu0 %v3596
        %3598 = vmatprep.subr.mxu0 0.0
        %v3599 = vand.u32 %v273, 4294901760
        %v3600 = vsub.f32 %v273, %v3599
        %v3601 = vand.u32 %v3600, 4294901760
        %v3602 = vsub.f32 %v3600, %v3601
        %v3603 = vand.u32 %v3602, 4294901760
        %3604 = vmatpush1.msra.mxu0 %v3603
        %3605 = vmatprep.subr.mxu0 0.0
        %v3606 = vand.u32 %v274, 4294901760
        %v3607 = vsub.f32 %v274, %v3606
        %v3608 = vand.u32 %v3607, 4294901760
        %v3609 = vsub.f32 %v3607, %v3608
        %v3610 = vand.u32 %v3609, 4294901760
        %3611 = vmatpush1.msra.mxu0 %v3610
        %3612 = vmatprep.subr.mxu0 0.0
        %v3613 = vand.u32 %v275, 4294901760
        %v3614 = vsub.f32 %v275, %v3613
        %v3615 = vand.u32 %v3614, 4294901760
        %v3616 = vsub.f32 %v3614, %v3615
        %v3617 = vand.u32 %v3616, 4294901760
        %3618 = vmatpush1.msra.mxu0 %v3617
        %3619 = vmatprep.subr.mxu0 0.0
        %v3620 = vand.u32 %v276, 4294901760
        %v3621 = vsub.f32 %v276, %v3620
        %v3622 = vand.u32 %v3621, 4294901760
        %v3623 = vsub.f32 %v3621, %v3622
        %v3624 = vand.u32 %v3623, 4294901760
        %3625 = vmatpush1.msra.mxu0 %v3624
        %3626 = vmatprep.subr.mxu0 0.0
        %v3627 = vand.u32 %v277, 4294901760
        %v3628 = vsub.f32 %v277, %v3627
        %v3629 = vand.u32 %v3628, 4294901760
        %v3630 = vsub.f32 %v3628, %v3629
        %v3631 = vand.u32 %v3630, 4294901760
        %3632 = vmatpush1.msra.mxu0 %v3631
        %3633 = vmatprep.subr.mxu0 0.0
        %v3634 = vand.u32 %v278, 4294901760
        %v3635 = vsub.f32 %v278, %v3634
        %v3636 = vand.u32 %v3635, 4294901760
        %v3637 = vsub.f32 %v3635, %v3636
        %v3638 = vand.u32 %v3637, 4294901760
        %3639 = vmatpush1.msra.mxu0 %v3638
        %3640 = vmatprep.subr.mxu0 0.0
        %v3641 = vand.u32 %v279, 4294901760
        %v3642 = vsub.f32 %v279, %v3641
        %v3643 = vand.u32 %v3642, 4294901760
        %v3644 = vsub.f32 %v3642, %v3643
        %v3645 = vand.u32 %v3644, 4294901760
        %3646 = vmatpush1.msra.mxu0 %v3645
        %3647 = vmatprep.subr.mxu0 0.0
        %v3648 = vand.u32 %v280, 4294901760
        %v3649 = vsub.f32 %v280, %v3648
        %v3650 = vand.u32 %v3649, 4294901760
        %v3651 = vsub.f32 %v3649, %v3650
        %v3652 = vand.u32 %v3651, 4294901760
        %3653 = vmatpush1.msra.mxu0 %v3652
        %3654 = vmatprep.subr.mxu0 0.0
        %v3655 = vand.u32 %v281, 4294901760
        %v3656 = vsub.f32 %v281, %v3655
        %v3657 = vand.u32 %v3656, 4294901760
        %v3658 = vsub.f32 %v3656, %v3657
        %v3659 = vand.u32 %v3658, 4294901760
        %3660 = vmatpush1.msra.mxu0 %v3659
        %3661 = vmatprep.subr.mxu0 0.0
        %v3662 = vand.u32 %v282, 4294901760
        %v3663 = vsub.f32 %v282, %v3662
        %v3664 = vand.u32 %v3663, 4294901760
        %v3665 = vsub.f32 %v3663, %v3664
        %v3666 = vand.u32 %v3665, 4294901760
        %3667 = vmatpush1.msra.mxu0 %v3666
        %3668 = vmatprep.subr.mxu0 0.0
        %v3669 = vand.u32 %v283, 4294901760
        %v3670 = vsub.f32 %v283, %v3669
        %v3671 = vand.u32 %v3670, 4294901760
        %v3672 = vsub.f32 %v3670, %v3671
        %v3673 = vand.u32 %v3672, 4294901760
        %3674 = vmatpush1.msra.mxu0 %v3673
        %3675 = vmatprep.subr.mxu0 0.0
        %v3676 = vand.u32 %v284, 4294901760
        %v3677 = vsub.f32 %v284, %v3676
        %v3678 = vand.u32 %v3677, 4294901760
        %v3679 = vsub.f32 %v3677, %v3678
        %v3680 = vand.u32 %v3679, 4294901760
        %3681 = vmatpush1.msra.mxu0 %v3680
        %3682 = vmatprep.subr.mxu0 0.0
        %v3683 = vand.u32 %v285, 4294901760
        %v3684 = vsub.f32 %v285, %v3683
        %v3685 = vand.u32 %v3684, 4294901760
        %v3686 = vsub.f32 %v3684, %v3685
        %v3687 = vand.u32 %v3686, 4294901760
        %3688 = vmatpush1.msra.mxu0 %v3687
        %3689 = vmatprep.subr.mxu0 0.0
        %v3690 = vand.u32 %v286, 4294901760
        %v3691 = vsub.f32 %v286, %v3690
        %v3692 = vand.u32 %v3691, 4294901760
        %v3693 = vsub.f32 %v3691, %v3692
        %v3694 = vand.u32 %v3693, 4294901760
        %3695 = vmatpush1.msra.mxu0 %v3694
        %3696 = vmatprep.subr.mxu0 0.0
        %v3697 = vand.u32 %v287, 4294901760
        %v3698 = vsub.f32 %v287, %v3697
        %v3699 = vand.u32 %v3698, 4294901760
        %v3700 = vsub.f32 %v3698, %v3699
        %v3701 = vand.u32 %v3700, 4294901760
        %3702 = vmatpush1.msra.mxu0 %v3701
        %3703 = vmatprep.subr.mxu0 0.0
        %v3704 = vand.u32 %v288, 4294901760
        %v3705 = vsub.f32 %v288, %v3704
        %v3706 = vand.u32 %v3705, 4294901760
        %v3707 = vsub.f32 %v3705, %v3706
        %v3708 = vand.u32 %v3707, 4294901760
        %3709 = vmatpush1.msra.mxu0 %v3708
        %3710 = vmatprep.subr.mxu0 0.0
        %v3711 = vand.u32 %v289, 4294901760
        %v3712 = vsub.f32 %v289, %v3711
        %v3713 = vand.u32 %v3712, 4294901760
        %v3714 = vsub.f32 %v3712, %v3713
        %v3715 = vand.u32 %v3714, 4294901760
        %3716 = vmatpush1.msra.mxu0 %v3715
        %v3717 = vand.u32 %v514, 4294901760
        %3718 = vmatprep.mubr.f32.mxu0 %v3717
        %v3719 = vand.u32 %v502, 4294901760
        %3720 = vmatmul.mubr.f32.gmra.mrb[0].mxu0 %v3719
        %v3721 = vpop.f32.mrb[0].mxu0
        %v3722 = vadd.f32 %v3475, %v3721
        %v3723 = vpop.f32.mrb[0].mxu0
        %v3724 = vand.u32 %v515, 4294901760
        %3725 = vmatprep.mubr.f32.mxu0 %v3724
        %v3726 = vand.u32 %v503, 4294901760
        %3727 = vmatmul.mubr.f32.gmra.mrb[0].mxu0 %v3726
        %v3728 = vpop.f32.mrb[0].mxu0
        %v3729 = vadd.f32 %v3490, %v3728
        %v3730 = vpop.f32.mrb[0].mxu0
        %3731 = vdwg.mxu0
        %3732 = vmatprep.subr.mxu0 0.0
        %v3733 = vand.u32 %v258, 4294901760
        %v3734 = vsub.f32 %v258, %v3733
        %3735 = vmatpush1.msra.mxu0 %v3734
        %3736 = vmatprep.subr.mxu0 0.0
        %v3737 = vand.u32 %v259, 4294901760
        %v3738 = vsub.f32 %v259, %v3737
        %3739 = vmatpush1.msra.mxu0 %v3738
        %3740 = vmatprep.subr.mxu0 0.0
        %v3741 = vand.u32 %v260, 4294901760
        %v3742 = vsub.f32 %v260, %v3741
        %3743 = vmatpush1.msra.mxu0 %v3742
        %3744 = vmatprep.subr.mxu0 0.0
        %v3745 = vand.u32 %v261, 4294901760
        %v3746 = vsub.f32 %v261, %v3745
        %3747 = vmatpush1.msra.mxu0 %v3746
        %3748 = vmatprep.subr.mxu0 0.0
        %v3749 = vand.u32 %v262, 4294901760
        %v3750 = vsub.f32 %v262, %v3749
        %3751 = vmatpush1.msra.mxu0 %v3750
        %3752 = vmatprep.subr.mxu0 0.0
        %v3753 = vand.u32 %v263, 4294901760
        %v3754 = vsub.f32 %v263, %v3753
        %3755 = vmatpush1.msra.mxu0 %v3754
        %3756 = vmatprep.subr.mxu0 0.0
        %v3757 = vand.u32 %v264, 4294901760
        %v3758 = vsub.f32 %v264, %v3757
        %3759 = vmatpush1.msra.mxu0 %v3758
        %3760 = vmatprep.subr.mxu0 0.0
        %v3761 = vand.u32 %v265, 4294901760
        %v3762 = vsub.f32 %v265, %v3761
        %3763 = vmatpush1.msra.mxu0 %v3762
        %3764 = vmatprep.subr.mxu0 0.0
        %v3765 = vand.u32 %v266, 4294901760
        %v3766 = vsub.f32 %v266, %v3765
        %3767 = vmatpush1.msra.mxu0 %v3766
        %3768 = vmatprep.subr.mxu0 0.0
        %v3769 = vand.u32 %v267, 4294901760
        %v3770 = vsub.f32 %v267, %v3769
        %3771 = vmatpush1.msra.mxu0 %v3770
        %3772 = vmatprep.subr.mxu0 0.0
        %v3773 = vand.u32 %v268, 4294901760
        %v3774 = vsub.f32 %v268, %v3773
        %3775 = vmatpush1.msra.mxu0 %v3774
        %3776 = vmatprep.subr.mxu0 0.0
        %v3777 = vand.u32 %v269, 4294901760
        %v3778 = vsub.f32 %v269, %v3777
        %3779 = vmatpush1.msra.mxu0 %v3778
        %3780 = vmatprep.subr.mxu0 0.0
        %v3781 = vand.u32 %v270, 4294901760
        %v3782 = vsub.f32 %v270, %v3781
        %3783 = vmatpush1.msra.mxu0 %v3782
        %3784 = vmatprep.subr.mxu0 0.0
        %v3785 = vand.u32 %v271, 4294901760
        %v3786 = vsub.f32 %v271, %v3785
        %3787 = vmatpush1.msra.mxu0 %v3786
        %3788 = vmatprep.subr.mxu0 0.0
        %v3789 = vand.u32 %v272, 4294901760
        %v3790 = vsub.f32 %v272, %v3789
        %3791 = vmatpush1.msra.mxu0 %v3790
        %3792 = vmatprep.subr.mxu0 0.0
        %v3793 = vand.u32 %v273, 4294901760
        %v3794 = vsub.f32 %v273, %v3793
        %3795 = vmatpush1.msra.mxu0 %v3794
        %3796 = vmatprep.subr.mxu0 0.0
        %v3797 = vand.u32 %v274, 4294901760
        %v3798 = vsub.f32 %v274, %v3797
        %3799 = vmatpush1.msra.mxu0 %v3798
        %3800 = vmatprep.subr.mxu0 0.0
        %v3801 = vand.u32 %v275, 4294901760
        %v3802 = vsub.f32 %v275, %v3801
        %3803 = vmatpush1.msra.mxu0 %v3802
        %3804 = vmatprep.subr.mxu0 0.0
        %v3805 = vand.u32 %v276, 4294901760
        %v3806 = vsub.f32 %v276, %v3805
        %3807 = vmatpush1.msra.mxu0 %v3806
        %3808 = vmatprep.subr.mxu0 0.0
        %v3809 = vand.u32 %v277, 4294901760
        %v3810 = vsub.f32 %v277, %v3809
        %3811 = vmatpush1.msra.mxu0 %v3810
        %3812 = vmatprep.subr.mxu0 0.0
        %v3813 = vand.u32 %v278, 4294901760
        %v3814 = vsub.f32 %v278, %v3813
        %3815 = vmatpush1.msra.mxu0 %v3814
        %3816 = vmatprep.subr.mxu0 0.0
        %v3817 = vand.u32 %v279, 4294901760
        %v3818 = vsub.f32 %v279, %v3817
        %3819 = vmatpush1.msra.mxu0 %v3818
        %3820 = vmatprep.subr.mxu0 0.0
        %v3821 = vand.u32 %v280, 4294901760
        %v3822 = vsub.f32 %v280, %v3821
        %3823 = vmatpush1.msra.mxu0 %v3822
        %3824 = vmatprep.subr.mxu0 0.0
        %v3825 = vand.u32 %v281, 4294901760
        %v3826 = vsub.f32 %v281, %v3825
        %3827 = vmatpush1.msra.mxu0 %v3826
        %3828 = vmatprep.subr.mxu0 0.0
        %v3829 = vand.u32 %v282, 4294901760
        %v3830 = vsub.f32 %v282, %v3829
        %3831 = vmatpush1.msra.mxu0 %v3830
        %3832 = vmatprep.subr.mxu0 0.0
        %v3833 = vand.u32 %v283, 4294901760
        %v3834 = vsub.f32 %v283, %v3833
        %3835 = vmatpush1.msra.mxu0 %v3834
        %3836 = vmatprep.subr.mxu0 0.0
        %v3837 = vand.u32 %v284, 4294901760
        %v3838 = vsub.f32 %v284, %v3837
        %3839 = vmatpush1.msra.mxu0 %v3838
        %3840 = vmatprep.subr.mxu0 0.0
        %v3841 = vand.u32 %v285, 4294901760
        %v3842 = vsub.f32 %v285, %v3841
        %3843 = vmatpush1.msra.mxu0 %v3842
        %3844 = vmatprep.subr.mxu0 0.0
        %v3845 = vand.u32 %v286, 4294901760
        %v3846 = vsub.f32 %v286, %v3845
        %3847 = vmatpush1.msra.mxu0 %v3846
        %3848 = vmatprep.subr.mxu0 0.0
        %v3849 = vand.u32 %v287, 4294901760
        %v3850 = vsub.f32 %v287, %v3849
        %3851 = vmatpush1.msra.mxu0 %v3850
        %3852 = vmatprep.subr.mxu0 0.0
        %v3853 = vand.u32 %v288, 4294901760
        %v3854 = vsub.f32 %v288, %v3853
        %3855 = vmatpush1.msra.mxu0 %v3854
        %3856 = vmatprep.subr.mxu0 0.0
        %v3857 = vand.u32 %v289, 4294901760
        %v3858 = vsub.f32 %v289, %v3857
        %3859 = vmatpush1.msra.mxu0 %v3858
        %v3860 = vand.u32 %v514, 4294901760
        %v3861 = vsub.f32 %v514, %v3860
        %3862 = vmatprep.mubr.f32.mxu0 %v3861
        %v3863 = vand.u32 %v502, 4294901760
        %v3864 = vsub.f32 %v502, %v3863
        %3865 = vmatmul.mubr.f32.gmra.mrb[0].mxu0 %v3864
        %v3866 = vpop.f32.mrb[0].mxu0
        %v3867 = vadd.f32 %v3722, %v3866
        %v3868 = vpop.f32.mrb[0].mxu0
        %v3869 = vand.u32 %v515, 4294901760
        %v3870 = vsub.f32 %v515, %v3869
        %3871 = vmatprep.mubr.f32.mxu0 %v3870
        %v3872 = vand.u32 %v503, 4294901760
        %v3873 = vsub.f32 %v503, %v3872
        %3874 = vmatmul.mubr.f32.gmra.mrb[0].mxu0 %v3873
        %v3875 = vpop.f32.mrb[0].mxu0
        %v3876 = vadd.f32 %v3729, %v3875
        %v3877 = vpop.f32.mrb[0].mxu0
        %3878 = vdwg.mxu0
        %3879 = vmatprep.subr.mxu0 0.0
        %v3880 = vand.u32 %v258, 4294901760
        %3881 = vmatpush1.msra.mxu0 %v3880
        %3882 = vmatprep.subr.mxu0 0.0
        %v3883 = vand.u32 %v259, 4294901760
        %3884 = vmatpush1.msra.mxu0 %v3883
        %3885 = vmatprep.subr.mxu0 0.0
        %v3886 = vand.u32 %v260, 4294901760
        %3887 = vmatpush1.msra.mxu0 %v3886
        %3888 = vmatprep.subr.mxu0 0.0
        %v3889 = vand.u32 %v261, 4294901760
        %3890 = vmatpush1.msra.mxu0 %v3889
        %3891 = vmatprep.subr.mxu0 0.0
        %v3892 = vand.u32 %v262, 4294901760
        %3893 = vmatpush1.msra.mxu0 %v3892
        %3894 = vmatprep.subr.mxu0 0.0
        %v3895 = vand.u32 %v263, 4294901760
        %3896 = vmatpush1.msra.mxu0 %v3895
        %3897 = vmatprep.subr.mxu0 0.0
        %v3898 = vand.u32 %v264, 4294901760
        %3899 = vmatpush1.msra.mxu0 %v3898
        %3900 = vmatprep.subr.mxu0 0.0
        %v3901 = vand.u32 %v265, 4294901760
        %3902 = vmatpush1.msra.mxu0 %v3901
        %3903 = vmatprep.subr.mxu0 0.0
        %v3904 = vand.u32 %v266, 4294901760
        %3905 = vmatpush1.msra.mxu0 %v3904
        %3906 = vmatprep.subr.mxu0 0.0
        %v3907 = vand.u32 %v267, 4294901760
        %3908 = vmatpush1.msra.mxu0 %v3907
        %3909 = vmatprep.subr.mxu0 0.0
        %v3910 = vand.u32 %v268, 4294901760
        %3911 = vmatpush1.msra.mxu0 %v3910
        %3912 = vmatprep.subr.mxu0 0.0
        %v3913 = vand.u32 %v269, 4294901760
        %3914 = vmatpush1.msra.mxu0 %v3913
        %3915 = vmatprep.subr.mxu0 0.0
        %v3916 = vand.u32 %v270, 4294901760
        %3917 = vmatpush1.msra.mxu0 %v3916
        %3918 = vmatprep.subr.mxu0 0.0
        %v3919 = vand.u32 %v271, 4294901760
        %3920 = vmatpush1.msra.mxu0 %v3919
        %3921 = vmatprep.subr.mxu0 0.0
        %v3922 = vand.u32 %v272, 4294901760
        %3923 = vmatpush1.msra.mxu0 %v3922
        %3924 = vmatprep.subr.mxu0 0.0
        %v3925 = vand.u32 %v273, 4294901760
        %3926 = vmatpush1.msra.mxu0 %v3925
        %3927 = vmatprep.subr.mxu0 0.0
        %v3928 = vand.u32 %v274, 4294901760
        %3929 = vmatpush1.msra.mxu0 %v3928
        %3930 = vmatprep.subr.mxu0 0.0
        %v3931 = vand.u32 %v275, 4294901760
        %3932 = vmatpush1.msra.mxu0 %v3931
        %3933 = vmatprep.subr.mxu0 0.0
        %v3934 = vand.u32 %v276, 4294901760
        %3935 = vmatpush1.msra.mxu0 %v3934
        %3936 = vmatprep.subr.mxu0 0.0
        %v3937 = vand.u32 %v277, 4294901760
        %3938 = vmatpush1.msra.mxu0 %v3937
        %3939 = vmatprep.subr.mxu0 0.0
        %v3940 = vand.u32 %v278, 4294901760
        %3941 = vmatpush1.msra.mxu0 %v3940
        %3942 = vmatprep.subr.mxu0 0.0
        %v3943 = vand.u32 %v279, 4294901760
        %3944 = vmatpush1.msra.mxu0 %v3943
        %3945 = vmatprep.subr.mxu0 0.0
        %v3946 = vand.u32 %v280, 4294901760
        %3947 = vmatpush1.msra.mxu0 %v3946
        %3948 = vmatprep.subr.mxu0 0.0
        %v3949 = vand.u32 %v281, 4294901760
        %3950 = vmatpush1.msra.mxu0 %v3949
        %3951 = vmatprep.subr.mxu0 0.0
        %v3952 = vand.u32 %v282, 4294901760
        %3953 = vmatpush1.msra.mxu0 %v3952
        %3954 = vmatprep.subr.mxu0 0.0
        %v3955 = vand.u32 %v283, 4294901760
        %3956 = vmatpush1.msra.mxu0 %v3955
        %3957 = vmatprep.subr.mxu0 0.0
        %v3958 = vand.u32 %v284, 4294901760
        %3959 = vmatpush1.msra.mxu0 %v3958
        %3960 = vmatprep.subr.mxu0 0.0
        %v3961 = vand.u32 %v285, 4294901760
        %3962 = vmatpush1.msra.mxu0 %v3961
        %3963 = vmatprep.subr.mxu0 0.0
        %v3964 = vand.u32 %v286, 4294901760
        %3965 = vmatpush1.msra.mxu0 %v3964
        %3966 = vmatprep.subr.mxu0 0.0
        %v3967 = vand.u32 %v287, 4294901760
        %3968 = vmatpush1.msra.mxu0 %v3967
        %3969 = vmatprep.subr.mxu0 0.0
        %v3970 = vand.u32 %v288, 4294901760
        %3971 = vmatpush1.msra.mxu0 %v3970
        %3972 = vmatprep.subr.mxu0 0.0
        %v3973 = vand.u32 %v289, 4294901760
        %3974 = vmatpush1.msra.mxu0 %v3973
        %v3975 = vand.u32 %v514, 4294901760
        %v3976 = vsub.f32 %v514, %v3975
        %v3977 = vand.u32 %v3976, 4294901760
        %3978 = vmatprep.mubr.f32.mxu0 %v3977
        %v3979 = vand.u32 %v502, 4294901760
        %v3980 = vsub.f32 %v502, %v3979
        %v3981 = vand.u32 %v3980, 4294901760
        %3982 = vmatmul.mubr.f32.gmra.mrb[0].mxu0 %v3981
        %v3983 = vpop.f32.mrb[0].mxu0
        %v3984 = vadd.f32 %v3867, %v3983
        %v3985 = vpop.f32.mrb[0].mxu0
        %v3986 = vand.u32 %v515, 4294901760
        %v3987 = vsub.f32 %v515, %v3986
        %v3988 = vand.u32 %v3987, 4294901760
        %3989 = vmatprep.mubr.f32.mxu0 %v3988
        %v3990 = vand.u32 %v503, 4294901760
        %v3991 = vsub.f32 %v503, %v3990
        %v3992 = vand.u32 %v3991, 4294901760
        %3993 = vmatmul.mubr.f32.gmra.mrb[0].mxu0 %v3992
        %v3994 = vpop.f32.mrb[0].mxu0
        %v3995 = vadd.f32 %v3876, %v3994
        %v3996 = vpop.f32.mrb[0].mxu0
        %3997 = vdwg.mxu0
        %3998 = vmatprep.subr.mxu0 0.0
        %v3999 = vand.u32 %v258, 4294901760
        %v4000 = vsub.f32 %v258, %v3999
        %v4001 = vand.u32 %v4000, 4294901760
        %4002 = vmatpush1.msra.mxu0 %v4001
        %4003 = vmatprep.subr.mxu0 0.0
        %v4004 = vand.u32 %v259, 4294901760
        %v4005 = vsub.f32 %v259, %v4004
        %v4006 = vand.u32 %v4005, 4294901760
        %4007 = vmatpush1.msra.mxu0 %v4006
        %4008 = vmatprep.subr.mxu0 0.0
        %v4009 = vand.u32 %v260, 4294901760
        %v4010 = vsub.f32 %v260, %v4009
        %v4011 = vand.u32 %v4010, 4294901760
        %4012 = vmatpush1.msra.mxu0 %v4011
        %4013 = vmatprep.subr.mxu0 0.0
        %v4014 = vand.u32 %v261, 4294901760
        %v4015 = vsub.f32 %v261, %v4014
        %v4016 = vand.u32 %v4015, 4294901760
        %4017 = vmatpush1.msra.mxu0 %v4016
        %4018 = vmatprep.subr.mxu0 0.0
        %v4019 = vand.u32 %v262, 4294901760
        %v4020 = vsub.f32 %v262, %v4019
        %v4021 = vand.u32 %v4020, 4294901760
        %4022 = vmatpush1.msra.mxu0 %v4021
        %4023 = vmatprep.subr.mxu0 0.0
        %v4024 = vand.u32 %v263, 4294901760
        %v4025 = vsub.f32 %v263, %v4024
        %v4026 = vand.u32 %v4025, 4294901760
        %4027 = vmatpush1.msra.mxu0 %v4026
        %4028 = vmatprep.subr.mxu0 0.0
        %v4029 = vand.u32 %v264, 4294901760
        %v4030 = vsub.f32 %v264, %v4029
        %v4031 = vand.u32 %v4030, 4294901760
        %4032 = vmatpush1.msra.mxu0 %v4031
        %4033 = vmatprep.subr.mxu0 0.0
        %v4034 = vand.u32 %v265, 4294901760
        %v4035 = vsub.f32 %v265, %v4034
        %v4036 = vand.u32 %v4035, 4294901760
        %4037 = vmatpush1.msra.mxu0 %v4036
        %4038 = vmatprep.subr.mxu0 0.0
        %v4039 = vand.u32 %v266, 4294901760
        %v4040 = vsub.f32 %v266, %v4039
        %v4041 = vand.u32 %v4040, 4294901760
        %4042 = vmatpush1.msra.mxu0 %v4041
        %4043 = vmatprep.subr.mxu0 0.0
        %v4044 = vand.u32 %v267, 4294901760
        %v4045 = vsub.f32 %v267, %v4044
        %v4046 = vand.u32 %v4045, 4294901760
        %4047 = vmatpush1.msra.mxu0 %v4046
        %4048 = vmatprep.subr.mxu0 0.0
        %v4049 = vand.u32 %v268, 4294901760
        %v4050 = vsub.f32 %v268, %v4049
        %v4051 = vand.u32 %v4050, 4294901760
        %4052 = vmatpush1.msra.mxu0 %v4051
        %4053 = vmatprep.subr.mxu0 0.0
        %v4054 = vand.u32 %v269, 4294901760
        %v4055 = vsub.f32 %v269, %v4054
        %v4056 = vand.u32 %v4055, 4294901760
        %4057 = vmatpush1.msra.mxu0 %v4056
        %4058 = vmatprep.subr.mxu0 0.0
        %v4059 = vand.u32 %v270, 4294901760
        %v4060 = vsub.f32 %v270, %v4059
        %v4061 = vand.u32 %v4060, 4294901760
        %4062 = vmatpush1.msra.mxu0 %v4061
        %4063 = vmatprep.subr.mxu0 0.0
        %v4064 = vand.u32 %v271, 4294901760
        %v4065 = vsub.f32 %v271, %v4064
        %v4066 = vand.u32 %v4065, 4294901760
        %4067 = vmatpush1.msra.mxu0 %v4066
        %4068 = vmatprep.subr.mxu0 0.0
        %v4069 = vand.u32 %v272, 4294901760
        %v4070 = vsub.f32 %v272, %v4069
        %v4071 = vand.u32 %v4070, 4294901760
        %4072 = vmatpush1.msra.mxu0 %v4071
        %4073 = vmatprep.subr.mxu0 0.0
        %v4074 = vand.u32 %v273, 4294901760
        %v4075 = vsub.f32 %v273, %v4074
        %v4076 = vand.u32 %v4075, 4294901760
        %4077 = vmatpush1.msra.mxu0 %v4076
        %4078 = vmatprep.subr.mxu0 0.0
        %v4079 = vand.u32 %v274, 4294901760
        %v4080 = vsub.f32 %v274, %v4079
        %v4081 = vand.u32 %v4080, 4294901760
        %4082 = vmatpush1.msra.mxu0 %v4081
        %4083 = vmatprep.subr.mxu0 0.0
        %v4084 = vand.u32 %v275, 4294901760
        %v4085 = vsub.f32 %v275, %v4084
        %v4086 = vand.u32 %v4085, 4294901760
        %4087 = vmatpush1.msra.mxu0 %v4086
        %4088 = vmatprep.subr.mxu0 0.0
        %v4089 = vand.u32 %v276, 4294901760
        %v4090 = vsub.f32 %v276, %v4089
        %v4091 = vand.u32 %v4090, 4294901760
        %4092 = vmatpush1.msra.mxu0 %v4091
        %4093 = vmatprep.subr.mxu0 0.0
        %v4094 = vand.u32 %v277, 4294901760
        %v4095 = vsub.f32 %v277, %v4094
        %v4096 = vand.u32 %v4095, 4294901760
        %4097 = vmatpush1.msra.mxu0 %v4096
        %4098 = vmatprep.subr.mxu0 0.0
        %v4099 = vand.u32 %v278, 4294901760
        %v4100 = vsub.f32 %v278, %v4099
        %v4101 = vand.u32 %v4100, 4294901760
        %4102 = vmatpush1.msra.mxu0 %v4101
        %4103 = vmatprep.subr.mxu0 0.0
        %v4104 = vand.u32 %v279, 4294901760
        %v4105 = vsub.f32 %v279, %v4104
        %v4106 = vand.u32 %v4105, 4294901760
        %4107 = vmatpush1.msra.mxu0 %v4106
        %4108 = vmatprep.subr.mxu0 0.0
        %v4109 = vand.u32 %v280, 4294901760
        %v4110 = vsub.f32 %v280, %v4109
        %v4111 = vand.u32 %v4110, 4294901760
        %4112 = vmatpush1.msra.mxu0 %v4111
        %4113 = vmatprep.subr.mxu0 0.0
        %v4114 = vand.u32 %v281, 4294901760
        %v4115 = vsub.f32 %v281, %v4114
        %v4116 = vand.u32 %v4115, 4294901760
        %4117 = vmatpush1.msra.mxu0 %v4116
        %4118 = vmatprep.subr.mxu0 0.0
        %v4119 = vand.u32 %v282, 4294901760
        %v4120 = vsub.f32 %v282, %v4119
        %v4121 = vand.u32 %v4120, 4294901760
        %4122 = vmatpush1.msra.mxu0 %v4121
        %4123 = vmatprep.subr.mxu0 0.0
        %v4124 = vand.u32 %v283, 4294901760
        %v4125 = vsub.f32 %v283, %v4124
        %v4126 = vand.u32 %v4125, 4294901760
        %4127 = vmatpush1.msra.mxu0 %v4126
        %4128 = vmatprep.subr.mxu0 0.0
        %v4129 = vand.u32 %v284, 4294901760
        %v4130 = vsub.f32 %v284, %v4129
        %v4131 = vand.u32 %v4130, 4294901760
        %4132 = vmatpush1.msra.mxu0 %v4131
        %4133 = vmatprep.subr.mxu0 0.0
        %v4134 = vand.u32 %v285, 4294901760
        %v4135 = vsub.f32 %v285, %v4134
        %v4136 = vand.u32 %v4135, 4294901760
        %4137 = vmatpush1.msra.mxu0 %v4136
        %4138 = vmatprep.subr.mxu0 0.0
        %v4139 = vand.u32 %v286, 4294901760
        %v4140 = vsub.f32 %v286, %v4139
        %v4141 = vand.u32 %v4140, 4294901760
        %4142 = vmatpush1.msra.mxu0 %v4141
        %4143 = vmatprep.subr.mxu0 0.0
        %v4144 = vand.u32 %v287, 4294901760
        %v4145 = vsub.f32 %v287, %v4144
        %v4146 = vand.u32 %v4145, 4294901760
        %4147 = vmatpush1.msra.mxu0 %v4146
        %4148 = vmatprep.subr.mxu0 0.0
        %v4149 = vand.u32 %v288, 4294901760
        %v4150 = vsub.f32 %v288, %v4149
        %v4151 = vand.u32 %v4150, 4294901760
        %4152 = vmatpush1.msra.mxu0 %v4151
        %4153 = vmatprep.subr.mxu0 0.0
        %v4154 = vand.u32 %v289, 4294901760
        %v4155 = vsub.f32 %v289, %v4154
        %v4156 = vand.u32 %v4155, 4294901760
        %4157 = vmatpush1.msra.mxu0 %v4156
        %v4158 = vand.u32 %v514, 4294901760
        %4159 = vmatprep.mubr.f32.mxu0 %v4158
        %v4160 = vand.u32 %v502, 4294901760
        %4161 = vmatmul.mubr.f32.gmra.mrb[0].mxu0 %v4160
        %v4162 = vpop.f32.mrb[0].mxu0
        %v4163 = vadd.f32 %v3984, %v4162
        %v4164 = vpop.f32.mrb[0].mxu0
        %v4165 = vand.u32 %v515, 4294901760
        %4166 = vmatprep.mubr.f32.mxu0 %v4165
        %v4167 = vand.u32 %v503, 4294901760
        %4168 = vmatmul.mubr.f32.gmra.mrb[0].mxu0 %v4167
        %v4169 = vpop.f32.mrb[0].mxu0
        %v4170 = vadd.f32 %v3995, %v4169
        %v4171 = vpop.f32.mrb[0].mxu0
        %4172 = vdwg.mxu0
        %4173 = vmatprep.subr.mxu0 0.0
        %v4174 = vand.u32 %v258, 4294901760
        %4175 = vmatpush1.msra.mxu0 %v4174
        %4176 = vmatprep.subr.mxu0 0.0
        %v4177 = vand.u32 %v259, 4294901760
        %4178 = vmatpush1.msra.mxu0 %v4177
        %4179 = vmatprep.subr.mxu0 0.0
        %v4180 = vand.u32 %v260, 4294901760
        %4181 = vmatpush1.msra.mxu0 %v4180
        %4182 = vmatprep.subr.mxu0 0.0
        %v4183 = vand.u32 %v261, 4294901760
        %4184 = vmatpush1.msra.mxu0 %v4183
        %4185 = vmatprep.subr.mxu0 0.0
        %v4186 = vand.u32 %v262, 4294901760
        %4187 = vmatpush1.msra.mxu0 %v4186
        %4188 = vmatprep.subr.mxu0 0.0
        %v4189 = vand.u32 %v263, 4294901760
        %4190 = vmatpush1.msra.mxu0 %v4189
        %4191 = vmatprep.subr.mxu0 0.0
        %v4192 = vand.u32 %v264, 4294901760
        %4193 = vmatpush1.msra.mxu0 %v4192
        %4194 = vmatprep.subr.mxu0 0.0
        %v4195 = vand.u32 %v265, 4294901760
        %4196 = vmatpush1.msra.mxu0 %v4195
        %4197 = vmatprep.subr.mxu0 0.0
        %v4198 = vand.u32 %v266, 4294901760
        %4199 = vmatpush1.msra.mxu0 %v4198
        %4200 = vmatprep.subr.mxu0 0.0
        %v4201 = vand.u32 %v267, 4294901760
        %4202 = vmatpush1.msra.mxu0 %v4201
        %4203 = vmatprep.subr.mxu0 0.0
        %v4204 = vand.u32 %v268, 4294901760
        %4205 = vmatpush1.msra.mxu0 %v4204
        %4206 = vmatprep.subr.mxu0 0.0
        %v4207 = vand.u32 %v269, 4294901760
        %4208 = vmatpush1.msra.mxu0 %v4207
        %4209 = vmatprep.subr.mxu0 0.0
        %v4210 = vand.u32 %v270, 4294901760
        %4211 = vmatpush1.msra.mxu0 %v4210
        %4212 = vmatprep.subr.mxu0 0.0
        %v4213 = vand.u32 %v271, 4294901760
        %4214 = vmatpush1.msra.mxu0 %v4213
        %4215 = vmatprep.subr.mxu0 0.0
        %v4216 = vand.u32 %v272, 4294901760
        %4217 = vmatpush1.msra.mxu0 %v4216
        %4218 = vmatprep.subr.mxu0 0.0
        %v4219 = vand.u32 %v273, 4294901760
        %4220 = vmatpush1.msra.mxu0 %v4219
        %4221 = vmatprep.subr.mxu0 0.0
        %v4222 = vand.u32 %v274, 4294901760
        %4223 = vmatpush1.msra.mxu0 %v4222
        %4224 = vmatprep.subr.mxu0 0.0
        %v4225 = vand.u32 %v275, 4294901760
        %4226 = vmatpush1.msra.mxu0 %v4225
        %4227 = vmatprep.subr.mxu0 0.0
        %v4228 = vand.u32 %v276, 4294901760
        %4229 = vmatpush1.msra.mxu0 %v4228
        %4230 = vmatprep.subr.mxu0 0.0
        %v4231 = vand.u32 %v277, 4294901760
        %4232 = vmatpush1.msra.mxu0 %v4231
        %4233 = vmatprep.subr.mxu0 0.0
        %v4234 = vand.u32 %v278, 4294901760
        %4235 = vmatpush1.msra.mxu0 %v4234
        %4236 = vmatprep.subr.mxu0 0.0
        %v4237 = vand.u32 %v279, 4294901760
        %4238 = vmatpush1.msra.mxu0 %v4237
        %4239 = vmatprep.subr.mxu0 0.0
        %v4240 = vand.u32 %v280, 4294901760
        %4241 = vmatpush1.msra.mxu0 %v4240
        %4242 = vmatprep.subr.mxu0 0.0
        %v4243 = vand.u32 %v281, 4294901760
        %4244 = vmatpush1.msra.mxu0 %v4243
        %4245 = vmatprep.subr.mxu0 0.0
        %v4246 = vand.u32 %v282, 4294901760
        %4247 = vmatpush1.msra.mxu0 %v4246
        %4248 = vmatprep.subr.mxu0 0.0
        %v4249 = vand.u32 %v283, 4294901760
        %4250 = vmatpush1.msra.mxu0 %v4249
        %4251 = vmatprep.subr.mxu0 0.0
        %v4252 = vand.u32 %v284, 4294901760
        %4253 = vmatpush1.msra.mxu0 %v4252
        %4254 = vmatprep.subr.mxu0 0.0
        %v4255 = vand.u32 %v285, 4294901760
        %4256 = vmatpush1.msra.mxu0 %v4255
        %4257 = vmatprep.subr.mxu0 0.0
        %v4258 = vand.u32 %v286, 4294901760
        %4259 = vmatpush1.msra.mxu0 %v4258
        %4260 = vmatprep.subr.mxu0 0.0
        %v4261 = vand.u32 %v287, 4294901760
        %4262 = vmatpush1.msra.mxu0 %v4261
        %4263 = vmatprep.subr.mxu0 0.0
        %v4264 = vand.u32 %v288, 4294901760
        %4265 = vmatpush1.msra.mxu0 %v4264
        %4266 = vmatprep.subr.mxu0 0.0
        %v4267 = vand.u32 %v289, 4294901760
        %4268 = vmatpush1.msra.mxu0 %v4267
        %v4269 = vand.u32 %v514, 4294901760
        %4270 = vmatprep.mubr.f32.mxu0 %v4269
        %v4271 = vand.u32 %v502, 4294901760
        %4272 = vmatmul.mubr.f32.gmra.mrb[0].mxu0 %v4271
        %v4273 = vpop.f32.mrb[0].mxu0
        %v4274 = vadd.f32 %v4163, %v4273
        %v4275 = vpop.f32.mrb[0].mxu0
        %v4276 = vand.u32 %v515, 4294901760
        %4277 = vmatprep.mubr.f32.mxu0 %v4276
        %v4278 = vand.u32 %v503, 4294901760
        %4279 = vmatmul.mubr.f32.gmra.mrb[0].mxu0 %v4278
        %v4280 = vpop.f32.mrb[0].mxu0
        %v4281 = vadd.f32 %v4170, %v4280
        %v4282 = vpop.f32.mrb[0].mxu0
        %4283 = vdwg.mxu0
        %4284 = vmatprep.subr.mxu0 0.0
        %v4285 = vand.u32 %v290, 4294901760
        %4286 = vmatpush1.msra.mxu0 %v4285
        %4287 = vmatprep.subr.mxu0 0.0
        %v4288 = vand.u32 %v291, 4294901760
        %4289 = vmatpush1.msra.mxu0 %v4288
        %4290 = vmatprep.subr.mxu0 0.0
        %v4291 = vand.u32 %v292, 4294901760
        %4292 = vmatpush1.msra.mxu0 %v4291
        %4293 = vmatprep.subr.mxu0 0.0
        %v4294 = vand.u32 %v293, 4294901760
        %4295 = vmatpush1.msra.mxu0 %v4294
        %4296 = vmatprep.subr.mxu0 0.0
        %v4297 = vand.u32 %v294, 4294901760
        %4298 = vmatpush1.msra.mxu0 %v4297
        %4299 = vmatprep.subr.mxu0 0.0
        %v4300 = vand.u32 %v295, 4294901760
        %4301 = vmatpush1.msra.mxu0 %v4300
        %4302 = vmatprep.subr.mxu0 0.0
        %v4303 = vand.u32 %v296, 4294901760
        %4304 = vmatpush1.msra.mxu0 %v4303
        %4305 = vmatprep.subr.mxu0 0.0
        %v4306 = vand.u32 %v297, 4294901760
        %4307 = vmatpush1.msra.mxu0 %v4306
        %4308 = vmatprep.subr.mxu0 0.0
        %v4309 = vand.u32 %v298, 4294901760
        %4310 = vmatpush1.msra.mxu0 %v4309
        %4311 = vmatprep.subr.mxu0 0.0
        %v4312 = vand.u32 %v299, 4294901760
        %4313 = vmatpush1.msra.mxu0 %v4312
        %4314 = vmatprep.subr.mxu0 0.0
        %v4315 = vand.u32 %v300, 4294901760
        %4316 = vmatpush1.msra.mxu0 %v4315
        %4317 = vmatprep.subr.mxu0 0.0
        %v4318 = vand.u32 %v301, 4294901760
        %4319 = vmatpush1.msra.mxu0 %v4318
        %4320 = vmatprep.subr.mxu0 0.0
        %v4321 = vand.u32 %v302, 4294901760
        %4322 = vmatpush1.msra.mxu0 %v4321
        %4323 = vmatprep.subr.mxu0 0.0
        %v4324 = vand.u32 %v303, 4294901760
        %4325 = vmatpush1.msra.mxu0 %v4324
        %4326 = vmatprep.subr.mxu0 0.0
        %v4327 = vand.u32 %v304, 4294901760
        %4328 = vmatpush1.msra.mxu0 %v4327
        %4329 = vmatprep.subr.mxu0 0.0
        %v4330 = vand.u32 %v305, 4294901760
        %4331 = vmatpush1.msra.mxu0 %v4330
        %4332 = vmatprep.subr.mxu0 0.0
        %v4333 = vand.u32 %v306, 4294901760
        %4334 = vmatpush1.msra.mxu0 %v4333
        %4335 = vmatprep.subr.mxu0 0.0
        %v4336 = vand.u32 %v307, 4294901760
        %4337 = vmatpush1.msra.mxu0 %v4336
        %4338 = vmatprep.subr.mxu0 0.0
        %v4339 = vand.u32 %v308, 4294901760
        %4340 = vmatpush1.msra.mxu0 %v4339
        %4341 = vmatprep.subr.mxu0 0.0
        %v4342 = vand.u32 %v309, 4294901760
        %4343 = vmatpush1.msra.mxu0 %v4342
        %4344 = vmatprep.subr.mxu0 0.0
        %v4345 = vand.u32 %v310, 4294901760
        %4346 = vmatpush1.msra.mxu0 %v4345
        %4347 = vmatprep.subr.mxu0 0.0
        %v4348 = vand.u32 %v311, 4294901760
        %4349 = vmatpush1.msra.mxu0 %v4348
        %4350 = vmatprep.subr.mxu0 0.0
        %v4351 = vand.u32 %v312, 4294901760
        %4352 = vmatpush1.msra.mxu0 %v4351
        %4353 = vmatprep.subr.mxu0 0.0
        %v4354 = vand.u32 %v313, 4294901760
        %4355 = vmatpush1.msra.mxu0 %v4354
        %4356 = vmatprep.subr.mxu0 0.0
        %v4357 = vand.u32 %v314, 4294901760
        %4358 = vmatpush1.msra.mxu0 %v4357
        %4359 = vmatprep.subr.mxu0 0.0
        %v4360 = vand.u32 %v315, 4294901760
        %4361 = vmatpush1.msra.mxu0 %v4360
        %4362 = vmatprep.subr.mxu0 0.0
        %v4363 = vand.u32 %v316, 4294901760
        %4364 = vmatpush1.msra.mxu0 %v4363
        %4365 = vmatprep.subr.mxu0 0.0
        %v4366 = vand.u32 %v317, 4294901760
        %4367 = vmatpush1.msra.mxu0 %v4366
        %4368 = vmatprep.subr.mxu0 0.0
        %v4369 = vand.u32 %v318, 4294901760
        %4370 = vmatpush1.msra.mxu0 %v4369
        %4371 = vmatprep.subr.mxu0 0.0
        %v4372 = vand.u32 %v319, 4294901760
        %4373 = vmatpush1.msra.mxu0 %v4372
        %4374 = vmatprep.subr.mxu0 0.0
        %v4375 = vand.u32 %v320, 4294901760
        %4376 = vmatpush1.msra.mxu0 %v4375
        %4377 = vmatprep.subr.mxu0 0.0
        %v4378 = vand.u32 %v321, 4294901760
        %4379 = vmatpush1.msra.mxu0 %v4378
        %v4380 = vand.u32 %v538, 4294901760
        %v4381 = vsub.f32 %v538, %v4380
        %v4382 = vand.u32 %v4381, 4294901760
        %v4383 = vsub.f32 %v4381, %v4382
        %v4384 = vand.u32 %v4383, 4294901760
        %4385 = vmatprep.mubr.f32.mxu0 %v4384
        %v4386 = vand.u32 %v526, 4294901760
        %v4387 = vsub.f32 %v526, %v4386
        %v4388 = vand.u32 %v4387, 4294901760
        %v4389 = vsub.f32 %v4387, %v4388
        %v4390 = vand.u32 %v4389, 4294901760
        %4391 = vmatmul.mubr.f32.gmra.mrb[0].mxu0 %v4390
        %v4392 = vpop.f32.mrb[0].mxu0
        %v4393 = vadd.f32 %v4274, %v4392
        %v4394 = vpop.f32.mrb[0].mxu0
        %v4395 = vand.u32 %v539, 4294901760
        %v4396 = vsub.f32 %v539, %v4395
        %v4397 = vand.u32 %v4396, 4294901760
        %v4398 = vsub.f32 %v4396, %v4397
        %v4399 = vand.u32 %v4398, 4294901760
        %4400 = vmatprep.mubr.f32.mxu0 %v4399
        %v4401 = vand.u32 %v527, 4294901760
        %v4402 = vsub.f32 %v527, %v4401
        %v4403 = vand.u32 %v4402, 4294901760
        %v4404 = vsub.f32 %v4402, %v4403
        %v4405 = vand.u32 %v4404, 4294901760
        %4406 = vmatmul.mubr.f32.gmra.mrb[0].mxu0 %v4405
        %v4407 = vpop.f32.mrb[0].mxu0
        %v4408 = vadd.f32 %v4281, %v4407
        %v4409 = vpop.f32.mrb[0].mxu0
        %4410 = vdwg.mxu0
        %4411 = vmatprep.subr.mxu0 0.0
        %v4412 = vand.u32 %v290, 4294901760
        %v4413 = vsub.f32 %v290, %v4412
        %v4414 = vand.u32 %v4413, 4294901760
        %v4415 = vsub.f32 %v4413, %v4414
        %v4416 = vand.u32 %v4415, 4294901760
        %4417 = vmatpush1.msra.mxu0 %v4416
        %4418 = vmatprep.subr.mxu0 0.0
        %v4419 = vand.u32 %v291, 4294901760
        %v4420 = vsub.f32 %v291, %v4419
        %v4421 = vand.u32 %v4420, 4294901760
        %v4422 = vsub.f32 %v4420, %v4421
        %v4423 = vand.u32 %v4422, 4294901760
        %4424 = vmatpush1.msra.mxu0 %v4423
        %4425 = vmatprep.subr.mxu0 0.0
        %v4426 = vand.u32 %v292, 4294901760
        %v4427 = vsub.f32 %v292, %v4426
        %v4428 = vand.u32 %v4427, 4294901760
        %v4429 = vsub.f32 %v4427, %v4428
        %v4430 = vand.u32 %v4429, 4294901760
        %4431 = vmatpush1.msra.mxu0 %v4430
        %4432 = vmatprep.subr.mxu0 0.0
        %v4433 = vand.u32 %v293, 4294901760
        %v4434 = vsub.f32 %v293, %v4433
        %v4435 = vand.u32 %v4434, 4294901760
        %v4436 = vsub.f32 %v4434, %v4435
        %v4437 = vand.u32 %v4436, 4294901760
        %4438 = vmatpush1.msra.mxu0 %v4437
        %4439 = vmatprep.subr.mxu0 0.0
        %v4440 = vand.u32 %v294, 4294901760
        %v4441 = vsub.f32 %v294, %v4440
        %v4442 = vand.u32 %v4441, 4294901760
        %v4443 = vsub.f32 %v4441, %v4442
        %v4444 = vand.u32 %v4443, 4294901760
        %4445 = vmatpush1.msra.mxu0 %v4444
        %4446 = vmatprep.subr.mxu0 0.0
        %v4447 = vand.u32 %v295, 4294901760
        %v4448 = vsub.f32 %v295, %v4447
        %v4449 = vand.u32 %v4448, 4294901760
        %v4450 = vsub.f32 %v4448, %v4449
        %v4451 = vand.u32 %v4450, 4294901760
        %4452 = vmatpush1.msra.mxu0 %v4451
        %4453 = vmatprep.subr.mxu0 0.0
        %v4454 = vand.u32 %v296, 4294901760
        %v4455 = vsub.f32 %v296, %v4454
        %v4456 = vand.u32 %v4455, 4294901760
        %v4457 = vsub.f32 %v4455, %v4456
        %v4458 = vand.u32 %v4457, 4294901760
        %4459 = vmatpush1.msra.mxu0 %v4458
        %4460 = vmatprep.subr.mxu0 0.0
        %v4461 = vand.u32 %v297, 4294901760
        %v4462 = vsub.f32 %v297, %v4461
        %v4463 = vand.u32 %v4462, 4294901760
        %v4464 = vsub.f32 %v4462, %v4463
        %v4465 = vand.u32 %v4464, 4294901760
        %4466 = vmatpush1.msra.mxu0 %v4465
        %4467 = vmatprep.subr.mxu0 0.0
        %v4468 = vand.u32 %v298, 4294901760
        %v4469 = vsub.f32 %v298, %v4468
        %v4470 = vand.u32 %v4469, 4294901760
        %v4471 = vsub.f32 %v4469, %v4470
        %v4472 = vand.u32 %v4471, 4294901760
        %4473 = vmatpush1.msra.mxu0 %v4472
        %4474 = vmatprep.subr.mxu0 0.0
        %v4475 = vand.u32 %v299, 4294901760
        %v4476 = vsub.f32 %v299, %v4475
        %v4477 = vand.u32 %v4476, 4294901760
        %v4478 = vsub.f32 %v4476, %v4477
        %v4479 = vand.u32 %v4478, 4294901760
        %4480 = vmatpush1.msra.mxu0 %v4479
        %4481 = vmatprep.subr.mxu0 0.0
        %v4482 = vand.u32 %v300, 4294901760
        %v4483 = vsub.f32 %v300, %v4482
        %v4484 = vand.u32 %v4483, 4294901760
        %v4485 = vsub.f32 %v4483, %v4484
        %v4486 = vand.u32 %v4485, 4294901760
        %4487 = vmatpush1.msra.mxu0 %v4486
        %4488 = vmatprep.subr.mxu0 0.0
        %v4489 = vand.u32 %v301, 4294901760
        %v4490 = vsub.f32 %v301, %v4489
        %v4491 = vand.u32 %v4490, 4294901760
        %v4492 = vsub.f32 %v4490, %v4491
        %v4493 = vand.u32 %v4492, 4294901760
        %4494 = vmatpush1.msra.mxu0 %v4493
        %4495 = vmatprep.subr.mxu0 0.0
        %v4496 = vand.u32 %v302, 4294901760
        %v4497 = vsub.f32 %v302, %v4496
        %v4498 = vand.u32 %v4497, 4294901760
        %v4499 = vsub.f32 %v4497, %v4498
        %v4500 = vand.u32 %v4499, 4294901760
        %4501 = vmatpush1.msra.mxu0 %v4500
        %4502 = vmatprep.subr.mxu0 0.0
        %v4503 = vand.u32 %v303, 4294901760
        %v4504 = vsub.f32 %v303, %v4503
        %v4505 = vand.u32 %v4504, 4294901760
        %v4506 = vsub.f32 %v4504, %v4505
        %v4507 = vand.u32 %v4506, 4294901760
        %4508 = vmatpush1.msra.mxu0 %v4507
        %4509 = vmatprep.subr.mxu0 0.0
        %v4510 = vand.u32 %v304, 4294901760
        %v4511 = vsub.f32 %v304, %v4510
        %v4512 = vand.u32 %v4511, 4294901760
        %v4513 = vsub.f32 %v4511, %v4512
        %v4514 = vand.u32 %v4513, 4294901760
        %4515 = vmatpush1.msra.mxu0 %v4514
        %4516 = vmatprep.subr.mxu0 0.0
        %v4517 = vand.u32 %v305, 4294901760
        %v4518 = vsub.f32 %v305, %v4517
        %v4519 = vand.u32 %v4518, 4294901760
        %v4520 = vsub.f32 %v4518, %v4519
        %v4521 = vand.u32 %v4520, 4294901760
        %4522 = vmatpush1.msra.mxu0 %v4521
        %4523 = vmatprep.subr.mxu0 0.0
        %v4524 = vand.u32 %v306, 4294901760
        %v4525 = vsub.f32 %v306, %v4524
        %v4526 = vand.u32 %v4525, 4294901760
        %v4527 = vsub.f32 %v4525, %v4526
        %v4528 = vand.u32 %v4527, 4294901760
        %4529 = vmatpush1.msra.mxu0 %v4528
        %4530 = vmatprep.subr.mxu0 0.0
        %v4531 = vand.u32 %v307, 4294901760
        %v4532 = vsub.f32 %v307, %v4531
        %v4533 = vand.u32 %v4532, 4294901760
        %v4534 = vsub.f32 %v4532, %v4533
        %v4535 = vand.u32 %v4534, 4294901760
        %4536 = vmatpush1.msra.mxu0 %v4535
        %4537 = vmatprep.subr.mxu0 0.0
        %v4538 = vand.u32 %v308, 4294901760
        %v4539 = vsub.f32 %v308, %v4538
        %v4540 = vand.u32 %v4539, 4294901760
        %v4541 = vsub.f32 %v4539, %v4540
        %v4542 = vand.u32 %v4541, 4294901760
        %4543 = vmatpush1.msra.mxu0 %v4542
        %4544 = vmatprep.subr.mxu0 0.0
        %v4545 = vand.u32 %v309, 4294901760
        %v4546 = vsub.f32 %v309, %v4545
        %v4547 = vand.u32 %v4546, 4294901760
        %v4548 = vsub.f32 %v4546, %v4547
        %v4549 = vand.u32 %v4548, 4294901760
        %4550 = vmatpush1.msra.mxu0 %v4549
        %4551 = vmatprep.subr.mxu0 0.0
        %v4552 = vand.u32 %v310, 4294901760
        %v4553 = vsub.f32 %v310, %v4552
        %v4554 = vand.u32 %v4553, 4294901760
        %v4555 = vsub.f32 %v4553, %v4554
        %v4556 = vand.u32 %v4555, 4294901760
        %4557 = vmatpush1.msra.mxu0 %v4556
        %4558 = vmatprep.subr.mxu0 0.0
        %v4559 = vand.u32 %v311, 4294901760
        %v4560 = vsub.f32 %v311, %v4559
        %v4561 = vand.u32 %v4560, 4294901760
        %v4562 = vsub.f32 %v4560, %v4561
        %v4563 = vand.u32 %v4562, 4294901760
        %4564 = vmatpush1.msra.mxu0 %v4563
        %4565 = vmatprep.subr.mxu0 0.0
        %v4566 = vand.u32 %v312, 4294901760
        %v4567 = vsub.f32 %v312, %v4566
        %v4568 = vand.u32 %v4567, 4294901760
        %v4569 = vsub.f32 %v4567, %v4568
        %v4570 = vand.u32 %v4569, 4294901760
        %4571 = vmatpush1.msra.mxu0 %v4570
        %4572 = vmatprep.subr.mxu0 0.0
        %v4573 = vand.u32 %v313, 4294901760
        %v4574 = vsub.f32 %v313, %v4573
        %v4575 = vand.u32 %v4574, 4294901760
        %v4576 = vsub.f32 %v4574, %v4575
        %v4577 = vand.u32 %v4576, 4294901760
        %4578 = vmatpush1.msra.mxu0 %v4577
        %4579 = vmatprep.subr.mxu0 0.0
        %v4580 = vand.u32 %v314, 4294901760
        %v4581 = vsub.f32 %v314, %v4580
        %v4582 = vand.u32 %v4581, 4294901760
        %v4583 = vsub.f32 %v4581, %v4582
        %v4584 = vand.u32 %v4583, 4294901760
        %4585 = vmatpush1.msra.mxu0 %v4584
        %4586 = vmatprep.subr.mxu0 0.0
        %v4587 = vand.u32 %v315, 4294901760
        %v4588 = vsub.f32 %v315, %v4587
        %v4589 = vand.u32 %v4588, 4294901760
        %v4590 = vsub.f32 %v4588, %v4589
        %v4591 = vand.u32 %v4590, 4294901760
        %4592 = vmatpush1.msra.mxu0 %v4591
        %4593 = vmatprep.subr.mxu0 0.0
        %v4594 = vand.u32 %v316, 4294901760
        %v4595 = vsub.f32 %v316, %v4594
        %v4596 = vand.u32 %v4595, 4294901760
        %v4597 = vsub.f32 %v4595, %v4596
        %v4598 = vand.u32 %v4597, 4294901760
        %4599 = vmatpush1.msra.mxu0 %v4598
        %4600 = vmatprep.subr.mxu0 0.0
        %v4601 = vand.u32 %v317, 4294901760
        %v4602 = vsub.f32 %v317, %v4601
        %v4603 = vand.u32 %v4602, 4294901760
        %v4604 = vsub.f32 %v4602, %v4603
        %v4605 = vand.u32 %v4604, 4294901760
        %4606 = vmatpush1.msra.mxu0 %v4605
        %4607 = vmatprep.subr.mxu0 0.0
        %v4608 = vand.u32 %v318, 4294901760
        %v4609 = vsub.f32 %v318, %v4608
        %v4610 = vand.u32 %v4609, 4294901760
        %v4611 = vsub.f32 %v4609, %v4610
        %v4612 = vand.u32 %v4611, 4294901760
        %4613 = vmatpush1.msra.mxu0 %v4612
        %4614 = vmatprep.subr.mxu0 0.0
        %v4615 = vand.u32 %v319, 4294901760
        %v4616 = vsub.f32 %v319, %v4615
        %v4617 = vand.u32 %v4616, 4294901760
        %v4618 = vsub.f32 %v4616, %v4617
        %v4619 = vand.u32 %v4618, 4294901760
        %4620 = vmatpush1.msra.mxu0 %v4619
        %4621 = vmatprep.subr.mxu0 0.0
        %v4622 = vand.u32 %v320, 4294901760
        %v4623 = vsub.f32 %v320, %v4622
        %v4624 = vand.u32 %v4623, 4294901760
        %v4625 = vsub.f32 %v4623, %v4624
        %v4626 = vand.u32 %v4625, 4294901760
        %4627 = vmatpush1.msra.mxu0 %v4626
        %4628 = vmatprep.subr.mxu0 0.0
        %v4629 = vand.u32 %v321, 4294901760
        %v4630 = vsub.f32 %v321, %v4629
        %v4631 = vand.u32 %v4630, 4294901760
        %v4632 = vsub.f32 %v4630, %v4631
        %v4633 = vand.u32 %v4632, 4294901760
        %4634 = vmatpush1.msra.mxu0 %v4633
        %v4635 = vand.u32 %v538, 4294901760
        %4636 = vmatprep.mubr.f32.mxu0 %v4635
        %v4637 = vand.u32 %v526, 4294901760
        %4638 = vmatmul.mubr.f32.gmra.mrb[0].mxu0 %v4637
        %v4639 = vpop.f32.mrb[0].mxu0
        %v4640 = vadd.f32 %v4393, %v4639
        %v4641 = vpop.f32.mrb[0].mxu0
        %v4642 = vand.u32 %v539, 4294901760
        %4643 = vmatprep.mubr.f32.mxu0 %v4642
        %v4644 = vand.u32 %v527, 4294901760
        %4645 = vmatmul.mubr.f32.gmra.mrb[0].mxu0 %v4644
        %v4646 = vpop.f32.mrb[0].mxu0
        %v4647 = vadd.f32 %v4408, %v4646
        %v4648 = vpop.f32.mrb[0].mxu0
        %4649 = vdwg.mxu0
        %4650 = vmatprep.subr.mxu0 0.0
        %v4651 = vand.u32 %v290, 4294901760
        %v4652 = vsub.f32 %v290, %v4651
        %4653 = vmatpush1.msra.mxu0 %v4652
        %4654 = vmatprep.subr.mxu0 0.0
        %v4655 = vand.u32 %v291, 4294901760
        %v4656 = vsub.f32 %v291, %v4655
        %4657 = vmatpush1.msra.mxu0 %v4656
        %4658 = vmatprep.subr.mxu0 0.0
        %v4659 = vand.u32 %v292, 4294901760
        %v4660 = vsub.f32 %v292, %v4659
        %4661 = vmatpush1.msra.mxu0 %v4660
        %4662 = vmatprep.subr.mxu0 0.0
        %v4663 = vand.u32 %v293, 4294901760
        %v4664 = vsub.f32 %v293, %v4663
        %4665 = vmatpush1.msra.mxu0 %v4664
        %4666 = vmatprep.subr.mxu0 0.0
        %v4667 = vand.u32 %v294, 4294901760
        %v4668 = vsub.f32 %v294, %v4667
        %4669 = vmatpush1.msra.mxu0 %v4668
        %4670 = vmatprep.subr.mxu0 0.0
        %v4671 = vand.u32 %v295, 4294901760
        %v4672 = vsub.f32 %v295, %v4671
        %4673 = vmatpush1.msra.mxu0 %v4672
        %4674 = vmatprep.subr.mxu0 0.0
        %v4675 = vand.u32 %v296, 4294901760
        %v4676 = vsub.f32 %v296, %v4675
        %4677 = vmatpush1.msra.mxu0 %v4676
        %4678 = vmatprep.subr.mxu0 0.0
        %v4679 = vand.u32 %v297, 4294901760
        %v4680 = vsub.f32 %v297, %v4679
        %4681 = vmatpush1.msra.mxu0 %v4680
        %4682 = vmatprep.subr.mxu0 0.0
        %v4683 = vand.u32 %v298, 4294901760
        %v4684 = vsub.f32 %v298, %v4683
        %4685 = vmatpush1.msra.mxu0 %v4684
        %4686 = vmatprep.subr.mxu0 0.0
        %v4687 = vand.u32 %v299, 4294901760
        %v4688 = vsub.f32 %v299, %v4687
        %4689 = vmatpush1.msra.mxu0 %v4688
        %4690 = vmatprep.subr.mxu0 0.0
        %v4691 = vand.u32 %v300, 4294901760
        %v4692 = vsub.f32 %v300, %v4691
        %4693 = vmatpush1.msra.mxu0 %v4692
        %4694 = vmatprep.subr.mxu0 0.0
        %v4695 = vand.u32 %v301, 4294901760
        %v4696 = vsub.f32 %v301, %v4695
        %4697 = vmatpush1.msra.mxu0 %v4696
        %4698 = vmatprep.subr.mxu0 0.0
        %v4699 = vand.u32 %v302, 4294901760
        %v4700 = vsub.f32 %v302, %v4699
        %4701 = vmatpush1.msra.mxu0 %v4700
        %4702 = vmatprep.subr.mxu0 0.0
        %v4703 = vand.u32 %v303, 4294901760
        %v4704 = vsub.f32 %v303, %v4703
        %4705 = vmatpush1.msra.mxu0 %v4704
        %4706 = vmatprep.subr.mxu0 0.0
        %v4707 = vand.u32 %v304, 4294901760
        %v4708 = vsub.f32 %v304, %v4707
        %4709 = vmatpush1.msra.mxu0 %v4708
        %4710 = vmatprep.subr.mxu0 0.0
        %v4711 = vand.u32 %v305, 4294901760
        %v4712 = vsub.f32 %v305, %v4711
        %4713 = vmatpush1.msra.mxu0 %v4712
        %4714 = vmatprep.subr.mxu0 0.0
        %v4715 = vand.u32 %v306, 4294901760
        %v4716 = vsub.f32 %v306, %v4715
        %4717 = vmatpush1.msra.mxu0 %v4716
        %4718 = vmatprep.subr.mxu0 0.0
        %v4719 = vand.u32 %v307, 4294901760
        %v4720 = vsub.f32 %v307, %v4719
        %4721 = vmatpush1.msra.mxu0 %v4720
        %4722 = vmatprep.subr.mxu0 0.0
        %v4723 = vand.u32 %v308, 4294901760
        %v4724 = vsub.f32 %v308, %v4723
        %4725 = vmatpush1.msra.mxu0 %v4724
        %4726 = vmatprep.subr.mxu0 0.0
        %v4727 = vand.u32 %v309, 4294901760
        %v4728 = vsub.f32 %v309, %v4727
        %4729 = vmatpush1.msra.mxu0 %v4728
        %4730 = vmatprep.subr.mxu0 0.0
        %v4731 = vand.u32 %v310, 4294901760
        %v4732 = vsub.f32 %v310, %v4731
        %4733 = vmatpush1.msra.mxu0 %v4732
        %4734 = vmatprep.subr.mxu0 0.0
        %v4735 = vand.u32 %v311, 4294901760
        %v4736 = vsub.f32 %v311, %v4735
        %4737 = vmatpush1.msra.mxu0 %v4736
        %4738 = vmatprep.subr.mxu0 0.0
        %v4739 = vand.u32 %v312, 4294901760
        %v4740 = vsub.f32 %v312, %v4739
        %4741 = vmatpush1.msra.mxu0 %v4740
        %4742 = vmatprep.subr.mxu0 0.0
        %v4743 = vand.u32 %v313, 4294901760
        %v4744 = vsub.f32 %v313, %v4743
        %4745 = vmatpush1.msra.mxu0 %v4744
        %4746 = vmatprep.subr.mxu0 0.0
        %v4747 = vand.u32 %v314, 4294901760
        %v4748 = vsub.f32 %v314, %v4747
        %4749 = vmatpush1.msra.mxu0 %v4748
        %4750 = vmatprep.subr.mxu0 0.0
        %v4751 = vand.u32 %v315, 4294901760
        %v4752 = vsub.f32 %v315, %v4751
        %4753 = vmatpush1.msra.mxu0 %v4752
        %4754 = vmatprep.subr.mxu0 0.0
        %v4755 = vand.u32 %v316, 4294901760
        %v4756 = vsub.f32 %v316, %v4755
        %4757 = vmatpush1.msra.mxu0 %v4756
        %4758 = vmatprep.subr.mxu0 0.0
        %v4759 = vand.u32 %v317, 4294901760
        %v4760 = vsub.f32 %v317, %v4759
        %4761 = vmatpush1.msra.mxu0 %v4760
        %4762 = vmatprep.subr.mxu0 0.0
        %v4763 = vand.u32 %v318, 4294901760
        %v4764 = vsub.f32 %v318, %v4763
        %4765 = vmatpush1.msra.mxu0 %v4764
        %4766 = vmatprep.subr.mxu0 0.0
        %v4767 = vand.u32 %v319, 4294901760
        %v4768 = vsub.f32 %v319, %v4767
        %4769 = vmatpush1.msra.mxu0 %v4768
        %4770 = vmatprep.subr.mxu0 0.0
        %v4771 = vand.u32 %v320, 4294901760
        %v4772 = vsub.f32 %v320, %v4771
        %4773 = vmatpush1.msra.mxu0 %v4772
        %4774 = vmatprep.subr.mxu0 0.0
        %v4775 = vand.u32 %v321, 4294901760
        %v4776 = vsub.f32 %v321, %v4775
        %4777 = vmatpush1.msra.mxu0 %v4776
        %v4778 = vand.u32 %v538, 4294901760
        %v4779 = vsub.f32 %v538, %v4778
        %4780 = vmatprep.mubr.f32.mxu0 %v4779
        %v4781 = vand.u32 %v526, 4294901760
        %v4782 = vsub.f32 %v526, %v4781
        %4783 = vmatmul.mubr.f32.gmra.mrb[0].mxu0 %v4782
        %v4784 = vpop.f32.mrb[0].mxu0
        %v4785 = vadd.f32 %v4640, %v4784
        %v4786 = vpop.f32.mrb[0].mxu0
        %v4787 = vand.u32 %v539, 4294901760
        %v4788 = vsub.f32 %v539, %v4787
        %4789 = vmatprep.mubr.f32.mxu0 %v4788
        %v4790 = vand.u32 %v527, 4294901760
        %v4791 = vsub.f32 %v527, %v4790
        %4792 = vmatmul.mubr.f32.gmra.mrb[0].mxu0 %v4791
        %v4793 = vpop.f32.mrb[0].mxu0
        %v4794 = vadd.f32 %v4647, %v4793
        %v4795 = vpop.f32.mrb[0].mxu0
        %4796 = vdwg.mxu0
        %4797 = vmatprep.subr.mxu0 0.0
        %v4798 = vand.u32 %v290, 4294901760
        %4799 = vmatpush1.msra.mxu0 %v4798
        %4800 = vmatprep.subr.mxu0 0.0
        %v4801 = vand.u32 %v291, 4294901760
        %4802 = vmatpush1.msra.mxu0 %v4801
        %4803 = vmatprep.subr.mxu0 0.0
        %v4804 = vand.u32 %v292, 4294901760
        %4805 = vmatpush1.msra.mxu0 %v4804
        %4806 = vmatprep.subr.mxu0 0.0
        %v4807 = vand.u32 %v293, 4294901760
        %4808 = vmatpush1.msra.mxu0 %v4807
        %4809 = vmatprep.subr.mxu0 0.0
        %v4810 = vand.u32 %v294, 4294901760
        %4811 = vmatpush1.msra.mxu0 %v4810
        %4812 = vmatprep.subr.mxu0 0.0
        %v4813 = vand.u32 %v295, 4294901760
        %4814 = vmatpush1.msra.mxu0 %v4813
        %4815 = vmatprep.subr.mxu0 0.0
        %v4816 = vand.u32 %v296, 4294901760
        %4817 = vmatpush1.msra.mxu0 %v4816
        %4818 = vmatprep.subr.mxu0 0.0
        %v4819 = vand.u32 %v297, 4294901760
        %4820 = vmatpush1.msra.mxu0 %v4819
        %4821 = vmatprep.subr.mxu0 0.0
        %v4822 = vand.u32 %v298, 4294901760
        %4823 = vmatpush1.msra.mxu0 %v4822
        %4824 = vmatprep.subr.mxu0 0.0
        %v4825 = vand.u32 %v299, 4294901760
        %4826 = vmatpush1.msra.mxu0 %v4825
        %4827 = vmatprep.subr.mxu0 0.0
        %v4828 = vand.u32 %v300, 4294901760
        %4829 = vmatpush1.msra.mxu0 %v4828
        %4830 = vmatprep.subr.mxu0 0.0
        %v4831 = vand.u32 %v301, 4294901760
        %4832 = vmatpush1.msra.mxu0 %v4831
        %4833 = vmatprep.subr.mxu0 0.0
        %v4834 = vand.u32 %v302, 4294901760
        %4835 = vmatpush1.msra.mxu0 %v4834
        %4836 = vmatprep.subr.mxu0 0.0
        %v4837 = vand.u32 %v303, 4294901760
        %4838 = vmatpush1.msra.mxu0 %v4837
        %4839 = vmatprep.subr.mxu0 0.0
        %v4840 = vand.u32 %v304, 4294901760
        %4841 = vmatpush1.msra.mxu0 %v4840
        %4842 = vmatprep.subr.mxu0 0.0
        %v4843 = vand.u32 %v305, 4294901760
        %4844 = vmatpush1.msra.mxu0 %v4843
        %4845 = vmatprep.subr.mxu0 0.0
        %v4846 = vand.u32 %v306, 4294901760
        %4847 = vmatpush1.msra.mxu0 %v4846
        %4848 = vmatprep.subr.mxu0 0.0
        %v4849 = vand.u32 %v307, 4294901760
        %4850 = vmatpush1.msra.mxu0 %v4849
        %4851 = vmatprep.subr.mxu0 0.0
        %v4852 = vand.u32 %v308, 4294901760
        %4853 = vmatpush1.msra.mxu0 %v4852
        %4854 = vmatprep.subr.mxu0 0.0
        %v4855 = vand.u32 %v309, 4294901760
        %4856 = vmatpush1.msra.mxu0 %v4855
        %4857 = vmatprep.subr.mxu0 0.0
        %v4858 = vand.u32 %v310, 4294901760
        %4859 = vmatpush1.msra.mxu0 %v4858
        %4860 = vmatprep.subr.mxu0 0.0
        %v4861 = vand.u32 %v311, 4294901760
        %4862 = vmatpush1.msra.mxu0 %v4861
        %4863 = vmatprep.subr.mxu0 0.0
        %v4864 = vand.u32 %v312, 4294901760
        %4865 = vmatpush1.msra.mxu0 %v4864
        %4866 = vmatprep.subr.mxu0 0.0
        %v4867 = vand.u32 %v313, 4294901760
        %4868 = vmatpush1.msra.mxu0 %v4867
        %4869 = vmatprep.subr.mxu0 0.0
        %v4870 = vand.u32 %v314, 4294901760
        %4871 = vmatpush1.msra.mxu0 %v4870
        %4872 = vmatprep.subr.mxu0 0.0
        %v4873 = vand.u32 %v315, 4294901760
        %4874 = vmatpush1.msra.mxu0 %v4873
        %4875 = vmatprep.subr.mxu0 0.0
        %v4876 = vand.u32 %v316, 4294901760
        %4877 = vmatpush1.msra.mxu0 %v4876
        %4878 = vmatprep.subr.mxu0 0.0
        %v4879 = vand.u32 %v317, 4294901760
        %4880 = vmatpush1.msra.mxu0 %v4879
        %4881 = vmatprep.subr.mxu0 0.0
        %v4882 = vand.u32 %v318, 4294901760
        %4883 = vmatpush1.msra.mxu0 %v4882
        %4884 = vmatprep.subr.mxu0 0.0
        %v4885 = vand.u32 %v319, 4294901760
        %4886 = vmatpush1.msra.mxu0 %v4885
        %4887 = vmatprep.subr.mxu0 0.0
        %v4888 = vand.u32 %v320, 4294901760
        %4889 = vmatpush1.msra.mxu0 %v4888
        %4890 = vmatprep.subr.mxu0 0.0
        %v4891 = vand.u32 %v321, 4294901760
        %4892 = vmatpush1.msra.mxu0 %v4891
        %v4893 = vand.u32 %v538, 4294901760
        %v4894 = vsub.f32 %v538, %v4893
        %v4895 = vand.u32 %v4894, 4294901760
        %4896 = vmatprep.mubr.f32.mxu0 %v4895
        %v4897 = vand.u32 %v526, 4294901760
        %v4898 = vsub.f32 %v526, %v4897
        %v4899 = vand.u32 %v4898, 4294901760
        %4900 = vmatmul.mubr.f32.gmra.mrb[0].mxu0 %v4899
        %v4901 = vpop.f32.mrb[0].mxu0
        %v4902 = vadd.f32 %v4785, %v4901
        %v4903 = vpop.f32.mrb[0].mxu0
        %v4904 = vand.u32 %v539, 4294901760
        %v4905 = vsub.f32 %v539, %v4904
        %v4906 = vand.u32 %v4905, 4294901760
        %4907 = vmatprep.mubr.f32.mxu0 %v4906
        %v4908 = vand.u32 %v527, 4294901760
        %v4909 = vsub.f32 %v527, %v4908
        %v4910 = vand.u32 %v4909, 4294901760
        %4911 = vmatmul.mubr.f32.gmra.mrb[0].mxu0 %v4910
        %v4912 = vpop.f32.mrb[0].mxu0
        %v4913 = vadd.f32 %v4794, %v4912
        %v4914 = vpop.f32.mrb[0].mxu0
        %4915 = vdwg.mxu0
        %4916 = vmatprep.subr.mxu0 0.0
        %v4917 = vand.u32 %v290, 4294901760
        %v4918 = vsub.f32 %v290, %v4917
        %v4919 = vand.u32 %v4918, 4294901760
        %4920 = vmatpush1.msra.mxu0 %v4919
        %4921 = vmatprep.subr.mxu0 0.0
        %v4922 = vand.u32 %v291, 4294901760
        %v4923 = vsub.f32 %v291, %v4922
        %v4924 = vand.u32 %v4923, 4294901760
        %4925 = vmatpush1.msra.mxu0 %v4924
        %4926 = vmatprep.subr.mxu0 0.0
        %v4927 = vand.u32 %v292, 4294901760
        %v4928 = vsub.f32 %v292, %v4927
        %v4929 = vand.u32 %v4928, 4294901760
        %4930 = vmatpush1.msra.mxu0 %v4929
        %4931 = vmatprep.subr.mxu0 0.0
        %v4932 = vand.u32 %v293, 4294901760
        %v4933 = vsub.f32 %v293, %v4932
        %v4934 = vand.u32 %v4933, 4294901760
        %4935 = vmatpush1.msra.mxu0 %v4934
        %4936 = vmatprep.subr.mxu0 0.0
        %v4937 = vand.u32 %v294, 4294901760
        %v4938 = vsub.f32 %v294, %v4937
        %v4939 = vand.u32 %v4938, 4294901760
        %4940 = vmatpush1.msra.mxu0 %v4939
        %4941 = vmatprep.subr.mxu0 0.0
        %v4942 = vand.u32 %v295, 4294901760
        %v4943 = vsub.f32 %v295, %v4942
        %v4944 = vand.u32 %v4943, 4294901760
        %4945 = vmatpush1.msra.mxu0 %v4944
        %4946 = vmatprep.subr.mxu0 0.0
        %v4947 = vand.u32 %v296, 4294901760
        %v4948 = vsub.f32 %v296, %v4947
        %v4949 = vand.u32 %v4948, 4294901760
        %4950 = vmatpush1.msra.mxu0 %v4949
        %4951 = vmatprep.subr.mxu0 0.0
        %v4952 = vand.u32 %v297, 4294901760
        %v4953 = vsub.f32 %v297, %v4952
        %v4954 = vand.u32 %v4953, 4294901760
        %4955 = vmatpush1.msra.mxu0 %v4954
        %4956 = vmatprep.subr.mxu0 0.0
        %v4957 = vand.u32 %v298, 4294901760
        %v4958 = vsub.f32 %v298, %v4957
        %v4959 = vand.u32 %v4958, 4294901760
        %4960 = vmatpush1.msra.mxu0 %v4959
        %4961 = vmatprep.subr.mxu0 0.0
        %v4962 = vand.u32 %v299, 4294901760
        %v4963 = vsub.f32 %v299, %v4962
        %v4964 = vand.u32 %v4963, 4294901760
        %4965 = vmatpush1.msra.mxu0 %v4964
        %4966 = vmatprep.subr.mxu0 0.0
        %v4967 = vand.u32 %v300, 4294901760
        %v4968 = vsub.f32 %v300, %v4967
        %v4969 = vand.u32 %v4968, 4294901760
        %4970 = vmatpush1.msra.mxu0 %v4969
        %4971 = vmatprep.subr.mxu0 0.0
        %v4972 = vand.u32 %v301, 4294901760
        %v4973 = vsub.f32 %v301, %v4972
        %v4974 = vand.u32 %v4973, 4294901760
        %4975 = vmatpush1.msra.mxu0 %v4974
        %4976 = vmatprep.subr.mxu0 0.0
        %v4977 = vand.u32 %v302, 4294901760
        %v4978 = vsub.f32 %v302, %v4977
        %v4979 = vand.u32 %v4978, 4294901760
        %4980 = vmatpush1.msra.mxu0 %v4979
        %4981 = vmatprep.subr.mxu0 0.0
        %v4982 = vand.u32 %v303, 4294901760
        %v4983 = vsub.f32 %v303, %v4982
        %v4984 = vand.u32 %v4983, 4294901760
        %4985 = vmatpush1.msra.mxu0 %v4984
        %4986 = vmatprep.subr.mxu0 0.0
        %v4987 = vand.u32 %v304, 4294901760
        %v4988 = vsub.f32 %v304, %v4987
        %v4989 = vand.u32 %v4988, 4294901760
        %4990 = vmatpush1.msra.mxu0 %v4989
        %4991 = vmatprep.subr.mxu0 0.0
        %v4992 = vand.u32 %v305, 4294901760
        %v4993 = vsub.f32 %v305, %v4992
        %v4994 = vand.u32 %v4993, 4294901760
        %4995 = vmatpush1.msra.mxu0 %v4994
        %4996 = vmatprep.subr.mxu0 0.0
        %v4997 = vand.u32 %v306, 4294901760
        %v4998 = vsub.f32 %v306, %v4997
        %v4999 = vand.u32 %v4998, 4294901760
        %5000 = vmatpush1.msra.mxu0 %v4999
        %5001 = vmatprep.subr.mxu0 0.0
        %v5002 = vand.u32 %v307, 4294901760
        %v5003 = vsub.f32 %v307, %v5002
        %v5004 = vand.u32 %v5003, 4294901760
        %5005 = vmatpush1.msra.mxu0 %v5004
        %5006 = vmatprep.subr.mxu0 0.0
        %v5007 = vand.u32 %v308, 4294901760
        %v5008 = vsub.f32 %v308, %v5007
        %v5009 = vand.u32 %v5008, 4294901760
        %5010 = vmatpush1.msra.mxu0 %v5009
        %5011 = vmatprep.subr.mxu0 0.0
        %v5012 = vand.u32 %v309, 4294901760
        %v5013 = vsub.f32 %v309, %v5012
        %v5014 = vand.u32 %v5013, 4294901760
        %5015 = vmatpush1.msra.mxu0 %v5014
        %5016 = vmatprep.subr.mxu0 0.0
        %v5017 = vand.u32 %v310, 4294901760
        %v5018 = vsub.f32 %v310, %v5017
        %v5019 = vand.u32 %v5018, 4294901760
        %5020 = vmatpush1.msra.mxu0 %v5019
        %5021 = vmatprep.subr.mxu0 0.0
        %v5022 = vand.u32 %v311, 4294901760
        %v5023 = vsub.f32 %v311, %v5022
        %v5024 = vand.u32 %v5023, 4294901760
        %5025 = vmatpush1.msra.mxu0 %v5024
        %5026 = vmatprep.subr.mxu0 0.0
        %v5027 = vand.u32 %v312, 4294901760
        %v5028 = vsub.f32 %v312, %v5027
        %v5029 = vand.u32 %v5028, 4294901760
        %5030 = vmatpush1.msra.mxu0 %v5029
        %5031 = vmatprep.subr.mxu0 0.0
        %v5032 = vand.u32 %v313, 4294901760
        %v5033 = vsub.f32 %v313, %v5032
        %v5034 = vand.u32 %v5033, 4294901760
        %5035 = vmatpush1.msra.mxu0 %v5034
        %5036 = vmatprep.subr.mxu0 0.0
        %v5037 = vand.u32 %v314, 4294901760
        %v5038 = vsub.f32 %v314, %v5037
        %v5039 = vand.u32 %v5038, 4294901760
        %5040 = vmatpush1.msra.mxu0 %v5039
        %5041 = vmatprep.subr.mxu0 0.0
        %v5042 = vand.u32 %v315, 4294901760
        %v5043 = vsub.f32 %v315, %v5042
        %v5044 = vand.u32 %v5043, 4294901760
        %5045 = vmatpush1.msra.mxu0 %v5044
        %5046 = vmatprep.subr.mxu0 0.0
        %v5047 = vand.u32 %v316, 4294901760
        %v5048 = vsub.f32 %v316, %v5047
        %v5049 = vand.u32 %v5048, 4294901760
        %5050 = vmatpush1.msra.mxu0 %v5049
        %5051 = vmatprep.subr.mxu0 0.0
        %v5052 = vand.u32 %v317, 4294901760
        %v5053 = vsub.f32 %v317, %v5052
        %v5054 = vand.u32 %v5053, 4294901760
        %5055 = vmatpush1.msra.mxu0 %v5054
        %5056 = vmatprep.subr.mxu0 0.0
        %v5057 = vand.u32 %v318, 4294901760
        %v5058 = vsub.f32 %v318, %v5057
        %v5059 = vand.u32 %v5058, 4294901760
        %5060 = vmatpush1.msra.mxu0 %v5059
        %5061 = vmatprep.subr.mxu0 0.0
        %v5062 = vand.u32 %v319, 4294901760
        %v5063 = vsub.f32 %v319, %v5062
        %v5064 = vand.u32 %v5063, 4294901760
        %5065 = vmatpush1.msra.mxu0 %v5064
        %5066 = vmatprep.subr.mxu0 0.0
        %v5067 = vand.u32 %v320, 4294901760
        %v5068 = vsub.f32 %v320, %v5067
        %v5069 = vand.u32 %v5068, 4294901760
        %5070 = vmatpush1.msra.mxu0 %v5069
        %5071 = vmatprep.subr.mxu0 0.0
        %v5072 = vand.u32 %v321, 4294901760
        %v5073 = vsub.f32 %v321, %v5072
        %v5074 = vand.u32 %v5073, 4294901760
        %5075 = vmatpush1.msra.mxu0 %v5074
        %v5076 = vand.u32 %v538, 4294901760
        %5077 = vmatprep.mubr.f32.mxu0 %v5076
        %v5078 = vand.u32 %v526, 4294901760
        %5079 = vmatmul.mubr.f32.gmra.mrb[0].mxu0 %v5078
        %v5080 = vpop.f32.mrb[0].mxu0
        %v5081 = vadd.f32 %v4902, %v5080
        %v5082 = vpop.f32.mrb[0].mxu0
        %v5083 = vand.u32 %v539, 4294901760
        %5084 = vmatprep.mubr.f32.mxu0 %v5083
        %v5085 = vand.u32 %v527, 4294901760
        %5086 = vmatmul.mubr.f32.gmra.mrb[0].mxu0 %v5085
        %v5087 = vpop.f32.mrb[0].mxu0
        %v5088 = vadd.f32 %v4913, %v5087
        %v5089 = vpop.f32.mrb[0].mxu0
        %5090 = vdwg.mxu0
        %5091 = vmatprep.subr.mxu0 0.0
        %v5092 = vand.u32 %v290, 4294901760
        %5093 = vmatpush1.msra.mxu0 %v5092
        %5094 = vmatprep.subr.mxu0 0.0
        %v5095 = vand.u32 %v291, 4294901760
        %5096 = vmatpush1.msra.mxu0 %v5095
        %5097 = vmatprep.subr.mxu0 0.0
        %v5098 = vand.u32 %v292, 4294901760
        %5099 = vmatpush1.msra.mxu0 %v5098
        %5100 = vmatprep.subr.mxu0 0.0
        %v5101 = vand.u32 %v293, 4294901760
        %5102 = vmatpush1.msra.mxu0 %v5101
        %5103 = vmatprep.subr.mxu0 0.0
        %v5104 = vand.u32 %v294, 4294901760
        %5105 = vmatpush1.msra.mxu0 %v5104
        %5106 = vmatprep.subr.mxu0 0.0
        %v5107 = vand.u32 %v295, 4294901760
        %5108 = vmatpush1.msra.mxu0 %v5107
        %5109 = vmatprep.subr.mxu0 0.0
        %v5110 = vand.u32 %v296, 4294901760
        %5111 = vmatpush1.msra.mxu0 %v5110
        %5112 = vmatprep.subr.mxu0 0.0
        %v5113 = vand.u32 %v297, 4294901760
        %5114 = vmatpush1.msra.mxu0 %v5113
        %5115 = vmatprep.subr.mxu0 0.0
        %v5116 = vand.u32 %v298, 4294901760
        %5117 = vmatpush1.msra.mxu0 %v5116
        %5118 = vmatprep.subr.mxu0 0.0
        %v5119 = vand.u32 %v299, 4294901760
        %5120 = vmatpush1.msra.mxu0 %v5119
        %5121 = vmatprep.subr.mxu0 0.0
        %v5122 = vand.u32 %v300, 4294901760
        %5123 = vmatpush1.msra.mxu0 %v5122
        %5124 = vmatprep.subr.mxu0 0.0
        %v5125 = vand.u32 %v301, 4294901760
        %5126 = vmatpush1.msra.mxu0 %v5125
        %5127 = vmatprep.subr.mxu0 0.0
        %v5128 = vand.u32 %v302, 4294901760
        %5129 = vmatpush1.msra.mxu0 %v5128
        %5130 = vmatprep.subr.mxu0 0.0
        %v5131 = vand.u32 %v303, 4294901760
        %5132 = vmatpush1.msra.mxu0 %v5131
        %5133 = vmatprep.subr.mxu0 0.0
        %v5134 = vand.u32 %v304, 4294901760
        %5135 = vmatpush1.msra.mxu0 %v5134
        %5136 = vmatprep.subr.mxu0 0.0
        %v5137 = vand.u32 %v305, 4294901760
        %5138 = vmatpush1.msra.mxu0 %v5137
        %5139 = vmatprep.subr.mxu0 0.0
        %v5140 = vand.u32 %v306, 4294901760
        %5141 = vmatpush1.msra.mxu0 %v5140
        %5142 = vmatprep.subr.mxu0 0.0
        %v5143 = vand.u32 %v307, 4294901760
        %5144 = vmatpush1.msra.mxu0 %v5143
        %5145 = vmatprep.subr.mxu0 0.0
        %v5146 = vand.u32 %v308, 4294901760
        %5147 = vmatpush1.msra.mxu0 %v5146
        %5148 = vmatprep.subr.mxu0 0.0
        %v5149 = vand.u32 %v309, 4294901760
        %5150 = vmatpush1.msra.mxu0 %v5149
        %5151 = vmatprep.subr.mxu0 0.0
        %v5152 = vand.u32 %v310, 4294901760
        %5153 = vmatpush1.msra.mxu0 %v5152
        %5154 = vmatprep.subr.mxu0 0.0
        %v5155 = vand.u32 %v311, 4294901760
        %5156 = vmatpush1.msra.mxu0 %v5155
        %5157 = vmatprep.subr.mxu0 0.0
        %v5158 = vand.u32 %v312, 4294901760
        %5159 = vmatpush1.msra.mxu0 %v5158
        %5160 = vmatprep.subr.mxu0 0.0
        %v5161 = vand.u32 %v313, 4294901760
        %5162 = vmatpush1.msra.mxu0 %v5161
        %5163 = vmatprep.subr.mxu0 0.0
        %v5164 = vand.u32 %v314, 4294901760
        %5165 = vmatpush1.msra.mxu0 %v5164
        %5166 = vmatprep.subr.mxu0 0.0
        %v5167 = vand.u32 %v315, 4294901760
        %5168 = vmatpush1.msra.mxu0 %v5167
        %5169 = vmatprep.subr.mxu0 0.0
        %v5170 = vand.u32 %v316, 4294901760
        %5171 = vmatpush1.msra.mxu0 %v5170
        %5172 = vmatprep.subr.mxu0 0.0
        %v5173 = vand.u32 %v317, 4294901760
        %5174 = vmatpush1.msra.mxu0 %v5173
        %5175 = vmatprep.subr.mxu0 0.0
        %v5176 = vand.u32 %v318, 4294901760
        %5177 = vmatpush1.msra.mxu0 %v5176
        %5178 = vmatprep.subr.mxu0 0.0
        %v5179 = vand.u32 %v319, 4294901760
        %5180 = vmatpush1.msra.mxu0 %v5179
        %5181 = vmatprep.subr.mxu0 0.0
        %v5182 = vand.u32 %v320, 4294901760
        %5183 = vmatpush1.msra.mxu0 %v5182
        %5184 = vmatprep.subr.mxu0 0.0
        %v5185 = vand.u32 %v321, 4294901760
        %5186 = vmatpush1.msra.mxu0 %v5185
        %v5187 = vand.u32 %v538, 4294901760
        %5188 = vmatprep.mubr.f32.mxu0 %v5187
        %v5189 = vand.u32 %v526, 4294901760
        %5190 = vmatmul.mubr.f32.gmra.mrb[0].mxu0 %v5189
        %v5191 = vpop.f32.mrb[0].mxu0
        %v5192 = vadd.f32 %v5081, %v5191
        %v5193 = vpop.f32.mrb[0].mxu0
        %v5194 = vand.u32 %v539, 4294901760
        %5195 = vmatprep.mubr.f32.mxu0 %v5194
        %v5196 = vand.u32 %v527, 4294901760
        %5197 = vmatmul.mubr.f32.gmra.mrb[0].mxu0 %v5196
        %v5198 = vpop.f32.mrb[0].mxu0
        %v5199 = vadd.f32 %v5088, %v5198
        %v5200 = vpop.f32.mrb[0].mxu0
        %5201 = vdwg.mxu0
        %5202 = vmatprep.subr.mxu0 0.0
        %v5203 = vand.u32 %v322, 4294901760
        %5204 = vmatpush1.msra.mxu0 %v5203
        %5205 = vmatprep.subr.mxu0 0.0
        %v5206 = vand.u32 %v323, 4294901760
        %5207 = vmatpush1.msra.mxu0 %v5206
        %5208 = vmatprep.subr.mxu0 0.0
        %v5209 = vand.u32 %v324, 4294901760
        %5210 = vmatpush1.msra.mxu0 %v5209
        %5211 = vmatprep.subr.mxu0 0.0
        %v5212 = vand.u32 %v325, 4294901760
        %5213 = vmatpush1.msra.mxu0 %v5212
        %5214 = vmatprep.subr.mxu0 0.0
        %v5215 = vand.u32 %v326, 4294901760
        %5216 = vmatpush1.msra.mxu0 %v5215
        %5217 = vmatprep.subr.mxu0 0.0
        %v5218 = vand.u32 %v327, 4294901760
        %5219 = vmatpush1.msra.mxu0 %v5218
        %5220 = vmatprep.subr.mxu0 0.0
        %v5221 = vand.u32 %v328, 4294901760
        %5222 = vmatpush1.msra.mxu0 %v5221
        %5223 = vmatprep.subr.mxu0 0.0
        %v5224 = vand.u32 %v329, 4294901760
        %5225 = vmatpush1.msra.mxu0 %v5224
        %5226 = vmatprep.subr.mxu0 0.0
        %v5227 = vand.u32 %v330, 4294901760
        %5228 = vmatpush1.msra.mxu0 %v5227
        %5229 = vmatprep.subr.mxu0 0.0
        %v5230 = vand.u32 %v331, 4294901760
        %5231 = vmatpush1.msra.mxu0 %v5230
        %5232 = vmatprep.subr.mxu0 0.0
        %v5233 = vand.u32 %v332, 4294901760
        %5234 = vmatpush1.msra.mxu0 %v5233
        %5235 = vmatprep.subr.mxu0 0.0
        %v5236 = vand.u32 %v333, 4294901760
        %5237 = vmatpush1.msra.mxu0 %v5236
        %5238 = vmatprep.subr.mxu0 0.0
        %v5239 = vand.u32 %v334, 4294901760
        %5240 = vmatpush1.msra.mxu0 %v5239
        %5241 = vmatprep.subr.mxu0 0.0
        %v5242 = vand.u32 %v335, 4294901760
        %5243 = vmatpush1.msra.mxu0 %v5242
        %5244 = vmatprep.subr.mxu0 0.0
        %v5245 = vand.u32 %v336, 4294901760
        %5246 = vmatpush1.msra.mxu0 %v5245
        %5247 = vmatprep.subr.mxu0 0.0
        %v5248 = vand.u32 %v337, 4294901760
        %5249 = vmatpush1.msra.mxu0 %v5248
        %5250 = vmatprep.subr.mxu0 0.0
        %v5251 = vand.u32 %v338, 4294901760
        %5252 = vmatpush1.msra.mxu0 %v5251
        %5253 = vmatprep.subr.mxu0 0.0
        %v5254 = vand.u32 %v339, 4294901760
        %5255 = vmatpush1.msra.mxu0 %v5254
        %5256 = vmatprep.subr.mxu0 0.0
        %v5257 = vand.u32 %v340, 4294901760
        %5258 = vmatpush1.msra.mxu0 %v5257
        %5259 = vmatprep.subr.mxu0 0.0
        %v5260 = vand.u32 %v341, 4294901760
        %5261 = vmatpush1.msra.mxu0 %v5260
        %5262 = vmatprep.subr.mxu0 0.0
        %v5263 = vand.u32 %v342, 4294901760
        %5264 = vmatpush1.msra.mxu0 %v5263
        %5265 = vmatprep.subr.mxu0 0.0
        %v5266 = vand.u32 %v343, 4294901760
        %5267 = vmatpush1.msra.mxu0 %v5266
        %5268 = vmatprep.subr.mxu0 0.0
        %v5269 = vand.u32 %v344, 4294901760
        %5270 = vmatpush1.msra.mxu0 %v5269
        %5271 = vmatprep.subr.mxu0 0.0
        %v5272 = vand.u32 %v345, 4294901760
        %5273 = vmatpush1.msra.mxu0 %v5272
        %5274 = vmatprep.subr.mxu0 0.0
        %v5275 = vand.u32 %v346, 4294901760
        %5276 = vmatpush1.msra.mxu0 %v5275
        %5277 = vmatprep.subr.mxu0 0.0
        %v5278 = vand.u32 %v347, 4294901760
        %5279 = vmatpush1.msra.mxu0 %v5278
        %5280 = vmatprep.subr.mxu0 0.0
        %v5281 = vand.u32 %v348, 4294901760
        %5282 = vmatpush1.msra.mxu0 %v5281
        %5283 = vmatprep.subr.mxu0 0.0
        %v5284 = vand.u32 %v349, 4294901760
        %5285 = vmatpush1.msra.mxu0 %v5284
        %5286 = vmatprep.subr.mxu0 0.0
        %v5287 = vand.u32 %v350, 4294901760
        %5288 = vmatpush1.msra.mxu0 %v5287
        %5289 = vmatprep.subr.mxu0 0.0
        %v5290 = vand.u32 %v351, 4294901760
        %5291 = vmatpush1.msra.mxu0 %v5290
        %5292 = vmatprep.subr.mxu0 0.0
        %v5293 = vand.u32 %v352, 4294901760
        %5294 = vmatpush1.msra.mxu0 %v5293
        %5295 = vmatprep.subr.mxu0 0.0
        %v5296 = vand.u32 %v353, 4294901760
        %5297 = vmatpush1.msra.mxu0 %v5296
        %v5298 = vand.u32 %v562, 4294901760
        %v5299 = vsub.f32 %v562, %v5298
        %v5300 = vand.u32 %v5299, 4294901760
        %v5301 = vsub.f32 %v5299, %v5300
        %v5302 = vand.u32 %v5301, 4294901760
        %5303 = vmatprep.mubr.f32.mxu0 %v5302
        %v5304 = vand.u32 %v550, 4294901760
        %v5305 = vsub.f32 %v550, %v5304
        %v5306 = vand.u32 %v5305, 4294901760
        %v5307 = vsub.f32 %v5305, %v5306
        %v5308 = vand.u32 %v5307, 4294901760
        %5309 = vmatmul.mubr.f32.gmra.mrb[0].mxu0 %v5308
        %v5310 = vpop.f32.mrb[0].mxu0
        %v5311 = vadd.f32 %v5192, %v5310
        %v5312 = vpop.f32.mrb[0].mxu0
        %v5313 = vand.u32 %v563, 4294901760
        %v5314 = vsub.f32 %v563, %v5313
        %v5315 = vand.u32 %v5314, 4294901760
        %v5316 = vsub.f32 %v5314, %v5315
        %v5317 = vand.u32 %v5316, 4294901760
        %5318 = vmatprep.mubr.f32.mxu0 %v5317
        %v5319 = vand.u32 %v551, 4294901760
        %v5320 = vsub.f32 %v551, %v5319
        %v5321 = vand.u32 %v5320, 4294901760
        %v5322 = vsub.f32 %v5320, %v5321
        %v5323 = vand.u32 %v5322, 4294901760
        %5324 = vmatmul.mubr.f32.gmra.mrb[0].mxu0 %v5323
        %v5325 = vpop.f32.mrb[0].mxu0
        %v5326 = vadd.f32 %v5199, %v5325
        %v5327 = vpop.f32.mrb[0].mxu0
        %5328 = vdwg.mxu0
        %5329 = vmatprep.subr.mxu0 0.0
        %v5330 = vand.u32 %v322, 4294901760
        %v5331 = vsub.f32 %v322, %v5330
        %v5332 = vand.u32 %v5331, 4294901760
        %v5333 = vsub.f32 %v5331, %v5332
        %v5334 = vand.u32 %v5333, 4294901760
        %5335 = vmatpush1.msra.mxu0 %v5334
        %5336 = vmatprep.subr.mxu0 0.0
        %v5337 = vand.u32 %v323, 4294901760
        %v5338 = vsub.f32 %v323, %v5337
        %v5339 = vand.u32 %v5338, 4294901760
        %v5340 = vsub.f32 %v5338, %v5339
        %v5341 = vand.u32 %v5340, 4294901760
        %5342 = vmatpush1.msra.mxu0 %v5341
        %5343 = vmatprep.subr.mxu0 0.0
        %v5344 = vand.u32 %v324, 4294901760
        %v5345 = vsub.f32 %v324, %v5344
        %v5346 = vand.u32 %v5345, 4294901760
        %v5347 = vsub.f32 %v5345, %v5346
        %v5348 = vand.u32 %v5347, 4294901760
        %5349 = vmatpush1.msra.mxu0 %v5348
        %5350 = vmatprep.subr.mxu0 0.0
        %v5351 = vand.u32 %v325, 4294901760
        %v5352 = vsub.f32 %v325, %v5351
        %v5353 = vand.u32 %v5352, 4294901760
        %v5354 = vsub.f32 %v5352, %v5353
        %v5355 = vand.u32 %v5354, 4294901760
        %5356 = vmatpush1.msra.mxu0 %v5355
        %5357 = vmatprep.subr.mxu0 0.0
        %v5358 = vand.u32 %v326, 4294901760
        %v5359 = vsub.f32 %v326, %v5358
        %v5360 = vand.u32 %v5359, 4294901760
        %v5361 = vsub.f32 %v5359, %v5360
        %v5362 = vand.u32 %v5361, 4294901760
        %5363 = vmatpush1.msra.mxu0 %v5362
        %5364 = vmatprep.subr.mxu0 0.0
        %v5365 = vand.u32 %v327, 4294901760
        %v5366 = vsub.f32 %v327, %v5365
        %v5367 = vand.u32 %v5366, 4294901760
        %v5368 = vsub.f32 %v5366, %v5367
        %v5369 = vand.u32 %v5368, 4294901760
        %5370 = vmatpush1.msra.mxu0 %v5369
        %5371 = vmatprep.subr.mxu0 0.0
        %v5372 = vand.u32 %v328, 4294901760
        %v5373 = vsub.f32 %v328, %v5372
        %v5374 = vand.u32 %v5373, 4294901760
        %v5375 = vsub.f32 %v5373, %v5374
        %v5376 = vand.u32 %v5375, 4294901760
        %5377 = vmatpush1.msra.mxu0 %v5376
        %5378 = vmatprep.subr.mxu0 0.0
        %v5379 = vand.u32 %v329, 4294901760
        %v5380 = vsub.f32 %v329, %v5379
        %v5381 = vand.u32 %v5380, 4294901760
        %v5382 = vsub.f32 %v5380, %v5381
        %v5383 = vand.u32 %v5382, 4294901760
        %5384 = vmatpush1.msra.mxu0 %v5383
        %5385 = vmatprep.subr.mxu0 0.0
        %v5386 = vand.u32 %v330, 4294901760
        %v5387 = vsub.f32 %v330, %v5386
        %v5388 = vand.u32 %v5387, 4294901760
        %v5389 = vsub.f32 %v5387, %v5388
        %v5390 = vand.u32 %v5389, 4294901760
        %5391 = vmatpush1.msra.mxu0 %v5390
        %5392 = vmatprep.subr.mxu0 0.0
        %v5393 = vand.u32 %v331, 4294901760
        %v5394 = vsub.f32 %v331, %v5393
        %v5395 = vand.u32 %v5394, 4294901760
        %v5396 = vsub.f32 %v5394, %v5395
        %v5397 = vand.u32 %v5396, 4294901760
        %5398 = vmatpush1.msra.mxu0 %v5397
        %5399 = vmatprep.subr.mxu0 0.0
        %v5400 = vand.u32 %v332, 4294901760
        %v5401 = vsub.f32 %v332, %v5400
        %v5402 = vand.u32 %v5401, 4294901760
        %v5403 = vsub.f32 %v5401, %v5402
        %v5404 = vand.u32 %v5403, 4294901760
        %5405 = vmatpush1.msra.mxu0 %v5404
        %5406 = vmatprep.subr.mxu0 0.0
        %v5407 = vand.u32 %v333, 4294901760
        %v5408 = vsub.f32 %v333, %v5407
        %v5409 = vand.u32 %v5408, 4294901760
        %v5410 = vsub.f32 %v5408, %v5409
        %v5411 = vand.u32 %v5410, 4294901760
        %5412 = vmatpush1.msra.mxu0 %v5411
        %5413 = vmatprep.subr.mxu0 0.0
        %v5414 = vand.u32 %v334, 4294901760
        %v5415 = vsub.f32 %v334, %v5414
        %v5416 = vand.u32 %v5415, 4294901760
        %v5417 = vsub.f32 %v5415, %v5416
        %v5418 = vand.u32 %v5417, 4294901760
        %5419 = vmatpush1.msra.mxu0 %v5418
        %5420 = vmatprep.subr.mxu0 0.0
        %v5421 = vand.u32 %v335, 4294901760
        %v5422 = vsub.f32 %v335, %v5421
        %v5423 = vand.u32 %v5422, 4294901760
        %v5424 = vsub.f32 %v5422, %v5423
        %v5425 = vand.u32 %v5424, 4294901760
        %5426 = vmatpush1.msra.mxu0 %v5425
        %5427 = vmatprep.subr.mxu0 0.0
        %v5428 = vand.u32 %v336, 4294901760
        %v5429 = vsub.f32 %v336, %v5428
        %v5430 = vand.u32 %v5429, 4294901760
        %v5431 = vsub.f32 %v5429, %v5430
        %v5432 = vand.u32 %v5431, 4294901760
        %5433 = vmatpush1.msra.mxu0 %v5432
        %5434 = vmatprep.subr.mxu0 0.0
        %v5435 = vand.u32 %v337, 4294901760
        %v5436 = vsub.f32 %v337, %v5435
        %v5437 = vand.u32 %v5436, 4294901760
        %v5438 = vsub.f32 %v5436, %v5437
        %v5439 = vand.u32 %v5438, 4294901760
        %5440 = vmatpush1.msra.mxu0 %v5439
        %5441 = vmatprep.subr.mxu0 0.0
        %v5442 = vand.u32 %v338, 4294901760
        %v5443 = vsub.f32 %v338, %v5442
        %v5444 = vand.u32 %v5443, 4294901760
        %v5445 = vsub.f32 %v5443, %v5444
        %v5446 = vand.u32 %v5445, 4294901760
        %5447 = vmatpush1.msra.mxu0 %v5446
        %5448 = vmatprep.subr.mxu0 0.0
        %v5449 = vand.u32 %v339, 4294901760
        %v5450 = vsub.f32 %v339, %v5449
        %v5451 = vand.u32 %v5450, 4294901760
        %v5452 = vsub.f32 %v5450, %v5451
        %v5453 = vand.u32 %v5452, 4294901760
        %5454 = vmatpush1.msra.mxu0 %v5453
        %5455 = vmatprep.subr.mxu0 0.0
        %v5456 = vand.u32 %v340, 4294901760
        %v5457 = vsub.f32 %v340, %v5456
        %v5458 = vand.u32 %v5457, 4294901760
        %v5459 = vsub.f32 %v5457, %v5458
        %v5460 = vand.u32 %v5459, 4294901760
        %5461 = vmatpush1.msra.mxu0 %v5460
        %5462 = vmatprep.subr.mxu0 0.0
        %v5463 = vand.u32 %v341, 4294901760
        %v5464 = vsub.f32 %v341, %v5463
        %v5465 = vand.u32 %v5464, 4294901760
        %v5466 = vsub.f32 %v5464, %v5465
        %v5467 = vand.u32 %v5466, 4294901760
        %5468 = vmatpush1.msra.mxu0 %v5467
        %5469 = vmatprep.subr.mxu0 0.0
        %v5470 = vand.u32 %v342, 4294901760
        %v5471 = vsub.f32 %v342, %v5470
        %v5472 = vand.u32 %v5471, 4294901760
        %v5473 = vsub.f32 %v5471, %v5472
        %v5474 = vand.u32 %v5473, 4294901760
        %5475 = vmatpush1.msra.mxu0 %v5474
        %5476 = vmatprep.subr.mxu0 0.0
        %v5477 = vand.u32 %v343, 4294901760
        %v5478 = vsub.f32 %v343, %v5477
        %v5479 = vand.u32 %v5478, 4294901760
        %v5480 = vsub.f32 %v5478, %v5479
        %v5481 = vand.u32 %v5480, 4294901760
        %5482 = vmatpush1.msra.mxu0 %v5481
        %5483 = vmatprep.subr.mxu0 0.0
        %v5484 = vand.u32 %v344, 4294901760
        %v5485 = vsub.f32 %v344, %v5484
        %v5486 = vand.u32 %v5485, 4294901760
        %v5487 = vsub.f32 %v5485, %v5486
        %v5488 = vand.u32 %v5487, 4294901760
        %5489 = vmatpush1.msra.mxu0 %v5488
        %5490 = vmatprep.subr.mxu0 0.0
        %v5491 = vand.u32 %v345, 4294901760
        %v5492 = vsub.f32 %v345, %v5491
        %v5493 = vand.u32 %v5492, 4294901760
        %v5494 = vsub.f32 %v5492, %v5493
        %v5495 = vand.u32 %v5494, 4294901760
        %5496 = vmatpush1.msra.mxu0 %v5495
        %5497 = vmatprep.subr.mxu0 0.0
        %v5498 = vand.u32 %v346, 4294901760
        %v5499 = vsub.f32 %v346, %v5498
        %v5500 = vand.u32 %v5499, 4294901760
        %v5501 = vsub.f32 %v5499, %v5500
        %v5502 = vand.u32 %v5501, 4294901760
        %5503 = vmatpush1.msra.mxu0 %v5502
        %5504 = vmatprep.subr.mxu0 0.0
        %v5505 = vand.u32 %v347, 4294901760
        %v5506 = vsub.f32 %v347, %v5505
        %v5507 = vand.u32 %v5506, 4294901760
        %v5508 = vsub.f32 %v5506, %v5507
        %v5509 = vand.u32 %v5508, 4294901760
        %5510 = vmatpush1.msra.mxu0 %v5509
        %5511 = vmatprep.subr.mxu0 0.0
        %v5512 = vand.u32 %v348, 4294901760
        %v5513 = vsub.f32 %v348, %v5512
        %v5514 = vand.u32 %v5513, 4294901760
        %v5515 = vsub.f32 %v5513, %v5514
        %v5516 = vand.u32 %v5515, 4294901760
        %5517 = vmatpush1.msra.mxu0 %v5516
        %5518 = vmatprep.subr.mxu0 0.0
        %v5519 = vand.u32 %v349, 4294901760
        %v5520 = vsub.f32 %v349, %v5519
        %v5521 = vand.u32 %v5520, 4294901760
        %v5522 = vsub.f32 %v5520, %v5521
        %v5523 = vand.u32 %v5522, 4294901760
        %5524 = vmatpush1.msra.mxu0 %v5523
        %5525 = vmatprep.subr.mxu0 0.0
        %v5526 = vand.u32 %v350, 4294901760
        %v5527 = vsub.f32 %v350, %v5526
        %v5528 = vand.u32 %v5527, 4294901760
        %v5529 = vsub.f32 %v5527, %v5528
        %v5530 = vand.u32 %v5529, 4294901760
        %5531 = vmatpush1.msra.mxu0 %v5530
        %5532 = vmatprep.subr.mxu0 0.0
        %v5533 = vand.u32 %v351, 4294901760
        %v5534 = vsub.f32 %v351, %v5533
        %v5535 = vand.u32 %v5534, 4294901760
        %v5536 = vsub.f32 %v5534, %v5535
        %v5537 = vand.u32 %v5536, 4294901760
        %5538 = vmatpush1.msra.mxu0 %v5537
        %5539 = vmatprep.subr.mxu0 0.0
        %v5540 = vand.u32 %v352, 4294901760
        %v5541 = vsub.f32 %v352, %v5540
        %v5542 = vand.u32 %v5541, 4294901760
        %v5543 = vsub.f32 %v5541, %v5542
        %v5544 = vand.u32 %v5543, 4294901760
        %5545 = vmatpush1.msra.mxu0 %v5544
        %5546 = vmatprep.subr.mxu0 0.0
        %v5547 = vand.u32 %v353, 4294901760
        %v5548 = vsub.f32 %v353, %v5547
        %v5549 = vand.u32 %v5548, 4294901760
        %v5550 = vsub.f32 %v5548, %v5549
        %v5551 = vand.u32 %v5550, 4294901760
        %5552 = vmatpush1.msra.mxu0 %v5551
        %v5553 = vand.u32 %v562, 4294901760
        %5554 = vmatprep.mubr.f32.mxu0 %v5553
        %v5555 = vand.u32 %v550, 4294901760
        %5556 = vmatmul.mubr.f32.gmra.mrb[0].mxu0 %v5555
        %v5557 = vpop.f32.mrb[0].mxu0
        %v5558 = vadd.f32 %v5311, %v5557
        %v5559 = vpop.f32.mrb[0].mxu0
        %v5560 = vand.u32 %v563, 4294901760
        %5561 = vmatprep.mubr.f32.mxu0 %v5560
        %v5562 = vand.u32 %v551, 4294901760
        %5563 = vmatmul.mubr.f32.gmra.mrb[0].mxu0 %v5562
        %v5564 = vpop.f32.mrb[0].mxu0
        %v5565 = vadd.f32 %v5326, %v5564
        %v5566 = vpop.f32.mrb[0].mxu0
        %5567 = vdwg.mxu0
        %5568 = vmatprep.subr.mxu0 0.0
        %v5569 = vand.u32 %v322, 4294901760
        %v5570 = vsub.f32 %v322, %v5569
        %5571 = vmatpush1.msra.mxu0 %v5570
        %5572 = vmatprep.subr.mxu0 0.0
        %v5573 = vand.u32 %v323, 4294901760
        %v5574 = vsub.f32 %v323, %v5573
        %5575 = vmatpush1.msra.mxu0 %v5574
        %5576 = vmatprep.subr.mxu0 0.0
        %v5577 = vand.u32 %v324, 4294901760
        %v5578 = vsub.f32 %v324, %v5577
        %5579 = vmatpush1.msra.mxu0 %v5578
        %5580 = vmatprep.subr.mxu0 0.0
        %v5581 = vand.u32 %v325, 4294901760
        %v5582 = vsub.f32 %v325, %v5581
        %5583 = vmatpush1.msra.mxu0 %v5582
        %5584 = vmatprep.subr.mxu0 0.0
        %v5585 = vand.u32 %v326, 4294901760
        %v5586 = vsub.f32 %v326, %v5585
        %5587 = vmatpush1.msra.mxu0 %v5586
        %5588 = vmatprep.subr.mxu0 0.0
        %v5589 = vand.u32 %v327, 4294901760
        %v5590 = vsub.f32 %v327, %v5589
        %5591 = vmatpush1.msra.mxu0 %v5590
        %5592 = vmatprep.subr.mxu0 0.0
        %v5593 = vand.u32 %v328, 4294901760
        %v5594 = vsub.f32 %v328, %v5593
        %5595 = vmatpush1.msra.mxu0 %v5594
        %5596 = vmatprep.subr.mxu0 0.0
        %v5597 = vand.u32 %v329, 4294901760
        %v5598 = vsub.f32 %v329, %v5597
        %5599 = vmatpush1.msra.mxu0 %v5598
        %5600 = vmatprep.subr.mxu0 0.0
        %v5601 = vand.u32 %v330, 4294901760
        %v5602 = vsub.f32 %v330, %v5601
        %5603 = vmatpush1.msra.mxu0 %v5602
        %5604 = vmatprep.subr.mxu0 0.0
        %v5605 = vand.u32 %v331, 4294901760
        %v5606 = vsub.f32 %v331, %v5605
        %5607 = vmatpush1.msra.mxu0 %v5606
        %5608 = vmatprep.subr.mxu0 0.0
        %v5609 = vand.u32 %v332, 4294901760
        %v5610 = vsub.f32 %v332, %v5609
        %5611 = vmatpush1.msra.mxu0 %v5610
        %5612 = vmatprep.subr.mxu0 0.0
        %v5613 = vand.u32 %v333, 4294901760
        %v5614 = vsub.f32 %v333, %v5613
        %5615 = vmatpush1.msra.mxu0 %v5614
        %5616 = vmatprep.subr.mxu0 0.0
        %v5617 = vand.u32 %v334, 4294901760
        %v5618 = vsub.f32 %v334, %v5617
        %5619 = vmatpush1.msra.mxu0 %v5618
        %5620 = vmatprep.subr.mxu0 0.0
        %v5621 = vand.u32 %v335, 4294901760
        %v5622 = vsub.f32 %v335, %v5621
        %5623 = vmatpush1.msra.mxu0 %v5622
        %5624 = vmatprep.subr.mxu0 0.0
        %v5625 = vand.u32 %v336, 4294901760
        %v5626 = vsub.f32 %v336, %v5625
        %5627 = vmatpush1.msra.mxu0 %v5626
        %5628 = vmatprep.subr.mxu0 0.0
        %v5629 = vand.u32 %v337, 4294901760
        %v5630 = vsub.f32 %v337, %v5629
        %5631 = vmatpush1.msra.mxu0 %v5630
        %5632 = vmatprep.subr.mxu0 0.0
        %v5633 = vand.u32 %v338, 4294901760
        %v5634 = vsub.f32 %v338, %v5633
        %5635 = vmatpush1.msra.mxu0 %v5634
        %5636 = vmatprep.subr.mxu0 0.0
        %v5637 = vand.u32 %v339, 4294901760
        %v5638 = vsub.f32 %v339, %v5637
        %5639 = vmatpush1.msra.mxu0 %v5638
        %5640 = vmatprep.subr.mxu0 0.0
        %v5641 = vand.u32 %v340, 4294901760
        %v5642 = vsub.f32 %v340, %v5641
        %5643 = vmatpush1.msra.mxu0 %v5642
        %5644 = vmatprep.subr.mxu0 0.0
        %v5645 = vand.u32 %v341, 4294901760
        %v5646 = vsub.f32 %v341, %v5645
        %5647 = vmatpush1.msra.mxu0 %v5646
        %5648 = vmatprep.subr.mxu0 0.0
        %v5649 = vand.u32 %v342, 4294901760
        %v5650 = vsub.f32 %v342, %v5649
        %5651 = vmatpush1.msra.mxu0 %v5650
        %5652 = vmatprep.subr.mxu0 0.0
        %v5653 = vand.u32 %v343, 4294901760
        %v5654 = vsub.f32 %v343, %v5653
        %5655 = vmatpush1.msra.mxu0 %v5654
        %5656 = vmatprep.subr.mxu0 0.0
        %v5657 = vand.u32 %v344, 4294901760
        %v5658 = vsub.f32 %v344, %v5657
        %5659 = vmatpush1.msra.mxu0 %v5658
        %5660 = vmatprep.subr.mxu0 0.0
        %v5661 = vand.u32 %v345, 4294901760
        %v5662 = vsub.f32 %v345, %v5661
        %5663 = vmatpush1.msra.mxu0 %v5662
        %5664 = vmatprep.subr.mxu0 0.0
        %v5665 = vand.u32 %v346, 4294901760
        %v5666 = vsub.f32 %v346, %v5665
        %5667 = vmatpush1.msra.mxu0 %v5666
        %5668 = vmatprep.subr.mxu0 0.0
        %v5669 = vand.u32 %v347, 4294901760
        %v5670 = vsub.f32 %v347, %v5669
        %5671 = vmatpush1.msra.mxu0 %v5670
        %5672 = vmatprep.subr.mxu0 0.0
        %v5673 = vand.u32 %v348, 4294901760
        %v5674 = vsub.f32 %v348, %v5673
        %5675 = vmatpush1.msra.mxu0 %v5674
        %5676 = vmatprep.subr.mxu0 0.0
        %v5677 = vand.u32 %v349, 4294901760
        %v5678 = vsub.f32 %v349, %v5677
        %5679 = vmatpush1.msra.mxu0 %v5678
        %5680 = vmatprep.subr.mxu0 0.0
        %v5681 = vand.u32 %v350, 4294901760
        %v5682 = vsub.f32 %v350, %v5681
        %5683 = vmatpush1.msra.mxu0 %v5682
        %5684 = vmatprep.subr.mxu0 0.0
        %v5685 = vand.u32 %v351, 4294901760
        %v5686 = vsub.f32 %v351, %v5685
        %5687 = vmatpush1.msra.mxu0 %v5686
        %5688 = vmatprep.subr.mxu0 0.0
        %v5689 = vand.u32 %v352, 4294901760
        %v5690 = vsub.f32 %v352, %v5689
        %5691 = vmatpush1.msra.mxu0 %v5690
        %5692 = vmatprep.subr.mxu0 0.0
        %v5693 = vand.u32 %v353, 4294901760
        %v5694 = vsub.f32 %v353, %v5693
        %5695 = vmatpush1.msra.mxu0 %v5694
        %v5696 = vand.u32 %v562, 4294901760
        %v5697 = vsub.f32 %v562, %v5696
        %5698 = vmatprep.mubr.f32.mxu0 %v5697
        %v5699 = vand.u32 %v550, 4294901760
        %v5700 = vsub.f32 %v550, %v5699
        %5701 = vmatmul.mubr.f32.gmra.mrb[0].mxu0 %v5700
        %v5702 = vpop.f32.mrb[0].mxu0
        %v5703 = vadd.f32 %v5558, %v5702
        %v5704 = vpop.f32.mrb[0].mxu0
        %v5705 = vand.u32 %v563, 4294901760
        %v5706 = vsub.f32 %v563, %v5705
        %5707 = vmatprep.mubr.f32.mxu0 %v5706
        %v5708 = vand.u32 %v551, 4294901760
        %v5709 = vsub.f32 %v551, %v5708
        %5710 = vmatmul.mubr.f32.gmra.mrb[0].mxu0 %v5709
        %v5711 = vpop.f32.mrb[0].mxu0
        %v5712 = vadd.f32 %v5565, %v5711
        %v5713 = vpop.f32.mrb[0].mxu0
        %5714 = vdwg.mxu0
        %5715 = vmatprep.subr.mxu0 0.0
        %v5716 = vand.u32 %v322, 4294901760
        %5717 = vmatpush1.msra.mxu0 %v5716
        %5718 = vmatprep.subr.mxu0 0.0
        %v5719 = vand.u32 %v323, 4294901760
        %5720 = vmatpush1.msra.mxu0 %v5719
        %5721 = vmatprep.subr.mxu0 0.0
        %v5722 = vand.u32 %v324, 4294901760
        %5723 = vmatpush1.msra.mxu0 %v5722
        %5724 = vmatprep.subr.mxu0 0.0
        %v5725 = vand.u32 %v325, 4294901760
        %5726 = vmatpush1.msra.mxu0 %v5725
        %5727 = vmatprep.subr.mxu0 0.0
        %v5728 = vand.u32 %v326, 4294901760
        %5729 = vmatpush1.msra.mxu0 %v5728
        %5730 = vmatprep.subr.mxu0 0.0
        %v5731 = vand.u32 %v327, 4294901760
        %5732 = vmatpush1.msra.mxu0 %v5731
        %5733 = vmatprep.subr.mxu0 0.0
        %v5734 = vand.u32 %v328, 4294901760
        %5735 = vmatpush1.msra.mxu0 %v5734
        %5736 = vmatprep.subr.mxu0 0.0
        %v5737 = vand.u32 %v329, 4294901760
        %5738 = vmatpush1.msra.mxu0 %v5737
        %5739 = vmatprep.subr.mxu0 0.0
        %v5740 = vand.u32 %v330, 4294901760
        %5741 = vmatpush1.msra.mxu0 %v5740
        %5742 = vmatprep.subr.mxu0 0.0
        %v5743 = vand.u32 %v331, 4294901760
        %5744 = vmatpush1.msra.mxu0 %v5743
        %5745 = vmatprep.subr.mxu0 0.0
        %v5746 = vand.u32 %v332, 4294901760
        %5747 = vmatpush1.msra.mxu0 %v5746
        %5748 = vmatprep.subr.mxu0 0.0
        %v5749 = vand.u32 %v333, 4294901760
        %5750 = vmatpush1.msra.mxu0 %v5749
        %5751 = vmatprep.subr.mxu0 0.0
        %v5752 = vand.u32 %v334, 4294901760
        %5753 = vmatpush1.msra.mxu0 %v5752
        %5754 = vmatprep.subr.mxu0 0.0
        %v5755 = vand.u32 %v335, 4294901760
        %5756 = vmatpush1.msra.mxu0 %v5755
        %5757 = vmatprep.subr.mxu0 0.0
        %v5758 = vand.u32 %v336, 4294901760
        %5759 = vmatpush1.msra.mxu0 %v5758
        %5760 = vmatprep.subr.mxu0 0.0
        %v5761 = vand.u32 %v337, 4294901760
        %5762 = vmatpush1.msra.mxu0 %v5761
        %5763 = vmatprep.subr.mxu0 0.0
        %v5764 = vand.u32 %v338, 4294901760
        %5765 = vmatpush1.msra.mxu0 %v5764
        %5766 = vmatprep.subr.mxu0 0.0
        %v5767 = vand.u32 %v339, 4294901760
        %5768 = vmatpush1.msra.mxu0 %v5767
        %5769 = vmatprep.subr.mxu0 0.0
        %v5770 = vand.u32 %v340, 4294901760
        %5771 = vmatpush1.msra.mxu0 %v5770
        %5772 = vmatprep.subr.mxu0 0.0
        %v5773 = vand.u32 %v341, 4294901760
        %5774 = vmatpush1.msra.mxu0 %v5773
        %5775 = vmatprep.subr.mxu0 0.0
        %v5776 = vand.u32 %v342, 4294901760
        %5777 = vmatpush1.msra.mxu0 %v5776
        %5778 = vmatprep.subr.mxu0 0.0
        %v5779 = vand.u32 %v343, 4294901760
        %5780 = vmatpush1.msra.mxu0 %v5779
        %5781 = vmatprep.subr.mxu0 0.0
        %v5782 = vand.u32 %v344, 4294901760
        %5783 = vmatpush1.msra.mxu0 %v5782
        %5784 = vmatprep.subr.mxu0 0.0
        %v5785 = vand.u32 %v345, 4294901760
        %5786 = vmatpush1.msra.mxu0 %v5785
        %5787 = vmatprep.subr.mxu0 0.0
        %v5788 = vand.u32 %v346, 4294901760
        %5789 = vmatpush1.msra.mxu0 %v5788
        %5790 = vmatprep.subr.mxu0 0.0
        %v5791 = vand.u32 %v347, 4294901760
        %5792 = vmatpush1.msra.mxu0 %v5791
        %5793 = vmatprep.subr.mxu0 0.0
        %v5794 = vand.u32 %v348, 4294901760
        %5795 = vmatpush1.msra.mxu0 %v5794
        %5796 = vmatprep.subr.mxu0 0.0
        %v5797 = vand.u32 %v349, 4294901760
        %5798 = vmatpush1.msra.mxu0 %v5797
        %5799 = vmatprep.subr.mxu0 0.0
        %v5800 = vand.u32 %v350, 4294901760
        %5801 = vmatpush1.msra.mxu0 %v5800
        %5802 = vmatprep.subr.mxu0 0.0
        %v5803 = vand.u32 %v351, 4294901760
        %5804 = vmatpush1.msra.mxu0 %v5803
        %5805 = vmatprep.subr.mxu0 0.0
        %v5806 = vand.u32 %v352, 4294901760
        %5807 = vmatpush1.msra.mxu0 %v5806
        %5808 = vmatprep.subr.mxu0 0.0
        %v5809 = vand.u32 %v353, 4294901760
        %5810 = vmatpush1.msra.mxu0 %v5809
        %v5811 = vand.u32 %v562, 4294901760
        %v5812 = vsub.f32 %v562, %v5811
        %v5813 = vand.u32 %v5812, 4294901760
        %5814 = vmatprep.mubr.f32.mxu0 %v5813
        %v5815 = vand.u32 %v550, 4294901760
        %v5816 = vsub.f32 %v550, %v5815
        %v5817 = vand.u32 %v5816, 4294901760
        %5818 = vmatmul.mubr.f32.gmra.mrb[0].mxu0 %v5817
        %v5819 = vpop.f32.mrb[0].mxu0
        %v5820 = vadd.f32 %v5703, %v5819
        %v5821 = vpop.f32.mrb[0].mxu0
        %v5822 = vand.u32 %v563, 4294901760
        %v5823 = vsub.f32 %v563, %v5822
        %v5824 = vand.u32 %v5823, 4294901760
        %5825 = vmatprep.mubr.f32.mxu0 %v5824
        %v5826 = vand.u32 %v551, 4294901760
        %v5827 = vsub.f32 %v551, %v5826
        %v5828 = vand.u32 %v5827, 4294901760
        %5829 = vmatmul.mubr.f32.gmra.mrb[0].mxu0 %v5828
        %v5830 = vpop.f32.mrb[0].mxu0
        %v5831 = vadd.f32 %v5712, %v5830
        %v5832 = vpop.f32.mrb[0].mxu0
        %5833 = vdwg.mxu0
        %5834 = vmatprep.subr.mxu0 0.0
        %v5835 = vand.u32 %v322, 4294901760
        %v5836 = vsub.f32 %v322, %v5835
        %v5837 = vand.u32 %v5836, 4294901760
        %5838 = vmatpush1.msra.mxu0 %v5837
        %5839 = vmatprep.subr.mxu0 0.0
        %v5840 = vand.u32 %v323, 4294901760
        %v5841 = vsub.f32 %v323, %v5840
        %v5842 = vand.u32 %v5841, 4294901760
        %5843 = vmatpush1.msra.mxu0 %v5842
        %5844 = vmatprep.subr.mxu0 0.0
        %v5845 = vand.u32 %v324, 4294901760
        %v5846 = vsub.f32 %v324, %v5845
        %v5847 = vand.u32 %v5846, 4294901760
        %5848 = vmatpush1.msra.mxu0 %v5847
        %5849 = vmatprep.subr.mxu0 0.0
        %v5850 = vand.u32 %v325, 4294901760
        %v5851 = vsub.f32 %v325, %v5850
        %v5852 = vand.u32 %v5851, 4294901760
        %5853 = vmatpush1.msra.mxu0 %v5852
        %5854 = vmatprep.subr.mxu0 0.0
        %v5855 = vand.u32 %v326, 4294901760
        %v5856 = vsub.f32 %v326, %v5855
        %v5857 = vand.u32 %v5856, 4294901760
        %5858 = vmatpush1.msra.mxu0 %v5857
        %5859 = vmatprep.subr.mxu0 0.0
        %v5860 = vand.u32 %v327, 4294901760
        %v5861 = vsub.f32 %v327, %v5860
        %v5862 = vand.u32 %v5861, 4294901760
        %5863 = vmatpush1.msra.mxu0 %v5862
        %5864 = vmatprep.subr.mxu0 0.0
        %v5865 = vand.u32 %v328, 4294901760
        %v5866 = vsub.f32 %v328, %v5865
        %v5867 = vand.u32 %v5866, 4294901760
        %5868 = vmatpush1.msra.mxu0 %v5867
        %5869 = vmatprep.subr.mxu0 0.0
        %v5870 = vand.u32 %v329, 4294901760
        %v5871 = vsub.f32 %v329, %v5870
        %v5872 = vand.u32 %v5871, 4294901760
        %5873 = vmatpush1.msra.mxu0 %v5872
        %5874 = vmatprep.subr.mxu0 0.0
        %v5875 = vand.u32 %v330, 4294901760
        %v5876 = vsub.f32 %v330, %v5875
        %v5877 = vand.u32 %v5876, 4294901760
        %5878 = vmatpush1.msra.mxu0 %v5877
        %5879 = vmatprep.subr.mxu0 0.0
        %v5880 = vand.u32 %v331, 4294901760
        %v5881 = vsub.f32 %v331, %v5880
        %v5882 = vand.u32 %v5881, 4294901760
        %5883 = vmatpush1.msra.mxu0 %v5882
        %5884 = vmatprep.subr.mxu0 0.0
        %v5885 = vand.u32 %v332, 4294901760
        %v5886 = vsub.f32 %v332, %v5885
        %v5887 = vand.u32 %v5886, 4294901760
        %5888 = vmatpush1.msra.mxu0 %v5887
        %5889 = vmatprep.subr.mxu0 0.0
        %v5890 = vand.u32 %v333, 4294901760
        %v5891 = vsub.f32 %v333, %v5890
        %v5892 = vand.u32 %v5891, 4294901760
        %5893 = vmatpush1.msra.mxu0 %v5892
        %5894 = vmatprep.subr.mxu0 0.0
        %v5895 = vand.u32 %v334, 4294901760
        %v5896 = vsub.f32 %v334, %v5895
        %v5897 = vand.u32 %v5896, 4294901760
        %5898 = vmatpush1.msra.mxu0 %v5897
        %5899 = vmatprep.subr.mxu0 0.0
        %v5900 = vand.u32 %v335, 4294901760
        %v5901 = vsub.f32 %v335, %v5900
        %v5902 = vand.u32 %v5901, 4294901760
        %5903 = vmatpush1.msra.mxu0 %v5902
        %5904 = vmatprep.subr.mxu0 0.0
        %v5905 = vand.u32 %v336, 4294901760
        %v5906 = vsub.f32 %v336, %v5905
        %v5907 = vand.u32 %v5906, 4294901760
        %5908 = vmatpush1.msra.mxu0 %v5907
        %5909 = vmatprep.subr.mxu0 0.0
        %v5910 = vand.u32 %v337, 4294901760
        %v5911 = vsub.f32 %v337, %v5910
        %v5912 = vand.u32 %v5911, 4294901760
        %5913 = vmatpush1.msra.mxu0 %v5912
        %5914 = vmatprep.subr.mxu0 0.0
        %v5915 = vand.u32 %v338, 4294901760
        %v5916 = vsub.f32 %v338, %v5915
        %v5917 = vand.u32 %v5916, 4294901760
        %5918 = vmatpush1.msra.mxu0 %v5917
        %5919 = vmatprep.subr.mxu0 0.0
        %v5920 = vand.u32 %v339, 4294901760
        %v5921 = vsub.f32 %v339, %v5920
        %v5922 = vand.u32 %v5921, 4294901760
        %5923 = vmatpush1.msra.mxu0 %v5922
        %5924 = vmatprep.subr.mxu0 0.0
        %v5925 = vand.u32 %v340, 4294901760
        %v5926 = vsub.f32 %v340, %v5925
        %v5927 = vand.u32 %v5926, 4294901760
        %5928 = vmatpush1.msra.mxu0 %v5927
        %5929 = vmatprep.subr.mxu0 0.0
        %v5930 = vand.u32 %v341, 4294901760
        %v5931 = vsub.f32 %v341, %v5930
        %v5932 = vand.u32 %v5931, 4294901760
        %5933 = vmatpush1.msra.mxu0 %v5932
        %5934 = vmatprep.subr.mxu0 0.0
        %v5935 = vand.u32 %v342, 4294901760
        %v5936 = vsub.f32 %v342, %v5935
        %v5937 = vand.u32 %v5936, 4294901760
        %5938 = vmatpush1.msra.mxu0 %v5937
        %5939 = vmatprep.subr.mxu0 0.0
        %v5940 = vand.u32 %v343, 4294901760
        %v5941 = vsub.f32 %v343, %v5940
        %v5942 = vand.u32 %v5941, 4294901760
        %5943 = vmatpush1.msra.mxu0 %v5942
        %5944 = vmatprep.subr.mxu0 0.0
        %v5945 = vand.u32 %v344, 4294901760
        %v5946 = vsub.f32 %v344, %v5945
        %v5947 = vand.u32 %v5946, 4294901760
        %5948 = vmatpush1.msra.mxu0 %v5947
        %5949 = vmatprep.subr.mxu0 0.0
        %v5950 = vand.u32 %v345, 4294901760
        %v5951 = vsub.f32 %v345, %v5950
        %v5952 = vand.u32 %v5951, 4294901760
        %5953 = vmatpush1.msra.mxu0 %v5952
        %5954 = vmatprep.subr.mxu0 0.0
        %v5955 = vand.u32 %v346, 4294901760
        %v5956 = vsub.f32 %v346, %v5955
        %v5957 = vand.u32 %v5956, 4294901760
        %5958 = vmatpush1.msra.mxu0 %v5957
        %5959 = vmatprep.subr.mxu0 0.0
        %v5960 = vand.u32 %v347, 4294901760
        %v5961 = vsub.f32 %v347, %v5960
        %v5962 = vand.u32 %v5961, 4294901760
        %5963 = vmatpush1.msra.mxu0 %v5962
        %5964 = vmatprep.subr.mxu0 0.0
        %v5965 = vand.u32 %v348, 4294901760
        %v5966 = vsub.f32 %v348, %v5965
        %v5967 = vand.u32 %v5966, 4294901760
        %5968 = vmatpush1.msra.mxu0 %v5967
        %5969 = vmatprep.subr.mxu0 0.0
        %v5970 = vand.u32 %v349, 4294901760
        %v5971 = vsub.f32 %v349, %v5970
        %v5972 = vand.u32 %v5971, 4294901760
        %5973 = vmatpush1.msra.mxu0 %v5972
        %5974 = vmatprep.subr.mxu0 0.0
        %v5975 = vand.u32 %v350, 4294901760
        %v5976 = vsub.f32 %v350, %v5975
        %v5977 = vand.u32 %v5976, 4294901760
        %5978 = vmatpush1.msra.mxu0 %v5977
        %5979 = vmatprep.subr.mxu0 0.0
        %v5980 = vand.u32 %v351, 4294901760
        %v5981 = vsub.f32 %v351, %v5980
        %v5982 = vand.u32 %v5981, 4294901760
        %5983 = vmatpush1.msra.mxu0 %v5982
        %5984 = vmatprep.subr.mxu0 0.0
        %v5985 = vand.u32 %v352, 4294901760
        %v5986 = vsub.f32 %v352, %v5985
        %v5987 = vand.u32 %v5986, 4294901760
        %5988 = vmatpush1.msra.mxu0 %v5987
        %5989 = vmatprep.subr.mxu0 0.0
        %v5990 = vand.u32 %v353, 4294901760
        %v5991 = vsub.f32 %v353, %v5990
        %v5992 = vand.u32 %v5991, 4294901760
        %5993 = vmatpush1.msra.mxu0 %v5992
        %v5994 = vand.u32 %v562, 4294901760
        %5995 = vmatprep.mubr.f32.mxu0 %v5994
        %v5996 = vand.u32 %v550, 4294901760
        %5997 = vmatmul.mubr.f32.gmra.mrb[0].mxu0 %v5996
        %v5998 = vpop.f32.mrb[0].mxu0
        %v5999 = vadd.f32 %v5820, %v5998
        %v6000 = vpop.f32.mrb[0].mxu0
        %v6001 = vand.u32 %v563, 4294901760
        %6002 = vmatprep.mubr.f32.mxu0 %v6001
        %v6003 = vand.u32 %v551, 4294901760
        %6004 = vmatmul.mubr.f32.gmra.mrb[0].mxu0 %v6003
        %v6005 = vpop.f32.mrb[0].mxu0
        %v6006 = vadd.f32 %v5831, %v6005
        %v6007 = vpop.f32.mrb[0].mxu0
        %6008 = vdwg.mxu0
        %6009 = vmatprep.subr.mxu0 0.0
        %v6010 = vand.u32 %v322, 4294901760
        %6011 = vmatpush1.msra.mxu0 %v6010
        %6012 = vmatprep.subr.mxu0 0.0
        %v6013 = vand.u32 %v323, 4294901760
        %6014 = vmatpush1.msra.mxu0 %v6013
        %6015 = vmatprep.subr.mxu0 0.0
        %v6016 = vand.u32 %v324, 4294901760
        %6017 = vmatpush1.msra.mxu0 %v6016
        %6018 = vmatprep.subr.mxu0 0.0
        %v6019 = vand.u32 %v325, 4294901760
        %6020 = vmatpush1.msra.mxu0 %v6019
        %6021 = vmatprep.subr.mxu0 0.0
        %v6022 = vand.u32 %v326, 4294901760
        %6023 = vmatpush1.msra.mxu0 %v6022
        %6024 = vmatprep.subr.mxu0 0.0
        %v6025 = vand.u32 %v327, 4294901760
        %6026 = vmatpush1.msra.mxu0 %v6025
        %6027 = vmatprep.subr.mxu0 0.0
        %v6028 = vand.u32 %v328, 4294901760
        %6029 = vmatpush1.msra.mxu0 %v6028
        %6030 = vmatprep.subr.mxu0 0.0
        %v6031 = vand.u32 %v329, 4294901760
        %6032 = vmatpush1.msra.mxu0 %v6031
        %6033 = vmatprep.subr.mxu0 0.0
        %v6034 = vand.u32 %v330, 4294901760
        %6035 = vmatpush1.msra.mxu0 %v6034
        %6036 = vmatprep.subr.mxu0 0.0
        %v6037 = vand.u32 %v331, 4294901760
        %6038 = vmatpush1.msra.mxu0 %v6037
        %6039 = vmatprep.subr.mxu0 0.0
        %v6040 = vand.u32 %v332, 4294901760
        %6041 = vmatpush1.msra.mxu0 %v6040
        %6042 = vmatprep.subr.mxu0 0.0
        %v6043 = vand.u32 %v333, 4294901760
        %6044 = vmatpush1.msra.mxu0 %v6043
        %6045 = vmatprep.subr.mxu0 0.0
        %v6046 = vand.u32 %v334, 4294901760
        %6047 = vmatpush1.msra.mxu0 %v6046
        %6048 = vmatprep.subr.mxu0 0.0
        %v6049 = vand.u32 %v335, 4294901760
        %6050 = vmatpush1.msra.mxu0 %v6049
        %6051 = vmatprep.subr.mxu0 0.0
        %v6052 = vand.u32 %v336, 4294901760
        %6053 = vmatpush1.msra.mxu0 %v6052
        %6054 = vmatprep.subr.mxu0 0.0
        %v6055 = vand.u32 %v337, 4294901760
        %6056 = vmatpush1.msra.mxu0 %v6055
        %6057 = vmatprep.subr.mxu0 0.0
        %v6058 = vand.u32 %v338, 4294901760
        %6059 = vmatpush1.msra.mxu0 %v6058
        %6060 = vmatprep.subr.mxu0 0.0
        %v6061 = vand.u32 %v339, 4294901760
        %6062 = vmatpush1.msra.mxu0 %v6061
        %6063 = vmatprep.subr.mxu0 0.0
        %v6064 = vand.u32 %v340, 4294901760
        %6065 = vmatpush1.msra.mxu0 %v6064
        %6066 = vmatprep.subr.mxu0 0.0
        %v6067 = vand.u32 %v341, 4294901760
        %6068 = vmatpush1.msra.mxu0 %v6067
        %6069 = vmatprep.subr.mxu0 0.0
        %v6070 = vand.u32 %v342, 4294901760
        %6071 = vmatpush1.msra.mxu0 %v6070
        %6072 = vmatprep.subr.mxu0 0.0
        %v6073 = vand.u32 %v343, 4294901760
        %6074 = vmatpush1.msra.mxu0 %v6073
        %6075 = vmatprep.subr.mxu0 0.0
        %v6076 = vand.u32 %v344, 4294901760
        %6077 = vmatpush1.msra.mxu0 %v6076
        %6078 = vmatprep.subr.mxu0 0.0
        %v6079 = vand.u32 %v345, 4294901760
        %6080 = vmatpush1.msra.mxu0 %v6079
        %6081 = vmatprep.subr.mxu0 0.0
        %v6082 = vand.u32 %v346, 4294901760
        %6083 = vmatpush1.msra.mxu0 %v6082
        %6084 = vmatprep.subr.mxu0 0.0
        %v6085 = vand.u32 %v347, 4294901760
        %6086 = vmatpush1.msra.mxu0 %v6085
        %6087 = vmatprep.subr.mxu0 0.0
        %v6088 = vand.u32 %v348, 4294901760
        %6089 = vmatpush1.msra.mxu0 %v6088
        %6090 = vmatprep.subr.mxu0 0.0
        %v6091 = vand.u32 %v349, 4294901760
        %6092 = vmatpush1.msra.mxu0 %v6091
        %6093 = vmatprep.subr.mxu0 0.0
        %v6094 = vand.u32 %v350, 4294901760
        %6095 = vmatpush1.msra.mxu0 %v6094
        %6096 = vmatprep.subr.mxu0 0.0
        %v6097 = vand.u32 %v351, 4294901760
        %6098 = vmatpush1.msra.mxu0 %v6097
        %6099 = vmatprep.subr.mxu0 0.0
        %v6100 = vand.u32 %v352, 4294901760
        %6101 = vmatpush1.msra.mxu0 %v6100
        %6102 = vmatprep.subr.mxu0 0.0
        %v6103 = vand.u32 %v353, 4294901760
        %6104 = vmatpush1.msra.mxu0 %v6103
        %v6105 = vand.u32 %v562, 4294901760
        %6106 = vmatprep.mubr.f32.mxu0 %v6105
        %v6107 = vand.u32 %v550, 4294901760
        %6108 = vmatmul.mubr.f32.gmra.mrb[0].mxu0 %v6107
        %v6109 = vpop.f32.mrb[0].mxu0
        %v6110 = vadd.f32 %v5999, %v6109
        %v6111 = vpop.f32.mrb[0].mxu0
        %v6112 = vand.u32 %v563, 4294901760
        %6113 = vmatprep.mubr.f32.mxu0 %v6112
        %v6114 = vand.u32 %v551, 4294901760
        %6115 = vmatmul.mubr.f32.gmra.mrb[0].mxu0 %v6114
        %v6116 = vpop.f32.mrb[0].mxu0
        %v6117 = vadd.f32 %v6006, %v6116
        %v6118 = vpop.f32.mrb[0].mxu0
        %6119 = vdwg.mxu0
        %6120 = vmatprep.subr.mxu0 0.0
        %v6121 = vand.u32 %v354, 4294901760
        %6122 = vmatpush1.msra.mxu0 %v6121
        %6123 = vmatprep.subr.mxu0 0.0
        %v6124 = vand.u32 %v355, 4294901760
        %6125 = vmatpush1.msra.mxu0 %v6124
        %6126 = vmatprep.subr.mxu0 0.0
        %v6127 = vand.u32 %v356, 4294901760
        %6128 = vmatpush1.msra.mxu0 %v6127
        %6129 = vmatprep.subr.mxu0 0.0
        %v6130 = vand.u32 %v357, 4294901760
        %6131 = vmatpush1.msra.mxu0 %v6130
        %6132 = vmatprep.subr.mxu0 0.0
        %v6133 = vand.u32 %v358, 4294901760
        %6134 = vmatpush1.msra.mxu0 %v6133
        %6135 = vmatprep.subr.mxu0 0.0
        %v6136 = vand.u32 %v359, 4294901760
        %6137 = vmatpush1.msra.mxu0 %v6136
        %6138 = vmatprep.subr.mxu0 0.0
        %v6139 = vand.u32 %v360, 4294901760
        %6140 = vmatpush1.msra.mxu0 %v6139
        %6141 = vmatprep.subr.mxu0 0.0
        %v6142 = vand.u32 %v361, 4294901760
        %6143 = vmatpush1.msra.mxu0 %v6142
        %6144 = vmatprep.subr.mxu0 0.0
        %v6145 = vand.u32 %v362, 4294901760
        %6146 = vmatpush1.msra.mxu0 %v6145
        %6147 = vmatprep.subr.mxu0 0.0
        %v6148 = vand.u32 %v363, 4294901760
        %6149 = vmatpush1.msra.mxu0 %v6148
        %6150 = vmatprep.subr.mxu0 0.0
        %v6151 = vand.u32 %v364, 4294901760
        %6152 = vmatpush1.msra.mxu0 %v6151
        %6153 = vmatprep.subr.mxu0 0.0
        %v6154 = vand.u32 %v365, 4294901760
        %6155 = vmatpush1.msra.mxu0 %v6154
        %6156 = vmatprep.subr.mxu0 0.0
        %v6157 = vand.u32 %v366, 4294901760
        %6158 = vmatpush1.msra.mxu0 %v6157
        %6159 = vmatprep.subr.mxu0 0.0
        %v6160 = vand.u32 %v367, 4294901760
        %6161 = vmatpush1.msra.mxu0 %v6160
        %6162 = vmatprep.subr.mxu0 0.0
        %v6163 = vand.u32 %v368, 4294901760
        %6164 = vmatpush1.msra.mxu0 %v6163
        %6165 = vmatprep.subr.mxu0 0.0
        %v6166 = vand.u32 %v369, 4294901760
        %6167 = vmatpush1.msra.mxu0 %v6166
        %6168 = vmatprep.subr.mxu0 0.0
        %v6169 = vand.u32 %v370, 4294901760
        %6170 = vmatpush1.msra.mxu0 %v6169
        %6171 = vmatprep.subr.mxu0 0.0
        %v6172 = vand.u32 %v371, 4294901760
        %6173 = vmatpush1.msra.mxu0 %v6172
        %6174 = vmatprep.subr.mxu0 0.0
        %v6175 = vand.u32 %v372, 4294901760
        %6176 = vmatpush1.msra.mxu0 %v6175
        %6177 = vmatprep.subr.mxu0 0.0
        %v6178 = vand.u32 %v373, 4294901760
        %6179 = vmatpush1.msra.mxu0 %v6178
        %6180 = vmatprep.subr.mxu0 0.0
        %v6181 = vand.u32 %v374, 4294901760
        %6182 = vmatpush1.msra.mxu0 %v6181
        %6183 = vmatprep.subr.mxu0 0.0
        %v6184 = vand.u32 %v375, 4294901760
        %6185 = vmatpush1.msra.mxu0 %v6184
        %6186 = vmatprep.subr.mxu0 0.0
        %v6187 = vand.u32 %v376, 4294901760
        %6188 = vmatpush1.msra.mxu0 %v6187
        %6189 = vmatprep.subr.mxu0 0.0
        %v6190 = vand.u32 %v377, 4294901760
        %6191 = vmatpush1.msra.mxu0 %v6190
        %6192 = vmatprep.subr.mxu0 0.0
        %v6193 = vand.u32 %v378, 4294901760
        %6194 = vmatpush1.msra.mxu0 %v6193
        %6195 = vmatprep.subr.mxu0 0.0
        %v6196 = vand.u32 %v379, 4294901760
        %6197 = vmatpush1.msra.mxu0 %v6196
        %6198 = vmatprep.subr.mxu0 0.0
        %v6199 = vand.u32 %v380, 4294901760
        %6200 = vmatpush1.msra.mxu0 %v6199
        %6201 = vmatprep.subr.mxu0 0.0
        %v6202 = vand.u32 %v381, 4294901760
        %6203 = vmatpush1.msra.mxu0 %v6202
        %6204 = vmatprep.subr.mxu0 0.0
        %v6205 = vand.u32 %v382, 4294901760
        %6206 = vmatpush1.msra.mxu0 %v6205
        %6207 = vmatprep.subr.mxu0 0.0
        %v6208 = vand.u32 %v383, 4294901760
        %6209 = vmatpush1.msra.mxu0 %v6208
        %6210 = vmatprep.subr.mxu0 0.0
        %v6211 = vand.u32 %v384, 4294901760
        %6212 = vmatpush1.msra.mxu0 %v6211
        %6213 = vmatprep.subr.mxu0 0.0
        %v6214 = vand.u32 %v385, 4294901760
        %6215 = vmatpush1.msra.mxu0 %v6214
        %v6216 = vand.u32 %v586, 4294901760
        %v6217 = vsub.f32 %v586, %v6216
        %v6218 = vand.u32 %v6217, 4294901760
        %v6219 = vsub.f32 %v6217, %v6218
        %v6220 = vand.u32 %v6219, 4294901760
        %6221 = vmatprep.mubr.f32.mxu0 %v6220
        %v6222 = vand.u32 %v574, 4294901760
        %v6223 = vsub.f32 %v574, %v6222
        %v6224 = vand.u32 %v6223, 4294901760
        %v6225 = vsub.f32 %v6223, %v6224
        %v6226 = vand.u32 %v6225, 4294901760
        %6227 = vmatmul.mubr.f32.gmra.mrb[0].mxu0 %v6226
        %v6228 = vpop.f32.mrb[0].mxu0
        %v6229 = vadd.f32 %v6110, %v6228
        %v6230 = vpop.f32.mrb[0].mxu0
        %v6231 = vand.u32 %v587, 4294901760
        %v6232 = vsub.f32 %v587, %v6231
        %v6233 = vand.u32 %v6232, 4294901760
        %v6234 = vsub.f32 %v6232, %v6233
        %v6235 = vand.u32 %v6234, 4294901760
        %6236 = vmatprep.mubr.f32.mxu0 %v6235
        %v6237 = vand.u32 %v575, 4294901760
        %v6238 = vsub.f32 %v575, %v6237
        %v6239 = vand.u32 %v6238, 4294901760
        %v6240 = vsub.f32 %v6238, %v6239
        %v6241 = vand.u32 %v6240, 4294901760
        %6242 = vmatmul.mubr.f32.gmra.mrb[0].mxu0 %v6241
        %v6243 = vpop.f32.mrb[0].mxu0
        %v6244 = vadd.f32 %v6117, %v6243
        %v6245 = vpop.f32.mrb[0].mxu0
        %6246 = vdwg.mxu0
        %6247 = vmatprep.subr.mxu0 0.0
        %v6248 = vand.u32 %v354, 4294901760
        %v6249 = vsub.f32 %v354, %v6248
        %v6250 = vand.u32 %v6249, 4294901760
        %v6251 = vsub.f32 %v6249, %v6250
        %v6252 = vand.u32 %v6251, 4294901760
        %6253 = vmatpush1.msra.mxu0 %v6252
        %6254 = vmatprep.subr.mxu0 0.0
        %v6255 = vand.u32 %v355, 4294901760
        %v6256 = vsub.f32 %v355, %v6255
        %v6257 = vand.u32 %v6256, 4294901760
        %v6258 = vsub.f32 %v6256, %v6257
        %v6259 = vand.u32 %v6258, 4294901760
        %6260 = vmatpush1.msra.mxu0 %v6259
        %6261 = vmatprep.subr.mxu0 0.0
        %v6262 = vand.u32 %v356, 4294901760
        %v6263 = vsub.f32 %v356, %v6262
        %v6264 = vand.u32 %v6263, 4294901760
        %v6265 = vsub.f32 %v6263, %v6264
        %v6266 = vand.u32 %v6265, 4294901760
        %6267 = vmatpush1.msra.mxu0 %v6266
        %6268 = vmatprep.subr.mxu0 0.0
        %v6269 = vand.u32 %v357, 4294901760
        %v6270 = vsub.f32 %v357, %v6269
        %v6271 = vand.u32 %v6270, 4294901760
        %v6272 = vsub.f32 %v6270, %v6271
        %v6273 = vand.u32 %v6272, 4294901760
        %6274 = vmatpush1.msra.mxu0 %v6273
        %6275 = vmatprep.subr.mxu0 0.0
        %v6276 = vand.u32 %v358, 4294901760
        %v6277 = vsub.f32 %v358, %v6276
        %v6278 = vand.u32 %v6277, 4294901760
        %v6279 = vsub.f32 %v6277, %v6278
        %v6280 = vand.u32 %v6279, 4294901760
        %6281 = vmatpush1.msra.mxu0 %v6280
        %6282 = vmatprep.subr.mxu0 0.0
        %v6283 = vand.u32 %v359, 4294901760
        %v6284 = vsub.f32 %v359, %v6283
        %v6285 = vand.u32 %v6284, 4294901760
        %v6286 = vsub.f32 %v6284, %v6285
        %v6287 = vand.u32 %v6286, 4294901760
        %6288 = vmatpush1.msra.mxu0 %v6287
        %6289 = vmatprep.subr.mxu0 0.0
        %v6290 = vand.u32 %v360, 4294901760
        %v6291 = vsub.f32 %v360, %v6290
        %v6292 = vand.u32 %v6291, 4294901760
        %v6293 = vsub.f32 %v6291, %v6292
        %v6294 = vand.u32 %v6293, 4294901760
        %6295 = vmatpush1.msra.mxu0 %v6294
        %6296 = vmatprep.subr.mxu0 0.0
        %v6297 = vand.u32 %v361, 4294901760
        %v6298 = vsub.f32 %v361, %v6297
        %v6299 = vand.u32 %v6298, 4294901760
        %v6300 = vsub.f32 %v6298, %v6299
        %v6301 = vand.u32 %v6300, 4294901760
        %6302 = vmatpush1.msra.mxu0 %v6301
        %6303 = vmatprep.subr.mxu0 0.0
        %v6304 = vand.u32 %v362, 4294901760
        %v6305 = vsub.f32 %v362, %v6304
        %v6306 = vand.u32 %v6305, 4294901760
        %v6307 = vsub.f32 %v6305, %v6306
        %v6308 = vand.u32 %v6307, 4294901760
        %6309 = vmatpush1.msra.mxu0 %v6308
        %6310 = vmatprep.subr.mxu0 0.0
        %v6311 = vand.u32 %v363, 4294901760
        %v6312 = vsub.f32 %v363, %v6311
        %v6313 = vand.u32 %v6312, 4294901760
        %v6314 = vsub.f32 %v6312, %v6313
        %v6315 = vand.u32 %v6314, 4294901760
        %6316 = vmatpush1.msra.mxu0 %v6315
        %6317 = vmatprep.subr.mxu0 0.0
        %v6318 = vand.u32 %v364, 4294901760
        %v6319 = vsub.f32 %v364, %v6318
        %v6320 = vand.u32 %v6319, 4294901760
        %v6321 = vsub.f32 %v6319, %v6320
        %v6322 = vand.u32 %v6321, 4294901760
        %6323 = vmatpush1.msra.mxu0 %v6322
        %6324 = vmatprep.subr.mxu0 0.0
        %v6325 = vand.u32 %v365, 4294901760
        %v6326 = vsub.f32 %v365, %v6325
        %v6327 = vand.u32 %v6326, 4294901760
        %v6328 = vsub.f32 %v6326, %v6327
        %v6329 = vand.u32 %v6328, 4294901760
        %6330 = vmatpush1.msra.mxu0 %v6329
        %6331 = vmatprep.subr.mxu0 0.0
        %v6332 = vand.u32 %v366, 4294901760
        %v6333 = vsub.f32 %v366, %v6332
        %v6334 = vand.u32 %v6333, 4294901760
        %v6335 = vsub.f32 %v6333, %v6334
        %v6336 = vand.u32 %v6335, 4294901760
        %6337 = vmatpush1.msra.mxu0 %v6336
        %6338 = vmatprep.subr.mxu0 0.0
        %v6339 = vand.u32 %v367, 4294901760
        %v6340 = vsub.f32 %v367, %v6339
        %v6341 = vand.u32 %v6340, 4294901760
        %v6342 = vsub.f32 %v6340, %v6341
        %v6343 = vand.u32 %v6342, 4294901760
        %6344 = vmatpush1.msra.mxu0 %v6343
        %6345 = vmatprep.subr.mxu0 0.0
        %v6346 = vand.u32 %v368, 4294901760
        %v6347 = vsub.f32 %v368, %v6346
        %v6348 = vand.u32 %v6347, 4294901760
        %v6349 = vsub.f32 %v6347, %v6348
        %v6350 = vand.u32 %v6349, 4294901760
        %6351 = vmatpush1.msra.mxu0 %v6350
        %6352 = vmatprep.subr.mxu0 0.0
        %v6353 = vand.u32 %v369, 4294901760
        %v6354 = vsub.f32 %v369, %v6353
        %v6355 = vand.u32 %v6354, 4294901760
        %v6356 = vsub.f32 %v6354, %v6355
        %v6357 = vand.u32 %v6356, 4294901760
        %6358 = vmatpush1.msra.mxu0 %v6357
        %6359 = vmatprep.subr.mxu0 0.0
        %v6360 = vand.u32 %v370, 4294901760
        %v6361 = vsub.f32 %v370, %v6360
        %v6362 = vand.u32 %v6361, 4294901760
        %v6363 = vsub.f32 %v6361, %v6362
        %v6364 = vand.u32 %v6363, 4294901760
        %6365 = vmatpush1.msra.mxu0 %v6364
        %6366 = vmatprep.subr.mxu0 0.0
        %v6367 = vand.u32 %v371, 4294901760
        %v6368 = vsub.f32 %v371, %v6367
        %v6369 = vand.u32 %v6368, 4294901760
        %v6370 = vsub.f32 %v6368, %v6369
        %v6371 = vand.u32 %v6370, 4294901760
        %6372 = vmatpush1.msra.mxu0 %v6371
        %6373 = vmatprep.subr.mxu0 0.0
        %v6374 = vand.u32 %v372, 4294901760
        %v6375 = vsub.f32 %v372, %v6374
        %v6376 = vand.u32 %v6375, 4294901760
        %v6377 = vsub.f32 %v6375, %v6376
        %v6378 = vand.u32 %v6377, 4294901760
        %6379 = vmatpush1.msra.mxu0 %v6378
        %6380 = vmatprep.subr.mxu0 0.0
        %v6381 = vand.u32 %v373, 4294901760
        %v6382 = vsub.f32 %v373, %v6381
        %v6383 = vand.u32 %v6382, 4294901760
        %v6384 = vsub.f32 %v6382, %v6383
        %v6385 = vand.u32 %v6384, 4294901760
        %6386 = vmatpush1.msra.mxu0 %v6385
        %6387 = vmatprep.subr.mxu0 0.0
        %v6388 = vand.u32 %v374, 4294901760
        %v6389 = vsub.f32 %v374, %v6388
        %v6390 = vand.u32 %v6389, 4294901760
        %v6391 = vsub.f32 %v6389, %v6390
        %v6392 = vand.u32 %v6391, 4294901760
        %6393 = vmatpush1.msra.mxu0 %v6392
        %6394 = vmatprep.subr.mxu0 0.0
        %v6395 = vand.u32 %v375, 4294901760
        %v6396 = vsub.f32 %v375, %v6395
        %v6397 = vand.u32 %v6396, 4294901760
        %v6398 = vsub.f32 %v6396, %v6397
        %v6399 = vand.u32 %v6398, 4294901760
        %6400 = vmatpush1.msra.mxu0 %v6399
        %6401 = vmatprep.subr.mxu0 0.0
        %v6402 = vand.u32 %v376, 4294901760
        %v6403 = vsub.f32 %v376, %v6402
        %v6404 = vand.u32 %v6403, 4294901760
        %v6405 = vsub.f32 %v6403, %v6404
        %v6406 = vand.u32 %v6405, 4294901760
        %6407 = vmatpush1.msra.mxu0 %v6406
        %6408 = vmatprep.subr.mxu0 0.0
        %v6409 = vand.u32 %v377, 4294901760
        %v6410 = vsub.f32 %v377, %v6409
        %v6411 = vand.u32 %v6410, 4294901760
        %v6412 = vsub.f32 %v6410, %v6411
        %v6413 = vand.u32 %v6412, 4294901760
        %6414 = vmatpush1.msra.mxu0 %v6413
        %6415 = vmatprep.subr.mxu0 0.0
        %v6416 = vand.u32 %v378, 4294901760
        %v6417 = vsub.f32 %v378, %v6416
        %v6418 = vand.u32 %v6417, 4294901760
        %v6419 = vsub.f32 %v6417, %v6418
        %v6420 = vand.u32 %v6419, 4294901760
        %6421 = vmatpush1.msra.mxu0 %v6420
        %6422 = vmatprep.subr.mxu0 0.0
        %v6423 = vand.u32 %v379, 4294901760
        %v6424 = vsub.f32 %v379, %v6423
        %v6425 = vand.u32 %v6424, 4294901760
        %v6426 = vsub.f32 %v6424, %v6425
        %v6427 = vand.u32 %v6426, 4294901760
        %6428 = vmatpush1.msra.mxu0 %v6427
        %6429 = vmatprep.subr.mxu0 0.0
        %v6430 = vand.u32 %v380, 4294901760
        %v6431 = vsub.f32 %v380, %v6430
        %v6432 = vand.u32 %v6431, 4294901760
        %v6433 = vsub.f32 %v6431, %v6432
        %v6434 = vand.u32 %v6433, 4294901760
        %6435 = vmatpush1.msra.mxu0 %v6434
        %6436 = vmatprep.subr.mxu0 0.0
        %v6437 = vand.u32 %v381, 4294901760
        %v6438 = vsub.f32 %v381, %v6437
        %v6439 = vand.u32 %v6438, 4294901760
        %v6440 = vsub.f32 %v6438, %v6439
        %v6441 = vand.u32 %v6440, 4294901760
        %6442 = vmatpush1.msra.mxu0 %v6441
        %6443 = vmatprep.subr.mxu0 0.0
        %v6444 = vand.u32 %v382, 4294901760
        %v6445 = vsub.f32 %v382, %v6444
        %v6446 = vand.u32 %v6445, 4294901760
        %v6447 = vsub.f32 %v6445, %v6446
        %v6448 = vand.u32 %v6447, 4294901760
        %6449 = vmatpush1.msra.mxu0 %v6448
        %6450 = vmatprep.subr.mxu0 0.0
        %v6451 = vand.u32 %v383, 4294901760
        %v6452 = vsub.f32 %v383, %v6451
        %v6453 = vand.u32 %v6452, 4294901760
        %v6454 = vsub.f32 %v6452, %v6453
        %v6455 = vand.u32 %v6454, 4294901760
        %6456 = vmatpush1.msra.mxu0 %v6455
        %6457 = vmatprep.subr.mxu0 0.0
        %v6458 = vand.u32 %v384, 4294901760
        %v6459 = vsub.f32 %v384, %v6458
        %v6460 = vand.u32 %v6459, 4294901760
        %v6461 = vsub.f32 %v6459, %v6460
        %v6462 = vand.u32 %v6461, 4294901760
        %6463 = vmatpush1.msra.mxu0 %v6462
        %6464 = vmatprep.subr.mxu0 0.0
        %v6465 = vand.u32 %v385, 4294901760
        %v6466 = vsub.f32 %v385, %v6465
        %v6467 = vand.u32 %v6466, 4294901760
        %v6468 = vsub.f32 %v6466, %v6467
        %v6469 = vand.u32 %v6468, 4294901760
        %6470 = vmatpush1.msra.mxu0 %v6469
        %v6471 = vand.u32 %v586, 4294901760
        %6472 = vmatprep.mubr.f32.mxu0 %v6471
        %v6473 = vand.u32 %v574, 4294901760
        %6474 = vmatmul.mubr.f32.gmra.mrb[0].mxu0 %v6473
        %v6475 = vpop.f32.mrb[0].mxu0
        %v6476 = vadd.f32 %v6229, %v6475
        %v6477 = vpop.f32.mrb[0].mxu0
        %v6478 = vand.u32 %v587, 4294901760
        %6479 = vmatprep.mubr.f32.mxu0 %v6478
        %v6480 = vand.u32 %v575, 4294901760
        %6481 = vmatmul.mubr.f32.gmra.mrb[0].mxu0 %v6480
        %v6482 = vpop.f32.mrb[0].mxu0
        %v6483 = vadd.f32 %v6244, %v6482
        %v6484 = vpop.f32.mrb[0].mxu0
        %6485 = vdwg.mxu0
        %6486 = vmatprep.subr.mxu0 0.0
        %v6487 = vand.u32 %v354, 4294901760
        %v6488 = vsub.f32 %v354, %v6487
        %6489 = vmatpush1.msra.mxu0 %v6488
        %6490 = vmatprep.subr.mxu0 0.0
        %v6491 = vand.u32 %v355, 4294901760
        %v6492 = vsub.f32 %v355, %v6491
        %6493 = vmatpush1.msra.mxu0 %v6492
        %6494 = vmatprep.subr.mxu0 0.0
        %v6495 = vand.u32 %v356, 4294901760
        %v6496 = vsub.f32 %v356, %v6495
        %6497 = vmatpush1.msra.mxu0 %v6496
        %6498 = vmatprep.subr.mxu0 0.0
        %v6499 = vand.u32 %v357, 4294901760
        %v6500 = vsub.f32 %v357, %v6499
        %6501 = vmatpush1.msra.mxu0 %v6500
        %6502 = vmatprep.subr.mxu0 0.0
        %v6503 = vand.u32 %v358, 4294901760
        %v6504 = vsub.f32 %v358, %v6503
        %6505 = vmatpush1.msra.mxu0 %v6504
        %6506 = vmatprep.subr.mxu0 0.0
        %v6507 = vand.u32 %v359, 4294901760
        %v6508 = vsub.f32 %v359, %v6507
        %6509 = vmatpush1.msra.mxu0 %v6508
        %6510 = vmatprep.subr.mxu0 0.0
        %v6511 = vand.u32 %v360, 4294901760
        %v6512 = vsub.f32 %v360, %v6511
        %6513 = vmatpush1.msra.mxu0 %v6512
        %6514 = vmatprep.subr.mxu0 0.0
        %v6515 = vand.u32 %v361, 4294901760
        %v6516 = vsub.f32 %v361, %v6515
        %6517 = vmatpush1.msra.mxu0 %v6516
        %6518 = vmatprep.subr.mxu0 0.0
        %v6519 = vand.u32 %v362, 4294901760
        %v6520 = vsub.f32 %v362, %v6519
        %6521 = vmatpush1.msra.mxu0 %v6520
        %6522 = vmatprep.subr.mxu0 0.0
        %v6523 = vand.u32 %v363, 4294901760
        %v6524 = vsub.f32 %v363, %v6523
        %6525 = vmatpush1.msra.mxu0 %v6524
        %6526 = vmatprep.subr.mxu0 0.0
        %v6527 = vand.u32 %v364, 4294901760
        %v6528 = vsub.f32 %v364, %v6527
        %6529 = vmatpush1.msra.mxu0 %v6528
        %6530 = vmatprep.subr.mxu0 0.0
        %v6531 = vand.u32 %v365, 4294901760
        %v6532 = vsub.f32 %v365, %v6531
        %6533 = vmatpush1.msra.mxu0 %v6532
        %6534 = vmatprep.subr.mxu0 0.0
        %v6535 = vand.u32 %v366, 4294901760
        %v6536 = vsub.f32 %v366, %v6535
        %6537 = vmatpush1.msra.mxu0 %v6536
        %6538 = vmatprep.subr.mxu0 0.0
        %v6539 = vand.u32 %v367, 4294901760
        %v6540 = vsub.f32 %v367, %v6539
        %6541 = vmatpush1.msra.mxu0 %v6540
        %6542 = vmatprep.subr.mxu0 0.0
        %v6543 = vand.u32 %v368, 4294901760
        %v6544 = vsub.f32 %v368, %v6543
        %6545 = vmatpush1.msra.mxu0 %v6544
        %6546 = vmatprep.subr.mxu0 0.0
        %v6547 = vand.u32 %v369, 4294901760
        %v6548 = vsub.f32 %v369, %v6547
        %6549 = vmatpush1.msra.mxu0 %v6548
        %6550 = vmatprep.subr.mxu0 0.0
        %v6551 = vand.u32 %v370, 4294901760
        %v6552 = vsub.f32 %v370, %v6551
        %6553 = vmatpush1.msra.mxu0 %v6552
        %6554 = vmatprep.subr.mxu0 0.0
        %v6555 = vand.u32 %v371, 4294901760
        %v6556 = vsub.f32 %v371, %v6555
        %6557 = vmatpush1.msra.mxu0 %v6556
        %6558 = vmatprep.subr.mxu0 0.0
        %v6559 = vand.u32 %v372, 4294901760
        %v6560 = vsub.f32 %v372, %v6559
        %6561 = vmatpush1.msra.mxu0 %v6560
        %6562 = vmatprep.subr.mxu0 0.0
        %v6563 = vand.u32 %v373, 4294901760
        %v6564 = vsub.f32 %v373, %v6563
        %6565 = vmatpush1.msra.mxu0 %v6564
        %6566 = vmatprep.subr.mxu0 0.0
        %v6567 = vand.u32 %v374, 4294901760
        %v6568 = vsub.f32 %v374, %v6567
        %6569 = vmatpush1.msra.mxu0 %v6568
        %6570 = vmatprep.subr.mxu0 0.0
        %v6571 = vand.u32 %v375, 4294901760
        %v6572 = vsub.f32 %v375, %v6571
        %6573 = vmatpush1.msra.mxu0 %v6572
        %6574 = vmatprep.subr.mxu0 0.0
        %v6575 = vand.u32 %v376, 4294901760
        %v6576 = vsub.f32 %v376, %v6575
        %6577 = vmatpush1.msra.mxu0 %v6576
        %6578 = vmatprep.subr.mxu0 0.0
        %v6579 = vand.u32 %v377, 4294901760
        %v6580 = vsub.f32 %v377, %v6579
        %6581 = vmatpush1.msra.mxu0 %v6580
        %6582 = vmatprep.subr.mxu0 0.0
        %v6583 = vand.u32 %v378, 4294901760
        %v6584 = vsub.f32 %v378, %v6583
        %6585 = vmatpush1.msra.mxu0 %v6584
        %6586 = vmatprep.subr.mxu0 0.0
        %v6587 = vand.u32 %v379, 4294901760
        %v6588 = vsub.f32 %v379, %v6587
        %6589 = vmatpush1.msra.mxu0 %v6588
        %6590 = vmatprep.subr.mxu0 0.0
        %v6591 = vand.u32 %v380, 4294901760
        %v6592 = vsub.f32 %v380, %v6591
        %6593 = vmatpush1.msra.mxu0 %v6592
        %6594 = vmatprep.subr.mxu0 0.0
        %v6595 = vand.u32 %v381, 4294901760
        %v6596 = vsub.f32 %v381, %v6595
        %6597 = vmatpush1.msra.mxu0 %v6596
        %6598 = vmatprep.subr.mxu0 0.0
        %v6599 = vand.u32 %v382, 4294901760
        %v6600 = vsub.f32 %v382, %v6599
        %6601 = vmatpush1.msra.mxu0 %v6600
        %6602 = vmatprep.subr.mxu0 0.0
        %v6603 = vand.u32 %v383, 4294901760
        %v6604 = vsub.f32 %v383, %v6603
        %6605 = vmatpush1.msra.mxu0 %v6604
        %6606 = vmatprep.subr.mxu0 0.0
        %v6607 = vand.u32 %v384, 4294901760
        %v6608 = vsub.f32 %v384, %v6607
        %6609 = vmatpush1.msra.mxu0 %v6608
        %6610 = vmatprep.subr.mxu0 0.0
        %v6611 = vand.u32 %v385, 4294901760
        %v6612 = vsub.f32 %v385, %v6611
        %6613 = vmatpush1.msra.mxu0 %v6612
        %v6614 = vand.u32 %v586, 4294901760
        %v6615 = vsub.f32 %v586, %v6614
        %6616 = vmatprep.mubr.f32.mxu0 %v6615
        %v6617 = vand.u32 %v574, 4294901760
        %v6618 = vsub.f32 %v574, %v6617
        %6619 = vmatmul.mubr.f32.gmra.mrb[0].mxu0 %v6618
        %v6620 = vpop.f32.mrb[0].mxu0
        %v6621 = vadd.f32 %v6476, %v6620
        %v6622 = vpop.f32.mrb[0].mxu0
        %v6623 = vand.u32 %v587, 4294901760
        %v6624 = vsub.f32 %v587, %v6623
        %6625 = vmatprep.mubr.f32.mxu0 %v6624
        %v6626 = vand.u32 %v575, 4294901760
        %v6627 = vsub.f32 %v575, %v6626
        %6628 = vmatmul.mubr.f32.gmra.mrb[0].mxu0 %v6627
        %v6629 = vpop.f32.mrb[0].mxu0
        %v6630 = vadd.f32 %v6483, %v6629
        %v6631 = vpop.f32.mrb[0].mxu0
        %6632 = vdwg.mxu0
        %6633 = vmatprep.subr.mxu0 0.0
        %v6634 = vand.u32 %v354, 4294901760
        %6635 = vmatpush1.msra.mxu0 %v6634
        %6636 = vmatprep.subr.mxu0 0.0
        %v6637 = vand.u32 %v355, 4294901760
        %6638 = vmatpush1.msra.mxu0 %v6637
        %6639 = vmatprep.subr.mxu0 0.0
        %v6640 = vand.u32 %v356, 4294901760
        %6641 = vmatpush1.msra.mxu0 %v6640
        %6642 = vmatprep.subr.mxu0 0.0
        %v6643 = vand.u32 %v357, 4294901760
        %6644 = vmatpush1.msra.mxu0 %v6643
        %6645 = vmatprep.subr.mxu0 0.0
        %v6646 = vand.u32 %v358, 4294901760
        %6647 = vmatpush1.msra.mxu0 %v6646
        %6648 = vmatprep.subr.mxu0 0.0
        %v6649 = vand.u32 %v359, 4294901760
        %6650 = vmatpush1.msra.mxu0 %v6649
        %6651 = vmatprep.subr.mxu0 0.0
        %v6652 = vand.u32 %v360, 4294901760
        %6653 = vmatpush1.msra.mxu0 %v6652
        %6654 = vmatprep.subr.mxu0 0.0
        %v6655 = vand.u32 %v361, 4294901760
        %6656 = vmatpush1.msra.mxu0 %v6655
        %6657 = vmatprep.subr.mxu0 0.0
        %v6658 = vand.u32 %v362, 4294901760
        %6659 = vmatpush1.msra.mxu0 %v6658
        %6660 = vmatprep.subr.mxu0 0.0
        %v6661 = vand.u32 %v363, 4294901760
        %6662 = vmatpush1.msra.mxu0 %v6661
        %6663 = vmatprep.subr.mxu0 0.0
        %v6664 = vand.u32 %v364, 4294901760
        %6665 = vmatpush1.msra.mxu0 %v6664
        %6666 = vmatprep.subr.mxu0 0.0
        %v6667 = vand.u32 %v365, 4294901760
        %6668 = vmatpush1.msra.mxu0 %v6667
        %6669 = vmatprep.subr.mxu0 0.0
        %v6670 = vand.u32 %v366, 4294901760
        %6671 = vmatpush1.msra.mxu0 %v6670
        %6672 = vmatprep.subr.mxu0 0.0
        %v6673 = vand.u32 %v367, 4294901760
        %6674 = vmatpush1.msra.mxu0 %v6673
        %6675 = vmatprep.subr.mxu0 0.0
        %v6676 = vand.u32 %v368, 4294901760
        %6677 = vmatpush1.msra.mxu0 %v6676
        %6678 = vmatprep.subr.mxu0 0.0
        %v6679 = vand.u32 %v369, 4294901760
        %6680 = vmatpush1.msra.mxu0 %v6679
        %6681 = vmatprep.subr.mxu0 0.0
        %v6682 = vand.u32 %v370, 4294901760
        %6683 = vmatpush1.msra.mxu0 %v6682
        %6684 = vmatprep.subr.mxu0 0.0
        %v6685 = vand.u32 %v371, 4294901760
        %6686 = vmatpush1.msra.mxu0 %v6685
        %6687 = vmatprep.subr.mxu0 0.0
        %v6688 = vand.u32 %v372, 4294901760
        %6689 = vmatpush1.msra.mxu0 %v6688
        %6690 = vmatprep.subr.mxu0 0.0
        %v6691 = vand.u32 %v373, 4294901760
        %6692 = vmatpush1.msra.mxu0 %v6691
        %6693 = vmatprep.subr.mxu0 0.0
        %v6694 = vand.u32 %v374, 4294901760
        %6695 = vmatpush1.msra.mxu0 %v6694
        %6696 = vmatprep.subr.mxu0 0.0
        %v6697 = vand.u32 %v375, 4294901760
        %6698 = vmatpush1.msra.mxu0 %v6697
        %6699 = vmatprep.subr.mxu0 0.0
        %v6700 = vand.u32 %v376, 4294901760
        %6701 = vmatpush1.msra.mxu0 %v6700
        %6702 = vmatprep.subr.mxu0 0.0
        %v6703 = vand.u32 %v377, 4294901760
        %6704 = vmatpush1.msra.mxu0 %v6703
        %6705 = vmatprep.subr.mxu0 0.0
        %v6706 = vand.u32 %v378, 4294901760
        %6707 = vmatpush1.msra.mxu0 %v6706
        %6708 = vmatprep.subr.mxu0 0.0
        %v6709 = vand.u32 %v379, 4294901760
        %6710 = vmatpush1.msra.mxu0 %v6709
        %6711 = vmatprep.subr.mxu0 0.0
        %v6712 = vand.u32 %v380, 4294901760
        %6713 = vmatpush1.msra.mxu0 %v6712
        %6714 = vmatprep.subr.mxu0 0.0
        %v6715 = vand.u32 %v381, 4294901760
        %6716 = vmatpush1.msra.mxu0 %v6715
        %6717 = vmatprep.subr.mxu0 0.0
        %v6718 = vand.u32 %v382, 4294901760
        %6719 = vmatpush1.msra.mxu0 %v6718
        %6720 = vmatprep.subr.mxu0 0.0
        %v6721 = vand.u32 %v383, 4294901760
        %6722 = vmatpush1.msra.mxu0 %v6721
        %6723 = vmatprep.subr.mxu0 0.0
        %v6724 = vand.u32 %v384, 4294901760
        %6725 = vmatpush1.msra.mxu0 %v6724
        %6726 = vmatprep.subr.mxu0 0.0
        %v6727 = vand.u32 %v385, 4294901760
        %6728 = vmatpush1.msra.mxu0 %v6727
        %v6729 = vand.u32 %v586, 4294901760
        %v6730 = vsub.f32 %v586, %v6729
        %v6731 = vand.u32 %v6730, 4294901760
        %6732 = vmatprep.mubr.f32.mxu0 %v6731
        %v6733 = vand.u32 %v574, 4294901760
        %v6734 = vsub.f32 %v574, %v6733
        %v6735 = vand.u32 %v6734, 4294901760
        %6736 = vmatmul.mubr.f32.gmra.mrb[0].mxu0 %v6735
        %v6737 = vpop.f32.mrb[0].mxu0
        %v6738 = vadd.f32 %v6621, %v6737
        %v6739 = vpop.f32.mrb[0].mxu0
        %v6740 = vand.u32 %v587, 4294901760
        %v6741 = vsub.f32 %v587, %v6740
        %v6742 = vand.u32 %v6741, 4294901760
        %6743 = vmatprep.mubr.f32.mxu0 %v6742
        %v6744 = vand.u32 %v575, 4294901760
        %v6745 = vsub.f32 %v575, %v6744
        %v6746 = vand.u32 %v6745, 4294901760
        %6747 = vmatmul.mubr.f32.gmra.mrb[0].mxu0 %v6746
        %v6748 = vpop.f32.mrb[0].mxu0
        %v6749 = vadd.f32 %v6630, %v6748
        %v6750 = vpop.f32.mrb[0].mxu0
        %6751 = vdwg.mxu0
        %6752 = vmatprep.subr.mxu0 0.0
        %v6753 = vand.u32 %v354, 4294901760
        %v6754 = vsub.f32 %v354, %v6753
        %v6755 = vand.u32 %v6754, 4294901760
        %6756 = vmatpush1.msra.mxu0 %v6755
        %6757 = vmatprep.subr.mxu0 0.0
        %v6758 = vand.u32 %v355, 4294901760
        %v6759 = vsub.f32 %v355, %v6758
        %v6760 = vand.u32 %v6759, 4294901760
        %6761 = vmatpush1.msra.mxu0 %v6760
        %6762 = vmatprep.subr.mxu0 0.0
        %v6763 = vand.u32 %v356, 4294901760
        %v6764 = vsub.f32 %v356, %v6763
        %v6765 = vand.u32 %v6764, 4294901760
        %6766 = vmatpush1.msra.mxu0 %v6765
        %6767 = vmatprep.subr.mxu0 0.0
        %v6768 = vand.u32 %v357, 4294901760
        %v6769 = vsub.f32 %v357, %v6768
        %v6770 = vand.u32 %v6769, 4294901760
        %6771 = vmatpush1.msra.mxu0 %v6770
        %6772 = vmatprep.subr.mxu0 0.0
        %v6773 = vand.u32 %v358, 4294901760
        %v6774 = vsub.f32 %v358, %v6773
        %v6775 = vand.u32 %v6774, 4294901760
        %6776 = vmatpush1.msra.mxu0 %v6775
        %6777 = vmatprep.subr.mxu0 0.0
        %v6778 = vand.u32 %v359, 4294901760
        %v6779 = vsub.f32 %v359, %v6778
        %v6780 = vand.u32 %v6779, 4294901760
        %6781 = vmatpush1.msra.mxu0 %v6780
        %6782 = vmatprep.subr.mxu0 0.0
        %v6783 = vand.u32 %v360, 4294901760
        %v6784 = vsub.f32 %v360, %v6783
        %v6785 = vand.u32 %v6784, 4294901760
        %6786 = vmatpush1.msra.mxu0 %v6785
        %6787 = vmatprep.subr.mxu0 0.0
        %v6788 = vand.u32 %v361, 4294901760
        %v6789 = vsub.f32 %v361, %v6788
        %v6790 = vand.u32 %v6789, 4294901760
        %6791 = vmatpush1.msra.mxu0 %v6790
        %6792 = vmatprep.subr.mxu0 0.0
        %v6793 = vand.u32 %v362, 4294901760
        %v6794 = vsub.f32 %v362, %v6793
        %v6795 = vand.u32 %v6794, 4294901760
        %6796 = vmatpush1.msra.mxu0 %v6795
        %6797 = vmatprep.subr.mxu0 0.0
        %v6798 = vand.u32 %v363, 4294901760
        %v6799 = vsub.f32 %v363, %v6798
        %v6800 = vand.u32 %v6799, 4294901760
        %6801 = vmatpush1.msra.mxu0 %v6800
        %6802 = vmatprep.subr.mxu0 0.0
        %v6803 = vand.u32 %v364, 4294901760
        %v6804 = vsub.f32 %v364, %v6803
        %v6805 = vand.u32 %v6804, 4294901760
        %6806 = vmatpush1.msra.mxu0 %v6805
        %6807 = vmatprep.subr.mxu0 0.0
        %v6808 = vand.u32 %v365, 4294901760
        %v6809 = vsub.f32 %v365, %v6808
        %v6810 = vand.u32 %v6809, 4294901760
        %6811 = vmatpush1.msra.mxu0 %v6810
        %6812 = vmatprep.subr.mxu0 0.0
        %v6813 = vand.u32 %v366, 4294901760
        %v6814 = vsub.f32 %v366, %v6813
        %v6815 = vand.u32 %v6814, 4294901760
        %6816 = vmatpush1.msra.mxu0 %v6815
        %6817 = vmatprep.subr.mxu0 0.0
        %v6818 = vand.u32 %v367, 4294901760
        %v6819 = vsub.f32 %v367, %v6818
        %v6820 = vand.u32 %v6819, 4294901760
        %6821 = vmatpush1.msra.mxu0 %v6820
        %6822 = vmatprep.subr.mxu0 0.0
        %v6823 = vand.u32 %v368, 4294901760
        %v6824 = vsub.f32 %v368, %v6823
        %v6825 = vand.u32 %v6824, 4294901760
        %6826 = vmatpush1.msra.mxu0 %v6825
        %6827 = vmatprep.subr.mxu0 0.0
        %v6828 = vand.u32 %v369, 4294901760
        %v6829 = vsub.f32 %v369, %v6828
        %v6830 = vand.u32 %v6829, 4294901760
        %6831 = vmatpush1.msra.mxu0 %v6830
        %6832 = vmatprep.subr.mxu0 0.0
        %v6833 = vand.u32 %v370, 4294901760
        %v6834 = vsub.f32 %v370, %v6833
        %v6835 = vand.u32 %v6834, 4294901760
        %6836 = vmatpush1.msra.mxu0 %v6835
        %6837 = vmatprep.subr.mxu0 0.0
        %v6838 = vand.u32 %v371, 4294901760
        %v6839 = vsub.f32 %v371, %v6838
        %v6840 = vand.u32 %v6839, 4294901760
        %6841 = vmatpush1.msra.mxu0 %v6840
        %6842 = vmatprep.subr.mxu0 0.0
        %v6843 = vand.u32 %v372, 4294901760
        %v6844 = vsub.f32 %v372, %v6843
        %v6845 = vand.u32 %v6844, 4294901760
        %6846 = vmatpush1.msra.mxu0 %v6845
        %6847 = vmatprep.subr.mxu0 0.0
        %v6848 = vand.u32 %v373, 4294901760
        %v6849 = vsub.f32 %v373, %v6848
        %v6850 = vand.u32 %v6849, 4294901760
        %6851 = vmatpush1.msra.mxu0 %v6850
        %6852 = vmatprep.subr.mxu0 0.0
        %v6853 = vand.u32 %v374, 4294901760
        %v6854 = vsub.f32 %v374, %v6853
        %v6855 = vand.u32 %v6854, 4294901760
        %6856 = vmatpush1.msra.mxu0 %v6855
        %6857 = vmatprep.subr.mxu0 0.0
        %v6858 = vand.u32 %v375, 4294901760
        %v6859 = vsub.f32 %v375, %v6858
        %v6860 = vand.u32 %v6859, 4294901760
        %6861 = vmatpush1.msra.mxu0 %v6860
        %6862 = vmatprep.subr.mxu0 0.0
        %v6863 = vand.u32 %v376, 4294901760
        %v6864 = vsub.f32 %v376, %v6863
        %v6865 = vand.u32 %v6864, 4294901760
        %6866 = vmatpush1.msra.mxu0 %v6865
        %6867 = vmatprep.subr.mxu0 0.0
        %v6868 = vand.u32 %v377, 4294901760
        %v6869 = vsub.f32 %v377, %v6868
        %v6870 = vand.u32 %v6869, 4294901760
        %6871 = vmatpush1.msra.mxu0 %v6870
        %6872 = vmatprep.subr.mxu0 0.0
        %v6873 = vand.u32 %v378, 4294901760
        %v6874 = vsub.f32 %v378, %v6873
        %v6875 = vand.u32 %v6874, 4294901760
        %6876 = vmatpush1.msra.mxu0 %v6875
        %6877 = vmatprep.subr.mxu0 0.0
        %v6878 = vand.u32 %v379, 4294901760
        %v6879 = vsub.f32 %v379, %v6878
        %v6880 = vand.u32 %v6879, 4294901760
        %6881 = vmatpush1.msra.mxu0 %v6880
        %6882 = vmatprep.subr.mxu0 0.0
        %v6883 = vand.u32 %v380, 4294901760
        %v6884 = vsub.f32 %v380, %v6883
        %v6885 = vand.u32 %v6884, 4294901760
        %6886 = vmatpush1.msra.mxu0 %v6885
        %6887 = vmatprep.subr.mxu0 0.0
        %v6888 = vand.u32 %v381, 4294901760
        %v6889 = vsub.f32 %v381, %v6888
        %v6890 = vand.u32 %v6889, 4294901760
        %6891 = vmatpush1.msra.mxu0 %v6890
        %6892 = vmatprep.subr.mxu0 0.0
        %v6893 = vand.u32 %v382, 4294901760
        %v6894 = vsub.f32 %v382, %v6893
        %v6895 = vand.u32 %v6894, 4294901760
        %6896 = vmatpush1.msra.mxu0 %v6895
        %6897 = vmatprep.subr.mxu0 0.0
        %v6898 = vand.u32 %v383, 4294901760
        %v6899 = vsub.f32 %v383, %v6898
        %v6900 = vand.u32 %v6899, 4294901760
        %6901 = vmatpush1.msra.mxu0 %v6900
        %6902 = vmatprep.subr.mxu0 0.0
        %v6903 = vand.u32 %v384, 4294901760
        %v6904 = vsub.f32 %v384, %v6903
        %v6905 = vand.u32 %v6904, 4294901760
        %6906 = vmatpush1.msra.mxu0 %v6905
        %6907 = vmatprep.subr.mxu0 0.0
        %v6908 = vand.u32 %v385, 4294901760
        %v6909 = vsub.f32 %v385, %v6908
        %v6910 = vand.u32 %v6909, 4294901760
        %6911 = vmatpush1.msra.mxu0 %v6910
        %v6912 = vand.u32 %v586, 4294901760
        %6913 = vmatprep.mubr.f32.mxu0 %v6912
        %v6914 = vand.u32 %v574, 4294901760
        %6915 = vmatmul.mubr.f32.gmra.mrb[0].mxu0 %v6914
        %v6916 = vpop.f32.mrb[0].mxu0
        %v6917 = vadd.f32 %v6738, %v6916
        %v6918 = vpop.f32.mrb[0].mxu0
        %v6919 = vand.u32 %v587, 4294901760
        %6920 = vmatprep.mubr.f32.mxu0 %v6919
        %v6921 = vand.u32 %v575, 4294901760
        %6922 = vmatmul.mubr.f32.gmra.mrb[0].mxu0 %v6921
        %v6923 = vpop.f32.mrb[0].mxu0
        %v6924 = vadd.f32 %v6749, %v6923
        %v6925 = vpop.f32.mrb[0].mxu0
        %6926 = vdwg.mxu0
        %6927 = vmatprep.subr.mxu0 0.0
        %v6928 = vand.u32 %v354, 4294901760
        %6929 = vmatpush1.msra.mxu0 %v6928
        %6930 = vmatprep.subr.mxu0 0.0
        %v6931 = vand.u32 %v355, 4294901760
        %6932 = vmatpush1.msra.mxu0 %v6931
        %6933 = vmatprep.subr.mxu0 0.0
        %v6934 = vand.u32 %v356, 4294901760
        %6935 = vmatpush1.msra.mxu0 %v6934
        %6936 = vmatprep.subr.mxu0 0.0
        %v6937 = vand.u32 %v357, 4294901760
        %6938 = vmatpush1.msra.mxu0 %v6937
        %6939 = vmatprep.subr.mxu0 0.0
        %v6940 = vand.u32 %v358, 4294901760
        %6941 = vmatpush1.msra.mxu0 %v6940
        %6942 = vmatprep.subr.mxu0 0.0
        %v6943 = vand.u32 %v359, 4294901760
        %6944 = vmatpush1.msra.mxu0 %v6943
        %6945 = vmatprep.subr.mxu0 0.0
        %v6946 = vand.u32 %v360, 4294901760
        %6947 = vmatpush1.msra.mxu0 %v6946
        %6948 = vmatprep.subr.mxu0 0.0
        %v6949 = vand.u32 %v361, 4294901760
        %6950 = vmatpush1.msra.mxu0 %v6949
        %6951 = vmatprep.subr.mxu0 0.0
        %v6952 = vand.u32 %v362, 4294901760
        %6953 = vmatpush1.msra.mxu0 %v6952
        %6954 = vmatprep.subr.mxu0 0.0
        %v6955 = vand.u32 %v363, 4294901760
        %6956 = vmatpush1.msra.mxu0 %v6955
        %6957 = vmatprep.subr.mxu0 0.0
        %v6958 = vand.u32 %v364, 4294901760
        %6959 = vmatpush1.msra.mxu0 %v6958
        %6960 = vmatprep.subr.mxu0 0.0
        %v6961 = vand.u32 %v365, 4294901760
        %6962 = vmatpush1.msra.mxu0 %v6961
        %6963 = vmatprep.subr.mxu0 0.0
        %v6964 = vand.u32 %v366, 4294901760
        %6965 = vmatpush1.msra.mxu0 %v6964
        %6966 = vmatprep.subr.mxu0 0.0
        %v6967 = vand.u32 %v367, 4294901760
        %6968 = vmatpush1.msra.mxu0 %v6967
        %6969 = vmatprep.subr.mxu0 0.0
        %v6970 = vand.u32 %v368, 4294901760
        %6971 = vmatpush1.msra.mxu0 %v6970
        %6972 = vmatprep.subr.mxu0 0.0
        %v6973 = vand.u32 %v369, 4294901760
        %6974 = vmatpush1.msra.mxu0 %v6973
        %6975 = vmatprep.subr.mxu0 0.0
        %v6976 = vand.u32 %v370, 4294901760
        %6977 = vmatpush1.msra.mxu0 %v6976
        %6978 = vmatprep.subr.mxu0 0.0
        %v6979 = vand.u32 %v371, 4294901760
        %6980 = vmatpush1.msra.mxu0 %v6979
        %6981 = vmatprep.subr.mxu0 0.0
        %v6982 = vand.u32 %v372, 4294901760
        %6983 = vmatpush1.msra.mxu0 %v6982
        %6984 = vmatprep.subr.mxu0 0.0
        %v6985 = vand.u32 %v373, 4294901760
        %6986 = vmatpush1.msra.mxu0 %v6985
        %6987 = vmatprep.subr.mxu0 0.0
        %v6988 = vand.u32 %v374, 4294901760
        %6989 = vmatpush1.msra.mxu0 %v6988
        %6990 = vmatprep.subr.mxu0 0.0
        %v6991 = vand.u32 %v375, 4294901760
        %6992 = vmatpush1.msra.mxu0 %v6991
        %6993 = vmatprep.subr.mxu0 0.0
        %v6994 = vand.u32 %v376, 4294901760
        %6995 = vmatpush1.msra.mxu0 %v6994
        %6996 = vmatprep.subr.mxu0 0.0
        %v6997 = vand.u32 %v377, 4294901760
        %6998 = vmatpush1.msra.mxu0 %v6997
        %6999 = vmatprep.subr.mxu0 0.0
        %v7000 = vand.u32 %v378, 4294901760
        %7001 = vmatpush1.msra.mxu0 %v7000
        %7002 = vmatprep.subr.mxu0 0.0
        %v7003 = vand.u32 %v379, 4294901760
        %7004 = vmatpush1.msra.mxu0 %v7003
        %7005 = vmatprep.subr.mxu0 0.0
        %v7006 = vand.u32 %v380, 4294901760
        %7007 = vmatpush1.msra.mxu0 %v7006
        %7008 = vmatprep.subr.mxu0 0.0
        %v7009 = vand.u32 %v381, 4294901760
        %7010 = vmatpush1.msra.mxu0 %v7009
        %7011 = vmatprep.subr.mxu0 0.0
        %v7012 = vand.u32 %v382, 4294901760
        %7013 = vmatpush1.msra.mxu0 %v7012
        %7014 = vmatprep.subr.mxu0 0.0
        %v7015 = vand.u32 %v383, 4294901760
        %7016 = vmatpush1.msra.mxu0 %v7015
        %7017 = vmatprep.subr.mxu0 0.0
        %v7018 = vand.u32 %v384, 4294901760
        %7019 = vmatpush1.msra.mxu0 %v7018
        %7020 = vmatprep.subr.mxu0 0.0
        %v7021 = vand.u32 %v385, 4294901760
        %7022 = vmatpush1.msra.mxu0 %v7021
        %v7023 = vand.u32 %v586, 4294901760
        %7024 = vmatprep.mubr.f32.mxu0 %v7023
        %v7025 = vand.u32 %v574, 4294901760
        %7026 = vmatmul.mubr.f32.gmra.mrb[0].mxu0 %v7025
        %v7027 = vpop.f32.mrb[0].mxu0
        %v7028 = vadd.f32 %v6917, %v7027
        %v7029 = vpop.f32.mrb[0].mxu0
        %v7030 = vand.u32 %v587, 4294901760
        %7031 = vmatprep.mubr.f32.mxu0 %v7030
        %v7032 = vand.u32 %v575, 4294901760
        %7033 = vmatmul.mubr.f32.gmra.mrb[0].mxu0 %v7032
        %v7034 = vpop.f32.mrb[0].mxu0
        %v7035 = vadd.f32 %v6924, %v7034
        %v7036 = vpop.f32.mrb[0].mxu0
        %7037 = vdwg.mxu0
        %7038 = vmatprep.subr.mxu0 0.0
        %v7039 = vand.u32 %v386, 4294901760
        %7040 = vmatpush1.msra.mxu0 %v7039
        %7041 = vmatprep.subr.mxu0 0.0
        %v7042 = vand.u32 %v387, 4294901760
        %7043 = vmatpush1.msra.mxu0 %v7042
        %7044 = vmatprep.subr.mxu0 0.0
        %v7045 = vand.u32 %v388, 4294901760
        %7046 = vmatpush1.msra.mxu0 %v7045
        %7047 = vmatprep.subr.mxu0 0.0
        %v7048 = vand.u32 %v389, 4294901760
        %7049 = vmatpush1.msra.mxu0 %v7048
        %7050 = vmatprep.subr.mxu0 0.0
        %v7051 = vand.u32 %v390, 4294901760
        %7052 = vmatpush1.msra.mxu0 %v7051
        %7053 = vmatprep.subr.mxu0 0.0
        %v7054 = vand.u32 %v391, 4294901760
        %7055 = vmatpush1.msra.mxu0 %v7054
        %7056 = vmatprep.subr.mxu0 0.0
        %v7057 = vand.u32 %v392, 4294901760
        %7058 = vmatpush1.msra.mxu0 %v7057
        %7059 = vmatprep.subr.mxu0 0.0
        %v7060 = vand.u32 %v393, 4294901760
        %7061 = vmatpush1.msra.mxu0 %v7060
        %7062 = vmatprep.subr.mxu0 0.0
        %v7063 = vand.u32 %v394, 4294901760
        %7064 = vmatpush1.msra.mxu0 %v7063
        %7065 = vmatprep.subr.mxu0 0.0
        %v7066 = vand.u32 %v395, 4294901760
        %7067 = vmatpush1.msra.mxu0 %v7066
        %7068 = vmatprep.subr.mxu0 0.0
        %v7069 = vand.u32 %v396, 4294901760
        %7070 = vmatpush1.msra.mxu0 %v7069
        %7071 = vmatprep.subr.mxu0 0.0
        %v7072 = vand.u32 %v397, 4294901760
        %7073 = vmatpush1.msra.mxu0 %v7072
        %7074 = vmatprep.subr.mxu0 0.0
        %v7075 = vand.u32 %v398, 4294901760
        %7076 = vmatpush1.msra.mxu0 %v7075
        %7077 = vmatprep.subr.mxu0 0.0
        %v7078 = vand.u32 %v399, 4294901760
        %7079 = vmatpush1.msra.mxu0 %v7078
        %7080 = vmatprep.subr.mxu0 0.0
        %v7081 = vand.u32 %v400, 4294901760
        %7082 = vmatpush1.msra.mxu0 %v7081
        %7083 = vmatprep.subr.mxu0 0.0
        %v7084 = vand.u32 %v401, 4294901760
        %7085 = vmatpush1.msra.mxu0 %v7084
        %7086 = vmatprep.subr.mxu0 0.0
        %v7087 = vand.u32 %v402, 4294901760
        %7088 = vmatpush1.msra.mxu0 %v7087
        %7089 = vmatprep.subr.mxu0 0.0
        %v7090 = vand.u32 %v403, 4294901760
        %7091 = vmatpush1.msra.mxu0 %v7090
        %7092 = vmatprep.subr.mxu0 0.0
        %v7093 = vand.u32 %v404, 4294901760
        %7094 = vmatpush1.msra.mxu0 %v7093
        %7095 = vmatprep.subr.mxu0 0.0
        %v7096 = vand.u32 %v405, 4294901760
        %7097 = vmatpush1.msra.mxu0 %v7096
        %7098 = vmatprep.subr.mxu0 0.0
        %v7099 = vand.u32 %v406, 4294901760
        %7100 = vmatpush1.msra.mxu0 %v7099
        %7101 = vmatprep.subr.mxu0 0.0
        %v7102 = vand.u32 %v407, 4294901760
        %7103 = vmatpush1.msra.mxu0 %v7102
        %7104 = vmatprep.subr.mxu0 0.0
        %v7105 = vand.u32 %v408, 4294901760
        %7106 = vmatpush1.msra.mxu0 %v7105
        %7107 = vmatprep.subr.mxu0 0.0
        %v7108 = vand.u32 %v409, 4294901760
        %7109 = vmatpush1.msra.mxu0 %v7108
        %7110 = vmatprep.subr.mxu0 0.0
        %v7111 = vand.u32 %v410, 4294901760
        %7112 = vmatpush1.msra.mxu0 %v7111
        %7113 = vmatprep.subr.mxu0 0.0
        %v7114 = vand.u32 %v411, 4294901760
        %7115 = vmatpush1.msra.mxu0 %v7114
        %7116 = vmatprep.subr.mxu0 0.0
        %v7117 = vand.u32 %v412, 4294901760
        %7118 = vmatpush1.msra.mxu0 %v7117
        %7119 = vmatprep.subr.mxu0 0.0
        %v7120 = vand.u32 %v413, 4294901760
        %7121 = vmatpush1.msra.mxu0 %v7120
        %7122 = vmatprep.subr.mxu0 0.0
        %v7123 = vand.u32 %v414, 4294901760
        %7124 = vmatpush1.msra.mxu0 %v7123
        %7125 = vmatprep.subr.mxu0 0.0
        %v7126 = vand.u32 %v415, 4294901760
        %7127 = vmatpush1.msra.mxu0 %v7126
        %7128 = vmatprep.subr.mxu0 0.0
        %v7129 = vand.u32 %v416, 4294901760
        %7130 = vmatpush1.msra.mxu0 %v7129
        %7131 = vmatprep.subr.mxu0 0.0
        %v7132 = vand.u32 %v417, 4294901760
        %7133 = vmatpush1.msra.mxu0 %v7132
        %v7134 = vand.u32 %v610, 4294901760
        %v7135 = vsub.f32 %v610, %v7134
        %v7136 = vand.u32 %v7135, 4294901760
        %v7137 = vsub.f32 %v7135, %v7136
        %v7138 = vand.u32 %v7137, 4294901760
        %7139 = vmatprep.mubr.f32.mxu0 %v7138
        %v7140 = vand.u32 %v598, 4294901760
        %v7141 = vsub.f32 %v598, %v7140
        %v7142 = vand.u32 %v7141, 4294901760
        %v7143 = vsub.f32 %v7141, %v7142
        %v7144 = vand.u32 %v7143, 4294901760
        %7145 = vmatmul.mubr.f32.gmra.mrb[0].mxu0 %v7144
        %v7146 = vpop.f32.mrb[0].mxu0
        %v7147 = vadd.f32 %v7028, %v7146
        %v7148 = vpop.f32.mrb[0].mxu0
        %v7149 = vand.u32 %v611, 4294901760
        %v7150 = vsub.f32 %v611, %v7149
        %v7151 = vand.u32 %v7150, 4294901760
        %v7152 = vsub.f32 %v7150, %v7151
        %v7153 = vand.u32 %v7152, 4294901760
        %7154 = vmatprep.mubr.f32.mxu0 %v7153
        %v7155 = vand.u32 %v599, 4294901760
        %v7156 = vsub.f32 %v599, %v7155
        %v7157 = vand.u32 %v7156, 4294901760
        %v7158 = vsub.f32 %v7156, %v7157
        %v7159 = vand.u32 %v7158, 4294901760
        %7160 = vmatmul.mubr.f32.gmra.mrb[0].mxu0 %v7159
        %v7161 = vpop.f32.mrb[0].mxu0
        %v7162 = vadd.f32 %v7035, %v7161
        %v7163 = vpop.f32.mrb[0].mxu0
        %7164 = vdwg.mxu0
        %7165 = vmatprep.subr.mxu0 0.0
        %v7166 = vand.u32 %v386, 4294901760
        %v7167 = vsub.f32 %v386, %v7166
        %v7168 = vand.u32 %v7167, 4294901760
        %v7169 = vsub.f32 %v7167, %v7168
        %v7170 = vand.u32 %v7169, 4294901760
        %7171 = vmatpush1.msra.mxu0 %v7170
        %7172 = vmatprep.subr.mxu0 0.0
        %v7173 = vand.u32 %v387, 4294901760
        %v7174 = vsub.f32 %v387, %v7173
        %v7175 = vand.u32 %v7174, 4294901760
        %v7176 = vsub.f32 %v7174, %v7175
        %v7177 = vand.u32 %v7176, 4294901760
        %7178 = vmatpush1.msra.mxu0 %v7177
        %7179 = vmatprep.subr.mxu0 0.0
        %v7180 = vand.u32 %v388, 4294901760
        %v7181 = vsub.f32 %v388, %v7180
        %v7182 = vand.u32 %v7181, 4294901760
        %v7183 = vsub.f32 %v7181, %v7182
        %v7184 = vand.u32 %v7183, 4294901760
        %7185 = vmatpush1.msra.mxu0 %v7184
        %7186 = vmatprep.subr.mxu0 0.0
        %v7187 = vand.u32 %v389, 4294901760
        %v7188 = vsub.f32 %v389, %v7187
        %v7189 = vand.u32 %v7188, 4294901760
        %v7190 = vsub.f32 %v7188, %v7189
        %v7191 = vand.u32 %v7190, 4294901760
        %7192 = vmatpush1.msra.mxu0 %v7191
        %7193 = vmatprep.subr.mxu0 0.0
        %v7194 = vand.u32 %v390, 4294901760
        %v7195 = vsub.f32 %v390, %v7194
        %v7196 = vand.u32 %v7195, 4294901760
        %v7197 = vsub.f32 %v7195, %v7196
        %v7198 = vand.u32 %v7197, 4294901760
        %7199 = vmatpush1.msra.mxu0 %v7198
        %7200 = vmatprep.subr.mxu0 0.0
        %v7201 = vand.u32 %v391, 4294901760
        %v7202 = vsub.f32 %v391, %v7201
        %v7203 = vand.u32 %v7202, 4294901760
        %v7204 = vsub.f32 %v7202, %v7203
        %v7205 = vand.u32 %v7204, 4294901760
        %7206 = vmatpush1.msra.mxu0 %v7205
        %7207 = vmatprep.subr.mxu0 0.0
        %v7208 = vand.u32 %v392, 4294901760
        %v7209 = vsub.f32 %v392, %v7208
        %v7210 = vand.u32 %v7209, 4294901760
        %v7211 = vsub.f32 %v7209, %v7210
        %v7212 = vand.u32 %v7211, 4294901760
        %7213 = vmatpush1.msra.mxu0 %v7212
        %7214 = vmatprep.subr.mxu0 0.0
        %v7215 = vand.u32 %v393, 4294901760
        %v7216 = vsub.f32 %v393, %v7215
        %v7217 = vand.u32 %v7216, 4294901760
        %v7218 = vsub.f32 %v7216, %v7217
        %v7219 = vand.u32 %v7218, 4294901760
        %7220 = vmatpush1.msra.mxu0 %v7219
        %7221 = vmatprep.subr.mxu0 0.0
        %v7222 = vand.u32 %v394, 4294901760
        %v7223 = vsub.f32 %v394, %v7222
        %v7224 = vand.u32 %v7223, 4294901760
        %v7225 = vsub.f32 %v7223, %v7224
        %v7226 = vand.u32 %v7225, 4294901760
        %7227 = vmatpush1.msra.mxu0 %v7226
        %7228 = vmatprep.subr.mxu0 0.0
        %v7229 = vand.u32 %v395, 4294901760
        %v7230 = vsub.f32 %v395, %v7229
        %v7231 = vand.u32 %v7230, 4294901760
        %v7232 = vsub.f32 %v7230, %v7231
        %v7233 = vand.u32 %v7232, 4294901760
        %7234 = vmatpush1.msra.mxu0 %v7233
        %7235 = vmatprep.subr.mxu0 0.0
        %v7236 = vand.u32 %v396, 4294901760
        %v7237 = vsub.f32 %v396, %v7236
        %v7238 = vand.u32 %v7237, 4294901760
        %v7239 = vsub.f32 %v7237, %v7238
        %v7240 = vand.u32 %v7239, 4294901760
        %7241 = vmatpush1.msra.mxu0 %v7240
        %7242 = vmatprep.subr.mxu0 0.0
        %v7243 = vand.u32 %v397, 4294901760
        %v7244 = vsub.f32 %v397, %v7243
        %v7245 = vand.u32 %v7244, 4294901760
        %v7246 = vsub.f32 %v7244, %v7245
        %v7247 = vand.u32 %v7246, 4294901760
        %7248 = vmatpush1.msra.mxu0 %v7247
        %7249 = vmatprep.subr.mxu0 0.0
        %v7250 = vand.u32 %v398, 4294901760
        %v7251 = vsub.f32 %v398, %v7250
        %v7252 = vand.u32 %v7251, 4294901760
        %v7253 = vsub.f32 %v7251, %v7252
        %v7254 = vand.u32 %v7253, 4294901760
        %7255 = vmatpush1.msra.mxu0 %v7254
        %7256 = vmatprep.subr.mxu0 0.0
        %v7257 = vand.u32 %v399, 4294901760
        %v7258 = vsub.f32 %v399, %v7257
        %v7259 = vand.u32 %v7258, 4294901760
        %v7260 = vsub.f32 %v7258, %v7259
        %v7261 = vand.u32 %v7260, 4294901760
        %7262 = vmatpush1.msra.mxu0 %v7261
        %7263 = vmatprep.subr.mxu0 0.0
        %v7264 = vand.u32 %v400, 4294901760
        %v7265 = vsub.f32 %v400, %v7264
        %v7266 = vand.u32 %v7265, 4294901760
        %v7267 = vsub.f32 %v7265, %v7266
        %v7268 = vand.u32 %v7267, 4294901760
        %7269 = vmatpush1.msra.mxu0 %v7268
        %7270 = vmatprep.subr.mxu0 0.0
        %v7271 = vand.u32 %v401, 4294901760
        %v7272 = vsub.f32 %v401, %v7271
        %v7273 = vand.u32 %v7272, 4294901760
        %v7274 = vsub.f32 %v7272, %v7273
        %v7275 = vand.u32 %v7274, 4294901760
        %7276 = vmatpush1.msra.mxu0 %v7275
        %7277 = vmatprep.subr.mxu0 0.0
        %v7278 = vand.u32 %v402, 4294901760
        %v7279 = vsub.f32 %v402, %v7278
        %v7280 = vand.u32 %v7279, 4294901760
        %v7281 = vsub.f32 %v7279, %v7280
        %v7282 = vand.u32 %v7281, 4294901760
        %7283 = vmatpush1.msra.mxu0 %v7282
        %7284 = vmatprep.subr.mxu0 0.0
        %v7285 = vand.u32 %v403, 4294901760
        %v7286 = vsub.f32 %v403, %v7285
        %v7287 = vand.u32 %v7286, 4294901760
        %v7288 = vsub.f32 %v7286, %v7287
        %v7289 = vand.u32 %v7288, 4294901760
        %7290 = vmatpush1.msra.mxu0 %v7289
        %7291 = vmatprep.subr.mxu0 0.0
        %v7292 = vand.u32 %v404, 4294901760
        %v7293 = vsub.f32 %v404, %v7292
        %v7294 = vand.u32 %v7293, 4294901760
        %v7295 = vsub.f32 %v7293, %v7294
        %v7296 = vand.u32 %v7295, 4294901760
        %7297 = vmatpush1.msra.mxu0 %v7296
        %7298 = vmatprep.subr.mxu0 0.0
        %v7299 = vand.u32 %v405, 4294901760
        %v7300 = vsub.f32 %v405, %v7299
        %v7301 = vand.u32 %v7300, 4294901760
        %v7302 = vsub.f32 %v7300, %v7301
        %v7303 = vand.u32 %v7302, 4294901760
        %7304 = vmatpush1.msra.mxu0 %v7303
        %7305 = vmatprep.subr.mxu0 0.0
        %v7306 = vand.u32 %v406, 4294901760
        %v7307 = vsub.f32 %v406, %v7306
        %v7308 = vand.u32 %v7307, 4294901760
        %v7309 = vsub.f32 %v7307, %v7308
        %v7310 = vand.u32 %v7309, 4294901760
        %7311 = vmatpush1.msra.mxu0 %v7310
        %7312 = vmatprep.subr.mxu0 0.0
        %v7313 = vand.u32 %v407, 4294901760
        %v7314 = vsub.f32 %v407, %v7313
        %v7315 = vand.u32 %v7314, 4294901760
        %v7316 = vsub.f32 %v7314, %v7315
        %v7317 = vand.u32 %v7316, 4294901760
        %7318 = vmatpush1.msra.mxu0 %v7317
        %7319 = vmatprep.subr.mxu0 0.0
        %v7320 = vand.u32 %v408, 4294901760
        %v7321 = vsub.f32 %v408, %v7320
        %v7322 = vand.u32 %v7321, 4294901760
        %v7323 = vsub.f32 %v7321, %v7322
        %v7324 = vand.u32 %v7323, 4294901760
        %7325 = vmatpush1.msra.mxu0 %v7324
        %7326 = vmatprep.subr.mxu0 0.0
        %v7327 = vand.u32 %v409, 4294901760
        %v7328 = vsub.f32 %v409, %v7327
        %v7329 = vand.u32 %v7328, 4294901760
        %v7330 = vsub.f32 %v7328, %v7329
        %v7331 = vand.u32 %v7330, 4294901760
        %7332 = vmatpush1.msra.mxu0 %v7331
        %7333 = vmatprep.subr.mxu0 0.0
        %v7334 = vand.u32 %v410, 4294901760
        %v7335 = vsub.f32 %v410, %v7334
        %v7336 = vand.u32 %v7335, 4294901760
        %v7337 = vsub.f32 %v7335, %v7336
        %v7338 = vand.u32 %v7337, 4294901760
        %7339 = vmatpush1.msra.mxu0 %v7338
        %7340 = vmatprep.subr.mxu0 0.0
        %v7341 = vand.u32 %v411, 4294901760
        %v7342 = vsub.f32 %v411, %v7341
        %v7343 = vand.u32 %v7342, 4294901760
        %v7344 = vsub.f32 %v7342, %v7343
        %v7345 = vand.u32 %v7344, 4294901760
        %7346 = vmatpush1.msra.mxu0 %v7345
        %7347 = vmatprep.subr.mxu0 0.0
        %v7348 = vand.u32 %v412, 4294901760
        %v7349 = vsub.f32 %v412, %v7348
        %v7350 = vand.u32 %v7349, 4294901760
        %v7351 = vsub.f32 %v7349, %v7350
        %v7352 = vand.u32 %v7351, 4294901760
        %7353 = vmatpush1.msra.mxu0 %v7352
        %7354 = vmatprep.subr.mxu0 0.0
        %v7355 = vand.u32 %v413, 4294901760
        %v7356 = vsub.f32 %v413, %v7355
        %v7357 = vand.u32 %v7356, 4294901760
        %v7358 = vsub.f32 %v7356, %v7357
        %v7359 = vand.u32 %v7358, 4294901760
        %7360 = vmatpush1.msra.mxu0 %v7359
        %7361 = vmatprep.subr.mxu0 0.0
        %v7362 = vand.u32 %v414, 4294901760
        %v7363 = vsub.f32 %v414, %v7362
        %v7364 = vand.u32 %v7363, 4294901760
        %v7365 = vsub.f32 %v7363, %v7364
        %v7366 = vand.u32 %v7365, 4294901760
        %7367 = vmatpush1.msra.mxu0 %v7366
        %7368 = vmatprep.subr.mxu0 0.0
        %v7369 = vand.u32 %v415, 4294901760
        %v7370 = vsub.f32 %v415, %v7369
        %v7371 = vand.u32 %v7370, 4294901760
        %v7372 = vsub.f32 %v7370, %v7371
        %v7373 = vand.u32 %v7372, 4294901760
        %7374 = vmatpush1.msra.mxu0 %v7373
        %7375 = vmatprep.subr.mxu0 0.0
        %v7376 = vand.u32 %v416, 4294901760
        %v7377 = vsub.f32 %v416, %v7376
        %v7378 = vand.u32 %v7377, 4294901760
        %v7379 = vsub.f32 %v7377, %v7378
        %v7380 = vand.u32 %v7379, 4294901760
        %7381 = vmatpush1.msra.mxu0 %v7380
        %7382 = vmatprep.subr.mxu0 0.0
        %v7383 = vand.u32 %v417, 4294901760
        %v7384 = vsub.f32 %v417, %v7383
        %v7385 = vand.u32 %v7384, 4294901760
        %v7386 = vsub.f32 %v7384, %v7385
        %v7387 = vand.u32 %v7386, 4294901760
        %7388 = vmatpush1.msra.mxu0 %v7387
        %v7389 = vand.u32 %v610, 4294901760
        %7390 = vmatprep.mubr.f32.mxu0 %v7389
        %v7391 = vand.u32 %v598, 4294901760
        %7392 = vmatmul.mubr.f32.gmra.mrb[0].mxu0 %v7391
        %v7393 = vpop.f32.mrb[0].mxu0
        %v7394 = vadd.f32 %v7147, %v7393
        %v7395 = vpop.f32.mrb[0].mxu0
        %v7396 = vand.u32 %v611, 4294901760
        %7397 = vmatprep.mubr.f32.mxu0 %v7396
        %v7398 = vand.u32 %v599, 4294901760
        %7399 = vmatmul.mubr.f32.gmra.mrb[0].mxu0 %v7398
        %v7400 = vpop.f32.mrb[0].mxu0
        %v7401 = vadd.f32 %v7162, %v7400
        %v7402 = vpop.f32.mrb[0].mxu0
        %7403 = vdwg.mxu0
        %7404 = vmatprep.subr.mxu0 0.0
        %v7405 = vand.u32 %v386, 4294901760
        %v7406 = vsub.f32 %v386, %v7405
        %7407 = vmatpush1.msra.mxu0 %v7406
        %7408 = vmatprep.subr.mxu0 0.0
        %v7409 = vand.u32 %v387, 4294901760
        %v7410 = vsub.f32 %v387, %v7409
        %7411 = vmatpush1.msra.mxu0 %v7410
        %7412 = vmatprep.subr.mxu0 0.0
        %v7413 = vand.u32 %v388, 4294901760
        %v7414 = vsub.f32 %v388, %v7413
        %7415 = vmatpush1.msra.mxu0 %v7414
        %7416 = vmatprep.subr.mxu0 0.0
        %v7417 = vand.u32 %v389, 4294901760
        %v7418 = vsub.f32 %v389, %v7417
        %7419 = vmatpush1.msra.mxu0 %v7418
        %7420 = vmatprep.subr.mxu0 0.0
        %v7421 = vand.u32 %v390, 4294901760
        %v7422 = vsub.f32 %v390, %v7421
        %7423 = vmatpush1.msra.mxu0 %v7422
        %7424 = vmatprep.subr.mxu0 0.0
        %v7425 = vand.u32 %v391, 4294901760
        %v7426 = vsub.f32 %v391, %v7425
        %7427 = vmatpush1.msra.mxu0 %v7426
        %7428 = vmatprep.subr.mxu0 0.0
        %v7429 = vand.u32 %v392, 4294901760
        %v7430 = vsub.f32 %v392, %v7429
        %7431 = vmatpush1.msra.mxu0 %v7430
        %7432 = vmatprep.subr.mxu0 0.0
        %v7433 = vand.u32 %v393, 4294901760
        %v7434 = vsub.f32 %v393, %v7433
        %7435 = vmatpush1.msra.mxu0 %v7434
        %7436 = vmatprep.subr.mxu0 0.0
        %v7437 = vand.u32 %v394, 4294901760
        %v7438 = vsub.f32 %v394, %v7437
        %7439 = vmatpush1.msra.mxu0 %v7438
        %7440 = vmatprep.subr.mxu0 0.0
        %v7441 = vand.u32 %v395, 4294901760
        %v7442 = vsub.f32 %v395, %v7441
        %7443 = vmatpush1.msra.mxu0 %v7442
        %7444 = vmatprep.subr.mxu0 0.0
        %v7445 = vand.u32 %v396, 4294901760
        %v7446 = vsub.f32 %v396, %v7445
        %7447 = vmatpush1.msra.mxu0 %v7446
        %7448 = vmatprep.subr.mxu0 0.0
        %v7449 = vand.u32 %v397, 4294901760
        %v7450 = vsub.f32 %v397, %v7449
        %7451 = vmatpush1.msra.mxu0 %v7450
        %7452 = vmatprep.subr.mxu0 0.0
        %v7453 = vand.u32 %v398, 4294901760
        %v7454 = vsub.f32 %v398, %v7453
        %7455 = vmatpush1.msra.mxu0 %v7454
        %7456 = vmatprep.subr.mxu0 0.0
        %v7457 = vand.u32 %v399, 4294901760
        %v7458 = vsub.f32 %v399, %v7457
        %7459 = vmatpush1.msra.mxu0 %v7458
        %7460 = vmatprep.subr.mxu0 0.0
        %v7461 = vand.u32 %v400, 4294901760
        %v7462 = vsub.f32 %v400, %v7461
        %7463 = vmatpush1.msra.mxu0 %v7462
        %7464 = vmatprep.subr.mxu0 0.0
        %v7465 = vand.u32 %v401, 4294901760
        %v7466 = vsub.f32 %v401, %v7465
        %7467 = vmatpush1.msra.mxu0 %v7466
        %7468 = vmatprep.subr.mxu0 0.0
        %v7469 = vand.u32 %v402, 4294901760
        %v7470 = vsub.f32 %v402, %v7469
        %7471 = vmatpush1.msra.mxu0 %v7470
        %7472 = vmatprep.subr.mxu0 0.0
        %v7473 = vand.u32 %v403, 4294901760
        %v7474 = vsub.f32 %v403, %v7473
        %7475 = vmatpush1.msra.mxu0 %v7474
        %7476 = vmatprep.subr.mxu0 0.0
        %v7477 = vand.u32 %v404, 4294901760
        %v7478 = vsub.f32 %v404, %v7477
        %7479 = vmatpush1.msra.mxu0 %v7478
        %7480 = vmatprep.subr.mxu0 0.0
        %v7481 = vand.u32 %v405, 4294901760
        %v7482 = vsub.f32 %v405, %v7481
        %7483 = vmatpush1.msra.mxu0 %v7482
        %7484 = vmatprep.subr.mxu0 0.0
        %v7485 = vand.u32 %v406, 4294901760
        %v7486 = vsub.f32 %v406, %v7485
        %7487 = vmatpush1.msra.mxu0 %v7486
        %7488 = vmatprep.subr.mxu0 0.0
        %v7489 = vand.u32 %v407, 4294901760
        %v7490 = vsub.f32 %v407, %v7489
        %7491 = vmatpush1.msra.mxu0 %v7490
        %7492 = vmatprep.subr.mxu0 0.0
        %v7493 = vand.u32 %v408, 4294901760
        %v7494 = vsub.f32 %v408, %v7493
        %7495 = vmatpush1.msra.mxu0 %v7494
        %7496 = vmatprep.subr.mxu0 0.0
        %v7497 = vand.u32 %v409, 4294901760
        %v7498 = vsub.f32 %v409, %v7497
        %7499 = vmatpush1.msra.mxu0 %v7498
        %7500 = vmatprep.subr.mxu0 0.0
        %v7501 = vand.u32 %v410, 4294901760
        %v7502 = vsub.f32 %v410, %v7501
        %7503 = vmatpush1.msra.mxu0 %v7502
        %7504 = vmatprep.subr.mxu0 0.0
        %v7505 = vand.u32 %v411, 4294901760
        %v7506 = vsub.f32 %v411, %v7505
        %7507 = vmatpush1.msra.mxu0 %v7506
        %7508 = vmatprep.subr.mxu0 0.0
        %v7509 = vand.u32 %v412, 4294901760
        %v7510 = vsub.f32 %v412, %v7509
        %7511 = vmatpush1.msra.mxu0 %v7510
        %7512 = vmatprep.subr.mxu0 0.0
        %v7513 = vand.u32 %v413, 4294901760
        %v7514 = vsub.f32 %v413, %v7513
        %7515 = vmatpush1.msra.mxu0 %v7514
        %7516 = vmatprep.subr.mxu0 0.0
        %v7517 = vand.u32 %v414, 4294901760
        %v7518 = vsub.f32 %v414, %v7517
        %7519 = vmatpush1.msra.mxu0 %v7518
        %7520 = vmatprep.subr.mxu0 0.0
        %v7521 = vand.u32 %v415, 4294901760
        %v7522 = vsub.f32 %v415, %v7521
        %7523 = vmatpush1.msra.mxu0 %v7522
        %7524 = vmatprep.subr.mxu0 0.0
        %v7525 = vand.u32 %v416, 4294901760
        %v7526 = vsub.f32 %v416, %v7525
        %7527 = vmatpush1.msra.mxu0 %v7526
        %7528 = vmatprep.subr.mxu0 0.0
        %v7529 = vand.u32 %v417, 4294901760
        %v7530 = vsub.f32 %v417, %v7529
        %7531 = vmatpush1.msra.mxu0 %v7530
        %v7532 = vand.u32 %v610, 4294901760
        %v7533 = vsub.f32 %v610, %v7532
        %7534 = vmatprep.mubr.f32.mxu0 %v7533
        %v7535 = vand.u32 %v598, 4294901760
        %v7536 = vsub.f32 %v598, %v7535
        %7537 = vmatmul.mubr.f32.gmra.mrb[0].mxu0 %v7536
        %v7538 = vpop.f32.mrb[0].mxu0
        %v7539 = vadd.f32 %v7394, %v7538
        %v7540 = vpop.f32.mrb[0].mxu0
        %v7541 = vand.u32 %v611, 4294901760
        %v7542 = vsub.f32 %v611, %v7541
        %7543 = vmatprep.mubr.f32.mxu0 %v7542
        %v7544 = vand.u32 %v599, 4294901760
        %v7545 = vsub.f32 %v599, %v7544
        %7546 = vmatmul.mubr.f32.gmra.mrb[0].mxu0 %v7545
        %v7547 = vpop.f32.mrb[0].mxu0
        %v7548 = vadd.f32 %v7401, %v7547
        %v7549 = vpop.f32.mrb[0].mxu0
        %7550 = vdwg.mxu0
        %7551 = vmatprep.subr.mxu0 0.0
        %v7552 = vand.u32 %v386, 4294901760
        %7553 = vmatpush1.msra.mxu0 %v7552
        %7554 = vmatprep.subr.mxu0 0.0
        %v7555 = vand.u32 %v387, 4294901760
        %7556 = vmatpush1.msra.mxu0 %v7555
        %7557 = vmatprep.subr.mxu0 0.0
        %v7558 = vand.u32 %v388, 4294901760
        %7559 = vmatpush1.msra.mxu0 %v7558
        %7560 = vmatprep.subr.mxu0 0.0
        %v7561 = vand.u32 %v389, 4294901760
        %7562 = vmatpush1.msra.mxu0 %v7561
        %7563 = vmatprep.subr.mxu0 0.0
        %v7564 = vand.u32 %v390, 4294901760
        %7565 = vmatpush1.msra.mxu0 %v7564
        %7566 = vmatprep.subr.mxu0 0.0
        %v7567 = vand.u32 %v391, 4294901760
        %7568 = vmatpush1.msra.mxu0 %v7567
        %7569 = vmatprep.subr.mxu0 0.0
        %v7570 = vand.u32 %v392, 4294901760
        %7571 = vmatpush1.msra.mxu0 %v7570
        %7572 = vmatprep.subr.mxu0 0.0
        %v7573 = vand.u32 %v393, 4294901760
        %7574 = vmatpush1.msra.mxu0 %v7573
        %7575 = vmatprep.subr.mxu0 0.0
        %v7576 = vand.u32 %v394, 4294901760
        %7577 = vmatpush1.msra.mxu0 %v7576
        %7578 = vmatprep.subr.mxu0 0.0
        %v7579 = vand.u32 %v395, 4294901760
        %7580 = vmatpush1.msra.mxu0 %v7579
        %7581 = vmatprep.subr.mxu0 0.0
        %v7582 = vand.u32 %v396, 4294901760
        %7583 = vmatpush1.msra.mxu0 %v7582
        %7584 = vmatprep.subr.mxu0 0.0
        %v7585 = vand.u32 %v397, 4294901760
        %7586 = vmatpush1.msra.mxu0 %v7585
        %7587 = vmatprep.subr.mxu0 0.0
        %v7588 = vand.u32 %v398, 4294901760
        %7589 = vmatpush1.msra.mxu0 %v7588
        %7590 = vmatprep.subr.mxu0 0.0
        %v7591 = vand.u32 %v399, 4294901760
        %7592 = vmatpush1.msra.mxu0 %v7591
        %7593 = vmatprep.subr.mxu0 0.0
        %v7594 = vand.u32 %v400, 4294901760
        %7595 = vmatpush1.msra.mxu0 %v7594
        %7596 = vmatprep.subr.mxu0 0.0
        %v7597 = vand.u32 %v401, 4294901760
        %7598 = vmatpush1.msra.mxu0 %v7597
        %7599 = vmatprep.subr.mxu0 0.0
        %v7600 = vand.u32 %v402, 4294901760
        %7601 = vmatpush1.msra.mxu0 %v7600
        %7602 = vmatprep.subr.mxu0 0.0
        %v7603 = vand.u32 %v403, 4294901760
        %7604 = vmatpush1.msra.mxu0 %v7603
        %7605 = vmatprep.subr.mxu0 0.0
        %v7606 = vand.u32 %v404, 4294901760
        %7607 = vmatpush1.msra.mxu0 %v7606
        %7608 = vmatprep.subr.mxu0 0.0
        %v7609 = vand.u32 %v405, 4294901760
        %7610 = vmatpush1.msra.mxu0 %v7609
        %7611 = vmatprep.subr.mxu0 0.0
        %v7612 = vand.u32 %v406, 4294901760
        %7613 = vmatpush1.msra.mxu0 %v7612
        %7614 = vmatprep.subr.mxu0 0.0
        %v7615 = vand.u32 %v407, 4294901760
        %7616 = vmatpush1.msra.mxu0 %v7615
        %7617 = vmatprep.subr.mxu0 0.0
        %v7618 = vand.u32 %v408, 4294901760
        %7619 = vmatpush1.msra.mxu0 %v7618
        %7620 = vmatprep.subr.mxu0 0.0
        %v7621 = vand.u32 %v409, 4294901760
        %7622 = vmatpush1.msra.mxu0 %v7621
        %7623 = vmatprep.subr.mxu0 0.0
        %v7624 = vand.u32 %v410, 4294901760
        %7625 = vmatpush1.msra.mxu0 %v7624
        %7626 = vmatprep.subr.mxu0 0.0
        %v7627 = vand.u32 %v411, 4294901760
        %7628 = vmatpush1.msra.mxu0 %v7627
        %7629 = vmatprep.subr.mxu0 0.0
        %v7630 = vand.u32 %v412, 4294901760
        %7631 = vmatpush1.msra.mxu0 %v7630
        %7632 = vmatprep.subr.mxu0 0.0
        %v7633 = vand.u32 %v413, 4294901760
        %7634 = vmatpush1.msra.mxu0 %v7633
        %7635 = vmatprep.subr.mxu0 0.0
        %v7636 = vand.u32 %v414, 4294901760
        %7637 = vmatpush1.msra.mxu0 %v7636
        %7638 = vmatprep.subr.mxu0 0.0
        %v7639 = vand.u32 %v415, 4294901760
        %7640 = vmatpush1.msra.mxu0 %v7639
        %7641 = vmatprep.subr.mxu0 0.0
        %v7642 = vand.u32 %v416, 4294901760
        %7643 = vmatpush1.msra.mxu0 %v7642
        %7644 = vmatprep.subr.mxu0 0.0
        %v7645 = vand.u32 %v417, 4294901760
        %7646 = vmatpush1.msra.mxu0 %v7645
        %v7647 = vand.u32 %v610, 4294901760
        %v7648 = vsub.f32 %v610, %v7647
        %v7649 = vand.u32 %v7648, 4294901760
        %7650 = vmatprep.mubr.f32.mxu0 %v7649
        %v7651 = vand.u32 %v598, 4294901760
        %v7652 = vsub.f32 %v598, %v7651
        %v7653 = vand.u32 %v7652, 4294901760
        %7654 = vmatmul.mubr.f32.gmra.mrb[0].mxu0 %v7653
        %v7655 = vpop.f32.mrb[0].mxu0
        %v7656 = vadd.f32 %v7539, %v7655
        %v7657 = vpop.f32.mrb[0].mxu0
        %v7658 = vand.u32 %v611, 4294901760
        %v7659 = vsub.f32 %v611, %v7658
        %v7660 = vand.u32 %v7659, 4294901760
        %7661 = vmatprep.mubr.f32.mxu0 %v7660
        %v7662 = vand.u32 %v599, 4294901760
        %v7663 = vsub.f32 %v599, %v7662
        %v7664 = vand.u32 %v7663, 4294901760
        %7665 = vmatmul.mubr.f32.gmra.mrb[0].mxu0 %v7664
        %v7666 = vpop.f32.mrb[0].mxu0
        %v7667 = vadd.f32 %v7548, %v7666
        %v7668 = vpop.f32.mrb[0].mxu0
        %7669 = vdwg.mxu0
        %7670 = vmatprep.subr.mxu0 0.0
        %v7671 = vand.u32 %v386, 4294901760
        %v7672 = vsub.f32 %v386, %v7671
        %v7673 = vand.u32 %v7672, 4294901760
        %7674 = vmatpush1.msra.mxu0 %v7673
        %7675 = vmatprep.subr.mxu0 0.0
        %v7676 = vand.u32 %v387, 4294901760
        %v7677 = vsub.f32 %v387, %v7676
        %v7678 = vand.u32 %v7677, 4294901760
        %7679 = vmatpush1.msra.mxu0 %v7678
        %7680 = vmatprep.subr.mxu0 0.0
        %v7681 = vand.u32 %v388, 4294901760
        %v7682 = vsub.f32 %v388, %v7681
        %v7683 = vand.u32 %v7682, 4294901760
        %7684 = vmatpush1.msra.mxu0 %v7683
        %7685 = vmatprep.subr.mxu0 0.0
        %v7686 = vand.u32 %v389, 4294901760
        %v7687 = vsub.f32 %v389, %v7686
        %v7688 = vand.u32 %v7687, 4294901760
        %7689 = vmatpush1.msra.mxu0 %v7688
        %7690 = vmatprep.subr.mxu0 0.0
        %v7691 = vand.u32 %v390, 4294901760
        %v7692 = vsub.f32 %v390, %v7691
        %v7693 = vand.u32 %v7692, 4294901760
        %7694 = vmatpush1.msra.mxu0 %v7693
        %7695 = vmatprep.subr.mxu0 0.0
        %v7696 = vand.u32 %v391, 4294901760
        %v7697 = vsub.f32 %v391, %v7696
        %v7698 = vand.u32 %v7697, 4294901760
        %7699 = vmatpush1.msra.mxu0 %v7698
        %7700 = vmatprep.subr.mxu0 0.0
        %v7701 = vand.u32 %v392, 4294901760
        %v7702 = vsub.f32 %v392, %v7701
        %v7703 = vand.u32 %v7702, 4294901760
        %7704 = vmatpush1.msra.mxu0 %v7703
        %7705 = vmatprep.subr.mxu0 0.0
        %v7706 = vand.u32 %v393, 4294901760
        %v7707 = vsub.f32 %v393, %v7706
        %v7708 = vand.u32 %v7707, 4294901760
        %7709 = vmatpush1.msra.mxu0 %v7708
        %7710 = vmatprep.subr.mxu0 0.0
        %v7711 = vand.u32 %v394, 4294901760
        %v7712 = vsub.f32 %v394, %v7711
        %v7713 = vand.u32 %v7712, 4294901760
        %7714 = vmatpush1.msra.mxu0 %v7713
        %7715 = vmatprep.subr.mxu0 0.0
        %v7716 = vand.u32 %v395, 4294901760
        %v7717 = vsub.f32 %v395, %v7716
        %v7718 = vand.u32 %v7717, 4294901760
        %7719 = vmatpush1.msra.mxu0 %v7718
        %7720 = vmatprep.subr.mxu0 0.0
        %v7721 = vand.u32 %v396, 4294901760
        %v7722 = vsub.f32 %v396, %v7721
        %v7723 = vand.u32 %v7722, 4294901760
        %7724 = vmatpush1.msra.mxu0 %v7723
        %7725 = vmatprep.subr.mxu0 0.0
        %v7726 = vand.u32 %v397, 4294901760
        %v7727 = vsub.f32 %v397, %v7726
        %v7728 = vand.u32 %v7727, 4294901760
        %7729 = vmatpush1.msra.mxu0 %v7728
        %7730 = vmatprep.subr.mxu0 0.0
        %v7731 = vand.u32 %v398, 4294901760
        %v7732 = vsub.f32 %v398, %v7731
        %v7733 = vand.u32 %v7732, 4294901760
        %7734 = vmatpush1.msra.mxu0 %v7733
        %7735 = vmatprep.subr.mxu0 0.0
        %v7736 = vand.u32 %v399, 4294901760
        %v7737 = vsub.f32 %v399, %v7736
        %v7738 = vand.u32 %v7737, 4294901760
        %7739 = vmatpush1.msra.mxu0 %v7738
        %7740 = vmatprep.subr.mxu0 0.0
        %v7741 = vand.u32 %v400, 4294901760
        %v7742 = vsub.f32 %v400, %v7741
        %v7743 = vand.u32 %v7742, 4294901760
        %7744 = vmatpush1.msra.mxu0 %v7743
        %7745 = vmatprep.subr.mxu0 0.0
        %v7746 = vand.u32 %v401, 4294901760
        %v7747 = vsub.f32 %v401, %v7746
        %v7748 = vand.u32 %v7747, 4294901760
        %7749 = vmatpush1.msra.mxu0 %v7748
        %7750 = vmatprep.subr.mxu0 0.0
        %v7751 = vand.u32 %v402, 4294901760
        %v7752 = vsub.f32 %v402, %v7751
        %v7753 = vand.u32 %v7752, 4294901760
        %7754 = vmatpush1.msra.mxu0 %v7753
        %7755 = vmatprep.subr.mxu0 0.0
        %v7756 = vand.u32 %v403, 4294901760
        %v7757 = vsub.f32 %v403, %v7756
        %v7758 = vand.u32 %v7757, 4294901760
        %7759 = vmatpush1.msra.mxu0 %v7758
        %7760 = vmatprep.subr.mxu0 0.0
        %v7761 = vand.u32 %v404, 4294901760
        %v7762 = vsub.f32 %v404, %v7761
        %v7763 = vand.u32 %v7762, 4294901760
        %7764 = vmatpush1.msra.mxu0 %v7763
        %7765 = vmatprep.subr.mxu0 0.0
        %v7766 = vand.u32 %v405, 4294901760
        %v7767 = vsub.f32 %v405, %v7766
        %v7768 = vand.u32 %v7767, 4294901760
        %7769 = vmatpush1.msra.mxu0 %v7768
        %7770 = vmatprep.subr.mxu0 0.0
        %v7771 = vand.u32 %v406, 4294901760
        %v7772 = vsub.f32 %v406, %v7771
        %v7773 = vand.u32 %v7772, 4294901760
        %7774 = vmatpush1.msra.mxu0 %v7773
        %7775 = vmatprep.subr.mxu0 0.0
        %v7776 = vand.u32 %v407, 4294901760
        %v7777 = vsub.f32 %v407, %v7776
        %v7778 = vand.u32 %v7777, 4294901760
        %7779 = vmatpush1.msra.mxu0 %v7778
        %7780 = vmatprep.subr.mxu0 0.0
        %v7781 = vand.u32 %v408, 4294901760
        %v7782 = vsub.f32 %v408, %v7781
        %v7783 = vand.u32 %v7782, 4294901760
        %7784 = vmatpush1.msra.mxu0 %v7783
        %7785 = vmatprep.subr.mxu0 0.0
        %v7786 = vand.u32 %v409, 4294901760
        %v7787 = vsub.f32 %v409, %v7786
        %v7788 = vand.u32 %v7787, 4294901760
        %7789 = vmatpush1.msra.mxu0 %v7788
        %7790 = vmatprep.subr.mxu0 0.0
        %v7791 = vand.u32 %v410, 4294901760
        %v7792 = vsub.f32 %v410, %v7791
        %v7793 = vand.u32 %v7792, 4294901760
        %7794 = vmatpush1.msra.mxu0 %v7793
        %7795 = vmatprep.subr.mxu0 0.0
        %v7796 = vand.u32 %v411, 4294901760
        %v7797 = vsub.f32 %v411, %v7796
        %v7798 = vand.u32 %v7797, 4294901760
        %7799 = vmatpush1.msra.mxu0 %v7798
        %7800 = vmatprep.subr.mxu0 0.0
        %v7801 = vand.u32 %v412, 4294901760
        %v7802 = vsub.f32 %v412, %v7801
        %v7803 = vand.u32 %v7802, 4294901760
        %7804 = vmatpush1.msra.mxu0 %v7803
        %7805 = vmatprep.subr.mxu0 0.0
        %v7806 = vand.u32 %v413, 4294901760
        %v7807 = vsub.f32 %v413, %v7806
        %v7808 = vand.u32 %v7807, 4294901760
        %7809 = vmatpush1.msra.mxu0 %v7808
        %7810 = vmatprep.subr.mxu0 0.0
        %v7811 = vand.u32 %v414, 4294901760
        %v7812 = vsub.f32 %v414, %v7811
        %v7813 = vand.u32 %v7812, 4294901760
        %7814 = vmatpush1.msra.mxu0 %v7813
        %7815 = vmatprep.subr.mxu0 0.0
        %v7816 = vand.u32 %v415, 4294901760
        %v7817 = vsub.f32 %v415, %v7816
        %v7818 = vand.u32 %v7817, 4294901760
        %7819 = vmatpush1.msra.mxu0 %v7818
        %7820 = vmatprep.subr.mxu0 0.0
        %v7821 = vand.u32 %v416, 4294901760
        %v7822 = vsub.f32 %v416, %v7821
        %v7823 = vand.u32 %v7822, 4294901760
        %7824 = vmatpush1.msra.mxu0 %v7823
        %7825 = vmatprep.subr.mxu0 0.0
        %v7826 = vand.u32 %v417, 4294901760
        %v7827 = vsub.f32 %v417, %v7826
        %v7828 = vand.u32 %v7827, 4294901760
        %7829 = vmatpush1.msra.mxu0 %v7828
        %v7830 = vand.u32 %v610, 4294901760
        %7831 = vmatprep.mubr.f32.mxu0 %v7830
        %v7832 = vand.u32 %v598, 4294901760
        %7833 = vmatmul.mubr.f32.gmra.mrb[0].mxu0 %v7832
        %v7834 = vpop.f32.mrb[0].mxu0
        %v7835 = vadd.f32 %v7656, %v7834
        %v7836 = vpop.f32.mrb[0].mxu0
        %v7837 = vand.u32 %v611, 4294901760
        %7838 = vmatprep.mubr.f32.mxu0 %v7837
        %v7839 = vand.u32 %v599, 4294901760
        %7840 = vmatmul.mubr.f32.gmra.mrb[0].mxu0 %v7839
        %v7841 = vpop.f32.mrb[0].mxu0
        %v7842 = vadd.f32 %v7667, %v7841
        %v7843 = vpop.f32.mrb[0].mxu0
        %7844 = vdwg.mxu0
        %7845 = vmatprep.subr.mxu0 0.0
        %v7846 = vand.u32 %v386, 4294901760
        %7847 = vmatpush1.msra.mxu0 %v7846
        %7848 = vmatprep.subr.mxu0 0.0
        %v7849 = vand.u32 %v387, 4294901760
        %7850 = vmatpush1.msra.mxu0 %v7849
        %7851 = vmatprep.subr.mxu0 0.0
        %v7852 = vand.u32 %v388, 4294901760
        %7853 = vmatpush1.msra.mxu0 %v7852
        %7854 = vmatprep.subr.mxu0 0.0
        %v7855 = vand.u32 %v389, 4294901760
        %7856 = vmatpush1.msra.mxu0 %v7855
        %7857 = vmatprep.subr.mxu0 0.0
        %v7858 = vand.u32 %v390, 4294901760
        %7859 = vmatpush1.msra.mxu0 %v7858
        %7860 = vmatprep.subr.mxu0 0.0
        %v7861 = vand.u32 %v391, 4294901760
        %7862 = vmatpush1.msra.mxu0 %v7861
        %7863 = vmatprep.subr.mxu0 0.0
        %v7864 = vand.u32 %v392, 4294901760
        %7865 = vmatpush1.msra.mxu0 %v7864
        %7866 = vmatprep.subr.mxu0 0.0
        %v7867 = vand.u32 %v393, 4294901760
        %7868 = vmatpush1.msra.mxu0 %v7867
        %7869 = vmatprep.subr.mxu0 0.0
        %v7870 = vand.u32 %v394, 4294901760
        %7871 = vmatpush1.msra.mxu0 %v7870
        %7872 = vmatprep.subr.mxu0 0.0
        %v7873 = vand.u32 %v395, 4294901760
        %7874 = vmatpush1.msra.mxu0 %v7873
        %7875 = vmatprep.subr.mxu0 0.0
        %v7876 = vand.u32 %v396, 4294901760
        %7877 = vmatpush1.msra.mxu0 %v7876
        %7878 = vmatprep.subr.mxu0 0.0
        %v7879 = vand.u32 %v397, 4294901760
        %7880 = vmatpush1.msra.mxu0 %v7879
        %7881 = vmatprep.subr.mxu0 0.0
        %v7882 = vand.u32 %v398, 4294901760
        %7883 = vmatpush1.msra.mxu0 %v7882
        %7884 = vmatprep.subr.mxu0 0.0
        %v7885 = vand.u32 %v399, 4294901760
        %7886 = vmatpush1.msra.mxu0 %v7885
        %7887 = vmatprep.subr.mxu0 0.0
        %v7888 = vand.u32 %v400, 4294901760
        %7889 = vmatpush1.msra.mxu0 %v7888
        %7890 = vmatprep.subr.mxu0 0.0
        %v7891 = vand.u32 %v401, 4294901760
        %7892 = vmatpush1.msra.mxu0 %v7891
        %7893 = vmatprep.subr.mxu0 0.0
        %v7894 = vand.u32 %v402, 4294901760
        %7895 = vmatpush1.msra.mxu0 %v7894
        %7896 = vmatprep.subr.mxu0 0.0
        %v7897 = vand.u32 %v403, 4294901760
        %7898 = vmatpush1.msra.mxu0 %v7897
        %7899 = vmatprep.subr.mxu0 0.0
        %v7900 = vand.u32 %v404, 4294901760
        %7901 = vmatpush1.msra.mxu0 %v7900
        %7902 = vmatprep.subr.mxu0 0.0
        %v7903 = vand.u32 %v405, 4294901760
        %7904 = vmatpush1.msra.mxu0 %v7903
        %7905 = vmatprep.subr.mxu0 0.0
        %v7906 = vand.u32 %v406, 4294901760
        %7907 = vmatpush1.msra.mxu0 %v7906
        %7908 = vmatprep.subr.mxu0 0.0
        %v7909 = vand.u32 %v407, 4294901760
        %7910 = vmatpush1.msra.mxu0 %v7909
        %7911 = vmatprep.subr.mxu0 0.0
        %v7912 = vand.u32 %v408, 4294901760
        %7913 = vmatpush1.msra.mxu0 %v7912
        %7914 = vmatprep.subr.mxu0 0.0
        %v7915 = vand.u32 %v409, 4294901760
        %7916 = vmatpush1.msra.mxu0 %v7915
        %7917 = vmatprep.subr.mxu0 0.0
        %v7918 = vand.u32 %v410, 4294901760
        %7919 = vmatpush1.msra.mxu0 %v7918
        %7920 = vmatprep.subr.mxu0 0.0
        %v7921 = vand.u32 %v411, 4294901760
        %7922 = vmatpush1.msra.mxu0 %v7921
        %7923 = vmatprep.subr.mxu0 0.0
        %v7924 = vand.u32 %v412, 4294901760
        %7925 = vmatpush1.msra.mxu0 %v7924
        %7926 = vmatprep.subr.mxu0 0.0
        %v7927 = vand.u32 %v413, 4294901760
        %7928 = vmatpush1.msra.mxu0 %v7927
        %7929 = vmatprep.subr.mxu0 0.0
        %v7930 = vand.u32 %v414, 4294901760
        %7931 = vmatpush1.msra.mxu0 %v7930
        %7932 = vmatprep.subr.mxu0 0.0
        %v7933 = vand.u32 %v415, 4294901760
        %7934 = vmatpush1.msra.mxu0 %v7933
        %7935 = vmatprep.subr.mxu0 0.0
        %v7936 = vand.u32 %v416, 4294901760
        %7937 = vmatpush1.msra.mxu0 %v7936
        %7938 = vmatprep.subr.mxu0 0.0
        %v7939 = vand.u32 %v417, 4294901760
        %7940 = vmatpush1.msra.mxu0 %v7939
        %v7941 = vand.u32 %v610, 4294901760
        %7942 = vmatprep.mubr.f32.mxu0 %v7941
        %v7943 = vand.u32 %v598, 4294901760
        %7944 = vmatmul.mubr.f32.gmra.mrb[0].mxu0 %v7943
        %v7945 = vpop.f32.mrb[0].mxu0
        %v7946 = vadd.f32 %v7835, %v7945
        %v7947 = vpop.f32.mrb[0].mxu0
        %v7948 = vand.u32 %v611, 4294901760
        %7949 = vmatprep.mubr.f32.mxu0 %v7948
        %v7950 = vand.u32 %v599, 4294901760
        %7951 = vmatmul.mubr.f32.gmra.mrb[0].mxu0 %v7950
        %v7952 = vpop.f32.mrb[0].mxu0
        %v7953 = vadd.f32 %v7842, %v7952
        %v7954 = vpop.f32.mrb[0].mxu0
        %7955 = vdwg.mxu0
        %7956 = vst [vmem:[%s152] sm:$0xff] %v7946
        %7957 = vst [vmem:[%s152 + $0x8] sm:$0xff] %v7953
        %s7958 = sand.u32 %s72, 1
        %s7959 = scalar_lea.sflag [#allocation4], %s7958
        %s7960 = sand.u32 %s72, 1
        %s7961 = smul.addr %s7960, 16
        %s7962 = scalar_lea.vmem [#allocation5], %s7961
        // Predicated region
        $region33: #{tpu_custom_call.1} parent=27 // pred_check
          %p7963 = pneg %p82
        $region34: #{tpu_custom_call.1} parent=27 // pred_check_branch
          %7965 = sbr.rel (%p7963) target = $region36
        $region35: #{tpu_custom_call.1} parent=27 // pred_region
          %s7966 = smul.u32 2, %s17
          %s7968 = ssub.s32 256, 256
          %7969 = vsyncadd %s7959, %s7968
          %s7970 = smul.addr %s7966, 128
          %s7971 = scalar_lea.hbm %s2, %s7970
          %s7972 = sshll.u32 %s7962, 4
          %s7973 = int_to_ptr.vmem [resolvable:$true] %s7972
          %7978 = dma.vmem_to_hbm [thread:$0]  %s7973, 256, %s7971, %s7959, 128, 128, 8
        $region36: #{tpu_custom_call.1} parent=27 // pred_fallthru
          _
      $region28: #{tpu_custom_call.1} parent=5 // pred_fallthru
        _
      %p7979 = scmp.le.s32.totalorder 2, %s12
      // Predicated region
      $region37: #{tpu_custom_call.1} parent=5 // pred_check
        %p7980 = pneg %p7979
      $region38: #{tpu_custom_call.1} parent=5 // pred_check_branch
        %7982 = sbr.rel (%p7980) target = $region40
      $region39: #{tpu_custom_call.1} parent=5 // pred_region
        %s7983 = ssub.s32 %s12, 2
        // Predicated region
        $region41: #{tpu_custom_call.1} parent=39 // pred_check
          %p7984 = pneg %p88
        $region42: #{tpu_custom_call.1} parent=39 // pred_check_branch
          %7986 = sbr.rel (%p7984) target = $region44
        $region43: #{tpu_custom_call.1} parent=39 // pred_region
          %s7987 = sand.u32 %s73, 1
          %s7988 = scalar_lea.sflag [#allocation4], %s7987
          %s7989 = sand.u32 %s73, 1
          %s7990 = smul.addr %s7989, 16
          %s7991 = scalar_lea.vmem [#allocation5], %s7990
          %7992 = dma.done %s7988, 256
        $region44: #{tpu_custom_call.1} parent=39 // pred_fallthru
          _
      $region40: #{tpu_custom_call.1} parent=5 // pred_fallthru
        _
    $region6: #{tpu_custom_call.1} parent=1 // loop_footer
      %s16 = sadd.s32 1, %s12
    $region7: #{tpu_custom_call.1} parent=1 // loop_footer_branch
      %11 = sbr.rel target = $region3
    $region8: #{tpu_custom_call.1} parent=1 // loop_exit
      _
    %7993 = vsyncpa [#allocation3], 1
    %s7994 = scalar_lea.sflag [#allocation3], 1
    %7995 = vsyncpa %s7994, 1
    %7996 = vsyncpa [#allocation4], 1
    %s7997 = scalar_lea.sflag [#allocation4], 1
    %7998 = vsyncpa %s7997, 1

</llo_original>
